<compile_context>
chip_gen: v5e
topology: v5e:2x2
jax: 0.10.0
libtpu: 0.0.40
codegen_flags: <defaults>
</compile_context>

<pallas_src>
import jax
import jax.numpy as jnp
import numpy as np
from jax.experimental import pallas as pl
from jax.experimental.pallas import tpu as pltpu


# ----------------------------- fused Pallas kernel ----------------------------- #

def _make_fused_kernel(H, W, CFP, CR, COUT, N_RES, PAD_IN, PAD_ACT, BUF_ACT):
    HW = H * W

    def kernel(feat_ref, rgb_ref, w0_ref, b0_ref, wrb_ref, brb_ref,
               wl_ref, bl_ref, o_ref, act_ref):
        # Pixel-column coordinate of every lane; left/right image-border masks, built once
        # per needed sublane height and reused by all 10 convs.
        xpos = jax.lax.broadcasted_iota(jnp.int32, (1, HW), 1) % W
        masks = {}
        for c in {CFP, CR, COUT}:
            masks[c] = (jnp.broadcast_to(xpos != 0, (c, HW)),        # valid src for dx = -1
                        jnp.broadcast_to(xpos != W - 1, (c, HW)))    # valid src for dx = +1

        def taps(ref, pad, c, to_bf16=False):
            """The 9 shifted (c, HW) conv-tap views of a lane-padded (c, pad+HW+pad) buffer."""
            m_l, m_r = masks[c]
            parts = []
            for dy in (-1, 0, 1):
                for dx in (-1, 0, 1):
                    s = dy * W + dx                       # static lane shift for this tap
                    win = ref[:, pad + s: pad + s + HW]   # (c, HW)
                    if dx == -1:                          # x == 0 has no left neighbour
                        win = jnp.where(m_l, win, 0)
                    elif dx == 1:                         # x == W-1 has no right neighbour
                        win = jnp.where(m_r, win, 0)
                    if to_bf16:
                        win = win.astype(jnp.bfloat16)
                    parts.append(win)
            return parts

        def conv(col, w, b):
            # one MXU matmul per conv: (Cout, K) x (K, HW), f32 accumulate, f32 bias
            return jnp.dot(w, col, preferred_element_type=jnp.float32) + b

        def stage(val_f32):
            # park the current (COUT, HW) activation in the bf16 scratch interior
            act_ref[:, PAD_ACT:PAD_ACT + HW] = val_f32.astype(jnp.bfloat16)

        # Zero only the lane halo of the activation scratch (it supplies the zero 'same'
        # padding for the top/bottom image rows of every staged conv); the interior is
        # always rewritten by stage().
        act_ref[:, :PAD_ACT] = jnp.zeros((COUT, PAD_ACT), jnp.bfloat16)
        act_ref[:, PAD_ACT + HW:] = jnp.zeros((COUT, BUF_ACT - PAD_ACT - HW), jnp.bfloat16)

        # ---- fea_conv0 + ReLU : one matmul, K = 9*CFP (features) + 9*CR (rgb) ----
        col0 = jnp.concatenate(taps(feat_ref, PAD_IN, CFP)
                               + taps(rgb_ref, PAD_IN, CR, to_bf16=True), axis=0)
        out = jnp.maximum(conv(col0, w0_ref[...], b0_ref[...]), 0.0)      # (COUT, HW) f32

        # ---- 4 residual blocks: out = out + conv2(relu(conv1(out))), f32 residual path ----
        for r in range(N_RES):
            stage(out)
            col = jnp.concatenate(taps(act_ref, PAD_ACT, COUT), axis=0)   # (9*COUT, HW) bf16
            h = jnp.maximum(conv(col, wrb_ref[2 * r], brb_ref[2 * r]), 0.0)
            stage(h)
            col = jnp.concatenate(taps(act_ref, PAD_ACT, COUT), axis=0)
            out = out + conv(col, wrb_ref[2 * r + 1], brb_ref[2 * r + 1])

        # ---- fea_conv_last + input[:, :3] skip; (3, HW) output is already flat NCHW ----
        stage(out)
        col = jnp.concatenate(taps(act_ref, PAD_ACT, COUT), axis=0)
        y = conv(col, wl_ref[...], bl_ref[...])                           # (8, HW) f32
        y = y + rgb_ref[:, PAD_IN:PAD_IN + HW]                            # exact f32 skip add
        o_ref[...] = y[:3, :]                                             # lane-dense store

    return kernel


# ------------------------------ weight packing ------------------------------ #

def _w_to_rows(w_oihw, cin_pad=None):
    """(Cout, Cin, 3, 3) -> (Cout, 9*cin_pad) bf16; columns ordered (tap, cin), tap = i*3+j."""
    co, ci = w_oihw.shape[0], w_oihw.shape[1]
    if cin_pad is None:
        cin_pad = ci
    wt = jnp.transpose(w_oihw, (0, 2, 3, 1))                   # (Cout, 3, 3, Cin)
    if cin_pad != ci:
        wt = jnp.pad(wt, ((0, 0), (0, 0), (0, 0), (0, cin_pad - ci)))
    return wt.reshape(co, 9 * cin_pad).astype(jnp.bfloat16)


# --------------------------- ViewRefNet forward (Pallas) --------------------------- #

@jax.jit
def view_ref_net_pallas(x_nchw, params):
    """Fused Pallas forward. Input NCHW (PyTorch convention), output NCHW."""
    N, CIN, H, W = x_nchw.shape
    COUT = params['conv0_b'].shape[0]
    N_RES = 4
    HW = H * W

    CF = CIN - 3                                     # feature channels (128 here)
    CFP = max(8, ((CF + 7) // 8) * 8)                # sublane-friendly pad (no-op for 128)
    CR = 8                                           # RGB channels padded 3 -> 8
    PAD_IN = ((W + 1 + 7) // 8) * 8                  # >= W+1 zero pixels on each side
    BUF_IN = HW + 2 * PAD_IN
    PAD_ACT = 128                                    # lane-aligned halo for staged activations
    BUF_ACT = HW + 2 * PAD_ACT

    # NCHW -> (N, C, H*W) is a pure reshape (no transpose).  Features go to bf16 (they feed
    # the MXU anyway); RGB stays f32 so the global skip add is exact.
    x_flat = x_nchw.reshape(N, CIN, HW)
    feat = jnp.pad(x_flat[:, 3:, :].astype(jnp.bfloat16),
                   ((0, 0), (0, CFP - CF), (PAD_IN, PAD_IN)))            # (N, CFP, BUF_IN)
    rgb = jnp.pad(x_flat[:, :3, :].astype(jnp.float32),
                  ((0, 0), (0, CR - 3), (PAD_IN, PAD_IN)))               # (N, CR,  BUF_IN)

    # Weights packed row-major to match the kernel's tap ordering.
    w0 = jnp.concatenate([_w_to_rows(params['conv0_w'][:, 3:], CFP),
                          _w_to_rows(params['conv0_w'][:, :3], CR)], axis=1)   # (COUT, K0)
    b0 = params['conv0_b'].reshape(COUT, 1).astype(jnp.float32)
    wrb = jnp.stack([_w_to_rows(params[f'rb{r}_w{j}'])
                     for r in range(N_RES) for j in (1, 2)])             # (8, COUT, 9*COUT)
    brb = jnp.stack([params[f'rb{r}_b{j}'].reshape(COUT, 1)
                     for r in range(N_RES) for j in (1, 2)]).astype(jnp.float32)
    wl = jnp.pad(_w_to_rows(params['last_w']), ((0, 8 - 3), (0, 0)))     # (8, 9*COUT)
    bl = jnp.pad(params['last_b'].reshape(3, 1),
                 ((0, 5), (0, 0))).astype(jnp.float32)                   # (8, 1)

    K0 = 9 * CFP + 9 * CR
    kernel = _make_fused_kernel(H, W, CFP, CR, COUT, N_RES, PAD_IN, PAD_ACT, BUF_ACT)

    out = pl.pallas_call(
        kernel,
        out_shape=jax.ShapeDtypeStruct((N, 3, HW), jnp.float32),
        grid=(N,),
        in_specs=[
            pl.BlockSpec((None, CFP, BUF_IN), lambda n: (n, 0, 0)),      # features (bf16)
            pl.BlockSpec((None, CR, BUF_IN), lambda n: (n, 0, 0)),       # rgb (f32, also skip)
            pl.BlockSpec((COUT, K0), lambda n: (0, 0)),                  # w0
            pl.BlockSpec((COUT, 1), lambda n: (0, 0)),                   # b0
            pl.BlockSpec((2 * N_RES, COUT, 9 * COUT), lambda n: (0, 0, 0)),  # resblock weights
            pl.BlockSpec((2 * N_RES, COUT, 1), lambda n: (0, 0, 0)),     # resblock biases
            pl.BlockSpec((8, 9 * COUT), lambda n: (0, 0)),               # w_last (padded to 8)
            pl.BlockSpec((8, 1), lambda n: (0, 0)),                      # b_last
        ],
        out_specs=pl.BlockSpec((None, 3, HW), lambda n: (n, 0, 0)),
        scratch_shapes=[
            pltpu.VMEM((COUT, BUF_ACT), jnp.bfloat16),                   # staged activations
        ],
        compiler_params=pltpu.CompilerParams(
            dimension_semantics=("parallel",)),
    )(feat, rgb, w0, b0, wrb, brb, wl, bl)

    return out.reshape(N, 3, H, W)                                       # already NCHW order


# ------------------------------ parameter init ------------------------------ #

def init_params(key, cin, cout, n_res=4, scale=0.05):
    """Deterministic synthetic init; PyTorch conv layout (Cout, Cin, 3, 3)."""
    params = {}
    keys = jax.random.split(key, 2 + 4 * n_res + 2)
    i = 0

    def conv_init(k, co, ci):
        kw, kb = jax.random.split(k)
        w = scale * jax.random.normal(kw, (co, ci, 3, 3), jnp.float32)
        bb = scale * jax.random.normal(kb, (co,), jnp.float32)
        return w, bb

    params['conv0_w'], params['conv0_b'] = conv_init(keys[i], cout, cin); i += 1
    for r in range(n_res):
        params[f'rb{r}_w1'], params[f'rb{r}_b1'] = conv_init(keys[i], cout, cout); i += 1
        params[f'rb{r}_w2'], params[f'rb{r}_b2'] = conv_init(keys[i], cout, cout); i += 1
    params['last_w'], params['last_b'] = conv_init(keys[i], 3, cout); i += 1
    return params


# ------------------------- pure-JAX reference (check) ------------------------- #

def _conv_ref(x_nchw, w, b):
    y = jax.lax.conv_general_dilated(
        x_nchw, w, window_strides=(1, 1), padding='SAME',
        dimension_numbers=('NCHW', 'OIHW', 'NCHW'))
    return y + b[None, :, None, None]


def view_ref_net_ref(x_nchw, params):
    out = jnp.maximum(_conv_ref(x_nchw, params['conv0_w'], params['conv0_b']), 0.0)
    for r in range(4):
        h = jnp.maximum(_conv_ref(out, params[f'rb{r}_w1'], params[f'rb{r}_b1']), 0.0)
        out = out + _conv_ref(h, params[f'rb{r}_w2'], params[f'rb{r}_b2'])
    out = _conv_ref(out, params['last_w'], params['last_b'])
    return out + x_nchw[:, :3]


# ---------------------------------- main ---------------------------------- #

if __name__ == "__main__":
    # opt.num_source = 1, opt.cout = 32  ->  cin = 3 + 64 + 64 = 131
    NUM_SOURCE = 1
    COUT = 32
    CIN = 3 + NUM_SOURCE * 64 + NUM_SOURCE * 64
    N, H, W = 2, 16, 16

    key = jax.random.PRNGKey(0)
    k_in, k_par = jax.random.split(key)
    x = jax.random.normal(k_in, (N, CIN, H, W), jnp.float32)   # NCHW like PyTorch
    params = init_params(k_par, CIN, COUT)

    out = jax.block_until_ready(view_ref_net_pallas(x, params))
    assert out.shape == (N, 3, H, W), out.shape

    ref = jax.block_until_ready(view_ref_net_ref(x, params))
    np.testing.assert_allclose(np.asarray(out), np.asarray(ref), rtol=5e-2, atol=1e-1)

    print("KERNEL_OK")
</pallas_src>

<mosaic_0001>
module attributes {stable_mosaic.version = 11 : i64} {
  func.func @kernel(%arg0: i32, %arg1: memref<1x128x304xbf16, #tpu.memory_space<vmem>>, %arg2: memref<1x8x304xf32, #tpu.memory_space<vmem>>, %arg3: memref<32x1224xbf16, #tpu.memory_space<vmem>>, %arg4: memref<32x1xf32, #tpu.memory_space<vmem>>, %arg5: memref<8x32x288xbf16, #tpu.memory_space<vmem>>, %arg6: memref<8x32x1xf32, #tpu.memory_space<vmem>>, %arg7: memref<8x288xbf16, #tpu.memory_space<vmem>>, %arg8: memref<8x1xf32, #tpu.memory_space<vmem>>, %arg9: memref<1x3x256xf32, #tpu.memory_space<vmem>>, %arg10: memref<32x512xbf16, #tpu.memory_space<vmem>>) attributes {dimension_semantics = [#tpu.dimension_semantics<parallel>], iteration_bounds = array<i64: 2>, scalar_prefetch = 0 : i64, scratch_operands = 1 : i64, tpu.core_type = #tpu.core_type<tc>, window_params = [{transform_indices = @transform_0, window_bounds = array<i64: 1, 128, 304>}, {transform_indices = @transform_1, window_bounds = array<i64: 1, 8, 304>}, {pipeline_mode = #tpu.pipeline_mode<synchronous>, transform_indices = @transform_2, window_bounds = array<i64: 32, 1224>}, {pipeline_mode = #tpu.pipeline_mode<synchronous>, transform_indices = @transform_3, window_bounds = array<i64: 32, 1>}, {pipeline_mode = #tpu.pipeline_mode<synchronous>, transform_indices = @transform_4, window_bounds = array<i64: 8, 32, 288>}, {pipeline_mode = #tpu.pipeline_mode<synchronous>, transform_indices = @transform_5, window_bounds = array<i64: 8, 32, 1>}, {pipeline_mode = #tpu.pipeline_mode<synchronous>, transform_indices = @transform_6, window_bounds = array<i64: 8, 288>}, {pipeline_mode = #tpu.pipeline_mode<synchronous>, transform_indices = @transform_7, window_bounds = array<i64: 8, 1>}, {transform_indices = @transform_8, window_bounds = array<i64: 1, 3, 256>}]} {
    %0 = tpu.iota {dimensions = array<i32: 1>} : vector<1x256xi32>
    %c16_i32 = arith.constant 16 : i32
    %c0_i32 = arith.constant 0 : i32
    %1 = arith.cmpi eq, %c16_i32, %c0_i32 : i32
    %c1_i32 = arith.constant 1 : i32
    %2 = arith.select %1, %c1_i32, %c16_i32 : i32
    %3 = vector.broadcast %2 : i32 to vector<1x256xi32>
    %4 = arith.remsi %0, %3 : vector<1x256xi32>
    %c0_i32_0 = arith.constant 0 : i32
    %5 = vector.broadcast %c0_i32_0 : i32 to vector<1x256xi32>
    %6 = arith.cmpi ne, %4, %5 : vector<1x256xi32>
    %c0_i32_1 = arith.constant 0 : i32
    %7 = vector.broadcast %c0_i32_1 : i32 to vector<1x256xi32>
    %8 = arith.cmpi slt, %4, %7 : vector<1x256xi32>
    %c0_i32_2 = arith.constant 0 : i32
    %9 = arith.cmpi slt, %2, %c0_i32_2 : i32
    %10 = vector.broadcast %9 : i1 to vector<1x256xi1>
    %11 = vector.broadcast %10 : vector<1x256xi1> to vector<1x256xi1>
    %12 = arith.xori %8, %11 : vector<1x256xi1>
    %13 = arith.andi %12, %6 : vector<1x256xi1>
    %14 = vector.broadcast %2 : i32 to vector<1x256xi32>
    %15 = arith.addi %4, %14 : vector<1x256xi32>
    %16 = arith.select %13, %15, %4 : vector<1x256xi1>, vector<1x256xi32>
    %c0_i32_3 = arith.constant 0 : i32
    %17 = vector.broadcast %c0_i32_3 : i32 to vector<1x256xi32>
    %18 = arith.cmpi ne, %16, %17 : vector<1x256xi32>
    %19 = vector.shape_cast %18 : vector<1x256xi1> to vector<1x256xi1>
    %20 = vector.broadcast %19 : vector<1x256xi1> to vector<128x256xi1>
    %c15_i32 = arith.constant 15 : i32
    %21 = vector.broadcast %c15_i32 : i32 to vector<1x256xi32>
    %22 = arith.cmpi ne, %16, %21 : vector<1x256xi32>
    %23 = vector.shape_cast %22 : vector<1x256xi1> to vector<1x256xi1>
    %24 = vector.broadcast %23 : vector<1x256xi1> to vector<128x256xi1>
    %c0_i32_4 = arith.constant 0 : i32
    %25 = vector.broadcast %c0_i32_4 : i32 to vector<1x256xi32>
    %26 = arith.cmpi ne, %16, %25 : vector<1x256xi32>
    %27 = vector.shape_cast %26 : vector<1x256xi1> to vector<1x256xi1>
    %28 = vector.broadcast %27 : vector<1x256xi1> to vector<8x256xi1>
    %c15_i32_5 = arith.constant 15 : i32
    %29 = vector.broadcast %c15_i32_5 : i32 to vector<1x256xi32>
    %30 = arith.cmpi ne, %16, %29 : vector<1x256xi32>
    %31 = vector.shape_cast %30 : vector<1x256xi1> to vector<1x256xi1>
    %32 = vector.broadcast %31 : vector<1x256xi1> to vector<8x256xi1>
    %c0_i32_6 = arith.constant 0 : i32
    %33 = vector.broadcast %c0_i32_6 : i32 to vector<1x256xi32>
    %34 = arith.cmpi ne, %16, %33 : vector<1x256xi32>
    %35 = vector.shape_cast %34 : vector<1x256xi1> to vector<1x256xi1>
    %36 = vector.broadcast %35 : vector<1x256xi1> to vector<32x256xi1>
    %c15_i32_7 = arith.constant 15 : i32
    %37 = vector.broadcast %c15_i32_7 : i32 to vector<1x256xi32>
    %38 = arith.cmpi ne, %16, %37 : vector<1x256xi32>
    %39 = vector.shape_cast %38 : vector<1x256xi1> to vector<1x256xi1>
    %40 = vector.broadcast %39 : vector<1x256xi1> to vector<32x256xi1>
    %cst = arith.constant 0.000000e+00 : bf16
    %41 = vector.broadcast %cst : bf16 to vector<32x128xbf16>
    %c0 = arith.constant 0 : index
    %c0_8 = arith.constant 0 : index
    %42 = vector.load %arg10[%c0, %c0_8] : memref<32x512xbf16, #tpu.memory_space<vmem>>, vector<32x128xbf16>
    tpu.vector_store %arg10[%c0, %c0_8], %41 {strides = array<i32>} : memref<32x512xbf16, #tpu.memory_space<vmem>>, vector<32x128xbf16>,
    %cst_9 = arith.constant 0.000000e+00 : bf16
    %43 = vector.broadcast %cst_9 : bf16 to vector<32x128xbf16>
    %c0_10 = arith.constant 0 : index
    %c384 = arith.constant 384 : index
    %44 = vector.load %arg10[%c0_10, %c384] : memref<32x512xbf16, #tpu.memory_space<vmem>>, vector<32x128xbf16>
    tpu.vector_store %arg10[%c0_10, %c384], %43 {strides = array<i32>} : memref<32x512xbf16, #tpu.memory_space<vmem>>, vector<32x128xbf16>,
    %c0_11 = arith.constant 0 : index
    %c0_12 = arith.constant 0 : index
    %c7 = arith.constant 7 : index
    %45 = vector.load %arg1[%c0_11, %c0_12, %c7] : memref<1x128x304xbf16, #tpu.memory_space<vmem>>, vector<1x128x256xbf16>
    %46 = vector.shape_cast %45 : vector<1x128x256xbf16> to vector<128x256xbf16>
    %c0_i32_13 = arith.constant 0 : i32
    %47 = arith.sitofp %c0_i32_13 : i32 to bf16
    %48 = vector.broadcast %47 : bf16 to vector<128x256xbf16>
    %49 = arith.select %20, %46, %48 : vector<128x256xi1>, vector<128x256xbf16>
    %c0_14 = arith.constant 0 : index
    %c0_15 = arith.constant 0 : index
    %c8 = arith.constant 8 : index
    %50 = vector.load %arg1[%c0_14, %c0_15, %c8] : memref<1x128x304xbf16, #tpu.memory_space<vmem>>, vector<1x128x256xbf16>
    %51 = vector.shape_cast %50 : vector<1x128x256xbf16> to vector<128x256xbf16>
    %c0_16 = arith.constant 0 : index
    %c0_17 = arith.constant 0 : index
    %c9 = arith.constant 9 : index
    %52 = vector.load %arg1[%c0_16, %c0_17, %c9] : memref<1x128x304xbf16, #tpu.memory_space<vmem>>, vector<1x128x256xbf16>
    %53 = vector.shape_cast %52 : vector<1x128x256xbf16> to vector<128x256xbf16>
    %c0_i32_18 = arith.constant 0 : i32
    %54 = arith.sitofp %c0_i32_18 : i32 to bf16
    %55 = vector.broadcast %54 : bf16 to vector<128x256xbf16>
    %56 = arith.select %24, %53, %55 : vector<128x256xi1>, vector<128x256xbf16>
    %c0_19 = arith.constant 0 : index
    %c0_20 = arith.constant 0 : index
    %c23 = arith.constant 23 : index
    %57 = vector.load %arg1[%c0_19, %c0_20, %c23] : memref<1x128x304xbf16, #tpu.memory_space<vmem>>, vector<1x128x256xbf16>
    %58 = vector.shape_cast %57 : vector<1x128x256xbf16> to vector<128x256xbf16>
    %c0_i32_21 = arith.constant 0 : i32
    %59 = arith.sitofp %c0_i32_21 : i32 to bf16
    %60 = vector.broadcast %59 : bf16 to vector<128x256xbf16>
    %61 = arith.select %20, %58, %60 : vector<128x256xi1>, vector<128x256xbf16>
    %c0_22 = arith.constant 0 : index
    %c0_23 = arith.constant 0 : index
    %c24 = arith.constant 24 : index
    %62 = vector.load %arg1[%c0_22, %c0_23, %c24] : memref<1x128x304xbf16, #tpu.memory_space<vmem>>, vector<1x128x256xbf16>
    %63 = vector.shape_cast %62 : vector<1x128x256xbf16> to vector<128x256xbf16>
    %c0_24 = arith.constant 0 : index
    %c0_25 = arith.constant 0 : index
    %c25 = arith.constant 25 : index
    %64 = vector.load %arg1[%c0_24, %c0_25, %c25] : memref<1x128x304xbf16, #tpu.memory_space<vmem>>, vector<1x128x256xbf16>
    %65 = vector.shape_cast %64 : vector<1x128x256xbf16> to vector<128x256xbf16>
    %c0_i32_26 = arith.constant 0 : i32
    %66 = arith.sitofp %c0_i32_26 : i32 to bf16
    %67 = vector.broadcast %66 : bf16 to vector<128x256xbf16>
    %68 = arith.select %24, %65, %67 : vector<128x256xi1>, vector<128x256xbf16>
    %c0_27 = arith.constant 0 : index
    %c0_28 = arith.constant 0 : index
    %c39 = arith.constant 39 : index
    %69 = vector.load %arg1[%c0_27, %c0_28, %c39] : memref<1x128x304xbf16, #tpu.memory_space<vmem>>, vector<1x128x256xbf16>
    %70 = vector.shape_cast %69 : vector<1x128x256xbf16> to vector<128x256xbf16>
    %c0_i32_29 = arith.constant 0 : i32
    %71 = arith.sitofp %c0_i32_29 : i32 to bf16
    %72 = vector.broadcast %71 : bf16 to vector<128x256xbf16>
    %73 = arith.select %20, %70, %72 : vector<128x256xi1>, vector<128x256xbf16>
    %c0_30 = arith.constant 0 : index
    %c0_31 = arith.constant 0 : index
    %c40 = arith.constant 40 : index
    %74 = vector.load %arg1[%c0_30, %c0_31, %c40] : memref<1x128x304xbf16, #tpu.memory_space<vmem>>, vector<1x128x256xbf16>
    %75 = vector.shape_cast %74 : vector<1x128x256xbf16> to vector<128x256xbf16>
    %c0_32 = arith.constant 0 : index
    %c0_33 = arith.constant 0 : index
    %c41 = arith.constant 41 : index
    %76 = vector.load %arg1[%c0_32, %c0_33, %c41] : memref<1x128x304xbf16, #tpu.memory_space<vmem>>, vector<1x128x256xbf16>
    %77 = vector.shape_cast %76 : vector<1x128x256xbf16> to vector<128x256xbf16>
    %c0_i32_34 = arith.constant 0 : i32
    %78 = arith.sitofp %c0_i32_34 : i32 to bf16
    %79 = vector.broadcast %78 : bf16 to vector<128x256xbf16>
    %80 = arith.select %24, %77, %79 : vector<128x256xi1>, vector<128x256xbf16>
    %c0_35 = arith.constant 0 : index
    %c0_36 = arith.constant 0 : index
    %c7_37 = arith.constant 7 : index
    %81 = vector.load %arg2[%c0_35, %c0_36, %c7_37] : memref<1x8x304xf32, #tpu.memory_space<vmem>>, vector<1x8x256xf32>
    %82 = vector.shape_cast %81 : vector<1x8x256xf32> to vector<8x256xf32>
    %c0_i32_38 = arith.constant 0 : i32
    %83 = arith.sitofp %c0_i32_38 : i32 to f32
    %84 = vector.broadcast %83 : f32 to vector<8x256xf32>
    %85 = arith.select %28, %82, %84 : vector<8x256xi1>, vector<8x256xf32>
    %86 = arith.truncf %85 : vector<8x256xf32> to vector<8x256xbf16>
    %c0_39 = arith.constant 0 : index
    %c0_40 = arith.constant 0 : index
    %c8_41 = arith.constant 8 : index
    %87 = vector.load %arg2[%c0_39, %c0_40, %c8_41] : memref<1x8x304xf32, #tpu.memory_space<vmem>>, vector<1x8x256xf32>
    %88 = vector.shape_cast %87 : vector<1x8x256xf32> to vector<8x256xf32>
    %89 = arith.truncf %88 : vector<8x256xf32> to vector<8x256xbf16>
    %c0_42 = arith.constant 0 : index
    %c0_43 = arith.constant 0 : index
    %c9_44 = arith.constant 9 : index
    %90 = vector.load %arg2[%c0_42, %c0_43, %c9_44] : memref<1x8x304xf32, #tpu.memory_space<vmem>>, vector<1x8x256xf32>
    %91 = vector.shape_cast %90 : vector<1x8x256xf32> to vector<8x256xf32>
    %c0_i32_45 = arith.constant 0 : i32
    %92 = arith.sitofp %c0_i32_45 : i32 to f32
    %93 = vector.broadcast %92 : f32 to vector<8x256xf32>
    %94 = arith.select %32, %91, %93 : vector<8x256xi1>, vector<8x256xf32>
    %95 = arith.truncf %94 : vector<8x256xf32> to vector<8x256xbf16>
    %c0_46 = arith.constant 0 : index
    %c0_47 = arith.constant 0 : index
    %c23_48 = arith.constant 23 : index
    %96 = vector.load %arg2[%c0_46, %c0_47, %c23_48] : memref<1x8x304xf32, #tpu.memory_space<vmem>>, vector<1x8x256xf32>
    %97 = vector.shape_cast %96 : vector<1x8x256xf32> to vector<8x256xf32>
    %c0_i32_49 = arith.constant 0 : i32
    %98 = arith.sitofp %c0_i32_49 : i32 to f32
    %99 = vector.broadcast %98 : f32 to vector<8x256xf32>
    %100 = arith.select %28, %97, %99 : vector<8x256xi1>, vector<8x256xf32>
    %101 = arith.truncf %100 : vector<8x256xf32> to vector<8x256xbf16>
    %c0_50 = arith.constant 0 : index
    %c0_51 = arith.constant 0 : index
    %c24_52 = arith.constant 24 : index
    %102 = vector.load %arg2[%c0_50, %c0_51, %c24_52] : memref<1x8x304xf32, #tpu.memory_space<vmem>>, vector<1x8x256xf32>
    %103 = vector.shape_cast %102 : vector<1x8x256xf32> to vector<8x256xf32>
    %104 = arith.truncf %103 : vector<8x256xf32> to vector<8x256xbf16>
    %c0_53 = arith.constant 0 : index
    %c0_54 = arith.constant 0 : index
    %c25_55 = arith.constant 25 : index
    %105 = vector.load %arg2[%c0_53, %c0_54, %c25_55] : memref<1x8x304xf32, #tpu.memory_space<vmem>>, vector<1x8x256xf32>
    %106 = vector.shape_cast %105 : vector<1x8x256xf32> to vector<8x256xf32>
    %c0_i32_56 = arith.constant 0 : i32
    %107 = arith.sitofp %c0_i32_56 : i32 to f32
    %108 = vector.broadcast %107 : f32 to vector<8x256xf32>
    %109 = arith.select %32, %106, %108 : vector<8x256xi1>, vector<8x256xf32>
    %110 = arith.truncf %109 : vector<8x256xf32> to vector<8x256xbf16>
    %c0_57 = arith.constant 0 : index
    %c0_58 = arith.constant 0 : index
    %c39_59 = arith.constant 39 : index
    %111 = vector.load %arg2[%c0_57, %c0_58, %c39_59] : memref<1x8x304xf32, #tpu.memory_space<vmem>>, vector<1x8x256xf32>
    %112 = vector.shape_cast %111 : vector<1x8x256xf32> to vector<8x256xf32>
    %c0_i32_60 = arith.constant 0 : i32
    %113 = arith.sitofp %c0_i32_60 : i32 to f32
    %114 = vector.broadcast %113 : f32 to vector<8x256xf32>
    %115 = arith.select %28, %112, %114 : vector<8x256xi1>, vector<8x256xf32>
    %116 = arith.truncf %115 : vector<8x256xf32> to vector<8x256xbf16>
    %c0_61 = arith.constant 0 : index
    %c0_62 = arith.constant 0 : index
    %c40_63 = arith.constant 40 : index
    %117 = vector.load %arg2[%c0_61, %c0_62, %c40_63] : memref<1x8x304xf32, #tpu.memory_space<vmem>>, vector<1x8x256xf32>
    %118 = vector.shape_cast %117 : vector<1x8x256xf32> to vector<8x256xf32>
    %119 = arith.truncf %118 : vector<8x256xf32> to vector<8x256xbf16>
    %c0_64 = arith.constant 0 : index
    %c0_65 = arith.constant 0 : index
    %c41_66 = arith.constant 41 : index
    %120 = vector.load %arg2[%c0_64, %c0_65, %c41_66] : memref<1x8x304xf32, #tpu.memory_space<vmem>>, vector<1x8x256xf32>
    %121 = vector.shape_cast %120 : vector<1x8x256xf32> to vector<8x256xf32>
    %c0_i32_67 = arith.constant 0 : i32
    %122 = arith.sitofp %c0_i32_67 : i32 to f32
    %123 = vector.broadcast %122 : f32 to vector<8x256xf32>
    %124 = arith.select %32, %121, %123 : vector<8x256xi1>, vector<8x256xf32>
    %125 = arith.truncf %124 : vector<8x256xf32> to vector<8x256xbf16>
    %126 = tpu.concatenate %49, %51, %56, %61, %63, %68, %73, %75, %80, %86, %89, %95, %101, %104, %110, %116 in 0 : vector<128x256xbf16>, vector<128x256xbf16>, vector<128x256xbf16>, vector<128x256xbf16>, vector<128x256xbf16>, vector<128x256xbf16>, vector<128x256xbf16>, vector<128x256xbf16>, vector<128x256xbf16>, vector<8x256xbf16>, vector<8x256xbf16>, vector<8x256xbf16>, vector<8x256xbf16>, vector<8x256xbf16>, vector<8x256xbf16>, vector<8x256xbf16> -> vector<1208x256xbf16>
    %127 = tpu.concatenate %119, %125 in 0 : vector<8x256xbf16>, vector<8x256xbf16> -> vector<16x256xbf16>
    %128 = tpu.concatenate %126, %127 in 0 : vector<1208x256xbf16>, vector<16x256xbf16> -> vector<1224x256xbf16>
    %c0_68 = arith.constant 0 : index
    %c0_69 = arith.constant 0 : index
    %129 = vector.load %arg3[%c0_68, %c0_69] : memref<32x1224xbf16, #tpu.memory_space<vmem>>, vector<32x1224xbf16>
    %c0_70 = arith.constant 0 : index
    %c0_71 = arith.constant 0 : index
    %130 = vector.load %arg4[%c0_70, %c0_71] : memref<32x1xf32, #tpu.memory_space<vmem>>, vector<32x1xf32>
    %cst_72 = arith.constant dense<0.000000e+00> : vector<32x256xf32>
    %131 = tpu.matmul %129, %128, %cst_72 {dimension_numbers = #tpu.dot_dimension_numbers<[1], [0], [0], [1], [0, 0, 1, 1], [], []>} : vector<32x1224xbf16>, vector<1224x256xbf16>, vector<32x256xf32> -> vector<32x256xf32>
    %132 = vector.broadcast %130 : vector<32x1xf32> to vector<32x256xf32>
    %133 = arith.addf %131, %132 : vector<32x256xf32>
    %cst_73 = arith.constant 0.000000e+00 : f32
    %134 = vector.broadcast %cst_73 : f32 to vector<32x256xf32>
    %135 = arith.maximumf %133, %134 : vector<32x256xf32>
    %136 = arith.truncf %135 : vector<32x256xf32> to vector<32x256xbf16>
    %c0_74 = arith.constant 0 : index
    %c128 = arith.constant 128 : index
    %137 = vector.load %arg10[%c0_74, %c128] : memref<32x512xbf16, #tpu.memory_space<vmem>>, vector<32x256xbf16>
    tpu.vector_store %arg10[%c0_74, %c128], %136 {strides = array<i32>} : memref<32x512xbf16, #tpu.memory_space<vmem>>, vector<32x256xbf16>,
    %c0_75 = arith.constant 0 : index
    %c111 = arith.constant 111 : index
    %138 = vector.load %arg10[%c0_75, %c111] : memref<32x512xbf16, #tpu.memory_space<vmem>>, vector<32x256xbf16>
    %c0_i32_76 = arith.constant 0 : i32
    %139 = arith.sitofp %c0_i32_76 : i32 to bf16
    %140 = vector.broadcast %139 : bf16 to vector<32x256xbf16>
    %141 = arith.select %36, %138, %140 : vector<32x256xi1>, vector<32x256xbf16>
    %c0_77 = arith.constant 0 : index
    %c112 = arith.constant 112 : index
    %142 = vector.load %arg10[%c0_77, %c112] : memref<32x512xbf16, #tpu.memory_space<vmem>>, vector<32x256xbf16>
    %c0_78 = arith.constant 0 : index
    %c113 = arith.constant 113 : index
    %143 = vector.load %arg10[%c0_78, %c113] : memref<32x512xbf16, #tpu.memory_space<vmem>>, vector<32x256xbf16>
    %c0_i32_79 = arith.constant 0 : i32
    %144 = arith.sitofp %c0_i32_79 : i32 to bf16
    %145 = vector.broadcast %144 : bf16 to vector<32x256xbf16>
    %146 = arith.select %40, %143, %145 : vector<32x256xi1>, vector<32x256xbf16>
    %c0_80 = arith.constant 0 : index
    %c127 = arith.constant 127 : index
    %147 = vector.load %arg10[%c0_80, %c127] : memref<32x512xbf16, #tpu.memory_space<vmem>>, vector<32x256xbf16>
    %c0_i32_81 = arith.constant 0 : i32
    %148 = arith.sitofp %c0_i32_81 : i32 to bf16
    %149 = vector.broadcast %148 : bf16 to vector<32x256xbf16>
    %150 = arith.select %36, %147, %149 : vector<32x256xi1>, vector<32x256xbf16>
    %c0_82 = arith.constant 0 : index
    %c128_83 = arith.constant 128 : index
    %151 = vector.load %arg10[%c0_82, %c128_83] : memref<32x512xbf16, #tpu.memory_space<vmem>>, vector<32x256xbf16>
    %c0_84 = arith.constant 0 : index
    %c129 = arith.constant 129 : index
    %152 = vector.load %arg10[%c0_84, %c129] : memref<32x512xbf16, #tpu.memory_space<vmem>>, vector<32x256xbf16>
    %c0_i32_85 = arith.constant 0 : i32
    %153 = arith.sitofp %c0_i32_85 : i32 to bf16
    %154 = vector.broadcast %153 : bf16 to vector<32x256xbf16>
    %155 = arith.select %40, %152, %154 : vector<32x256xi1>, vector<32x256xbf16>
    %c0_86 = arith.constant 0 : index
    %c143 = arith.constant 143 : index
    %156 = vector.load %arg10[%c0_86, %c143] : memref<32x512xbf16, #tpu.memory_space<vmem>>, vector<32x256xbf16>
    %c0_i32_87 = arith.constant 0 : i32
    %157 = arith.sitofp %c0_i32_87 : i32 to bf16
    %158 = vector.broadcast %157 : bf16 to vector<32x256xbf16>
    %159 = arith.select %36, %156, %158 : vector<32x256xi1>, vector<32x256xbf16>
    %c0_88 = arith.constant 0 : index
    %c144 = arith.constant 144 : index
    %160 = vector.load %arg10[%c0_88, %c144] : memref<32x512xbf16, #tpu.memory_space<vmem>>, vector<32x256xbf16>
    %c0_89 = arith.constant 0 : index
    %c145 = arith.constant 145 : index
    %161 = vector.load %arg10[%c0_89, %c145] : memref<32x512xbf16, #tpu.memory_space<vmem>>, vector<32x256xbf16>
    %c0_i32_90 = arith.constant 0 : i32
    %162 = arith.sitofp %c0_i32_90 : i32 to bf16
    %163 = vector.broadcast %162 : bf16 to vector<32x256xbf16>
    %164 = arith.select %40, %161, %163 : vector<32x256xi1>, vector<32x256xbf16>
    %165 = tpu.concatenate %141, %142, %146, %150, %151, %155, %159, %160, %164 in 0 : vector<32x256xbf16>, vector<32x256xbf16>, vector<32x256xbf16>, vector<32x256xbf16>, vector<32x256xbf16>, vector<32x256xbf16>, vector<32x256xbf16>, vector<32x256xbf16>, vector<32x256xbf16> -> vector<288x256xbf16>
    %c0_91 = arith.constant 0 : index
    %c0_92 = arith.constant 0 : index
    %c0_93 = arith.constant 0 : index
    %166 = vector.load %arg5[%c0_91, %c0_92, %c0_93] : memref<8x32x288xbf16, #tpu.memory_space<vmem>>, vector<1x32x288xbf16>
    %167 = vector.shape_cast %166 : vector<1x32x288xbf16> to vector<32x288xbf16>
    %c0_94 = arith.constant 0 : index
    %c0_95 = arith.constant 0 : index
    %c0_96 = arith.constant 0 : index
    %168 = vector.load %arg6[%c0_94, %c0_95, %c0_96] : memref<8x32x1xf32, #tpu.memory_space<vmem>>, vector<1x32x1xf32>
    %169 = vector.shape_cast %168 : vector<1x32x1xf32> to vector<32x1xf32>
    %cst_97 = arith.constant dense<0.000000e+00> : vector<32x256xf32>
    %170 = tpu.matmul %167, %165, %cst_97 {dimension_numbers = #tpu.dot_dimension_numbers<[1], [0], [0], [1], [0, 0, 1, 1], [], []>} : vector<32x288xbf16>, vector<288x256xbf16>, vector<32x256xf32> -> vector<32x256xf32>
    %171 = vector.broadcast %169 : vector<32x1xf32> to vector<32x256xf32>
    %172 = arith.addf %170, %171 : vector<32x256xf32>
    %cst_98 = arith.constant 0.000000e+00 : f32
    %173 = vector.broadcast %cst_98 : f32 to vector<32x256xf32>
    %174 = arith.maximumf %172, %173 : vector<32x256xf32>
    %175 = arith.truncf %174 : vector<32x256xf32> to vector<32x256xbf16>
    %c0_99 = arith.constant 0 : index
    %c128_100 = arith.constant 128 : index
    %176 = vector.load %arg10[%c0_99, %c128_100] : memref<32x512xbf16, #tpu.memory_space<vmem>>, vector<32x256xbf16>
    tpu.vector_store %arg10[%c0_99, %c128_100], %175 {strides = array<i32>} : memref<32x512xbf16, #tpu.memory_space<vmem>>, vector<32x256xbf16>,
    %c0_101 = arith.constant 0 : index
    %c111_102 = arith.constant 111 : index
    %177 = vector.load %arg10[%c0_101, %c111_102] : memref<32x512xbf16, #tpu.memory_space<vmem>>, vector<32x256xbf16>
    %c0_i32_103 = arith.constant 0 : i32
    %178 = arith.sitofp %c0_i32_103 : i32 to bf16
    %179 = vector.broadcast %178 : bf16 to vector<32x256xbf16>
    %180 = arith.select %36, %177, %179 : vector<32x256xi1>, vector<32x256xbf16>
    %c0_104 = arith.constant 0 : index
    %c112_105 = arith.constant 112 : index
    %181 = vector.load %arg10[%c0_104, %c112_105] : memref<32x512xbf16, #tpu.memory_space<vmem>>, vector<32x256xbf16>
    %c0_106 = arith.constant 0 : index
    %c113_107 = arith.constant 113 : index
    %182 = vector.load %arg10[%c0_106, %c113_107] : memref<32x512xbf16, #tpu.memory_space<vmem>>, vector<32x256xbf16>
    %c0_i32_108 = arith.constant 0 : i32
    %183 = arith.sitofp %c0_i32_108 : i32 to bf16
    %184 = vector.broadcast %183 : bf16 to vector<32x256xbf16>
    %185 = arith.select %40, %182, %184 : vector<32x256xi1>, vector<32x256xbf16>
    %c0_109 = arith.constant 0 : index
    %c127_110 = arith.constant 127 : index
    %186 = vector.load %arg10[%c0_109, %c127_110] : memref<32x512xbf16, #tpu.memory_space<vmem>>, vector<32x256xbf16>
    %c0_i32_111 = arith.constant 0 : i32
    %187 = arith.sitofp %c0_i32_111 : i32 to bf16
    %188 = vector.broadcast %187 : bf16 to vector<32x256xbf16>
    %189 = arith.select %36, %186, %188 : vector<32x256xi1>, vector<32x256xbf16>
    %c0_112 = arith.constant 0 : index
    %c128_113 = arith.constant 128 : index
    %190 = vector.load %arg10[%c0_112, %c128_113] : memref<32x512xbf16, #tpu.memory_space<vmem>>, vector<32x256xbf16>
    %c0_114 = arith.constant 0 : index
    %c129_115 = arith.constant 129 : index
    %191 = vector.load %arg10[%c0_114, %c129_115] : memref<32x512xbf16, #tpu.memory_space<vmem>>, vector<32x256xbf16>
    %c0_i32_116 = arith.constant 0 : i32
    %192 = arith.sitofp %c0_i32_116 : i32 to bf16
    %193 = vector.broadcast %192 : bf16 to vector<32x256xbf16>
    %194 = arith.select %40, %191, %193 : vector<32x256xi1>, vector<32x256xbf16>
    %c0_117 = arith.constant 0 : index
    %c143_118 = arith.constant 143 : index
    %195 = vector.load %arg10[%c0_117, %c143_118] : memref<32x512xbf16, #tpu.memory_space<vmem>>, vector<32x256xbf16>
    %c0_i32_119 = arith.constant 0 : i32
    %196 = arith.sitofp %c0_i32_119 : i32 to bf16
    %197 = vector.broadcast %196 : bf16 to vector<32x256xbf16>
    %198 = arith.select %36, %195, %197 : vector<32x256xi1>, vector<32x256xbf16>
    %c0_120 = arith.constant 0 : index
    %c144_121 = arith.constant 144 : index
    %199 = vector.load %arg10[%c0_120, %c144_121] : memref<32x512xbf16, #tpu.memory_space<vmem>>, vector<32x256xbf16>
    %c0_122 = arith.constant 0 : index
    %c145_123 = arith.constant 145 : index
    %200 = vector.load %arg10[%c0_122, %c145_123] : memref<32x512xbf16, #tpu.memory_space<vmem>>, vector<32x256xbf16>
    %c0_i32_124 = arith.constant 0 : i32
    %201 = arith.sitofp %c0_i32_124 : i32 to bf16
    %202 = vector.broadcast %201 : bf16 to vector<32x256xbf16>
    %203 = arith.select %40, %200, %202 : vector<32x256xi1>, vector<32x256xbf16>
    %204 = tpu.concatenate %180, %181, %185, %189, %190, %194, %198, %199, %203 in 0 : vector<32x256xbf16>, vector<32x256xbf16>, vector<32x256xbf16>, vector<32x256xbf16>, vector<32x256xbf16>, vector<32x256xbf16>, vector<32x256xbf16>, vector<32x256xbf16>, vector<32x256xbf16> -> vector<288x256xbf16>
    %c1 = arith.constant 1 : index
    %c0_125 = arith.constant 0 : index
    %c0_126 = arith.constant 0 : index
    %205 = vector.load %arg5[%c1, %c0_125, %c0_126] : memref<8x32x288xbf16, #tpu.memory_space<vmem>>, vector<1x32x288xbf16>
    %206 = vector.shape_cast %205 : vector<1x32x288xbf16> to vector<32x288xbf16>
    %c1_127 = arith.constant 1 : index
    %c0_128 = arith.constant 0 : index
    %c0_129 = arith.constant 0 : index
    %207 = vector.load %arg6[%c1_127, %c0_128, %c0_129] : memref<8x32x1xf32, #tpu.memory_space<vmem>>, vector<1x32x1xf32>
    %208 = vector.shape_cast %207 : vector<1x32x1xf32> to vector<32x1xf32>
    %cst_130 = arith.constant dense<0.000000e+00> : vector<32x256xf32>
    %209 = tpu.matmul %206, %204, %cst_130 {dimension_numbers = #tpu.dot_dimension_numbers<[1], [0], [0], [1], [0, 0, 1, 1], [], []>} : vector<32x288xbf16>, vector<288x256xbf16>, vector<32x256xf32> -> vector<32x256xf32>
    %210 = vector.broadcast %208 : vector<32x1xf32> to vector<32x256xf32>
    %211 = arith.addf %209, %210 : vector<32x256xf32>
    %212 = arith.addf %135, %211 : vector<32x256xf32>
    %213 = arith.truncf %212 : vector<32x256xf32> to vector<32x256xbf16>
    %c0_131 = arith.constant 0 : index
    %c128_132 = arith.constant 128 : index
    %214 = vector.load %arg10[%c0_131, %c128_132] : memref<32x512xbf16, #tpu.memory_space<vmem>>, vector<32x256xbf16>
    tpu.vector_store %arg10[%c0_131, %c128_132], %213 {strides = array<i32>} : memref<32x512xbf16, #tpu.memory_space<vmem>>, vector<32x256xbf16>,
    %c0_133 = arith.constant 0 : index
    %c111_134 = arith.constant 111 : index
    %215 = vector.load %arg10[%c0_133, %c111_134] : memref<32x512xbf16, #tpu.memory_space<vmem>>, vector<32x256xbf16>
    %c0_i32_135 = arith.constant 0 : i32
    %216 = arith.sitofp %c0_i32_135 : i32 to bf16
    %217 = vector.broadcast %216 : bf16 to vector<32x256xbf16>
    %218 = arith.select %36, %215, %217 : vector<32x256xi1>, vector<32x256xbf16>
    %c0_136 = arith.constant 0 : index
    %c112_137 = arith.constant 112 : index
    %219 = vector.load %arg10[%c0_136, %c112_137] : memref<32x512xbf16, #tpu.memory_space<vmem>>, vector<32x256xbf16>
    %c0_138 = arith.constant 0 : index
    %c113_139 = arith.constant 113 : index
    %220 = vector.load %arg10[%c0_138, %c113_139] : memref<32x512xbf16, #tpu.memory_space<vmem>>, vector<32x256xbf16>
    %c0_i32_140 = arith.constant 0 : i32
    %221 = arith.sitofp %c0_i32_140 : i32 to bf16
    %222 = vector.broadcast %221 : bf16 to vector<32x256xbf16>
    %223 = arith.select %40, %220, %222 : vector<32x256xi1>, vector<32x256xbf16>
    %c0_141 = arith.constant 0 : index
    %c127_142 = arith.constant 127 : index
    %224 = vector.load %arg10[%c0_141, %c127_142] : memref<32x512xbf16, #tpu.memory_space<vmem>>, vector<32x256xbf16>
    %c0_i32_143 = arith.constant 0 : i32
    %225 = arith.sitofp %c0_i32_143 : i32 to bf16
    %226 = vector.broadcast %225 : bf16 to vector<32x256xbf16>
    %227 = arith.select %36, %224, %226 : vector<32x256xi1>, vector<32x256xbf16>
    %c0_144 = arith.constant 0 : index
    %c128_145 = arith.constant 128 : index
    %228 = vector.load %arg10[%c0_144, %c128_145] : memref<32x512xbf16, #tpu.memory_space<vmem>>, vector<32x256xbf16>
    %c0_146 = arith.constant 0 : index
    %c129_147 = arith.constant 129 : index
    %229 = vector.load %arg10[%c0_146, %c129_147] : memref<32x512xbf16, #tpu.memory_space<vmem>>, vector<32x256xbf16>
    %c0_i32_148 = arith.constant 0 : i32
    %230 = arith.sitofp %c0_i32_148 : i32 to bf16
    %231 = vector.broadcast %230 : bf16 to vector<32x256xbf16>
    %232 = arith.select %40, %229, %231 : vector<32x256xi1>, vector<32x256xbf16>
    %c0_149 = arith.constant 0 : index
    %c143_150 = arith.constant 143 : index
    %233 = vector.load %arg10[%c0_149, %c143_150] : memref<32x512xbf16, #tpu.memory_space<vmem>>, vector<32x256xbf16>
    %c0_i32_151 = arith.constant 0 : i32
    %234 = arith.sitofp %c0_i32_151 : i32 to bf16
    %235 = vector.broadcast %234 : bf16 to vector<32x256xbf16>
    %236 = arith.select %36, %233, %235 : vector<32x256xi1>, vector<32x256xbf16>
    %c0_152 = arith.constant 0 : index
    %c144_153 = arith.constant 144 : index
    %237 = vector.load %arg10[%c0_152, %c144_153] : memref<32x512xbf16, #tpu.memory_space<vmem>>, vector<32x256xbf16>
    %c0_154 = arith.constant 0 : index
    %c145_155 = arith.constant 145 : index
    %238 = vector.load %arg10[%c0_154, %c145_155] : memref<32x512xbf16, #tpu.memory_space<vmem>>, vector<32x256xbf16>
    %c0_i32_156 = arith.constant 0 : i32
    %239 = arith.sitofp %c0_i32_156 : i32 to bf16
    %240 = vector.broadcast %239 : bf16 to vector<32x256xbf16>
    %241 = arith.select %40, %238, %240 : vector<32x256xi1>, vector<32x256xbf16>
    %242 = tpu.concatenate %218, %219, %223, %227, %228, %232, %236, %237, %241 in 0 : vector<32x256xbf16>, vector<32x256xbf16>, vector<32x256xbf16>, vector<32x256xbf16>, vector<32x256xbf16>, vector<32x256xbf16>, vector<32x256xbf16>, vector<32x256xbf16>, vector<32x256xbf16> -> vector<288x256xbf16>
    %c2 = arith.constant 2 : index
    %c0_157 = arith.constant 0 : index
    %c0_158 = arith.constant 0 : index
    %243 = vector.load %arg5[%c2, %c0_157, %c0_158] : memref<8x32x288xbf16, #tpu.memory_space<vmem>>, vector<1x32x288xbf16>
    %244 = vector.shape_cast %243 : vector<1x32x288xbf16> to vector<32x288xbf16>
    %c2_159 = arith.constant 2 : index
    %c0_160 = arith.constant 0 : index
    %c0_161 = arith.constant 0 : index
    %245 = vector.load %arg6[%c2_159, %c0_160, %c0_161] : memref<8x32x1xf32, #tpu.memory_space<vmem>>, vector<1x32x1xf32>
    %246 = vector.shape_cast %245 : vector<1x32x1xf32> to vector<32x1xf32>
    %cst_162 = arith.constant dense<0.000000e+00> : vector<32x256xf32>
    %247 = tpu.matmul %244, %242, %cst_162 {dimension_numbers = #tpu.dot_dimension_numbers<[1], [0], [0], [1], [0, 0, 1, 1], [], []>} : vector<32x288xbf16>, vector<288x256xbf16>, vector<32x256xf32> -> vector<32x256xf32>
    %248 = vector.broadcast %246 : vector<32x1xf32> to vector<32x256xf32>
    %249 = arith.addf %247, %248 : vector<32x256xf32>
    %cst_163 = arith.constant 0.000000e+00 : f32
    %250 = vector.broadcast %cst_163 : f32 to vector<32x256xf32>
    %251 = arith.maximumf %249, %250 : vector<32x256xf32>
    %252 = arith.truncf %251 : vector<32x256xf32> to vector<32x256xbf16>
    %c0_164 = arith.constant 0 : index
    %c128_165 = arith.constant 128 : index
    %253 = vector.load %arg10[%c0_164, %c128_165] : memref<32x512xbf16, #tpu.memory_space<vmem>>, vector<32x256xbf16>
    tpu.vector_store %arg10[%c0_164, %c128_165], %252 {strides = array<i32>} : memref<32x512xbf16, #tpu.memory_space<vmem>>, vector<32x256xbf16>,
    %c0_166 = arith.constant 0 : index
    %c111_167 = arith.constant 111 : index
    %254 = vector.load %arg10[%c0_166, %c111_167] : memref<32x512xbf16, #tpu.memory_space<vmem>>, vector<32x256xbf16>
    %c0_i32_168 = arith.constant 0 : i32
    %255 = arith.sitofp %c0_i32_168 : i32 to bf16
    %256 = vector.broadcast %255 : bf16 to vector<32x256xbf16>
    %257 = arith.select %36, %254, %256 : vector<32x256xi1>, vector<32x256xbf16>
    %c0_169 = arith.constant 0 : index
    %c112_170 = arith.constant 112 : index
    %258 = vector.load %arg10[%c0_169, %c112_170] : memref<32x512xbf16, #tpu.memory_space<vmem>>, vector<32x256xbf16>
    %c0_171 = arith.constant 0 : index
    %c113_172 = arith.constant 113 : index
    %259 = vector.load %arg10[%c0_171, %c113_172] : memref<32x512xbf16, #tpu.memory_space<vmem>>, vector<32x256xbf16>
    %c0_i32_173 = arith.constant 0 : i32
    %260 = arith.sitofp %c0_i32_173 : i32 to bf16
    %261 = vector.broadcast %260 : bf16 to vector<32x256xbf16>
    %262 = arith.select %40, %259, %261 : vector<32x256xi1>, vector<32x256xbf16>
    %c0_174 = arith.constant 0 : index
    %c127_175 = arith.constant 127 : index
    %263 = vector.load %arg10[%c0_174, %c127_175] : memref<32x512xbf16, #tpu.memory_space<vmem>>, vector<32x256xbf16>
    %c0_i32_176 = arith.constant 0 : i32
    %264 = arith.sitofp %c0_i32_176 : i32 to bf16
    %265 = vector.broadcast %264 : bf16 to vector<32x256xbf16>
    %266 = arith.select %36, %263, %265 : vector<32x256xi1>, vector<32x256xbf16>
    %c0_177 = arith.constant 0 : index
    %c128_178 = arith.constant 128 : index
    %267 = vector.load %arg10[%c0_177, %c128_178] : memref<32x512xbf16, #tpu.memory_space<vmem>>, vector<32x256xbf16>
    %c0_179 = arith.constant 0 : index
    %c129_180 = arith.constant 129 : index
    %268 = vector.load %arg10[%c0_179, %c129_180] : memref<32x512xbf16, #tpu.memory_space<vmem>>, vector<32x256xbf16>
    %c0_i32_181 = arith.constant 0 : i32
    %269 = arith.sitofp %c0_i32_181 : i32 to bf16
    %270 = vector.broadcast %269 : bf16 to vector<32x256xbf16>
    %271 = arith.select %40, %268, %270 : vector<32x256xi1>, vector<32x256xbf16>
    %c0_182 = arith.constant 0 : index
    %c143_183 = arith.constant 143 : index
    %272 = vector.load %arg10[%c0_182, %c143_183] : memref<32x512xbf16, #tpu.memory_space<vmem>>, vector<32x256xbf16>
    %c0_i32_184 = arith.constant 0 : i32
    %273 = arith.sitofp %c0_i32_184 : i32 to bf16
    %274 = vector.broadcast %273 : bf16 to vector<32x256xbf16>
    %275 = arith.select %36, %272, %274 : vector<32x256xi1>, vector<32x256xbf16>
    %c0_185 = arith.constant 0 : index
    %c144_186 = arith.constant 144 : index
    %276 = vector.load %arg10[%c0_185, %c144_186] : memref<32x512xbf16, #tpu.memory_space<vmem>>, vector<32x256xbf16>
    %c0_187 = arith.constant 0 : index
    %c145_188 = arith.constant 145 : index
    %277 = vector.load %arg10[%c0_187, %c145_188] : memref<32x512xbf16, #tpu.memory_space<vmem>>, vector<32x256xbf16>
    %c0_i32_189 = arith.constant 0 : i32
    %278 = arith.sitofp %c0_i32_189 : i32 to bf16
    %279 = vector.broadcast %278 : bf16 to vector<32x256xbf16>
    %280 = arith.select %40, %277, %279 : vector<32x256xi1>, vector<32x256xbf16>
    %281 = tpu.concatenate %257, %258, %262, %266, %267, %271, %275, %276, %280 in 0 : vector<32x256xbf16>, vector<32x256xbf16>, vector<32x256xbf16>, vector<32x256xbf16>, vector<32x256xbf16>, vector<32x256xbf16>, vector<32x256xbf16>, vector<32x256xbf16>, vector<32x256xbf16> -> vector<288x256xbf16>
    %c3 = arith.constant 3 : index
    %c0_190 = arith.constant 0 : index
    %c0_191 = arith.constant 0 : index
    %282 = vector.load %arg5[%c3, %c0_190, %c0_191] : memref<8x32x288xbf16, #tpu.memory_space<vmem>>, vector<1x32x288xbf16>
    %283 = vector.shape_cast %282 : vector<1x32x288xbf16> to vector<32x288xbf16>
    %c3_192 = arith.constant 3 : index
    %c0_193 = arith.constant 0 : index
    %c0_194 = arith.constant 0 : index
    %284 = vector.load %arg6[%c3_192, %c0_193, %c0_194] : memref<8x32x1xf32, #tpu.memory_space<vmem>>, vector<1x32x1xf32>
    %285 = vector.shape_cast %284 : vector<1x32x1xf32> to vector<32x1xf32>
    %cst_195 = arith.constant dense<0.000000e+00> : vector<32x256xf32>
    %286 = tpu.matmul %283, %281, %cst_195 {dimension_numbers = #tpu.dot_dimension_numbers<[1], [0], [0], [1], [0, 0, 1, 1], [], []>} : vector<32x288xbf16>, vector<288x256xbf16>, vector<32x256xf32> -> vector<32x256xf32>
    %287 = vector.broadcast %285 : vector<32x1xf32> to vector<32x256xf32>
    %288 = arith.addf %286, %287 : vector<32x256xf32>
    %289 = arith.addf %212, %288 : vector<32x256xf32>
    %290 = arith.truncf %289 : vector<32x256xf32> to vector<32x256xbf16>
    %c0_196 = arith.constant 0 : index
    %c128_197 = arith.constant 128 : index
    %291 = vector.load %arg10[%c0_196, %c128_197] : memref<32x512xbf16, #tpu.memory_space<vmem>>, vector<32x256xbf16>
    tpu.vector_store %arg10[%c0_196, %c128_197], %290 {strides = array<i32>} : memref<32x512xbf16, #tpu.memory_space<vmem>>, vector<32x256xbf16>,
    %c0_198 = arith.constant 0 : index
    %c111_199 = arith.constant 111 : index
    %292 = vector.load %arg10[%c0_198, %c111_199] : memref<32x512xbf16, #tpu.memory_space<vmem>>, vector<32x256xbf16>
    %c0_i32_200 = arith.constant 0 : i32
    %293 = arith.sitofp %c0_i32_200 : i32 to bf16
    %294 = vector.broadcast %293 : bf16 to vector<32x256xbf16>
    %295 = arith.select %36, %292, %294 : vector<32x256xi1>, vector<32x256xbf16>
    %c0_201 = arith.constant 0 : index
    %c112_202 = arith.constant 112 : index
    %296 = vector.load %arg10[%c0_201, %c112_202] : memref<32x512xbf16, #tpu.memory_space<vmem>>, vector<32x256xbf16>
    %c0_203 = arith.constant 0 : index
    %c113_204 = arith.constant 113 : index
    %297 = vector.load %arg10[%c0_203, %c113_204] : memref<32x512xbf16, #tpu.memory_space<vmem>>, vector<32x256xbf16>
    %c0_i32_205 = arith.constant 0 : i32
    %298 = arith.sitofp %c0_i32_205 : i32 to bf16
    %299 = vector.broadcast %298 : bf16 to vector<32x256xbf16>
    %300 = arith.select %40, %297, %299 : vector<32x256xi1>, vector<32x256xbf16>
    %c0_206 = arith.constant 0 : index
    %c127_207 = arith.constant 127 : index
    %301 = vector.load %arg10[%c0_206, %c127_207] : memref<32x512xbf16, #tpu.memory_space<vmem>>, vector<32x256xbf16>
    %c0_i32_208 = arith.constant 0 : i32
    %302 = arith.sitofp %c0_i32_208 : i32 to bf16
    %303 = vector.broadcast %302 : bf16 to vector<32x256xbf16>
    %304 = arith.select %36, %301, %303 : vector<32x256xi1>, vector<32x256xbf16>
    %c0_209 = arith.constant 0 : index
    %c128_210 = arith.constant 128 : index
    %305 = vector.load %arg10[%c0_209, %c128_210] : memref<32x512xbf16, #tpu.memory_space<vmem>>, vector<32x256xbf16>
    %c0_211 = arith.constant 0 : index
    %c129_212 = arith.constant 129 : index
    %306 = vector.load %arg10[%c0_211, %c129_212] : memref<32x512xbf16, #tpu.memory_space<vmem>>, vector<32x256xbf16>
    %c0_i32_213 = arith.constant 0 : i32
    %307 = arith.sitofp %c0_i32_213 : i32 to bf16
    %308 = vector.broadcast %307 : bf16 to vector<32x256xbf16>
    %309 = arith.select %40, %306, %308 : vector<32x256xi1>, vector<32x256xbf16>
    %c0_214 = arith.constant 0 : index
    %c143_215 = arith.constant 143 : index
    %310 = vector.load %arg10[%c0_214, %c143_215] : memref<32x512xbf16, #tpu.memory_space<vmem>>, vector<32x256xbf16>
    %c0_i32_216 = arith.constant 0 : i32
    %311 = arith.sitofp %c0_i32_216 : i32 to bf16
    %312 = vector.broadcast %311 : bf16 to vector<32x256xbf16>
    %313 = arith.select %36, %310, %312 : vector<32x256xi1>, vector<32x256xbf16>
    %c0_217 = arith.constant 0 : index
    %c144_218 = arith.constant 144 : index
    %314 = vector.load %arg10[%c0_217, %c144_218] : memref<32x512xbf16, #tpu.memory_space<vmem>>, vector<32x256xbf16>
    %c0_219 = arith.constant 0 : index
    %c145_220 = arith.constant 145 : index
    %315 = vector.load %arg10[%c0_219, %c145_220] : memref<32x512xbf16, #tpu.memory_space<vmem>>, vector<32x256xbf16>
    %c0_i32_221 = arith.constant 0 : i32
    %316 = arith.sitofp %c0_i32_221 : i32 to bf16
    %317 = vector.broadcast %316 : bf16 to vector<32x256xbf16>
    %318 = arith.select %40, %315, %317 : vector<32x256xi1>, vector<32x256xbf16>
    %319 = tpu.concatenate %295, %296, %300, %304, %305, %309, %313, %314, %318 in 0 : vector<32x256xbf16>, vector<32x256xbf16>, vector<32x256xbf16>, vector<32x256xbf16>, vector<32x256xbf16>, vector<32x256xbf16>, vector<32x256xbf16>, vector<32x256xbf16>, vector<32x256xbf16> -> vector<288x256xbf16>
    %c4 = arith.constant 4 : index
    %c0_222 = arith.constant 0 : index
    %c0_223 = arith.constant 0 : index
    %320 = vector.load %arg5[%c4, %c0_222, %c0_223] : memref<8x32x288xbf16, #tpu.memory_space<vmem>>, vector<1x32x288xbf16>
    %321 = vector.shape_cast %320 : vector<1x32x288xbf16> to vector<32x288xbf16>
    %c4_224 = arith.constant 4 : index
    %c0_225 = arith.constant 0 : index
    %c0_226 = arith.constant 0 : index
    %322 = vector.load %arg6[%c4_224, %c0_225, %c0_226] : memref<8x32x1xf32, #tpu.memory_space<vmem>>, vector<1x32x1xf32>
    %323 = vector.shape_cast %322 : vector<1x32x1xf32> to vector<32x1xf32>
    %cst_227 = arith.constant dense<0.000000e+00> : vector<32x256xf32>
    %324 = tpu.matmul %321, %319, %cst_227 {dimension_numbers = #tpu.dot_dimension_numbers<[1], [0], [0], [1], [0, 0, 1, 1], [], []>} : vector<32x288xbf16>, vector<288x256xbf16>, vector<32x256xf32> -> vector<32x256xf32>
    %325 = vector.broadcast %323 : vector<32x1xf32> to vector<32x256xf32>
    %326 = arith.addf %324, %325 : vector<32x256xf32>
    %cst_228 = arith.constant 0.000000e+00 : f32
    %327 = vector.broadcast %cst_228 : f32 to vector<32x256xf32>
    %328 = arith.maximumf %326, %327 : vector<32x256xf32>
    %329 = arith.truncf %328 : vector<32x256xf32> to vector<32x256xbf16>
    %c0_229 = arith.constant 0 : index
    %c128_230 = arith.constant 128 : index
    %330 = vector.load %arg10[%c0_229, %c128_230] : memref<32x512xbf16, #tpu.memory_space<vmem>>, vector<32x256xbf16>
    tpu.vector_store %arg10[%c0_229, %c128_230], %329 {strides = array<i32>} : memref<32x512xbf16, #tpu.memory_space<vmem>>, vector<32x256xbf16>,
    %c0_231 = arith.constant 0 : index
    %c111_232 = arith.constant 111 : index
    %331 = vector.load %arg10[%c0_231, %c111_232] : memref<32x512xbf16, #tpu.memory_space<vmem>>, vector<32x256xbf16>
    %c0_i32_233 = arith.constant 0 : i32
    %332 = arith.sitofp %c0_i32_233 : i32 to bf16
    %333 = vector.broadcast %332 : bf16 to vector<32x256xbf16>
    %334 = arith.select %36, %331, %333 : vector<32x256xi1>, vector<32x256xbf16>
    %c0_234 = arith.constant 0 : index
    %c112_235 = arith.constant 112 : index
    %335 = vector.load %arg10[%c0_234, %c112_235] : memref<32x512xbf16, #tpu.memory_space<vmem>>, vector<32x256xbf16>
    %c0_236 = arith.constant 0 : index
    %c113_237 = arith.constant 113 : index
    %336 = vector.load %arg10[%c0_236, %c113_237] : memref<32x512xbf16, #tpu.memory_space<vmem>>, vector<32x256xbf16>
    %c0_i32_238 = arith.constant 0 : i32
    %337 = arith.sitofp %c0_i32_238 : i32 to bf16
    %338 = vector.broadcast %337 : bf16 to vector<32x256xbf16>
    %339 = arith.select %40, %336, %338 : vector<32x256xi1>, vector<32x256xbf16>
    %c0_239 = arith.constant 0 : index
    %c127_240 = arith.constant 127 : index
    %340 = vector.load %arg10[%c0_239, %c127_240] : memref<32x512xbf16, #tpu.memory_space<vmem>>, vector<32x256xbf16>
    %c0_i32_241 = arith.constant 0 : i32
    %341 = arith.sitofp %c0_i32_241 : i32 to bf16
    %342 = vector.broadcast %341 : bf16 to vector<32x256xbf16>
    %343 = arith.select %36, %340, %342 : vector<32x256xi1>, vector<32x256xbf16>
    %c0_242 = arith.constant 0 : index
    %c128_243 = arith.constant 128 : index
    %344 = vector.load %arg10[%c0_242, %c128_243] : memref<32x512xbf16, #tpu.memory_space<vmem>>, vector<32x256xbf16>
    %c0_244 = arith.constant 0 : index
    %c129_245 = arith.constant 129 : index
    %345 = vector.load %arg10[%c0_244, %c129_245] : memref<32x512xbf16, #tpu.memory_space<vmem>>, vector<32x256xbf16>
    %c0_i32_246 = arith.constant 0 : i32
    %346 = arith.sitofp %c0_i32_246 : i32 to bf16
    %347 = vector.broadcast %346 : bf16 to vector<32x256xbf16>
    %348 = arith.select %40, %345, %347 : vector<32x256xi1>, vector<32x256xbf16>
    %c0_247 = arith.constant 0 : index
    %c143_248 = arith.constant 143 : index
    %349 = vector.load %arg10[%c0_247, %c143_248] : memref<32x512xbf16, #tpu.memory_space<vmem>>, vector<32x256xbf16>
    %c0_i32_249 = arith.constant 0 : i32
    %350 = arith.sitofp %c0_i32_249 : i32 to bf16
    %351 = vector.broadcast %350 : bf16 to vector<32x256xbf16>
    %352 = arith.select %36, %349, %351 : vector<32x256xi1>, vector<32x256xbf16>
    %c0_250 = arith.constant 0 : index
    %c144_251 = arith.constant 144 : index
    %353 = vector.load %arg10[%c0_250, %c144_251] : memref<32x512xbf16, #tpu.memory_space<vmem>>, vector<32x256xbf16>
    %c0_252 = arith.constant 0 : index
    %c145_253 = arith.constant 145 : index
    %354 = vector.load %arg10[%c0_252, %c145_253] : memref<32x512xbf16, #tpu.memory_space<vmem>>, vector<32x256xbf16>
    %c0_i32_254 = arith.constant 0 : i32
    %355 = arith.sitofp %c0_i32_254 : i32 to bf16
    %356 = vector.broadcast %355 : bf16 to vector<32x256xbf16>
    %357 = arith.select %40, %354, %356 : vector<32x256xi1>, vector<32x256xbf16>
    %358 = tpu.concatenate %334, %335, %339, %343, %344, %348, %352, %353, %357 in 0 : vector<32x256xbf16>, vector<32x256xbf16>, vector<32x256xbf16>, vector<32x256xbf16>, vector<32x256xbf16>, vector<32x256xbf16>, vector<32x256xbf16>, vector<32x256xbf16>, vector<32x256xbf16> -> vector<288x256xbf16>
    %c5 = arith.constant 5 : index
    %c0_255 = arith.constant 0 : index
    %c0_256 = arith.constant 0 : index
    %359 = vector.load %arg5[%c5, %c0_255, %c0_256] : memref<8x32x288xbf16, #tpu.memory_space<vmem>>, vector<1x32x288xbf16>
    %360 = vector.shape_cast %359 : vector<1x32x288xbf16> to vector<32x288xbf16>
    %c5_257 = arith.constant 5 : index
    %c0_258 = arith.constant 0 : index
    %c0_259 = arith.constant 0 : index
    %361 = vector.load %arg6[%c5_257, %c0_258, %c0_259] : memref<8x32x1xf32, #tpu.memory_space<vmem>>, vector<1x32x1xf32>
    %362 = vector.shape_cast %361 : vector<1x32x1xf32> to vector<32x1xf32>
    %cst_260 = arith.constant dense<0.000000e+00> : vector<32x256xf32>
    %363 = tpu.matmul %360, %358, %cst_260 {dimension_numbers = #tpu.dot_dimension_numbers<[1], [0], [0], [1], [0, 0, 1, 1], [], []>} : vector<32x288xbf16>, vector<288x256xbf16>, vector<32x256xf32> -> vector<32x256xf32>
    %364 = vector.broadcast %362 : vector<32x1xf32> to vector<32x256xf32>
    %365 = arith.addf %363, %364 : vector<32x256xf32>
    %366 = arith.addf %289, %365 : vector<32x256xf32>
    %367 = arith.truncf %366 : vector<32x256xf32> to vector<32x256xbf16>
    %c0_261 = arith.constant 0 : index
    %c128_262 = arith.constant 128 : index
    %368 = vector.load %arg10[%c0_261, %c128_262] : memref<32x512xbf16, #tpu.memory_space<vmem>>, vector<32x256xbf16>
    tpu.vector_store %arg10[%c0_261, %c128_262], %367 {strides = array<i32>} : memref<32x512xbf16, #tpu.memory_space<vmem>>, vector<32x256xbf16>,
    %c0_263 = arith.constant 0 : index
    %c111_264 = arith.constant 111 : index
    %369 = vector.load %arg10[%c0_263, %c111_264] : memref<32x512xbf16, #tpu.memory_space<vmem>>, vector<32x256xbf16>
    %c0_i32_265 = arith.constant 0 : i32
    %370 = arith.sitofp %c0_i32_265 : i32 to bf16
    %371 = vector.broadcast %370 : bf16 to vector<32x256xbf16>
    %372 = arith.select %36, %369, %371 : vector<32x256xi1>, vector<32x256xbf16>
    %c0_266 = arith.constant 0 : index
    %c112_267 = arith.constant 112 : index
    %373 = vector.load %arg10[%c0_266, %c112_267] : memref<32x512xbf16, #tpu.memory_space<vmem>>, vector<32x256xbf16>
    %c0_268 = arith.constant 0 : index
    %c113_269 = arith.constant 113 : index
    %374 = vector.load %arg10[%c0_268, %c113_269] : memref<32x512xbf16, #tpu.memory_space<vmem>>, vector<32x256xbf16>
    %c0_i32_270 = arith.constant 0 : i32
    %375 = arith.sitofp %c0_i32_270 : i32 to bf16
    %376 = vector.broadcast %375 : bf16 to vector<32x256xbf16>
    %377 = arith.select %40, %374, %376 : vector<32x256xi1>, vector<32x256xbf16>
    %c0_271 = arith.constant 0 : index
    %c127_272 = arith.constant 127 : index
    %378 = vector.load %arg10[%c0_271, %c127_272] : memref<32x512xbf16, #tpu.memory_space<vmem>>, vector<32x256xbf16>
    %c0_i32_273 = arith.constant 0 : i32
    %379 = arith.sitofp %c0_i32_273 : i32 to bf16
    %380 = vector.broadcast %379 : bf16 to vector<32x256xbf16>
    %381 = arith.select %36, %378, %380 : vector<32x256xi1>, vector<32x256xbf16>
    %c0_274 = arith.constant 0 : index
    %c128_275 = arith.constant 128 : index
    %382 = vector.load %arg10[%c0_274, %c128_275] : memref<32x512xbf16, #tpu.memory_space<vmem>>, vector<32x256xbf16>
    %c0_276 = arith.constant 0 : index
    %c129_277 = arith.constant 129 : index
    %383 = vector.load %arg10[%c0_276, %c129_277] : memref<32x512xbf16, #tpu.memory_space<vmem>>, vector<32x256xbf16>
    %c0_i32_278 = arith.constant 0 : i32
    %384 = arith.sitofp %c0_i32_278 : i32 to bf16
    %385 = vector.broadcast %384 : bf16 to vector<32x256xbf16>
    %386 = arith.select %40, %383, %385 : vector<32x256xi1>, vector<32x256xbf16>
    %c0_279 = arith.constant 0 : index
    %c143_280 = arith.constant 143 : index
    %387 = vector.load %arg10[%c0_279, %c143_280] : memref<32x512xbf16, #tpu.memory_space<vmem>>, vector<32x256xbf16>
    %c0_i32_281 = arith.constant 0 : i32
    %388 = arith.sitofp %c0_i32_281 : i32 to bf16
    %389 = vector.broadcast %388 : bf16 to vector<32x256xbf16>
    %390 = arith.select %36, %387, %389 : vector<32x256xi1>, vector<32x256xbf16>
    %c0_282 = arith.constant 0 : index
    %c144_283 = arith.constant 144 : index
    %391 = vector.load %arg10[%c0_282, %c144_283] : memref<32x512xbf16, #tpu.memory_space<vmem>>, vector<32x256xbf16>
    %c0_284 = arith.constant 0 : index
    %c145_285 = arith.constant 145 : index
    %392 = vector.load %arg10[%c0_284, %c145_285] : memref<32x512xbf16, #tpu.memory_space<vmem>>, vector<32x256xbf16>
    %c0_i32_286 = arith.constant 0 : i32
    %393 = arith.sitofp %c0_i32_286 : i32 to bf16
    %394 = vector.broadcast %393 : bf16 to vector<32x256xbf16>
    %395 = arith.select %40, %392, %394 : vector<32x256xi1>, vector<32x256xbf16>
    %396 = tpu.concatenate %372, %373, %377, %381, %382, %386, %390, %391, %395 in 0 : vector<32x256xbf16>, vector<32x256xbf16>, vector<32x256xbf16>, vector<32x256xbf16>, vector<32x256xbf16>, vector<32x256xbf16>, vector<32x256xbf16>, vector<32x256xbf16>, vector<32x256xbf16> -> vector<288x256xbf16>
    %c6 = arith.constant 6 : index
    %c0_287 = arith.constant 0 : index
    %c0_288 = arith.constant 0 : index
    %397 = vector.load %arg5[%c6, %c0_287, %c0_288] : memref<8x32x288xbf16, #tpu.memory_space<vmem>>, vector<1x32x288xbf16>
    %398 = vector.shape_cast %397 : vector<1x32x288xbf16> to vector<32x288xbf16>
    %c6_289 = arith.constant 6 : index
    %c0_290 = arith.constant 0 : index
    %c0_291 = arith.constant 0 : index
    %399 = vector.load %arg6[%c6_289, %c0_290, %c0_291] : memref<8x32x1xf32, #tpu.memory_space<vmem>>, vector<1x32x1xf32>
    %400 = vector.shape_cast %399 : vector<1x32x1xf32> to vector<32x1xf32>
    %cst_292 = arith.constant dense<0.000000e+00> : vector<32x256xf32>
    %401 = tpu.matmul %398, %396, %cst_292 {dimension_numbers = #tpu.dot_dimension_numbers<[1], [0], [0], [1], [0, 0, 1, 1], [], []>} : vector<32x288xbf16>, vector<288x256xbf16>, vector<32x256xf32> -> vector<32x256xf32>
    %402 = vector.broadcast %400 : vector<32x1xf32> to vector<32x256xf32>
    %403 = arith.addf %401, %402 : vector<32x256xf32>
    %cst_293 = arith.constant 0.000000e+00 : f32
    %404 = vector.broadcast %cst_293 : f32 to vector<32x256xf32>
    %405 = arith.maximumf %403, %404 : vector<32x256xf32>
    %406 = arith.truncf %405 : vector<32x256xf32> to vector<32x256xbf16>
    %c0_294 = arith.constant 0 : index
    %c128_295 = arith.constant 128 : index
    %407 = vector.load %arg10[%c0_294, %c128_295] : memref<32x512xbf16, #tpu.memory_space<vmem>>, vector<32x256xbf16>
    tpu.vector_store %arg10[%c0_294, %c128_295], %406 {strides = array<i32>} : memref<32x512xbf16, #tpu.memory_space<vmem>>, vector<32x256xbf16>,
    %c0_296 = arith.constant 0 : index
    %c111_297 = arith.constant 111 : index
    %408 = vector.load %arg10[%c0_296, %c111_297] : memref<32x512xbf16, #tpu.memory_space<vmem>>, vector<32x256xbf16>
    %c0_i32_298 = arith.constant 0 : i32
    %409 = arith.sitofp %c0_i32_298 : i32 to bf16
    %410 = vector.broadcast %409 : bf16 to vector<32x256xbf16>
    %411 = arith.select %36, %408, %410 : vector<32x256xi1>, vector<32x256xbf16>
    %c0_299 = arith.constant 0 : index
    %c112_300 = arith.constant 112 : index
    %412 = vector.load %arg10[%c0_299, %c112_300] : memref<32x512xbf16, #tpu.memory_space<vmem>>, vector<32x256xbf16>
    %c0_301 = arith.constant 0 : index
    %c113_302 = arith.constant 113 : index
    %413 = vector.load %arg10[%c0_301, %c113_302] : memref<32x512xbf16, #tpu.memory_space<vmem>>, vector<32x256xbf16>
    %c0_i32_303 = arith.constant 0 : i32
    %414 = arith.sitofp %c0_i32_303 : i32 to bf16
    %415 = vector.broadcast %414 : bf16 to vector<32x256xbf16>
    %416 = arith.select %40, %413, %415 : vector<32x256xi1>, vector<32x256xbf16>
    %c0_304 = arith.constant 0 : index
    %c127_305 = arith.constant 127 : index
    %417 = vector.load %arg10[%c0_304, %c127_305] : memref<32x512xbf16, #tpu.memory_space<vmem>>, vector<32x256xbf16>
    %c0_i32_306 = arith.constant 0 : i32
    %418 = arith.sitofp %c0_i32_306 : i32 to bf16
    %419 = vector.broadcast %418 : bf16 to vector<32x256xbf16>
    %420 = arith.select %36, %417, %419 : vector<32x256xi1>, vector<32x256xbf16>
    %c0_307 = arith.constant 0 : index
    %c128_308 = arith.constant 128 : index
    %421 = vector.load %arg10[%c0_307, %c128_308] : memref<32x512xbf16, #tpu.memory_space<vmem>>, vector<32x256xbf16>
    %c0_309 = arith.constant 0 : index
    %c129_310 = arith.constant 129 : index
    %422 = vector.load %arg10[%c0_309, %c129_310] : memref<32x512xbf16, #tpu.memory_space<vmem>>, vector<32x256xbf16>
    %c0_i32_311 = arith.constant 0 : i32
    %423 = arith.sitofp %c0_i32_311 : i32 to bf16
    %424 = vector.broadcast %423 : bf16 to vector<32x256xbf16>
    %425 = arith.select %40, %422, %424 : vector<32x256xi1>, vector<32x256xbf16>
    %c0_312 = arith.constant 0 : index
    %c143_313 = arith.constant 143 : index
    %426 = vector.load %arg10[%c0_312, %c143_313] : memref<32x512xbf16, #tpu.memory_space<vmem>>, vector<32x256xbf16>
    %c0_i32_314 = arith.constant 0 : i32
    %427 = arith.sitofp %c0_i32_314 : i32 to bf16
    %428 = vector.broadcast %427 : bf16 to vector<32x256xbf16>
    %429 = arith.select %36, %426, %428 : vector<32x256xi1>, vector<32x256xbf16>
    %c0_315 = arith.constant 0 : index
    %c144_316 = arith.constant 144 : index
    %430 = vector.load %arg10[%c0_315, %c144_316] : memref<32x512xbf16, #tpu.memory_space<vmem>>, vector<32x256xbf16>
    %c0_317 = arith.constant 0 : index
    %c145_318 = arith.constant 145 : index
    %431 = vector.load %arg10[%c0_317, %c145_318] : memref<32x512xbf16, #tpu.memory_space<vmem>>, vector<32x256xbf16>
    %c0_i32_319 = arith.constant 0 : i32
    %432 = arith.sitofp %c0_i32_319 : i32 to bf16
    %433 = vector.broadcast %432 : bf16 to vector<32x256xbf16>
    %434 = arith.select %40, %431, %433 : vector<32x256xi1>, vector<32x256xbf16>
    %435 = tpu.concatenate %411, %412, %416, %420, %421, %425, %429, %430, %434 in 0 : vector<32x256xbf16>, vector<32x256xbf16>, vector<32x256xbf16>, vector<32x256xbf16>, vector<32x256xbf16>, vector<32x256xbf16>, vector<32x256xbf16>, vector<32x256xbf16>, vector<32x256xbf16> -> vector<288x256xbf16>
    %c7_320 = arith.constant 7 : index
    %c0_321 = arith.constant 0 : index
    %c0_322 = arith.constant 0 : index
    %436 = vector.load %arg5[%c7_320, %c0_321, %c0_322] : memref<8x32x288xbf16, #tpu.memory_space<vmem>>, vector<1x32x288xbf16>
    %437 = vector.shape_cast %436 : vector<1x32x288xbf16> to vector<32x288xbf16>
    %c7_323 = arith.constant 7 : index
    %c0_324 = arith.constant 0 : index
    %c0_325 = arith.constant 0 : index
    %438 = vector.load %arg6[%c7_323, %c0_324, %c0_325] : memref<8x32x1xf32, #tpu.memory_space<vmem>>, vector<1x32x1xf32>
    %439 = vector.shape_cast %438 : vector<1x32x1xf32> to vector<32x1xf32>
    %cst_326 = arith.constant dense<0.000000e+00> : vector<32x256xf32>
    %440 = tpu.matmul %437, %435, %cst_326 {dimension_numbers = #tpu.dot_dimension_numbers<[1], [0], [0], [1], [0, 0, 1, 1], [], []>} : vector<32x288xbf16>, vector<288x256xbf16>, vector<32x256xf32> -> vector<32x256xf32>
    %441 = vector.broadcast %439 : vector<32x1xf32> to vector<32x256xf32>
    %442 = arith.addf %440, %441 : vector<32x256xf32>
    %443 = arith.addf %366, %442 : vector<32x256xf32>
    %444 = arith.truncf %443 : vector<32x256xf32> to vector<32x256xbf16>
    %c0_327 = arith.constant 0 : index
    %c128_328 = arith.constant 128 : index
    %445 = vector.load %arg10[%c0_327, %c128_328] : memref<32x512xbf16, #tpu.memory_space<vmem>>, vector<32x256xbf16>
    tpu.vector_store %arg10[%c0_327, %c128_328], %444 {strides = array<i32>} : memref<32x512xbf16, #tpu.memory_space<vmem>>, vector<32x256xbf16>,
    %c0_329 = arith.constant 0 : index
    %c111_330 = arith.constant 111 : index
    %446 = vector.load %arg10[%c0_329, %c111_330] : memref<32x512xbf16, #tpu.memory_space<vmem>>, vector<32x256xbf16>
    %c0_i32_331 = arith.constant 0 : i32
    %447 = arith.sitofp %c0_i32_331 : i32 to bf16
    %448 = vector.broadcast %447 : bf16 to vector<32x256xbf16>
    %449 = arith.select %36, %446, %448 : vector<32x256xi1>, vector<32x256xbf16>
    %c0_332 = arith.constant 0 : index
    %c112_333 = arith.constant 112 : index
    %450 = vector.load %arg10[%c0_332, %c112_333] : memref<32x512xbf16, #tpu.memory_space<vmem>>, vector<32x256xbf16>
    %c0_334 = arith.constant 0 : index
    %c113_335 = arith.constant 113 : index
    %451 = vector.load %arg10[%c0_334, %c113_335] : memref<32x512xbf16, #tpu.memory_space<vmem>>, vector<32x256xbf16>
    %c0_i32_336 = arith.constant 0 : i32
    %452 = arith.sitofp %c0_i32_336 : i32 to bf16
    %453 = vector.broadcast %452 : bf16 to vector<32x256xbf16>
    %454 = arith.select %40, %451, %453 : vector<32x256xi1>, vector<32x256xbf16>
    %c0_337 = arith.constant 0 : index
    %c127_338 = arith.constant 127 : index
    %455 = vector.load %arg10[%c0_337, %c127_338] : memref<32x512xbf16, #tpu.memory_space<vmem>>, vector<32x256xbf16>
    %c0_i32_339 = arith.constant 0 : i32
    %456 = arith.sitofp %c0_i32_339 : i32 to bf16
    %457 = vector.broadcast %456 : bf16 to vector<32x256xbf16>
    %458 = arith.select %36, %455, %457 : vector<32x256xi1>, vector<32x256xbf16>
    %c0_340 = arith.constant 0 : index
    %c128_341 = arith.constant 128 : index
    %459 = vector.load %arg10[%c0_340, %c128_341] : memref<32x512xbf16, #tpu.memory_space<vmem>>, vector<32x256xbf16>
    %c0_342 = arith.constant 0 : index
    %c129_343 = arith.constant 129 : index
    %460 = vector.load %arg10[%c0_342, %c129_343] : memref<32x512xbf16, #tpu.memory_space<vmem>>, vector<32x256xbf16>
    %c0_i32_344 = arith.constant 0 : i32
    %461 = arith.sitofp %c0_i32_344 : i32 to bf16
    %462 = vector.broadcast %461 : bf16 to vector<32x256xbf16>
    %463 = arith.select %40, %460, %462 : vector<32x256xi1>, vector<32x256xbf16>
    %c0_345 = arith.constant 0 : index
    %c143_346 = arith.constant 143 : index
    %464 = vector.load %arg10[%c0_345, %c143_346] : memref<32x512xbf16, #tpu.memory_space<vmem>>, vector<32x256xbf16>
    %c0_i32_347 = arith.constant 0 : i32
    %465 = arith.sitofp %c0_i32_347 : i32 to bf16
    %466 = vector.broadcast %465 : bf16 to vector<32x256xbf16>
    %467 = arith.select %36, %464, %466 : vector<32x256xi1>, vector<32x256xbf16>
    %c0_348 = arith.constant 0 : index
    %c144_349 = arith.constant 144 : index
    %468 = vector.load %arg10[%c0_348, %c144_349] : memref<32x512xbf16, #tpu.memory_space<vmem>>, vector<32x256xbf16>
    %c0_350 = arith.constant 0 : index
    %c145_351 = arith.constant 145 : index
    %469 = vector.load %arg10[%c0_350, %c145_351] : memref<32x512xbf16, #tpu.memory_space<vmem>>, vector<32x256xbf16>
    %c0_i32_352 = arith.constant 0 : i32
    %470 = arith.sitofp %c0_i32_352 : i32 to bf16
    %471 = vector.broadcast %470 : bf16 to vector<32x256xbf16>
    %472 = arith.select %40, %469, %471 : vector<32x256xi1>, vector<32x256xbf16>
    %473 = tpu.concatenate %449, %450, %454, %458, %459, %463, %467, %468, %472 in 0 : vector<32x256xbf16>, vector<32x256xbf16>, vector<32x256xbf16>, vector<32x256xbf16>, vector<32x256xbf16>, vector<32x256xbf16>, vector<32x256xbf16>, vector<32x256xbf16>, vector<32x256xbf16> -> vector<288x256xbf16>
    %c0_353 = arith.constant 0 : index
    %c0_354 = arith.constant 0 : index
    %474 = vector.load %arg7[%c0_353, %c0_354] : memref<8x288xbf16, #tpu.memory_space<vmem>>, vector<8x288xbf16>
    %c0_355 = arith.constant 0 : index
    %c0_356 = arith.constant 0 : index
    %475 = vector.load %arg8[%c0_355, %c0_356] : memref<8x1xf32, #tpu.memory_space<vmem>>, vector<8x1xf32>
    %cst_357 = arith.constant dense<0.000000e+00> : vector<8x256xf32>
    %476 = tpu.matmul %474, %473, %cst_357 {dimension_numbers = #tpu.dot_dimension_numbers<[1], [0], [0], [1], [0, 0, 1, 1], [], []>} : vector<8x288xbf16>, vector<288x256xbf16>, vector<8x256xf32> -> vector<8x256xf32>
    %477 = vector.broadcast %475 : vector<8x1xf32> to vector<8x256xf32>
    %478 = arith.addf %476, %477 : vector<8x256xf32>
    %c0_358 = arith.constant 0 : index
    %c0_359 = arith.constant 0 : index
    %c24_360 = arith.constant 24 : index
    %479 = vector.load %arg2[%c0_358, %c0_359, %c24_360] : memref<1x8x304xf32, #tpu.memory_space<vmem>>, vector<1x8x256xf32>
    %480 = vector.shape_cast %479 : vector<1x8x256xf32> to vector<8x256xf32>
    %481 = arith.addf %478, %480 : vector<8x256xf32>
    %482 = vector.extract_strided_slice %481 {offsets = [0, 0], sizes = [3, 256], strides = [1, 1]} : vector<8x256xf32> to vector<3x256xf32>
    %c0_361 = arith.constant 0 : index
    %c0_362 = arith.constant 0 : index
    %c0_363 = arith.constant 0 : index
    %483 = vector.load %arg9[%c0_361, %c0_362, %c0_363] : memref<1x3x256xf32, #tpu.memory_space<vmem>>, vector<1x3x256xf32>
    %484 = vector.shape_cast %483 : vector<1x3x256xf32> to vector<3x256xf32>
    %485 = vector.shape_cast %482 : vector<3x256xf32> to vector<1x3x256xf32>
    tpu.vector_store %arg9[%c0_361, %c0_362, %c0_363], %485 {strides = array<i32>} : memref<1x3x256xf32, #tpu.memory_space<vmem>>, vector<1x3x256xf32>,
    return
  }
  func.func @transform_0(%arg0: i32) -> (i32, i32, i32) {
    %c0_i32 = arith.constant 0 : i32
    %c0_i32_0 = arith.constant 0 : i32
    %c0_i32_1 = arith.constant 0 : i32
    return %arg0, %c0_i32, %c0_i32_0 : i32, i32, i32
  }
  func.func @transform_1(%arg0: i32) -> (i32, i32, i32) {
    %c0_i32 = arith.constant 0 : i32
    %c0_i32_0 = arith.constant 0 : i32
    %c0_i32_1 = arith.constant 0 : i32
    return %arg0, %c0_i32, %c0_i32_0 : i32, i32, i32
  }
  func.func @transform_2(%arg0: i32) -> (i32, i32) {
    %c0_i32 = arith.constant 0 : i32
    %c0_i32_0 = arith.constant 0 : i32
    %c0_i32_1 = arith.constant 0 : i32
    return %c0_i32, %c0_i32_0 : i32, i32
  }
  func.func @transform_3(%arg0: i32) -> (i32, i32) {
    %c0_i32 = arith.constant 0 : i32
    %c0_i32_0 = arith.constant 0 : i32
    %c0_i32_1 = arith.constant 0 : i32
    return %c0_i32, %c0_i32_0 : i32, i32
  }
  func.func @transform_4(%arg0: i32) -> (i32, i32, i32) {
    %c0_i32 = arith.constant 0 : i32
    %c0_i32_0 = arith.constant 0 : i32
    %c0_i32_1 = arith.constant 0 : i32
    %c0_i32_2 = arith.constant 0 : i32
    return %c0_i32, %c0_i32_0, %c0_i32_1 : i32, i32, i32
  }
  func.func @transform_5(%arg0: i32) -> (i32, i32, i32) {
    %c0_i32 = arith.constant 0 : i32
    %c0_i32_0 = arith.constant 0 : i32
    %c0_i32_1 = arith.constant 0 : i32
    %c0_i32_2 = arith.constant 0 : i32
    return %c0_i32, %c0_i32_0, %c0_i32_1 : i32, i32, i32
  }
  func.func @transform_6(%arg0: i32) -> (i32, i32) {
    %c0_i32 = arith.constant 0 : i32
    %c0_i32_0 = arith.constant 0 : i32
    %c0_i32_1 = arith.constant 0 : i32
    return %c0_i32, %c0_i32_0 : i32, i32
  }
  func.func @transform_7(%arg0: i32) -> (i32, i32) {
    %c0_i32 = arith.constant 0 : i32
    %c0_i32_0 = arith.constant 0 : i32
    %c0_i32_1 = arith.constant 0 : i32
    return %c0_i32, %c0_i32_0 : i32, i32
  }
  func.func @transform_8(%arg0: i32) -> (i32, i32, i32) {
    %c0_i32 = arith.constant 0 : i32
    %c0_i32_0 = arith.constant 0 : i32
    %c0_i32_1 = arith.constant 0 : i32
    return %arg0, %c0_i32, %c0_i32_0 : i32, i32, i32
  }
}

</mosaic_0001>

<llo_original>
// kernel: view_ref_net_pallas.1
$region0: #{view_ref_net_pallas.1}
  #allocation0 [shape = 'u32[]', space=smem, size = 0x4, offset = 0x4, fixed_abs, tag = 'smem constant byte address 0x4 - core index']
  #allocation1 [shape = 'u32[72,128]{1,0:T(1,128)}', space=vmem, size = 0x9000, scoped, tag = 'internal scratch']
  #allocation2 [shape = 'bf16[32,512]{1,0:T(8,128)(2,1)}', space=vmem, size = 0x8000, scoped, tag = 'scratch operand']
  %s0 = inlined_call_operand.vmem [shape: bf16[2,128,304], index: 0, kind: input, shape index: {}]
  %s1 = inlined_call_operand.vmem [shape: f32[2,8,304], index: 1, kind: input, shape index: {}]
  %s2 = inlined_call_operand.vmem [shape: bf16[32,1224], index: 2, kind: input, shape index: {}]
  %s3 = inlined_call_operand.vmem [shape: f32[32,1], index: 3, kind: input, shape index: {}]
  %s4 = inlined_call_operand.vmem [shape: bf16[8,32,288], index: 4, kind: input, shape index: {}]
  %s5 = inlined_call_operand.vmem [shape: f32[8,32,1], index: 5, kind: input, shape index: {}]
  %s6 = inlined_call_operand.vmem [shape: bf16[8,288], index: 6, kind: input, shape index: {}]
  %s7 = inlined_call_operand.vmem [shape: f32[8,1], index: 7, kind: input, shape index: {}]
  %s8 = inlined_call_operand.vmem [shape: f32[2,3,256], index: 8, kind: output, shape index: {}]
  %s9 = sld [smem:[#allocation0]]
  $region65: #{view_ref_net_pallas.1} parent=0
    _
  %s11 = ssub.s32 1, %s9
  %s12 = scalar_select 0, %s11, %s9
  loop: start=0, step=1, limit=4
  $region2: #{view_ref_net_pallas.1} parent=0 // loop_pre_header
    _
  $region3: #{view_ref_net_pallas.1} parent=0 // loop_header
    %s14 = sphi 0, %s18
    %p15 = scmp.ge.s32.totalorder %s14, 4
    %s24 = sphi 0, %s26
    %s27 = sphi 0, %s24
    %s28 = sphi 0, %s27
    %s44 = sphi 0, %s28
    %s50 = sphi 0, %s52
    %s53 = sphi 0, %s50
    %s54 = sphi 0, %s53
    %s70 = sphi 0, %s54
    %s74 = sphi 0, %s74
    %s76 = sphi 0, %s74
    %s77 = sphi 0, %s76
    %s91 = sphi 0, %s77
    %s95 = sphi 0, %s95
    %s97 = sphi 0, %s95
    %s98 = sphi 0, %s97
    %s112 = sphi 0, %s98
    %s116 = sphi 0, %s116
    %s118 = sphi 0, %s116
    %s119 = sphi 0, %s118
    %s133 = sphi 0, %s119
    %s137 = sphi 0, %s137
    %s139 = sphi 0, %s137
    %s140 = sphi 0, %s139
    %s154 = sphi 0, %s140
    %s158 = sphi 0, %s158
    %s160 = sphi 0, %s158
    %s161 = sphi 0, %s160
    %s175 = sphi 0, %s161
    %s179 = sphi 0, %s179
    %s181 = sphi 0, %s179
    %s182 = sphi 0, %s181
    %s196 = sphi 0, %s182
    %s202 = sphi 0, %s204
    %s205 = sphi 0, %s202
    %s206 = sphi 0, %s205
    %s222 = sphi 0, %s206
  $region4: #{view_ref_net_pallas.1} parent=0 // loop_header_branch
    %17 = sbr.rel (%p15) target = $region8
  $region5: #{view_ref_net_pallas.1} parent=0 // loop_body
    %s19 = ssub.s32 %s14, 1
    %s20 = ssub.s32 %s14, 2
    %s21 = sadd.s32 %s14, 1
    %s22 = ssub.s32 %s14, %s21
    %p23 = scmp.eq.s32.totalorder %s22, 0
    %s25 = sadd.s32 %s24, 1
    %s26 = scalar_select %p23, %s24, %s25
    %p29 = pneg %p23
    %p30 = scmp.eq.s32.totalorder %s14, 1
    %p31 = por %p29, %p30
    %p32 = scmp.ne.s32.totalorder %s24, %s27
    %p33 = scmp.eq.s32.totalorder %s14, 0
    %p34 = por %p32, %p33
    %p35 = scmp.ne.s32.totalorder %s24, %s27
    %p36 = scmp.eq.s32.totalorder %s19, 1
    %p37 = por %p35, %p36
    %p38 = scmp.ne.s32.totalorder %s27, %s28
    %p39 = scmp.eq.s32.totalorder %s19, 0
    %p40 = por %p38, %p39
    %p41 = scmp.ne.s32.totalorder %s27, %s28
    %p42 = scmp.eq.s32.totalorder %s20, 1
    %p43 = por %p41, %p42
    %p45 = scmp.ne.s32.totalorder %s28, %s44
    %p46 = scmp.eq.s32.totalorder %s20, 0
    %p47 = por %p45, %p46
    %s48 = ssub.s32 %s14, %s21
    %p49 = scmp.eq.s32.totalorder %s48, 0
    %s51 = sadd.s32 %s50, 1
    %s52 = scalar_select %p49, %s50, %s51
    %p55 = pneg %p49
    %p56 = scmp.eq.s32.totalorder %s14, 1
    %p57 = por %p55, %p56
    %p58 = scmp.ne.s32.totalorder %s50, %s53
    %p59 = scmp.eq.s32.totalorder %s14, 0
    %p60 = por %p58, %p59
    %p61 = scmp.ne.s32.totalorder %s50, %s53
    %p62 = scmp.eq.s32.totalorder %s19, 1
    %p63 = por %p61, %p62
    %p64 = scmp.ne.s32.totalorder %s53, %s54
    %p65 = scmp.eq.s32.totalorder %s19, 0
    %p66 = por %p64, %p65
    %p67 = scmp.ne.s32.totalorder %s53, %s54
    %p68 = scmp.eq.s32.totalorder %s20, 1
    %p69 = por %p67, %p68
    %p71 = scmp.ne.s32.totalorder %s54, %s70
    %p72 = scmp.eq.s32.totalorder %s20, 0
    %p73 = por %p71, %p72
    %s75 = sadd.s32 %s74, 1
    %p78 = scmp.eq.s32.totalorder %s14, 1
    %p79 = scmp.ne.s32.totalorder %s74, %s76
    %p80 = scmp.eq.s32.totalorder %s14, 0
    %p81 = por %p79, %p80
    %p82 = scmp.ne.s32.totalorder %s74, %s76
    %p83 = scmp.eq.s32.totalorder %s19, 1
    %p84 = por %p82, %p83
    %p85 = scmp.ne.s32.totalorder %s76, %s77
    %p86 = scmp.eq.s32.totalorder %s19, 0
    %p87 = por %p85, %p86
    %p88 = scmp.ne.s32.totalorder %s76, %s77
    %p89 = scmp.eq.s32.totalorder %s20, 1
    %p90 = por %p88, %p89
    %p92 = scmp.ne.s32.totalorder %s77, %s91
    %p93 = scmp.eq.s32.totalorder %s20, 0
    %p94 = por %p92, %p93
    %s96 = sadd.s32 %s95, 1
    %p99 = scmp.eq.s32.totalorder %s14, 1
    %p100 = scmp.ne.s32.totalorder %s95, %s97
    %p101 = scmp.eq.s32.totalorder %s14, 0
    %p102 = por %p100, %p101
    %p103 = scmp.ne.s32.totalorder %s95, %s97
    %p104 = scmp.eq.s32.totalorder %s19, 1
    %p105 = por %p103, %p104
    %p106 = scmp.ne.s32.totalorder %s97, %s98
    %p107 = scmp.eq.s32.totalorder %s19, 0
    %p108 = por %p106, %p107
    %p109 = scmp.ne.s32.totalorder %s97, %s98
    %p110 = scmp.eq.s32.totalorder %s20, 1
    %p111 = por %p109, %p110
    %p113 = scmp.ne.s32.totalorder %s98, %s112
    %p114 = scmp.eq.s32.totalorder %s20, 0
    %p115 = por %p113, %p114
    %s117 = sadd.s32 %s116, 1
    %p120 = scmp.eq.s32.totalorder %s14, 1
    %p121 = scmp.ne.s32.totalorder %s116, %s118
    %p122 = scmp.eq.s32.totalorder %s14, 0
    %p123 = por %p121, %p122
    %p124 = scmp.ne.s32.totalorder %s116, %s118
    %p125 = scmp.eq.s32.totalorder %s19, 1
    %p126 = por %p124, %p125
    %p127 = scmp.ne.s32.totalorder %s118, %s119
    %p128 = scmp.eq.s32.totalorder %s19, 0
    %p129 = por %p127, %p128
    %p130 = scmp.ne.s32.totalorder %s118, %s119
    %p131 = scmp.eq.s32.totalorder %s20, 1
    %p132 = por %p130, %p131
    %p134 = scmp.ne.s32.totalorder %s119, %s133
    %p135 = scmp.eq.s32.totalorder %s20, 0
    %p136 = por %p134, %p135
    %s138 = sadd.s32 %s137, 1
    %p141 = scmp.eq.s32.totalorder %s14, 1
    %p142 = scmp.ne.s32.totalorder %s137, %s139
    %p143 = scmp.eq.s32.totalorder %s14, 0
    %p144 = por %p142, %p143
    %p145 = scmp.ne.s32.totalorder %s137, %s139
    %p146 = scmp.eq.s32.totalorder %s19, 1
    %p147 = por %p145, %p146
    %p148 = scmp.ne.s32.totalorder %s139, %s140
    %p149 = scmp.eq.s32.totalorder %s19, 0
    %p150 = por %p148, %p149
    %p151 = scmp.ne.s32.totalorder %s139, %s140
    %p152 = scmp.eq.s32.totalorder %s20, 1
    %p153 = por %p151, %p152
    %p155 = scmp.ne.s32.totalorder %s140, %s154
    %p156 = scmp.eq.s32.totalorder %s20, 0
    %p157 = por %p155, %p156
    %s159 = sadd.s32 %s158, 1
    %p162 = scmp.eq.s32.totalorder %s14, 1
    %p163 = scmp.ne.s32.totalorder %s158, %s160
    %p164 = scmp.eq.s32.totalorder %s14, 0
    %p165 = por %p163, %p164
    %p166 = scmp.ne.s32.totalorder %s158, %s160
    %p167 = scmp.eq.s32.totalorder %s19, 1
    %p168 = por %p166, %p167
    %p169 = scmp.ne.s32.totalorder %s160, %s161
    %p170 = scmp.eq.s32.totalorder %s19, 0
    %p171 = por %p169, %p170
    %p172 = scmp.ne.s32.totalorder %s160, %s161
    %p173 = scmp.eq.s32.totalorder %s20, 1
    %p174 = por %p172, %p173
    %p176 = scmp.ne.s32.totalorder %s161, %s175
    %p177 = scmp.eq.s32.totalorder %s20, 0
    %p178 = por %p176, %p177
    %s180 = sadd.s32 %s179, 1
    %p183 = scmp.eq.s32.totalorder %s14, 1
    %p184 = scmp.ne.s32.totalorder %s179, %s181
    %p185 = scmp.eq.s32.totalorder %s14, 0
    %p186 = por %p184, %p185
    %p187 = scmp.ne.s32.totalorder %s179, %s181
    %p188 = scmp.eq.s32.totalorder %s19, 1
    %p189 = por %p187, %p188
    %p190 = scmp.ne.s32.totalorder %s181, %s182
    %p191 = scmp.eq.s32.totalorder %s19, 0
    %p192 = por %p190, %p191
    %p193 = scmp.ne.s32.totalorder %s181, %s182
    %p194 = scmp.eq.s32.totalorder %s20, 1
    %p195 = por %p193, %p194
    %p197 = scmp.ne.s32.totalorder %s182, %s196
    %p198 = scmp.eq.s32.totalorder %s20, 0
    %p199 = por %p197, %p198
    %s200 = ssub.s32 %s14, %s21
    %p201 = scmp.eq.s32.totalorder %s200, 0
    %s203 = sadd.s32 %s202, 1
    %s204 = scalar_select %p201, %s202, %s203
    %p207 = pneg %p201
    %p208 = scmp.eq.s32.totalorder %s14, 1
    %p209 = por %p207, %p208
    %p210 = scmp.ne.s32.totalorder %s202, %s205
    %p211 = scmp.eq.s32.totalorder %s14, 0
    %p212 = por %p210, %p211
    %p213 = scmp.ne.s32.totalorder %s202, %s205
    %p214 = scmp.eq.s32.totalorder %s19, 1
    %p215 = por %p213, %p214
    %p216 = scmp.ne.s32.totalorder %s205, %s206
    %p217 = scmp.eq.s32.totalorder %s19, 0
    %p218 = por %p216, %p217
    %p219 = scmp.ne.s32.totalorder %s205, %s206
    %p220 = scmp.eq.s32.totalorder %s20, 1
    %p221 = por %p219, %p220
    %p223 = scmp.ne.s32.totalorder %s206, %s222
    %p224 = scmp.eq.s32.totalorder %s20, 0
    %p225 = por %p223, %p224
    %p226 = scmp.le.s32.totalorder 1, %s14
    %p227 = scmp.lt.s32.totalorder %s14, 3
    %p228 = pnand %p226, %p227
    %p229 = pneg %p228
    // Predicated region
    $region9: #{view_ref_net_pallas.1} parent=5 // pred_check
      _
    $region10: #{view_ref_net_pallas.1} parent=5 // pred_check_branch
      %231 = sbr.rel (%p228) target = $region12
    $region11: #{view_ref_net_pallas.1} parent=5 // pred_region
      %s232 = ssub.s32 %s14, 1
      // Predicated region
      $region13: #{view_ref_net_pallas.1} parent=11 // pred_check
        %p233 = pneg %p87
      $region14: #{view_ref_net_pallas.1} parent=11 // pred_check_branch
        %235 = sbr.rel (%p233) target = $region16
      $region15: #{view_ref_net_pallas.1} parent=11 // pred_region
        _
      $region16: #{view_ref_net_pallas.1} parent=11 // pred_fallthru
        _
      // Predicated region
      $region17: #{view_ref_net_pallas.1} parent=11 // pred_check
        %p236 = pneg %p108
      $region18: #{view_ref_net_pallas.1} parent=11 // pred_check_branch
        %238 = sbr.rel (%p236) target = $region20
      $region19: #{view_ref_net_pallas.1} parent=11 // pred_region
        _
      $region20: #{view_ref_net_pallas.1} parent=11 // pred_fallthru
        _
      // Predicated region
      $region21: #{view_ref_net_pallas.1} parent=11 // pred_check
        %p239 = pneg %p129
      $region22: #{view_ref_net_pallas.1} parent=11 // pred_check_branch
        %241 = sbr.rel (%p239) target = $region24
      $region23: #{view_ref_net_pallas.1} parent=11 // pred_region
        _
      $region24: #{view_ref_net_pallas.1} parent=11 // pred_fallthru
        _
      // Predicated region
      $region25: #{view_ref_net_pallas.1} parent=11 // pred_check
        %p242 = pneg %p150
      $region26: #{view_ref_net_pallas.1} parent=11 // pred_check_branch
        %244 = sbr.rel (%p242) target = $region28
      $region27: #{view_ref_net_pallas.1} parent=11 // pred_region
        _
      $region28: #{view_ref_net_pallas.1} parent=11 // pred_fallthru
        _
      // Predicated region
      $region29: #{view_ref_net_pallas.1} parent=11 // pred_check
        %p245 = pneg %p171
      $region30: #{view_ref_net_pallas.1} parent=11 // pred_check_branch
        %247 = sbr.rel (%p245) target = $region32
      $region31: #{view_ref_net_pallas.1} parent=11 // pred_region
        _
      $region32: #{view_ref_net_pallas.1} parent=11 // pred_fallthru
        _
      // Predicated region
      $region33: #{view_ref_net_pallas.1} parent=11 // pred_check
        %p248 = pneg %p192
      $region34: #{view_ref_net_pallas.1} parent=11 // pred_check_branch
        %250 = sbr.rel (%p248) target = $region36
      $region35: #{view_ref_net_pallas.1} parent=11 // pred_region
        _
      $region36: #{view_ref_net_pallas.1} parent=11 // pred_fallthru
        _
    $region12: #{view_ref_net_pallas.1} parent=5 // pred_fallthru
      _
    %p251 = scmp.lt.s32.totalorder %s14, 2
    // Predicated region
    $region37: #{view_ref_net_pallas.1} parent=5 // pred_check
      %p252 = pneg %p251
    $region38: #{view_ref_net_pallas.1} parent=5 // pred_check_branch
      %254 = sbr.rel (%p252) target = $region40
    $region39: #{view_ref_net_pallas.1} parent=5 // pred_region
      // Predicated region
      $region41: #{view_ref_net_pallas.1} parent=39 // pred_check
        %p255 = pneg %p34
      $region42: #{view_ref_net_pallas.1} parent=39 // pred_check_branch
        %257 = sbr.rel (%p255) target = $region44
      $region43: #{view_ref_net_pallas.1} parent=39 // pred_region
        %p258 = scmp.lt.s32.totalorder %s14, 1
        %s259 = scalar_select %p258, %s14, 1
        %s260 = smul.addr %s259, 48
        %s261 = smul.addr %s260, 4
        %s262 = scalar_lea.vmem %s0, %s261
      $region44: #{view_ref_net_pallas.1} parent=39 // pred_fallthru
        _
      // Predicated region
      $region45: #{view_ref_net_pallas.1} parent=39 // pred_check
        %p263 = pneg %p60
      $region46: #{view_ref_net_pallas.1} parent=39 // pred_check_branch
        %265 = sbr.rel (%p263) target = $region48
      $region47: #{view_ref_net_pallas.1} parent=39 // pred_region
        %p266 = scmp.lt.s32.totalorder %s14, 1
        %s267 = scalar_select %p266, %s14, 1
        %s268 = smul.addr %s267, 3
        %s269 = smul.addr %s268, 8
        %s270 = scalar_lea.vmem %s1, %s269
      $region48: #{view_ref_net_pallas.1} parent=39 // pred_fallthru
        _
    $region40: #{view_ref_net_pallas.1} parent=5 // pred_fallthru
      _
    %p271 = scmp.le.s32.totalorder 1, %s14
    %p272 = scmp.lt.s32.totalorder %s14, 3
    %p273 = pnand %p271, %p272
    %p274 = pneg %p273
    // Predicated region
    $region49: #{view_ref_net_pallas.1} parent=5 // pred_check
      _
    $region50: #{view_ref_net_pallas.1} parent=5 // pred_check_branch
      %276 = sbr.rel (%p273) target = $region52
    $region51: #{view_ref_net_pallas.1} parent=5 // pred_region
      %s277 = ssub.s32 %s14, 1
      %p278 = scmp.lt.s32.totalorder %s19, 1
      %s279 = scalar_select %p278, %s19, 1
      %s280 = smul.addr %s279, 48
      %s281 = smul.addr %s280, 4
      %s282 = scalar_lea.vmem %s0, %s281
      %p283 = pneg %p40
      %p284 = pneg %p37
      %p285 = scmp.lt.s32.totalorder %s19, 1
      %s286 = scalar_select %p285, %s19, 1
      %s287 = smul.addr %s286, 3
      %s288 = smul.addr %s287, 8
      %s289 = scalar_lea.vmem %s1, %s288
      %p290 = pneg %p66
      %p291 = pneg %p63
      %p292 = pneg %p87
      %p293 = pneg %p84
      %p294 = pneg %p108
      %p295 = pneg %p105
      %p296 = pneg %p129
      %p297 = pneg %p126
      %p298 = pneg %p150
      %p299 = pneg %p147
      %p300 = pneg %p171
      %p301 = pneg %p168
      %p302 = pneg %p192
      %p303 = pneg %p189
      %p304 = pneg %p218
      %p305 = pneg %p215
      %p306 = scmp.lt.s32.totalorder %s19, 1
      %s307 = scalar_select %p306, %s19, 1
      %s308 = smul.addr %s307, 2
      %s309 = smul.addr %s308, 4
      %s310 = scalar_lea.vmem %s8, %s309
      %p311 = scmp.lt.s32.totalorder %s19, 1
      %s312 = scalar_select %p311, %s19, 1
      %s313 = smul.addr %s312, 48
      %s314 = smul.addr %s313, 4
      %s315 = scalar_lea.vmem %s0, %s314
      %p316 = scmp.lt.s32.totalorder %s19, 1
      %s317 = scalar_select %p316, %s19, 1
      %s318 = smul.addr %s317, 3
      %s319 = smul.addr %s318, 8
      %s320 = scalar_lea.vmem %s1, %s319
      %p321 = scmp.lt.s32.totalorder %s19, 1
      %s322 = scalar_select %p321, %s19, 1
      %s323 = smul.addr %s322, 2
      %s324 = smul.addr %s323, 4
      %s325 = scalar_lea.vmem %s8, %s324
      %v329 = vlaneseq
      %v330 = vand.u32 %v329, 127
      %v331 = vadd.s32 %v330, 128
      %vm332 = vcmp.lt.s32.totalorder %v330, 0
      %v333 = vsub.s32 0, %v330
      %v334 = vsel %vm332, %v333, %v330
      %v335 = vshrl.u32 %v334, 4
      %v336 = vand.u32 %v334, 15
      %v337 = vsub.s32 0, %v336
      %v338 = vsel %vm332, %v337, %v336
      %vm339 = vcmp.lt.s32.totalorder %v331, 0
      %v340 = vsub.s32 0, %v331
      %v341 = vsel %vm339, %v340, %v331
      %v342 = vshrl.u32 %v341, 4
      %v343 = vand.u32 %v341, 15
      %v344 = vsub.s32 0, %v343
      %v345 = vsel %vm339, %v344, %v343
      %vm346 = vcmp.ne.s32.totalorder %v338, 0
      %vm347 = vcmp.ne.s32.totalorder %v345, 0
      %vm348 = vcmp.lt.s32.totalorder %v338, 0
      %vm349 = vcmp.lt.s32.totalorder %v345, 0
      %vm350 = vmand %vm348, %vm346
      %vm351 = vmand %vm349, %vm347
      %v352 = vadd.s32 %v338, 16
      %v353 = vadd.s32 %v345, 16
      %v354 = vsel %vm350, %v352, %v338
      %v355 = vsel %vm351, %v353, %v345
      %vm356 = vcmp.ne.s32.totalorder %v354, 0
      %vm357 = vcmp.ne.s32.totalorder %v355, 0
      %v358 = vsel %vm356, 1, 0
      %v359 = vsel %vm357, 1, 0
      %vm360 = vcmp.eq.s32.totalorder %v358, 1
      %vm361 = vcmp.eq.s32.totalorder %v359, 1
      %vm362 = vcmp.ne.s32.totalorder %v354, 15
      %vm363 = vcmp.ne.s32.totalorder %v355, 15
      %v364 = vsel %vm362, 1, 0
      %v365 = vsel %vm363, 1, 0
      %vm366 = vcmp.eq.s32.totalorder %v364, 1
      %vm367 = vcmp.eq.s32.totalorder %v365, 1
      %368 = vst [vmem:[#allocation2] sm:$0xf] 0
      %369 = vst [vmem:[#allocation2 + $0x10] sm:$0xf] 0
      %370 = vst [vmem:[#allocation2 + $0x20] sm:$0xf] 0
      %371 = vst [vmem:[#allocation2 + $0x30] sm:$0xf] 0
      %372 = vst [vmem:[#allocation2 + $0xc] sm:$0xf] 0
      %373 = vst [vmem:[#allocation2 + $0x1c] sm:$0xf] 0
      %374 = vst [vmem:[#allocation2 + $0x2c] sm:$0xf] 0
      %375 = vst [vmem:[#allocation2 + $0x3c] sm:$0xf] 0
      %v376 = vld [vmem:[%s315] sm:$0xff]
      %v377 = vld [vmem:[%s315 + $0x8] sm:$0xf]
      %v378 = vld [vmem:[%s315 + $0xc] sm:$0xff]
      %v379 = vld [vmem:[%s315 + $0x14] sm:$0xf]
      %v380 = vld [vmem:[%s315 + $0x18] sm:$0xff]
      %v381 = vld [vmem:[%s315 + $0x20] sm:$0xf]
      %v382 = vld [vmem:[%s315 + $0x24] sm:$0xff]
      %v383 = vld [vmem:[%s315 + $0x2c] sm:$0xf]
      %v384 = vld [vmem:[%s315 + $0x30] sm:$0xff]
      %v385 = vld [vmem:[%s315 + $0x38] sm:$0xf]
      %v386 = vld [vmem:[%s315 + $0x3c] sm:$0xff]
      %v387 = vld [vmem:[%s315 + $0x44] sm:$0xf]
      %v388 = vld [vmem:[%s315 + $0x48] sm:$0xff]
      %v389 = vld [vmem:[%s315 + $0x50] sm:$0xf]
      %v390 = vld [vmem:[%s315 + $0x54] sm:$0xff]
      %v391 = vld [vmem:[%s315 + $0x5c] sm:$0xf]
      %v392 = vld [vmem:[%s315 + $0x60] sm:$0xff]
      %v393 = vld [vmem:[%s315 + $0x68] sm:$0xf]
      %v394 = vld [vmem:[%s315 + $0x6c] sm:$0xff]
      %v395 = vld [vmem:[%s315 + $0x74] sm:$0xf]
      %v396 = vld [vmem:[%s315 + $0x78] sm:$0xff]
      %v397 = vld [vmem:[%s315 + $0x80] sm:$0xf]
      %v398 = vld [vmem:[%s315 + $0x84] sm:$0xff]
      %v399 = vld [vmem:[%s315 + $0x8c] sm:$0xf]
      %v400 = vld [vmem:[%s315 + $0x90] sm:$0xff]
      %v401 = vld [vmem:[%s315 + $0x98] sm:$0xf]
      %v402 = vld [vmem:[%s315 + $0x9c] sm:$0xff]
      %v403 = vld [vmem:[%s315 + $0xa4] sm:$0xf]
      %v404 = vld [vmem:[%s315 + $0xa8] sm:$0xff]
      %v405 = vld [vmem:[%s315 + $0xb0] sm:$0xf]
      %v406 = vld [vmem:[%s315 + $0xb4] sm:$0xff]
      %v407 = vld [vmem:[%s315 + $0xbc] sm:$0xf]
      %vm408 = vmpackc.low %vm361, %vm360
      %v409 = vsel %vm408, 65537, 0
      %410 = vrot.lane.b32.xlu0 %v409, 7
      %v411 = vpop.permute.xlu0 %410
      %v412 = vrot.slane %v411, 4
      %vm413 = vcmask 56320
      %v414 = vsel %vm413, %v412, %v411
      %v415 = vunpack.c.l.b16 %v414
      %v416 = vunpack.c.h.b16 %v414
      %v417 = vunpack.c.l.b16 0
      %v418 = vunpack.c.h.b16 0
      %vm419 = vcmp.ne.s32.totalorder %v415, %v417
      %vm420 = vcmp.ne.s32.totalorder %v416, %v418
      %vm421 = vmpackc.low %vm420, %vm419
      %v422 = vunpack.c.l.b16 %v412
      %v423 = vunpack.c.h.b16 %v412
      %v424 = vunpack.c.l.b16 0
      %v425 = vunpack.c.h.b16 0
      %vm426 = vcmp.ne.s32.totalorder %v422, %v424
      %vm427 = vcmp.ne.s32.totalorder %v423, %v425
      %vm428 = vmpackc.low %vm427, %vm426
      %v429 = vsel %vm421, %v376, 0
      %v430 = vsel %vm428, %v377, 0
      %v431 = vsel %vm421, %v378, 0
      %v432 = vsel %vm428, %v379, 0
      %v433 = vsel %vm421, %v380, 0
      %v434 = vsel %vm428, %v381, 0
      %v435 = vsel %vm421, %v382, 0
      %v436 = vsel %vm428, %v383, 0
      %v437 = vsel %vm421, %v384, 0
      %v438 = vsel %vm428, %v385, 0
      %v439 = vsel %vm421, %v386, 0
      %v440 = vsel %vm428, %v387, 0
      %v441 = vsel %vm421, %v388, 0
      %v442 = vsel %vm428, %v389, 0
      %v443 = vsel %vm421, %v390, 0
      %v444 = vsel %vm428, %v391, 0
      %v445 = vsel %vm421, %v392, 0
      %v446 = vsel %vm428, %v393, 0
      %v447 = vsel %vm421, %v394, 0
      %v448 = vsel %vm428, %v395, 0
      %v449 = vsel %vm421, %v396, 0
      %v450 = vsel %vm428, %v397, 0
      %v451 = vsel %vm421, %v398, 0
      %v452 = vsel %vm428, %v399, 0
      %v453 = vsel %vm421, %v400, 0
      %v454 = vsel %vm428, %v401, 0
      %v455 = vsel %vm421, %v402, 0
      %v456 = vsel %vm428, %v403, 0
      %v457 = vsel %vm421, %v404, 0
      %v458 = vsel %vm428, %v405, 0
      %v459 = vsel %vm421, %v406, 0
      %v460 = vsel %vm428, %v407, 0
      %vm461 = vmpackc.low %vm367, %vm366
      %v462 = vsel %vm461, 65537, 0
      %463 = vrot.lane.b32.xlu0 %v462, 9
      %v464 = vpop.permute.xlu0 %463
      %v465 = vrot.slane %v464, 4
      %vm466 = vcmask 72704
      %v467 = vsel %vm466, %v465, %v464
      %v468 = vunpack.c.l.b16 %v467
      %v469 = vunpack.c.h.b16 %v467
      %v470 = vunpack.c.l.b16 0
      %v471 = vunpack.c.h.b16 0
      %vm472 = vcmp.ne.s32.totalorder %v468, %v470
      %vm473 = vcmp.ne.s32.totalorder %v469, %v471
      %vm474 = vmpackc.low %vm473, %vm472
      %v475 = vunpack.c.l.b16 %v465
      %v476 = vunpack.c.h.b16 %v465
      %v477 = vunpack.c.l.b16 0
      %v478 = vunpack.c.h.b16 0
      %vm479 = vcmp.ne.s32.totalorder %v475, %v477
      %vm480 = vcmp.ne.s32.totalorder %v476, %v478
      %vm481 = vmpackc.low %vm480, %vm479
      %v482 = vsel %vm474, %v376, 0
      %v483 = vsel %vm481, %v377, 0
      %v484 = vsel %vm474, %v378, 0
      %v485 = vsel %vm481, %v379, 0
      %v486 = vsel %vm474, %v380, 0
      %v487 = vsel %vm481, %v381, 0
      %v488 = vsel %vm474, %v382, 0
      %v489 = vsel %vm481, %v383, 0
      %v490 = vsel %vm474, %v384, 0
      %v491 = vsel %vm481, %v385, 0
      %v492 = vsel %vm474, %v386, 0
      %v493 = vsel %vm481, %v387, 0
      %v494 = vsel %vm474, %v388, 0
      %v495 = vsel %vm481, %v389, 0
      %v496 = vsel %vm474, %v390, 0
      %v497 = vsel %vm481, %v391, 0
      %v498 = vsel %vm474, %v392, 0
      %v499 = vsel %vm481, %v393, 0
      %v500 = vsel %vm474, %v394, 0
      %v501 = vsel %vm481, %v395, 0
      %v502 = vsel %vm474, %v396, 0
      %v503 = vsel %vm481, %v397, 0
      %v504 = vsel %vm474, %v398, 0
      %v505 = vsel %vm481, %v399, 0
      %v506 = vsel %vm474, %v400, 0
      %v507 = vsel %vm481, %v401, 0
      %v508 = vsel %vm474, %v402, 0
      %v509 = vsel %vm481, %v403, 0
      %v510 = vsel %vm474, %v404, 0
      %v511 = vsel %vm481, %v405, 0
      %v512 = vsel %vm474, %v406, 0
      %v513 = vsel %vm481, %v407, 0
      %514 = vrot.lane.b32.xlu0 %v409, 23
      %v515 = vpop.permute.xlu0 %514
      %v516 = vrot.slane %v515, 4
      %vm517 = vcmask 187392
      %v518 = vsel %vm517, %v516, %v515
      %v519 = vunpack.c.l.b16 %v518
      %v520 = vunpack.c.h.b16 %v518
      %v521 = vunpack.c.l.b16 0
      %v522 = vunpack.c.h.b16 0
      %vm523 = vcmp.ne.s32.totalorder %v519, %v521
      %vm524 = vcmp.ne.s32.totalorder %v520, %v522
      %vm525 = vmpackc.low %vm524, %vm523
      %v526 = vunpack.c.l.b16 %v516
      %v527 = vunpack.c.h.b16 %v516
      %v528 = vunpack.c.l.b16 0
      %v529 = vunpack.c.h.b16 0
      %vm530 = vcmp.ne.s32.totalorder %v526, %v528
      %vm531 = vcmp.ne.s32.totalorder %v527, %v529
      %vm532 = vmpackc.low %vm531, %vm530
      %v533 = vsel %vm525, %v376, 0
      %v534 = vsel %vm532, %v377, 0
      %v535 = vsel %vm525, %v378, 0
      %v536 = vsel %vm532, %v379, 0
      %v537 = vsel %vm525, %v380, 0
      %v538 = vsel %vm532, %v381, 0
      %v539 = vsel %vm525, %v382, 0
      %v540 = vsel %vm532, %v383, 0
      %v541 = vsel %vm525, %v384, 0
      %v542 = vsel %vm532, %v385, 0
      %v543 = vsel %vm525, %v386, 0
      %v544 = vsel %vm532, %v387, 0
      %v545 = vsel %vm525, %v388, 0
      %v546 = vsel %vm532, %v389, 0
      %v547 = vsel %vm525, %v390, 0
      %v548 = vsel %vm532, %v391, 0
      %v549 = vsel %vm525, %v392, 0
      %v550 = vsel %vm532, %v393, 0
      %v551 = vsel %vm525, %v394, 0
      %v552 = vsel %vm532, %v395, 0
      %v553 = vsel %vm525, %v396, 0
      %v554 = vsel %vm532, %v397, 0
      %v555 = vsel %vm525, %v398, 0
      %v556 = vsel %vm532, %v399, 0
      %v557 = vsel %vm525, %v400, 0
      %v558 = vsel %vm532, %v401, 0
      %v559 = vsel %vm525, %v402, 0
      %v560 = vsel %vm532, %v403, 0
      %v561 = vsel %vm525, %v404, 0
      %v562 = vsel %vm532, %v405, 0
      %v563 = vsel %vm525, %v406, 0
      %v564 = vsel %vm532, %v407, 0
      %565 = vrot.lane.b32.xlu0 %v462, 25
      %v566 = vpop.permute.xlu0 %565
      %v567 = vrot.slane %v566, 4
      %vm568 = vcmask 203776
      %v569 = vsel %vm568, %v567, %v566
      %v570 = vunpack.c.l.b16 %v569
      %v571 = vunpack.c.h.b16 %v569
      %v572 = vunpack.c.l.b16 0
      %v573 = vunpack.c.h.b16 0
      %vm574 = vcmp.ne.s32.totalorder %v570, %v572
      %vm575 = vcmp.ne.s32.totalorder %v571, %v573
      %vm576 = vmpackc.low %vm575, %vm574
      %v577 = vunpack.c.l.b16 %v567
      %v578 = vunpack.c.h.b16 %v567
      %v579 = vunpack.c.l.b16 0
      %v580 = vunpack.c.h.b16 0
      %vm581 = vcmp.ne.s32.totalorder %v577, %v579
      %vm582 = vcmp.ne.s32.totalorder %v578, %v580
      %vm583 = vmpackc.low %vm582, %vm581
      %v584 = vsel %vm576, %v376, 0
      %v585 = vsel %vm583, %v377, 0
      %v586 = vsel %vm576, %v378, 0
      %v587 = vsel %vm583, %v379, 0
      %v588 = vsel %vm576, %v380, 0
      %v589 = vsel %vm583, %v381, 0
      %v590 = vsel %vm576, %v382, 0
      %v591 = vsel %vm583, %v383, 0
      %v592 = vsel %vm576, %v384, 0
      %v593 = vsel %vm583, %v385, 0
      %v594 = vsel %vm576, %v386, 0
      %v595 = vsel %vm583, %v387, 0
      %v596 = vsel %vm576, %v388, 0
      %v597 = vsel %vm583, %v389, 0
      %v598 = vsel %vm576, %v390, 0
      %v599 = vsel %vm583, %v391, 0
      %v600 = vsel %vm576, %v392, 0
      %v601 = vsel %vm583, %v393, 0
      %v602 = vsel %vm576, %v394, 0
      %v603 = vsel %vm583, %v395, 0
      %v604 = vsel %vm576, %v396, 0
      %v605 = vsel %vm583, %v397, 0
      %v606 = vsel %vm576, %v398, 0
      %v607 = vsel %vm583, %v399, 0
      %v608 = vsel %vm576, %v400, 0
      %v609 = vsel %vm583, %v401, 0
      %v610 = vsel %vm576, %v402, 0
      %v611 = vsel %vm583, %v403, 0
      %v612 = vsel %vm576, %v404, 0
      %v613 = vsel %vm583, %v405, 0
      %v614 = vsel %vm576, %v406, 0
      %v615 = vsel %vm583, %v407, 0
      %616 = vrot.lane.b32.xlu0 %v409, 39
      %v617 = vpop.permute.xlu0 %616
      %v618 = vrot.slane %v617, 4
      %vm619 = vcmask 318464
      %v620 = vsel %vm619, %v618, %v617
      %v621 = vunpack.c.l.b16 %v620
      %v622 = vunpack.c.h.b16 %v620
      %v623 = vunpack.c.l.b16 0
      %v624 = vunpack.c.h.b16 0
      %vm625 = vcmp.ne.s32.totalorder %v621, %v623
      %vm626 = vcmp.ne.s32.totalorder %v622, %v624
      %vm627 = vmpackc.low %vm626, %vm625
      %v628 = vunpack.c.l.b16 %v618
      %v629 = vunpack.c.h.b16 %v618
      %v630 = vunpack.c.l.b16 0
      %v631 = vunpack.c.h.b16 0
      %vm632 = vcmp.ne.s32.totalorder %v628, %v630
      %vm633 = vcmp.ne.s32.totalorder %v629, %v631
      %vm634 = vmpackc.low %vm633, %vm632
      %v635 = vsel %vm627, %v376, 0
      %v636 = vsel %vm634, %v377, 0
      %v637 = vsel %vm627, %v378, 0
      %v638 = vsel %vm634, %v379, 0
      %v639 = vsel %vm627, %v380, 0
      %v640 = vsel %vm634, %v381, 0
      %v641 = vsel %vm627, %v382, 0
      %v642 = vsel %vm634, %v383, 0
      %v643 = vsel %vm627, %v384, 0
      %v644 = vsel %vm634, %v385, 0
      %v645 = vsel %vm627, %v386, 0
      %v646 = vsel %vm634, %v387, 0
      %v647 = vsel %vm627, %v388, 0
      %v648 = vsel %vm634, %v389, 0
      %v649 = vsel %vm627, %v390, 0
      %v650 = vsel %vm634, %v391, 0
      %v651 = vsel %vm627, %v392, 0
      %v652 = vsel %vm634, %v393, 0
      %v653 = vsel %vm627, %v394, 0
      %v654 = vsel %vm634, %v395, 0
      %v655 = vsel %vm627, %v396, 0
      %v656 = vsel %vm634, %v397, 0
      %v657 = vsel %vm627, %v398, 0
      %v658 = vsel %vm634, %v399, 0
      %v659 = vsel %vm627, %v400, 0
      %v660 = vsel %vm634, %v401, 0
      %v661 = vsel %vm627, %v402, 0
      %v662 = vsel %vm634, %v403, 0
      %v663 = vsel %vm627, %v404, 0
      %v664 = vsel %vm634, %v405, 0
      %v665 = vsel %vm627, %v406, 0
      %v666 = vsel %vm634, %v407, 0
      %667 = vrot.lane.b32.xlu0 %v462, 41
      %v668 = vpop.permute.xlu0 %667
      %v669 = vrot.slane %v668, 4
      %vm670 = vcmask 334848
      %v671 = vsel %vm670, %v669, %v668
      %v672 = vunpack.c.l.b16 %v671
      %v673 = vunpack.c.h.b16 %v671
      %v674 = vunpack.c.l.b16 0
      %v675 = vunpack.c.h.b16 0
      %vm676 = vcmp.ne.s32.totalorder %v672, %v674
      %vm677 = vcmp.ne.s32.totalorder %v673, %v675
      %vm678 = vmpackc.low %vm677, %vm676
      %v679 = vunpack.c.l.b16 %v669
      %v680 = vunpack.c.h.b16 %v669
      %v681 = vunpack.c.l.b16 0
      %v682 = vunpack.c.h.b16 0
      %vm683 = vcmp.ne.s32.totalorder %v679, %v681
      %vm684 = vcmp.ne.s32.totalorder %v680, %v682
      %vm685 = vmpackc.low %vm684, %vm683
      %v686 = vsel %vm678, %v376, 0
      %v687 = vsel %vm685, %v377, 0
      %v688 = vsel %vm678, %v378, 0
      %v689 = vsel %vm685, %v379, 0
      %v690 = vsel %vm678, %v380, 0
      %v691 = vsel %vm685, %v381, 0
      %v692 = vsel %vm678, %v382, 0
      %v693 = vsel %vm685, %v383, 0
      %v694 = vsel %vm678, %v384, 0
      %v695 = vsel %vm685, %v385, 0
      %v696 = vsel %vm678, %v386, 0
      %v697 = vsel %vm685, %v387, 0
      %v698 = vsel %vm678, %v388, 0
      %v699 = vsel %vm685, %v389, 0
      %v700 = vsel %vm678, %v390, 0
      %v701 = vsel %vm685, %v391, 0
      %v702 = vsel %vm678, %v392, 0
      %v703 = vsel %vm685, %v393, 0
      %v704 = vsel %vm678, %v394, 0
      %v705 = vsel %vm685, %v395, 0
      %v706 = vsel %vm678, %v396, 0
      %v707 = vsel %vm685, %v397, 0
      %v708 = vsel %vm678, %v398, 0
      %v709 = vsel %vm685, %v399, 0
      %v710 = vsel %vm678, %v400, 0
      %v711 = vsel %vm685, %v401, 0
      %v712 = vsel %vm678, %v402, 0
      %v713 = vsel %vm685, %v403, 0
      %v714 = vsel %vm678, %v404, 0
      %v715 = vsel %vm685, %v405, 0
      %v716 = vsel %vm678, %v406, 0
      %v717 = vsel %vm685, %v407, 0
      %v718 = vld [vmem:[%s320] sm:$0xff]
      %v719 = vld [vmem:[%s320 + $0x8] sm:$0xff]
      %v720 = vld [vmem:[%s320 + $0x10] sm:$0xff]
      %724 = vrot.lane.b32.xlu0 %v718, 121
      %v725 = vpop.permute.xlu0 %724
      %726 = vrot.lane.b32.xlu0 %v719, 121
      %v727 = vpop.permute.xlu0 %726
      %728 = vrot.lane.b32.xlu0 %v720, 121
      %v729 = vpop.permute.xlu0 %728
      %vm730 = vcmask 990208
      %v731 = vsel %vm730, %v725, %v727
      %v732 = vsel %vm730, %v727, %v729
      %v735 = vsel %vm360, %v731, 0.0
      %v736 = vsel %vm361, %v732, 0.0
      %v737 = vpack.c.bf16 %v736, %v735
      %v738 = vpack.c.bf16 %v719, %v718
      %v739 = vpack.c.bf16 %v720, %v720
      %740 = vrot.lane.b32.xlu0 %v718, 119
      %v741 = vpop.permute.xlu0 %740
      %742 = vrot.lane.b32.xlu0 %v719, 119
      %v743 = vpop.permute.xlu0 %742
      %744 = vrot.lane.b32.xlu0 %v720, 119
      %v745 = vpop.permute.xlu0 %744
      %vm746 = vcmask 973824
      %v747 = vsel %vm746, %v741, %v743
      %v748 = vsel %vm746, %v743, %v745
      %v751 = vsel %vm366, %v747, 0.0
      %v752 = vsel %vm367, %v748, 0.0
      %v753 = vpack.c.bf16 %v752, %v751
      %754 = vrot.lane.b32.xlu0 %v718, 105
      %v755 = vpop.permute.xlu0 %754
      %756 = vrot.lane.b32.xlu0 %v719, 105
      %v757 = vpop.permute.xlu0 %756
      %758 = vrot.lane.b32.xlu0 %v720, 105
      %v759 = vpop.permute.xlu0 %758
      %vm760 = vcmask 859136
      %v761 = vsel %vm760, %v755, %v757
      %v762 = vsel %vm760, %v757, %v759
      %v765 = vsel %vm360, %v761, 0.0
      %v766 = vsel %vm361, %v762, 0.0
      %v767 = vpack.c.bf16 %v766, %v765
      %768 = vrot.lane.b32.xlu0 %v718, 103
      %v769 = vpop.permute.xlu0 %768
      %770 = vrot.lane.b32.xlu0 %v719, 103
      %v771 = vpop.permute.xlu0 %770
      %772 = vrot.lane.b32.xlu0 %v720, 103
      %v773 = vpop.permute.xlu0 %772
      %vm774 = vcmask 842752
      %v775 = vsel %vm774, %v769, %v771
      %v776 = vsel %vm774, %v771, %v773
      %v779 = vsel %vm366, %v775, 0.0
      %v780 = vsel %vm367, %v776, 0.0
      %v781 = vpack.c.bf16 %v780, %v779
      %782 = vrot.lane.b32.xlu0 %v718, 89
      %v783 = vpop.permute.xlu0 %782
      %784 = vrot.lane.b32.xlu0 %v719, 89
      %v785 = vpop.permute.xlu0 %784
      %786 = vrot.lane.b32.xlu0 %v720, 89
      %v787 = vpop.permute.xlu0 %786
      %vm788 = vcmask 728064
      %v789 = vsel %vm788, %v783, %v785
      %v790 = vsel %vm788, %v785, %v787
      %v793 = vsel %vm360, %v789, 0.0
      %v794 = vsel %vm361, %v790, 0.0
      %v795 = vpack.c.bf16 %v794, %v793
      %796 = vrot.lane.b32.xlu0 %v718, 87
      %v797 = vpop.permute.xlu0 %796
      %798 = vrot.lane.b32.xlu0 %v719, 87
      %v799 = vpop.permute.xlu0 %798
      %800 = vrot.lane.b32.xlu0 %v720, 87
      %v801 = vpop.permute.xlu0 %800
      %vm802 = vcmask 711680
      %v803 = vsel %vm802, %v797, %v799
      %v804 = vsel %vm802, %v799, %v801
      %v807 = vsel %vm366, %v803, 0.0
      %v808 = vsel %vm367, %v804, 0.0
      %v809 = vpack.c.bf16 %v808, %v807
      %v842 = vunpack.c.l.b16 %v429
      %v843 = vunpack.c.h.b16 %v429
      %v844 = vunpack.c.l.b16 %v430
      %v845 = vunpack.c.l.b16 %v431
      %v846 = vunpack.c.h.b16 %v431
      %v847 = vunpack.c.l.b16 %v432
      %v848 = vunpack.c.l.b16 %v433
      %v849 = vunpack.c.h.b16 %v433
      %v850 = vunpack.c.l.b16 %v434
      %v851 = vunpack.c.l.b16 %v435
      %v852 = vunpack.c.h.b16 %v435
      %v853 = vunpack.c.l.b16 %v436
      %v854 = vunpack.c.l.b16 %v437
      %v855 = vunpack.c.h.b16 %v437
      %v856 = vunpack.c.l.b16 %v438
      %v857 = vunpack.c.l.b16 %v439
      %v858 = vunpack.c.h.b16 %v439
      %v859 = vunpack.c.l.b16 %v440
      %v860 = vunpack.c.l.b16 %v441
      %v861 = vunpack.c.h.b16 %v441
      %v862 = vunpack.c.l.b16 %v442
      %v863 = vunpack.c.l.b16 %v443
      %v864 = vunpack.c.h.b16 %v443
      %v865 = vunpack.c.l.b16 %v444
      %v866 = vunpack.c.l.b16 %v445
      %v867 = vunpack.c.h.b16 %v445
      %v868 = vunpack.c.l.b16 %v446
      %v869 = vunpack.c.l.b16 %v447
      %v870 = vunpack.c.h.b16 %v447
      %v871 = vunpack.c.l.b16 %v448
      %v872 = vunpack.c.l.b16 %v449
      %v873 = vunpack.c.h.b16 %v449
      %v874 = vunpack.c.l.b16 %v450
      %v875 = vunpack.c.l.b16 %v451
      %v876 = vunpack.c.h.b16 %v451
      %v877 = vunpack.c.l.b16 %v452
      %v878 = vunpack.c.l.b16 %v453
      %v879 = vunpack.c.h.b16 %v453
      %v880 = vunpack.c.l.b16 %v454
      %v881 = vunpack.c.l.b16 %v455
      %v882 = vunpack.c.h.b16 %v455
      %v883 = vunpack.c.l.b16 %v456
      %v884 = vunpack.c.l.b16 %v457
      %v885 = vunpack.c.h.b16 %v457
      %v886 = vunpack.c.l.b16 %v458
      %v887 = vunpack.c.l.b16 %v459
      %v888 = vunpack.c.h.b16 %v459
      %v889 = vunpack.c.l.b16 %v460
      %v890 = vpack.c.b16 %v845, %v842
      %v891 = vpack.c.b16 %v846, %v843
      %v892 = vpack.c.b16 %v847, %v844
      %v893 = vpack.c.b16 %v851, %v848
      %v894 = vpack.c.b16 %v852, %v849
      %v895 = vpack.c.b16 %v853, %v850
      %v896 = vpack.c.b16 %v857, %v854
      %v897 = vpack.c.b16 %v858, %v855
      %v898 = vpack.c.b16 %v859, %v856
      %v899 = vpack.c.b16 %v863, %v860
      %v900 = vpack.c.b16 %v864, %v861
      %v901 = vpack.c.b16 %v865, %v862
      %v902 = vpack.c.b16 %v869, %v866
      %v903 = vpack.c.b16 %v870, %v867
      %v904 = vpack.c.b16 %v871, %v868
      %v905 = vpack.c.b16 %v875, %v872
      %v906 = vpack.c.b16 %v876, %v873
      %v907 = vpack.c.b16 %v877, %v874
      %v908 = vpack.c.b16 %v881, %v878
      %v909 = vpack.c.b16 %v882, %v879
      %v910 = vpack.c.b16 %v883, %v880
      %v911 = vpack.c.b16 %v887, %v884
      %v912 = vpack.c.b16 %v888, %v885
      %v913 = vpack.c.b16 %v889, %v886
      %v946 = vunpack.c.l.b16 %v376
      %v947 = vunpack.c.h.b16 %v376
      %v948 = vunpack.c.l.b16 %v377
      %v949 = vunpack.c.l.b16 %v378
      %v950 = vunpack.c.h.b16 %v378
      %v951 = vunpack.c.l.b16 %v379
      %v952 = vunpack.c.l.b16 %v380
      %v953 = vunpack.c.h.b16 %v380
      %v954 = vunpack.c.l.b16 %v381
      %v955 = vunpack.c.l.b16 %v382
      %v956 = vunpack.c.h.b16 %v382
      %v957 = vunpack.c.l.b16 %v383
      %v958 = vunpack.c.l.b16 %v384
      %v959 = vunpack.c.h.b16 %v384
      %v960 = vunpack.c.l.b16 %v385
      %v961 = vunpack.c.l.b16 %v386
      %v962 = vunpack.c.h.b16 %v386
      %v963 = vunpack.c.l.b16 %v387
      %v964 = vunpack.c.l.b16 %v388
      %v965 = vunpack.c.h.b16 %v388
      %v966 = vunpack.c.l.b16 %v389
      %v967 = vunpack.c.l.b16 %v390
      %v968 = vunpack.c.h.b16 %v390
      %v969 = vunpack.c.l.b16 %v391
      %v970 = vunpack.c.l.b16 %v392
      %v971 = vunpack.c.h.b16 %v392
      %v972 = vunpack.c.l.b16 %v393
      %v973 = vunpack.c.l.b16 %v394
      %v974 = vunpack.c.h.b16 %v394
      %v975 = vunpack.c.l.b16 %v395
      %v976 = vunpack.c.l.b16 %v396
      %v977 = vunpack.c.h.b16 %v396
      %v978 = vunpack.c.l.b16 %v397
      %v979 = vunpack.c.l.b16 %v398
      %v980 = vunpack.c.h.b16 %v398
      %v981 = vunpack.c.l.b16 %v399
      %v982 = vunpack.c.l.b16 %v400
      %v983 = vunpack.c.h.b16 %v400
      %v984 = vunpack.c.l.b16 %v401
      %v985 = vunpack.c.l.b16 %v402
      %v986 = vunpack.c.h.b16 %v402
      %v987 = vunpack.c.l.b16 %v403
      %v988 = vunpack.c.l.b16 %v404
      %v989 = vunpack.c.h.b16 %v404
      %v990 = vunpack.c.l.b16 %v405
      %v991 = vunpack.c.l.b16 %v406
      %v992 = vunpack.c.h.b16 %v406
      %v993 = vunpack.c.l.b16 %v407
      %v994 = vpack.c.b16 %v949, %v946
      %v995 = vpack.c.b16 %v950, %v947
      %v996 = vpack.c.b16 %v951, %v948
      %v997 = vpack.c.b16 %v955, %v952
      %v998 = vpack.c.b16 %v956, %v953
      %v999 = vpack.c.b16 %v957, %v954
      %v1000 = vpack.c.b16 %v961, %v958
      %v1001 = vpack.c.b16 %v962, %v959
      %v1002 = vpack.c.b16 %v963, %v960
      %v1003 = vpack.c.b16 %v967, %v964
      %v1004 = vpack.c.b16 %v968, %v965
      %v1005 = vpack.c.b16 %v969, %v966
      %v1006 = vpack.c.b16 %v973, %v970
      %v1007 = vpack.c.b16 %v974, %v971
      %v1008 = vpack.c.b16 %v975, %v972
      %v1009 = vpack.c.b16 %v979, %v976
      %v1010 = vpack.c.b16 %v980, %v977
      %v1011 = vpack.c.b16 %v981, %v978
      %v1012 = vpack.c.b16 %v985, %v982
      %v1013 = vpack.c.b16 %v986, %v983
      %v1014 = vpack.c.b16 %v987, %v984
      %v1015 = vpack.c.b16 %v991, %v988
      %v1016 = vpack.c.b16 %v992, %v989
      %v1017 = vpack.c.b16 %v993, %v990
      %1018 = vrot.lane.b32.xlu0 %v994, 127
      %v1019 = vpop.permute.xlu0 %1018
      %1020 = vrot.lane.b32.xlu0 %v995, 127
      %v1021 = vpop.permute.xlu0 %1020
      %1022 = vrot.lane.b32.xlu0 %v996, 127
      %v1023 = vpop.permute.xlu0 %1022
      %1024 = vrot.lane.b32.xlu0 %v997, 127
      %v1025 = vpop.permute.xlu0 %1024
      %1026 = vrot.lane.b32.xlu0 %v998, 127
      %v1027 = vpop.permute.xlu0 %1026
      %1028 = vrot.lane.b32.xlu0 %v999, 127
      %v1029 = vpop.permute.xlu0 %1028
      %1030 = vrot.lane.b32.xlu0 %v1000, 127
      %v1031 = vpop.permute.xlu0 %1030
      %1032 = vrot.lane.b32.xlu0 %v1001, 127
      %v1033 = vpop.permute.xlu0 %1032
      %1034 = vrot.lane.b32.xlu0 %v1002, 127
      %v1035 = vpop.permute.xlu0 %1034
      %1036 = vrot.lane.b32.xlu0 %v1003, 127
      %v1037 = vpop.permute.xlu0 %1036
      %1038 = vrot.lane.b32.xlu0 %v1004, 127
      %v1039 = vpop.permute.xlu0 %1038
      %1040 = vrot.lane.b32.xlu0 %v1005, 127
      %v1041 = vpop.permute.xlu0 %1040
      %1042 = vrot.lane.b32.xlu0 %v1006, 127
      %v1043 = vpop.permute.xlu0 %1042
      %1044 = vrot.lane.b32.xlu0 %v1007, 127
      %v1045 = vpop.permute.xlu0 %1044
      %1046 = vrot.lane.b32.xlu0 %v1008, 127
      %v1047 = vpop.permute.xlu0 %1046
      %1048 = vrot.lane.b32.xlu0 %v1009, 127
      %v1049 = vpop.permute.xlu0 %1048
      %1050 = vrot.lane.b32.xlu0 %v1010, 127
      %v1051 = vpop.permute.xlu0 %1050
      %1052 = vrot.lane.b32.xlu0 %v1011, 127
      %v1053 = vpop.permute.xlu0 %1052
      %1054 = vrot.lane.b32.xlu0 %v1012, 127
      %v1055 = vpop.permute.xlu0 %1054
      %1056 = vrot.lane.b32.xlu0 %v1013, 127
      %v1057 = vpop.permute.xlu0 %1056
      %1058 = vrot.lane.b32.xlu0 %v1014, 127
      %v1059 = vpop.permute.xlu0 %1058
      %1060 = vrot.lane.b32.xlu0 %v1015, 127
      %v1061 = vpop.permute.xlu0 %1060
      %1062 = vrot.lane.b32.xlu0 %v1016, 127
      %v1063 = vpop.permute.xlu0 %1062
      %1064 = vrot.lane.b32.xlu0 %v1017, 127
      %v1065 = vpop.permute.xlu0 %1064
      %vm1066 = vcmask 1039360
      %v1067 = vsel %vm1066, %v1019, %v1021
      %v1068 = vsel %vm1066, %v1021, %v1023
      %v1069 = vsel %vm1066, %v1025, %v1027
      %v1070 = vsel %vm1066, %v1027, %v1029
      %v1071 = vsel %vm1066, %v1031, %v1033
      %v1072 = vsel %vm1066, %v1033, %v1035
      %v1073 = vsel %vm1066, %v1037, %v1039
      %v1074 = vsel %vm1066, %v1039, %v1041
      %v1075 = vsel %vm1066, %v1043, %v1045
      %v1076 = vsel %vm1066, %v1045, %v1047
      %v1077 = vsel %vm1066, %v1049, %v1051
      %v1078 = vsel %vm1066, %v1051, %v1053
      %v1079 = vsel %vm1066, %v1055, %v1057
      %v1080 = vsel %vm1066, %v1057, %v1059
      %v1081 = vsel %vm1066, %v1061, %v1063
      %v1082 = vsel %vm1066, %v1063, %v1065
      %v1115 = vunpack.c.l.b16 %v482
      %v1116 = vunpack.c.h.b16 %v482
      %v1117 = vunpack.c.l.b16 %v483
      %v1118 = vunpack.c.l.b16 %v484
      %v1119 = vunpack.c.h.b16 %v484
      %v1120 = vunpack.c.l.b16 %v485
      %v1121 = vunpack.c.l.b16 %v486
      %v1122 = vunpack.c.h.b16 %v486
      %v1123 = vunpack.c.l.b16 %v487
      %v1124 = vunpack.c.l.b16 %v488
      %v1125 = vunpack.c.h.b16 %v488
      %v1126 = vunpack.c.l.b16 %v489
      %v1127 = vunpack.c.l.b16 %v490
      %v1128 = vunpack.c.h.b16 %v490
      %v1129 = vunpack.c.l.b16 %v491
      %v1130 = vunpack.c.l.b16 %v492
      %v1131 = vunpack.c.h.b16 %v492
      %v1132 = vunpack.c.l.b16 %v493
      %v1133 = vunpack.c.l.b16 %v494
      %v1134 = vunpack.c.h.b16 %v494
      %v1135 = vunpack.c.l.b16 %v495
      %v1136 = vunpack.c.l.b16 %v496
      %v1137 = vunpack.c.h.b16 %v496
      %v1138 = vunpack.c.l.b16 %v497
      %v1139 = vunpack.c.l.b16 %v498
      %v1140 = vunpack.c.h.b16 %v498
      %v1141 = vunpack.c.l.b16 %v499
      %v1142 = vunpack.c.l.b16 %v500
      %v1143 = vunpack.c.h.b16 %v500
      %v1144 = vunpack.c.l.b16 %v501
      %v1145 = vunpack.c.l.b16 %v502
      %v1146 = vunpack.c.h.b16 %v502
      %v1147 = vunpack.c.l.b16 %v503
      %v1148 = vunpack.c.l.b16 %v504
      %v1149 = vunpack.c.h.b16 %v504
      %v1150 = vunpack.c.l.b16 %v505
      %v1151 = vunpack.c.l.b16 %v506
      %v1152 = vunpack.c.h.b16 %v506
      %v1153 = vunpack.c.l.b16 %v507
      %v1154 = vunpack.c.l.b16 %v508
      %v1155 = vunpack.c.h.b16 %v508
      %v1156 = vunpack.c.l.b16 %v509
      %v1157 = vunpack.c.l.b16 %v510
      %v1158 = vunpack.c.h.b16 %v510
      %v1159 = vunpack.c.l.b16 %v511
      %v1160 = vunpack.c.l.b16 %v512
      %v1161 = vunpack.c.h.b16 %v512
      %v1162 = vunpack.c.l.b16 %v513
      %v1163 = vpack.c.b16 %v1118, %v1115
      %v1164 = vpack.c.b16 %v1119, %v1116
      %v1165 = vpack.c.b16 %v1120, %v1117
      %v1166 = vpack.c.b16 %v1124, %v1121
      %v1167 = vpack.c.b16 %v1125, %v1122
      %v1168 = vpack.c.b16 %v1126, %v1123
      %v1169 = vpack.c.b16 %v1130, %v1127
      %v1170 = vpack.c.b16 %v1131, %v1128
      %v1171 = vpack.c.b16 %v1132, %v1129
      %v1172 = vpack.c.b16 %v1136, %v1133
      %v1173 = vpack.c.b16 %v1137, %v1134
      %v1174 = vpack.c.b16 %v1138, %v1135
      %v1175 = vpack.c.b16 %v1142, %v1139
      %v1176 = vpack.c.b16 %v1143, %v1140
      %v1177 = vpack.c.b16 %v1144, %v1141
      %v1178 = vpack.c.b16 %v1148, %v1145
      %v1179 = vpack.c.b16 %v1149, %v1146
      %v1180 = vpack.c.b16 %v1150, %v1147
      %v1181 = vpack.c.b16 %v1154, %v1151
      %v1182 = vpack.c.b16 %v1155, %v1152
      %v1183 = vpack.c.b16 %v1156, %v1153
      %v1184 = vpack.c.b16 %v1160, %v1157
      %v1185 = vpack.c.b16 %v1161, %v1158
      %v1186 = vpack.c.b16 %v1162, %v1159
      %1187 = vrot.lane.b32.xlu0 %v1163, 126
      %v1188 = vpop.permute.xlu0 %1187
      %1189 = vrot.lane.b32.xlu0 %v1164, 126
      %v1190 = vpop.permute.xlu0 %1189
      %1191 = vrot.lane.b32.xlu0 %v1165, 126
      %v1192 = vpop.permute.xlu0 %1191
      %1193 = vrot.lane.b32.xlu0 %v1166, 126
      %v1194 = vpop.permute.xlu0 %1193
      %1195 = vrot.lane.b32.xlu0 %v1167, 126
      %v1196 = vpop.permute.xlu0 %1195
      %1197 = vrot.lane.b32.xlu0 %v1168, 126
      %v1198 = vpop.permute.xlu0 %1197
      %1199 = vrot.lane.b32.xlu0 %v1169, 126
      %v1200 = vpop.permute.xlu0 %1199
      %1201 = vrot.lane.b32.xlu0 %v1170, 126
      %v1202 = vpop.permute.xlu0 %1201
      %1203 = vrot.lane.b32.xlu0 %v1171, 126
      %v1204 = vpop.permute.xlu0 %1203
      %1205 = vrot.lane.b32.xlu0 %v1172, 126
      %v1206 = vpop.permute.xlu0 %1205
      %1207 = vrot.lane.b32.xlu0 %v1173, 126
      %v1208 = vpop.permute.xlu0 %1207
      %1209 = vrot.lane.b32.xlu0 %v1174, 126
      %v1210 = vpop.permute.xlu0 %1209
      %1211 = vrot.lane.b32.xlu0 %v1175, 126
      %v1212 = vpop.permute.xlu0 %1211
      %1213 = vrot.lane.b32.xlu0 %v1176, 126
      %v1214 = vpop.permute.xlu0 %1213
      %1215 = vrot.lane.b32.xlu0 %v1177, 126
      %v1216 = vpop.permute.xlu0 %1215
      %1217 = vrot.lane.b32.xlu0 %v1178, 126
      %v1218 = vpop.permute.xlu0 %1217
      %1219 = vrot.lane.b32.xlu0 %v1179, 126
      %v1220 = vpop.permute.xlu0 %1219
      %1221 = vrot.lane.b32.xlu0 %v1180, 126
      %v1222 = vpop.permute.xlu0 %1221
      %1223 = vrot.lane.b32.xlu0 %v1181, 126
      %v1224 = vpop.permute.xlu0 %1223
      %1225 = vrot.lane.b32.xlu0 %v1182, 126
      %v1226 = vpop.permute.xlu0 %1225
      %1227 = vrot.lane.b32.xlu0 %v1183, 126
      %v1228 = vpop.permute.xlu0 %1227
      %1229 = vrot.lane.b32.xlu0 %v1184, 126
      %v1230 = vpop.permute.xlu0 %1229
      %1231 = vrot.lane.b32.xlu0 %v1185, 126
      %v1232 = vpop.permute.xlu0 %1231
      %1233 = vrot.lane.b32.xlu0 %v1186, 126
      %v1234 = vpop.permute.xlu0 %1233
      %vm1235 = vcmask 1031168
      %v1236 = vsel %vm1235, %v1188, %v1190
      %v1237 = vsel %vm1235, %v1190, %v1192
      %v1238 = vsel %vm1235, %v1194, %v1196
      %v1239 = vsel %vm1235, %v1196, %v1198
      %v1240 = vsel %vm1235, %v1200, %v1202
      %v1241 = vsel %vm1235, %v1202, %v1204
      %v1242 = vsel %vm1235, %v1206, %v1208
      %v1243 = vsel %vm1235, %v1208, %v1210
      %v1244 = vsel %vm1235, %v1212, %v1214
      %v1245 = vsel %vm1235, %v1214, %v1216
      %v1246 = vsel %vm1235, %v1218, %v1220
      %v1247 = vsel %vm1235, %v1220, %v1222
      %v1248 = vsel %vm1235, %v1224, %v1226
      %v1249 = vsel %vm1235, %v1226, %v1228
      %v1250 = vsel %vm1235, %v1230, %v1232
      %v1251 = vsel %vm1235, %v1232, %v1234
      %v1284 = vunpack.c.l.b16 %v533
      %v1285 = vunpack.c.h.b16 %v533
      %v1286 = vunpack.c.l.b16 %v534
      %v1287 = vunpack.c.l.b16 %v535
      %v1288 = vunpack.c.h.b16 %v535
      %v1289 = vunpack.c.l.b16 %v536
      %v1290 = vunpack.c.l.b16 %v537
      %v1291 = vunpack.c.h.b16 %v537
      %v1292 = vunpack.c.l.b16 %v538
      %v1293 = vunpack.c.l.b16 %v539
      %v1294 = vunpack.c.h.b16 %v539
      %v1295 = vunpack.c.l.b16 %v540
      %v1296 = vunpack.c.l.b16 %v541
      %v1297 = vunpack.c.h.b16 %v541
      %v1298 = vunpack.c.l.b16 %v542
      %v1299 = vunpack.c.l.b16 %v543
      %v1300 = vunpack.c.h.b16 %v543
      %v1301 = vunpack.c.l.b16 %v544
      %v1302 = vunpack.c.l.b16 %v545
      %v1303 = vunpack.c.h.b16 %v545
      %v1304 = vunpack.c.l.b16 %v546
      %v1305 = vunpack.c.l.b16 %v547
      %v1306 = vunpack.c.h.b16 %v547
      %v1307 = vunpack.c.l.b16 %v548
      %v1308 = vunpack.c.l.b16 %v549
      %v1309 = vunpack.c.h.b16 %v549
      %v1310 = vunpack.c.l.b16 %v550
      %v1311 = vunpack.c.l.b16 %v551
      %v1312 = vunpack.c.h.b16 %v551
      %v1313 = vunpack.c.l.b16 %v552
      %v1314 = vunpack.c.l.b16 %v553
      %v1315 = vunpack.c.h.b16 %v553
      %v1316 = vunpack.c.l.b16 %v554
      %v1317 = vunpack.c.l.b16 %v555
      %v1318 = vunpack.c.h.b16 %v555
      %v1319 = vunpack.c.l.b16 %v556
      %v1320 = vunpack.c.l.b16 %v557
      %v1321 = vunpack.c.h.b16 %v557
      %v1322 = vunpack.c.l.b16 %v558
      %v1323 = vunpack.c.l.b16 %v559
      %v1324 = vunpack.c.h.b16 %v559
      %v1325 = vunpack.c.l.b16 %v560
      %v1326 = vunpack.c.l.b16 %v561
      %v1327 = vunpack.c.h.b16 %v561
      %v1328 = vunpack.c.l.b16 %v562
      %v1329 = vunpack.c.l.b16 %v563
      %v1330 = vunpack.c.h.b16 %v563
      %v1331 = vunpack.c.l.b16 %v564
      %v1332 = vpack.c.b16 %v1287, %v1284
      %v1333 = vpack.c.b16 %v1288, %v1285
      %v1334 = vpack.c.b16 %v1289, %v1286
      %v1335 = vpack.c.b16 %v1293, %v1290
      %v1336 = vpack.c.b16 %v1294, %v1291
      %v1337 = vpack.c.b16 %v1295, %v1292
      %v1338 = vpack.c.b16 %v1299, %v1296
      %v1339 = vpack.c.b16 %v1300, %v1297
      %v1340 = vpack.c.b16 %v1301, %v1298
      %v1341 = vpack.c.b16 %v1305, %v1302
      %v1342 = vpack.c.b16 %v1306, %v1303
      %v1343 = vpack.c.b16 %v1307, %v1304
      %v1344 = vpack.c.b16 %v1311, %v1308
      %v1345 = vpack.c.b16 %v1312, %v1309
      %v1346 = vpack.c.b16 %v1313, %v1310
      %v1347 = vpack.c.b16 %v1317, %v1314
      %v1348 = vpack.c.b16 %v1318, %v1315
      %v1349 = vpack.c.b16 %v1319, %v1316
      %v1350 = vpack.c.b16 %v1323, %v1320
      %v1351 = vpack.c.b16 %v1324, %v1321
      %v1352 = vpack.c.b16 %v1325, %v1322
      %v1353 = vpack.c.b16 %v1329, %v1326
      %v1354 = vpack.c.b16 %v1330, %v1327
      %v1355 = vpack.c.b16 %v1331, %v1328
      %1356 = vrot.lane.b32.xlu0 %v1332, 112
      %v1357 = vpop.permute.xlu0 %1356
      %1358 = vrot.lane.b32.xlu0 %v1333, 112
      %v1359 = vpop.permute.xlu0 %1358
      %1360 = vrot.lane.b32.xlu0 %v1334, 112
      %v1361 = vpop.permute.xlu0 %1360
      %1362 = vrot.lane.b32.xlu0 %v1335, 112
      %v1363 = vpop.permute.xlu0 %1362
      %1364 = vrot.lane.b32.xlu0 %v1336, 112
      %v1365 = vpop.permute.xlu0 %1364
      %1366 = vrot.lane.b32.xlu0 %v1337, 112
      %v1367 = vpop.permute.xlu0 %1366
      %1368 = vrot.lane.b32.xlu0 %v1338, 112
      %v1369 = vpop.permute.xlu0 %1368
      %1370 = vrot.lane.b32.xlu0 %v1339, 112
      %v1371 = vpop.permute.xlu0 %1370
      %1372 = vrot.lane.b32.xlu0 %v1340, 112
      %v1373 = vpop.permute.xlu0 %1372
      %1374 = vrot.lane.b32.xlu0 %v1341, 112
      %v1375 = vpop.permute.xlu0 %1374
      %1376 = vrot.lane.b32.xlu0 %v1342, 112
      %v1377 = vpop.permute.xlu0 %1376
      %1378 = vrot.lane.b32.xlu0 %v1343, 112
      %v1379 = vpop.permute.xlu0 %1378
      %1380 = vrot.lane.b32.xlu0 %v1344, 112
      %v1381 = vpop.permute.xlu0 %1380
      %1382 = vrot.lane.b32.xlu0 %v1345, 112
      %v1383 = vpop.permute.xlu0 %1382
      %1384 = vrot.lane.b32.xlu0 %v1346, 112
      %v1385 = vpop.permute.xlu0 %1384
      %1386 = vrot.lane.b32.xlu0 %v1347, 112
      %v1387 = vpop.permute.xlu0 %1386
      %1388 = vrot.lane.b32.xlu0 %v1348, 112
      %v1389 = vpop.permute.xlu0 %1388
      %1390 = vrot.lane.b32.xlu0 %v1349, 112
      %v1391 = vpop.permute.xlu0 %1390
      %1392 = vrot.lane.b32.xlu0 %v1350, 112
      %v1393 = vpop.permute.xlu0 %1392
      %1394 = vrot.lane.b32.xlu0 %v1351, 112
      %v1395 = vpop.permute.xlu0 %1394
      %1396 = vrot.lane.b32.xlu0 %v1352, 112
      %v1397 = vpop.permute.xlu0 %1396
      %1398 = vrot.lane.b32.xlu0 %v1353, 112
      %v1399 = vpop.permute.xlu0 %1398
      %1400 = vrot.lane.b32.xlu0 %v1354, 112
      %v1401 = vpop.permute.xlu0 %1400
      %1402 = vrot.lane.b32.xlu0 %v1355, 112
      %v1403 = vpop.permute.xlu0 %1402
      %vm1404 = vcmask 916480
      %v1405 = vsel %vm1404, %v1357, %v1359
      %v1406 = vsel %vm1404, %v1359, %v1361
      %v1407 = vsel %vm1404, %v1363, %v1365
      %v1408 = vsel %vm1404, %v1365, %v1367
      %v1409 = vsel %vm1404, %v1369, %v1371
      %v1410 = vsel %vm1404, %v1371, %v1373
      %v1411 = vsel %vm1404, %v1375, %v1377
      %v1412 = vsel %vm1404, %v1377, %v1379
      %v1413 = vsel %vm1404, %v1381, %v1383
      %v1414 = vsel %vm1404, %v1383, %v1385
      %v1415 = vsel %vm1404, %v1387, %v1389
      %v1416 = vsel %vm1404, %v1389, %v1391
      %v1417 = vsel %vm1404, %v1393, %v1395
      %v1418 = vsel %vm1404, %v1395, %v1397
      %v1419 = vsel %vm1404, %v1399, %v1401
      %v1420 = vsel %vm1404, %v1401, %v1403
      %1421 = vrot.lane.b32.xlu0 %v994, 111
      %v1422 = vpop.permute.xlu0 %1421
      %1423 = vrot.lane.b32.xlu0 %v995, 111
      %v1424 = vpop.permute.xlu0 %1423
      %1425 = vrot.lane.b32.xlu0 %v996, 111
      %v1426 = vpop.permute.xlu0 %1425
      %1427 = vrot.lane.b32.xlu0 %v997, 111
      %v1428 = vpop.permute.xlu0 %1427
      %1429 = vrot.lane.b32.xlu0 %v998, 111
      %v1430 = vpop.permute.xlu0 %1429
      %1431 = vrot.lane.b32.xlu0 %v999, 111
      %v1432 = vpop.permute.xlu0 %1431
      %1433 = vrot.lane.b32.xlu0 %v1000, 111
      %v1434 = vpop.permute.xlu0 %1433
      %1435 = vrot.lane.b32.xlu0 %v1001, 111
      %v1436 = vpop.permute.xlu0 %1435
      %1437 = vrot.lane.b32.xlu0 %v1002, 111
      %v1438 = vpop.permute.xlu0 %1437
      %1439 = vrot.lane.b32.xlu0 %v1003, 111
      %v1440 = vpop.permute.xlu0 %1439
      %1441 = vrot.lane.b32.xlu0 %v1004, 111
      %v1442 = vpop.permute.xlu0 %1441
      %1443 = vrot.lane.b32.xlu0 %v1005, 111
      %v1444 = vpop.permute.xlu0 %1443
      %1445 = vrot.lane.b32.xlu0 %v1006, 111
      %v1446 = vpop.permute.xlu0 %1445
      %1447 = vrot.lane.b32.xlu0 %v1007, 111
      %v1448 = vpop.permute.xlu0 %1447
      %1449 = vrot.lane.b32.xlu0 %v1008, 111
      %v1450 = vpop.permute.xlu0 %1449
      %1451 = vrot.lane.b32.xlu0 %v1009, 111
      %v1452 = vpop.permute.xlu0 %1451
      %1453 = vrot.lane.b32.xlu0 %v1010, 111
      %v1454 = vpop.permute.xlu0 %1453
      %1455 = vrot.lane.b32.xlu0 %v1011, 111
      %v1456 = vpop.permute.xlu0 %1455
      %1457 = vrot.lane.b32.xlu0 %v1012, 111
      %v1458 = vpop.permute.xlu0 %1457
      %1459 = vrot.lane.b32.xlu0 %v1013, 111
      %v1460 = vpop.permute.xlu0 %1459
      %1461 = vrot.lane.b32.xlu0 %v1014, 111
      %v1462 = vpop.permute.xlu0 %1461
      %1463 = vrot.lane.b32.xlu0 %v1015, 111
      %v1464 = vpop.permute.xlu0 %1463
      %1465 = vrot.lane.b32.xlu0 %v1016, 111
      %v1466 = vpop.permute.xlu0 %1465
      %1467 = vrot.lane.b32.xlu0 %v1017, 111
      %v1468 = vpop.permute.xlu0 %1467
      %vm1469 = vcmask 908288
      %v1470 = vsel %vm1469, %v1422, %v1424
      %v1471 = vsel %vm1469, %v1424, %v1426
      %v1472 = vsel %vm1469, %v1428, %v1430
      %v1473 = vsel %vm1469, %v1430, %v1432
      %v1474 = vsel %vm1469, %v1434, %v1436
      %v1475 = vsel %vm1469, %v1436, %v1438
      %v1476 = vsel %vm1469, %v1440, %v1442
      %v1477 = vsel %vm1469, %v1442, %v1444
      %v1478 = vsel %vm1469, %v1446, %v1448
      %v1479 = vsel %vm1469, %v1448, %v1450
      %v1480 = vsel %vm1469, %v1452, %v1454
      %v1481 = vsel %vm1469, %v1454, %v1456
      %v1482 = vsel %vm1469, %v1458, %v1460
      %v1483 = vsel %vm1469, %v1460, %v1462
      %v1484 = vsel %vm1469, %v1464, %v1466
      %v1485 = vsel %vm1469, %v1466, %v1468
      %v1518 = vunpack.c.l.b16 %v584
      %v1519 = vunpack.c.h.b16 %v584
      %v1520 = vunpack.c.l.b16 %v585
      %v1521 = vunpack.c.l.b16 %v586
      %v1522 = vunpack.c.h.b16 %v586
      %v1523 = vunpack.c.l.b16 %v587
      %v1524 = vunpack.c.l.b16 %v588
      %v1525 = vunpack.c.h.b16 %v588
      %v1526 = vunpack.c.l.b16 %v589
      %v1527 = vunpack.c.l.b16 %v590
      %v1528 = vunpack.c.h.b16 %v590
      %v1529 = vunpack.c.l.b16 %v591
      %v1530 = vunpack.c.l.b16 %v592
      %v1531 = vunpack.c.h.b16 %v592
      %v1532 = vunpack.c.l.b16 %v593
      %v1533 = vunpack.c.l.b16 %v594
      %v1534 = vunpack.c.h.b16 %v594
      %v1535 = vunpack.c.l.b16 %v595
      %v1536 = vunpack.c.l.b16 %v596
      %v1537 = vunpack.c.h.b16 %v596
      %v1538 = vunpack.c.l.b16 %v597
      %v1539 = vunpack.c.l.b16 %v598
      %v1540 = vunpack.c.h.b16 %v598
      %v1541 = vunpack.c.l.b16 %v599
      %v1542 = vunpack.c.l.b16 %v600
      %v1543 = vunpack.c.h.b16 %v600
      %v1544 = vunpack.c.l.b16 %v601
      %v1545 = vunpack.c.l.b16 %v602
      %v1546 = vunpack.c.h.b16 %v602
      %v1547 = vunpack.c.l.b16 %v603
      %v1548 = vunpack.c.l.b16 %v604
      %v1549 = vunpack.c.h.b16 %v604
      %v1550 = vunpack.c.l.b16 %v605
      %v1551 = vunpack.c.l.b16 %v606
      %v1552 = vunpack.c.h.b16 %v606
      %v1553 = vunpack.c.l.b16 %v607
      %v1554 = vunpack.c.l.b16 %v608
      %v1555 = vunpack.c.h.b16 %v608
      %v1556 = vunpack.c.l.b16 %v609
      %v1557 = vunpack.c.l.b16 %v610
      %v1558 = vunpack.c.h.b16 %v610
      %v1559 = vunpack.c.l.b16 %v611
      %v1560 = vunpack.c.l.b16 %v612
      %v1561 = vunpack.c.h.b16 %v612
      %v1562 = vunpack.c.l.b16 %v613
      %v1563 = vunpack.c.l.b16 %v614
      %v1564 = vunpack.c.h.b16 %v614
      %v1565 = vunpack.c.l.b16 %v615
      %v1566 = vpack.c.b16 %v1521, %v1518
      %v1567 = vpack.c.b16 %v1522, %v1519
      %v1568 = vpack.c.b16 %v1523, %v1520
      %v1569 = vpack.c.b16 %v1527, %v1524
      %v1570 = vpack.c.b16 %v1528, %v1525
      %v1571 = vpack.c.b16 %v1529, %v1526
      %v1572 = vpack.c.b16 %v1533, %v1530
      %v1573 = vpack.c.b16 %v1534, %v1531
      %v1574 = vpack.c.b16 %v1535, %v1532
      %v1575 = vpack.c.b16 %v1539, %v1536
      %v1576 = vpack.c.b16 %v1540, %v1537
      %v1577 = vpack.c.b16 %v1541, %v1538
      %v1578 = vpack.c.b16 %v1545, %v1542
      %v1579 = vpack.c.b16 %v1546, %v1543
      %v1580 = vpack.c.b16 %v1547, %v1544
      %v1581 = vpack.c.b16 %v1551, %v1548
      %v1582 = vpack.c.b16 %v1552, %v1549
      %v1583 = vpack.c.b16 %v1553, %v1550
      %v1584 = vpack.c.b16 %v1557, %v1554
      %v1585 = vpack.c.b16 %v1558, %v1555
      %v1586 = vpack.c.b16 %v1559, %v1556
      %v1587 = vpack.c.b16 %v1563, %v1560
      %v1588 = vpack.c.b16 %v1564, %v1561
      %v1589 = vpack.c.b16 %v1565, %v1562
      %1590 = vrot.lane.b32.xlu0 %v1566, 110
      %v1591 = vpop.permute.xlu0 %1590
      %1592 = vrot.lane.b32.xlu0 %v1567, 110
      %v1593 = vpop.permute.xlu0 %1592
      %1594 = vrot.lane.b32.xlu0 %v1568, 110
      %v1595 = vpop.permute.xlu0 %1594
      %1596 = vrot.lane.b32.xlu0 %v1569, 110
      %v1597 = vpop.permute.xlu0 %1596
      %1598 = vrot.lane.b32.xlu0 %v1570, 110
      %v1599 = vpop.permute.xlu0 %1598
      %1600 = vrot.lane.b32.xlu0 %v1571, 110
      %v1601 = vpop.permute.xlu0 %1600
      %1602 = vrot.lane.b32.xlu0 %v1572, 110
      %v1603 = vpop.permute.xlu0 %1602
      %1604 = vrot.lane.b32.xlu0 %v1573, 110
      %v1605 = vpop.permute.xlu0 %1604
      %1606 = vrot.lane.b32.xlu0 %v1574, 110
      %v1607 = vpop.permute.xlu0 %1606
      %1608 = vrot.lane.b32.xlu0 %v1575, 110
      %v1609 = vpop.permute.xlu0 %1608
      %1610 = vrot.lane.b32.xlu0 %v1576, 110
      %v1611 = vpop.permute.xlu0 %1610
      %1612 = vrot.lane.b32.xlu0 %v1577, 110
      %v1613 = vpop.permute.xlu0 %1612
      %1614 = vrot.lane.b32.xlu0 %v1578, 110
      %v1615 = vpop.permute.xlu0 %1614
      %1616 = vrot.lane.b32.xlu0 %v1579, 110
      %v1617 = vpop.permute.xlu0 %1616
      %1618 = vrot.lane.b32.xlu0 %v1580, 110
      %v1619 = vpop.permute.xlu0 %1618
      %1620 = vrot.lane.b32.xlu0 %v1581, 110
      %v1621 = vpop.permute.xlu0 %1620
      %1622 = vrot.lane.b32.xlu0 %v1582, 110
      %v1623 = vpop.permute.xlu0 %1622
      %1624 = vrot.lane.b32.xlu0 %v1583, 110
      %v1625 = vpop.permute.xlu0 %1624
      %1626 = vrot.lane.b32.xlu0 %v1584, 110
      %v1627 = vpop.permute.xlu0 %1626
      %1628 = vrot.lane.b32.xlu0 %v1585, 110
      %v1629 = vpop.permute.xlu0 %1628
      %1630 = vrot.lane.b32.xlu0 %v1586, 110
      %v1631 = vpop.permute.xlu0 %1630
      %1632 = vrot.lane.b32.xlu0 %v1587, 110
      %v1633 = vpop.permute.xlu0 %1632
      %1634 = vrot.lane.b32.xlu0 %v1588, 110
      %v1635 = vpop.permute.xlu0 %1634
      %1636 = vrot.lane.b32.xlu0 %v1589, 110
      %v1637 = vpop.permute.xlu0 %1636
      %vm1638 = vcmask 900096
      %v1639 = vsel %vm1638, %v1591, %v1593
      %v1640 = vsel %vm1638, %v1593, %v1595
      %v1641 = vsel %vm1638, %v1597, %v1599
      %v1642 = vsel %vm1638, %v1599, %v1601
      %v1643 = vsel %vm1638, %v1603, %v1605
      %v1644 = vsel %vm1638, %v1605, %v1607
      %v1645 = vsel %vm1638, %v1609, %v1611
      %v1646 = vsel %vm1638, %v1611, %v1613
      %v1647 = vsel %vm1638, %v1615, %v1617
      %v1648 = vsel %vm1638, %v1617, %v1619
      %v1649 = vsel %vm1638, %v1621, %v1623
      %v1650 = vsel %vm1638, %v1623, %v1625
      %v1651 = vsel %vm1638, %v1627, %v1629
      %v1652 = vsel %vm1638, %v1629, %v1631
      %v1653 = vsel %vm1638, %v1633, %v1635
      %v1654 = vsel %vm1638, %v1635, %v1637
      %v1687 = vunpack.c.l.b16 %v635
      %v1688 = vunpack.c.h.b16 %v635
      %v1689 = vunpack.c.l.b16 %v636
      %v1690 = vunpack.c.l.b16 %v637
      %v1691 = vunpack.c.h.b16 %v637
      %v1692 = vunpack.c.l.b16 %v638
      %v1693 = vunpack.c.l.b16 %v639
      %v1694 = vunpack.c.h.b16 %v639
      %v1695 = vunpack.c.l.b16 %v640
      %v1696 = vunpack.c.l.b16 %v641
      %v1697 = vunpack.c.h.b16 %v641
      %v1698 = vunpack.c.l.b16 %v642
      %v1699 = vunpack.c.l.b16 %v643
      %v1700 = vunpack.c.h.b16 %v643
      %v1701 = vunpack.c.l.b16 %v644
      %v1702 = vunpack.c.l.b16 %v645
      %v1703 = vunpack.c.h.b16 %v645
      %v1704 = vunpack.c.l.b16 %v646
      %v1705 = vunpack.c.l.b16 %v647
      %v1706 = vunpack.c.h.b16 %v647
      %v1707 = vunpack.c.l.b16 %v648
      %v1708 = vunpack.c.l.b16 %v649
      %v1709 = vunpack.c.h.b16 %v649
      %v1710 = vunpack.c.l.b16 %v650
      %v1711 = vunpack.c.l.b16 %v651
      %v1712 = vunpack.c.h.b16 %v651
      %v1713 = vunpack.c.l.b16 %v652
      %v1714 = vunpack.c.l.b16 %v653
      %v1715 = vunpack.c.h.b16 %v653
      %v1716 = vunpack.c.l.b16 %v654
      %v1717 = vunpack.c.l.b16 %v655
      %v1718 = vunpack.c.h.b16 %v655
      %v1719 = vunpack.c.l.b16 %v656
      %v1720 = vunpack.c.l.b16 %v657
      %v1721 = vunpack.c.h.b16 %v657
      %v1722 = vunpack.c.l.b16 %v658
      %v1723 = vunpack.c.l.b16 %v659
      %v1724 = vunpack.c.h.b16 %v659
      %v1725 = vunpack.c.l.b16 %v660
      %v1726 = vunpack.c.l.b16 %v661
      %v1727 = vunpack.c.h.b16 %v661
      %v1728 = vunpack.c.l.b16 %v662
      %v1729 = vunpack.c.l.b16 %v663
      %v1730 = vunpack.c.h.b16 %v663
      %v1731 = vunpack.c.l.b16 %v664
      %v1732 = vunpack.c.l.b16 %v665
      %v1733 = vunpack.c.h.b16 %v665
      %v1734 = vunpack.c.l.b16 %v666
      %v1735 = vpack.c.b16 %v1690, %v1687
      %v1736 = vpack.c.b16 %v1691, %v1688
      %v1737 = vpack.c.b16 %v1692, %v1689
      %v1738 = vpack.c.b16 %v1696, %v1693
      %v1739 = vpack.c.b16 %v1697, %v1694
      %v1740 = vpack.c.b16 %v1698, %v1695
      %v1741 = vpack.c.b16 %v1702, %v1699
      %v1742 = vpack.c.b16 %v1703, %v1700
      %v1743 = vpack.c.b16 %v1704, %v1701
      %v1744 = vpack.c.b16 %v1708, %v1705
      %v1745 = vpack.c.b16 %v1709, %v1706
      %v1746 = vpack.c.b16 %v1710, %v1707
      %v1747 = vpack.c.b16 %v1714, %v1711
      %v1748 = vpack.c.b16 %v1715, %v1712
      %v1749 = vpack.c.b16 %v1716, %v1713
      %v1750 = vpack.c.b16 %v1720, %v1717
      %v1751 = vpack.c.b16 %v1721, %v1718
      %v1752 = vpack.c.b16 %v1722, %v1719
      %v1753 = vpack.c.b16 %v1726, %v1723
      %v1754 = vpack.c.b16 %v1727, %v1724
      %v1755 = vpack.c.b16 %v1728, %v1725
      %v1756 = vpack.c.b16 %v1732, %v1729
      %v1757 = vpack.c.b16 %v1733, %v1730
      %v1758 = vpack.c.b16 %v1734, %v1731
      %1759 = vrot.lane.b32.xlu0 %v1735, 96
      %v1760 = vpop.permute.xlu0 %1759
      %1761 = vrot.lane.b32.xlu0 %v1736, 96
      %v1762 = vpop.permute.xlu0 %1761
      %1763 = vrot.lane.b32.xlu0 %v1737, 96
      %v1764 = vpop.permute.xlu0 %1763
      %1765 = vrot.lane.b32.xlu0 %v1738, 96
      %v1766 = vpop.permute.xlu0 %1765
      %1767 = vrot.lane.b32.xlu0 %v1739, 96
      %v1768 = vpop.permute.xlu0 %1767
      %1769 = vrot.lane.b32.xlu0 %v1740, 96
      %v1770 = vpop.permute.xlu0 %1769
      %1771 = vrot.lane.b32.xlu0 %v1741, 96
      %v1772 = vpop.permute.xlu0 %1771
      %1773 = vrot.lane.b32.xlu0 %v1742, 96
      %v1774 = vpop.permute.xlu0 %1773
      %1775 = vrot.lane.b32.xlu0 %v1743, 96
      %v1776 = vpop.permute.xlu0 %1775
      %1777 = vrot.lane.b32.xlu0 %v1744, 96
      %v1778 = vpop.permute.xlu0 %1777
      %1779 = vrot.lane.b32.xlu0 %v1745, 96
      %v1780 = vpop.permute.xlu0 %1779
      %1781 = vrot.lane.b32.xlu0 %v1746, 96
      %v1782 = vpop.permute.xlu0 %1781
      %1783 = vrot.lane.b32.xlu0 %v1747, 96
      %v1784 = vpop.permute.xlu0 %1783
      %1785 = vrot.lane.b32.xlu0 %v1748, 96
      %v1786 = vpop.permute.xlu0 %1785
      %1787 = vrot.lane.b32.xlu0 %v1749, 96
      %v1788 = vpop.permute.xlu0 %1787
      %1789 = vrot.lane.b32.xlu0 %v1750, 96
      %v1790 = vpop.permute.xlu0 %1789
      %1791 = vrot.lane.b32.xlu0 %v1751, 96
      %v1792 = vpop.permute.xlu0 %1791
      %1793 = vrot.lane.b32.xlu0 %v1752, 96
      %v1794 = vpop.permute.xlu0 %1793
      %1795 = vrot.lane.b32.xlu0 %v1753, 96
      %v1796 = vpop.permute.xlu0 %1795
      %1797 = vrot.lane.b32.xlu0 %v1754, 96
      %v1798 = vpop.permute.xlu0 %1797
      %1799 = vrot.lane.b32.xlu0 %v1755, 96
      %v1800 = vpop.permute.xlu0 %1799
      %1801 = vrot.lane.b32.xlu0 %v1756, 96
      %v1802 = vpop.permute.xlu0 %1801
      %1803 = vrot.lane.b32.xlu0 %v1757, 96
      %v1804 = vpop.permute.xlu0 %1803
      %1805 = vrot.lane.b32.xlu0 %v1758, 96
      %v1806 = vpop.permute.xlu0 %1805
      %vm1807 = vcmask 785408
      %v1808 = vsel %vm1807, %v1760, %v1762
      %v1809 = vsel %vm1807, %v1762, %v1764
      %v1810 = vsel %vm1807, %v1766, %v1768
      %v1811 = vsel %vm1807, %v1768, %v1770
      %v1812 = vsel %vm1807, %v1772, %v1774
      %v1813 = vsel %vm1807, %v1774, %v1776
      %v1814 = vsel %vm1807, %v1778, %v1780
      %v1815 = vsel %vm1807, %v1780, %v1782
      %v1816 = vsel %vm1807, %v1784, %v1786
      %v1817 = vsel %vm1807, %v1786, %v1788
      %v1818 = vsel %vm1807, %v1790, %v1792
      %v1819 = vsel %vm1807, %v1792, %v1794
      %v1820 = vsel %vm1807, %v1796, %v1798
      %v1821 = vsel %vm1807, %v1798, %v1800
      %v1822 = vsel %vm1807, %v1802, %v1804
      %v1823 = vsel %vm1807, %v1804, %v1806
      %1824 = vrot.lane.b32.xlu0 %v994, 95
      %v1825 = vpop.permute.xlu0 %1824
      %1826 = vrot.lane.b32.xlu0 %v995, 95
      %v1827 = vpop.permute.xlu0 %1826
      %1828 = vrot.lane.b32.xlu0 %v996, 95
      %v1829 = vpop.permute.xlu0 %1828
      %1830 = vrot.lane.b32.xlu0 %v997, 95
      %v1831 = vpop.permute.xlu0 %1830
      %1832 = vrot.lane.b32.xlu0 %v998, 95
      %v1833 = vpop.permute.xlu0 %1832
      %1834 = vrot.lane.b32.xlu0 %v999, 95
      %v1835 = vpop.permute.xlu0 %1834
      %1836 = vrot.lane.b32.xlu0 %v1000, 95
      %v1837 = vpop.permute.xlu0 %1836
      %1838 = vrot.lane.b32.xlu0 %v1001, 95
      %v1839 = vpop.permute.xlu0 %1838
      %1840 = vrot.lane.b32.xlu0 %v1002, 95
      %v1841 = vpop.permute.xlu0 %1840
      %1842 = vrot.lane.b32.xlu0 %v1003, 95
      %v1843 = vpop.permute.xlu0 %1842
      %1844 = vrot.lane.b32.xlu0 %v1004, 95
      %v1845 = vpop.permute.xlu0 %1844
      %1846 = vrot.lane.b32.xlu0 %v1005, 95
      %v1847 = vpop.permute.xlu0 %1846
      %1848 = vrot.lane.b32.xlu0 %v1006, 95
      %v1849 = vpop.permute.xlu0 %1848
      %1850 = vrot.lane.b32.xlu0 %v1007, 95
      %v1851 = vpop.permute.xlu0 %1850
      %1852 = vrot.lane.b32.xlu0 %v1008, 95
      %v1853 = vpop.permute.xlu0 %1852
      %1854 = vrot.lane.b32.xlu0 %v1009, 95
      %v1855 = vpop.permute.xlu0 %1854
      %1856 = vrot.lane.b32.xlu0 %v1010, 95
      %v1857 = vpop.permute.xlu0 %1856
      %1858 = vrot.lane.b32.xlu0 %v1011, 95
      %v1859 = vpop.permute.xlu0 %1858
      %1860 = vrot.lane.b32.xlu0 %v1012, 95
      %v1861 = vpop.permute.xlu0 %1860
      %1862 = vrot.lane.b32.xlu0 %v1013, 95
      %v1863 = vpop.permute.xlu0 %1862
      %1864 = vrot.lane.b32.xlu0 %v1014, 95
      %v1865 = vpop.permute.xlu0 %1864
      %1866 = vrot.lane.b32.xlu0 %v1015, 95
      %v1867 = vpop.permute.xlu0 %1866
      %1868 = vrot.lane.b32.xlu0 %v1016, 95
      %v1869 = vpop.permute.xlu0 %1868
      %1870 = vrot.lane.b32.xlu0 %v1017, 95
      %v1871 = vpop.permute.xlu0 %1870
      %vm1872 = vcmask 777216
      %v1873 = vsel %vm1872, %v1825, %v1827
      %v1874 = vsel %vm1872, %v1827, %v1829
      %v1875 = vsel %vm1872, %v1831, %v1833
      %v1876 = vsel %vm1872, %v1833, %v1835
      %v1877 = vsel %vm1872, %v1837, %v1839
      %v1878 = vsel %vm1872, %v1839, %v1841
      %v1879 = vsel %vm1872, %v1843, %v1845
      %v1880 = vsel %vm1872, %v1845, %v1847
      %v1881 = vsel %vm1872, %v1849, %v1851
      %v1882 = vsel %vm1872, %v1851, %v1853
      %v1883 = vsel %vm1872, %v1855, %v1857
      %v1884 = vsel %vm1872, %v1857, %v1859
      %v1885 = vsel %vm1872, %v1861, %v1863
      %v1886 = vsel %vm1872, %v1863, %v1865
      %v1887 = vsel %vm1872, %v1867, %v1869
      %v1888 = vsel %vm1872, %v1869, %v1871
      %v1921 = vunpack.c.l.b16 %v686
      %v1922 = vunpack.c.h.b16 %v686
      %v1923 = vunpack.c.l.b16 %v687
      %v1924 = vunpack.c.l.b16 %v688
      %v1925 = vunpack.c.h.b16 %v688
      %v1926 = vunpack.c.l.b16 %v689
      %v1927 = vunpack.c.l.b16 %v690
      %v1928 = vunpack.c.h.b16 %v690
      %v1929 = vunpack.c.l.b16 %v691
      %v1930 = vunpack.c.l.b16 %v692
      %v1931 = vunpack.c.h.b16 %v692
      %v1932 = vunpack.c.l.b16 %v693
      %v1933 = vunpack.c.l.b16 %v694
      %v1934 = vunpack.c.h.b16 %v694
      %v1935 = vunpack.c.l.b16 %v695
      %v1936 = vunpack.c.l.b16 %v696
      %v1937 = vunpack.c.h.b16 %v696
      %v1938 = vunpack.c.l.b16 %v697
      %v1939 = vunpack.c.l.b16 %v698
      %v1940 = vunpack.c.h.b16 %v698
      %v1941 = vunpack.c.l.b16 %v699
      %v1942 = vunpack.c.l.b16 %v700
      %v1943 = vunpack.c.h.b16 %v700
      %v1944 = vunpack.c.l.b16 %v701
      %v1945 = vunpack.c.l.b16 %v702
      %v1946 = vunpack.c.h.b16 %v702
      %v1947 = vunpack.c.l.b16 %v703
      %v1948 = vunpack.c.l.b16 %v704
      %v1949 = vunpack.c.h.b16 %v704
      %v1950 = vunpack.c.l.b16 %v705
      %v1951 = vunpack.c.l.b16 %v706
      %v1952 = vunpack.c.h.b16 %v706
      %v1953 = vunpack.c.l.b16 %v707
      %v1954 = vunpack.c.l.b16 %v708
      %v1955 = vunpack.c.h.b16 %v708
      %v1956 = vunpack.c.l.b16 %v709
      %v1957 = vunpack.c.l.b16 %v710
      %v1958 = vunpack.c.h.b16 %v710
      %v1959 = vunpack.c.l.b16 %v711
      %v1960 = vunpack.c.l.b16 %v712
      %v1961 = vunpack.c.h.b16 %v712
      %v1962 = vunpack.c.l.b16 %v713
      %v1963 = vunpack.c.l.b16 %v714
      %v1964 = vunpack.c.h.b16 %v714
      %v1965 = vunpack.c.l.b16 %v715
      %v1966 = vunpack.c.l.b16 %v716
      %v1967 = vunpack.c.h.b16 %v716
      %v1968 = vunpack.c.l.b16 %v717
      %v1969 = vpack.c.b16 %v1924, %v1921
      %v1970 = vpack.c.b16 %v1925, %v1922
      %v1971 = vpack.c.b16 %v1926, %v1923
      %v1972 = vpack.c.b16 %v1930, %v1927
      %v1973 = vpack.c.b16 %v1931, %v1928
      %v1974 = vpack.c.b16 %v1932, %v1929
      %v1975 = vpack.c.b16 %v1936, %v1933
      %v1976 = vpack.c.b16 %v1937, %v1934
      %v1977 = vpack.c.b16 %v1938, %v1935
      %v1978 = vpack.c.b16 %v1942, %v1939
      %v1979 = vpack.c.b16 %v1943, %v1940
      %v1980 = vpack.c.b16 %v1944, %v1941
      %v1981 = vpack.c.b16 %v1948, %v1945
      %v1982 = vpack.c.b16 %v1949, %v1946
      %v1983 = vpack.c.b16 %v1950, %v1947
      %v1984 = vpack.c.b16 %v1954, %v1951
      %v1985 = vpack.c.b16 %v1955, %v1952
      %v1986 = vpack.c.b16 %v1956, %v1953
      %v1987 = vpack.c.b16 %v1960, %v1957
      %v1988 = vpack.c.b16 %v1961, %v1958
      %v1989 = vpack.c.b16 %v1962, %v1959
      %v1990 = vpack.c.b16 %v1966, %v1963
      %v1991 = vpack.c.b16 %v1967, %v1964
      %v1992 = vpack.c.b16 %v1968, %v1965
      %1993 = vrot.lane.b32.xlu0 %v1969, 94
      %v1994 = vpop.permute.xlu0 %1993
      %1995 = vrot.lane.b32.xlu0 %v1970, 94
      %v1996 = vpop.permute.xlu0 %1995
      %1997 = vrot.lane.b32.xlu0 %v1971, 94
      %v1998 = vpop.permute.xlu0 %1997
      %1999 = vrot.lane.b32.xlu0 %v1972, 94
      %v2000 = vpop.permute.xlu0 %1999
      %2001 = vrot.lane.b32.xlu0 %v1973, 94
      %v2002 = vpop.permute.xlu0 %2001
      %2003 = vrot.lane.b32.xlu0 %v1974, 94
      %v2004 = vpop.permute.xlu0 %2003
      %2005 = vrot.lane.b32.xlu0 %v1975, 94
      %v2006 = vpop.permute.xlu0 %2005
      %2007 = vrot.lane.b32.xlu0 %v1976, 94
      %v2008 = vpop.permute.xlu0 %2007
      %2009 = vrot.lane.b32.xlu0 %v1977, 94
      %v2010 = vpop.permute.xlu0 %2009
      %2011 = vrot.lane.b32.xlu0 %v1978, 94
      %v2012 = vpop.permute.xlu0 %2011
      %2013 = vrot.lane.b32.xlu0 %v1979, 94
      %v2014 = vpop.permute.xlu0 %2013
      %2015 = vrot.lane.b32.xlu0 %v1980, 94
      %v2016 = vpop.permute.xlu0 %2015
      %2017 = vrot.lane.b32.xlu0 %v1981, 94
      %v2018 = vpop.permute.xlu0 %2017
      %2019 = vrot.lane.b32.xlu0 %v1982, 94
      %v2020 = vpop.permute.xlu0 %2019
      %2021 = vrot.lane.b32.xlu0 %v1983, 94
      %v2022 = vpop.permute.xlu0 %2021
      %2023 = vrot.lane.b32.xlu0 %v1984, 94
      %v2024 = vpop.permute.xlu0 %2023
      %2025 = vrot.lane.b32.xlu0 %v1985, 94
      %v2026 = vpop.permute.xlu0 %2025
      %2027 = vrot.lane.b32.xlu0 %v1986, 94
      %v2028 = vpop.permute.xlu0 %2027
      %2029 = vrot.lane.b32.xlu0 %v1987, 94
      %v2030 = vpop.permute.xlu0 %2029
      %2031 = vrot.lane.b32.xlu0 %v1988, 94
      %v2032 = vpop.permute.xlu0 %2031
      %2033 = vrot.lane.b32.xlu0 %v1989, 94
      %v2034 = vpop.permute.xlu0 %2033
      %2035 = vrot.lane.b32.xlu0 %v1990, 94
      %v2036 = vpop.permute.xlu0 %2035
      %2037 = vrot.lane.b32.xlu0 %v1991, 94
      %v2038 = vpop.permute.xlu0 %2037
      %2039 = vrot.lane.b32.xlu0 %v1992, 94
      %v2040 = vpop.permute.xlu0 %2039
      %vm2041 = vcmask 769024
      %v2042 = vsel %vm2041, %v1994, %v1996
      %v2043 = vsel %vm2041, %v1996, %v1998
      %v2044 = vsel %vm2041, %v2000, %v2002
      %v2045 = vsel %vm2041, %v2002, %v2004
      %v2046 = vsel %vm2041, %v2006, %v2008
      %v2047 = vsel %vm2041, %v2008, %v2010
      %v2048 = vsel %vm2041, %v2012, %v2014
      %v2049 = vsel %vm2041, %v2014, %v2016
      %v2050 = vsel %vm2041, %v2018, %v2020
      %v2051 = vsel %vm2041, %v2020, %v2022
      %v2052 = vsel %vm2041, %v2024, %v2026
      %v2053 = vsel %vm2041, %v2026, %v2028
      %v2054 = vsel %vm2041, %v2030, %v2032
      %v2055 = vsel %vm2041, %v2032, %v2034
      %v2056 = vsel %vm2041, %v2036, %v2038
      %v2057 = vsel %vm2041, %v2038, %v2040
      %v2059 = vunpack.c.l.b16 %v737
      %v2060 = vunpack.c.h.b16 %v737
      %v2061 = vpack.c.b16 %v2059, %v2059
      %v2062 = vpack.c.b16 %v2060, %v2060
      %2063 = vrot.lane.b32.xlu0 %v2061, 7
      %v2064 = vpop.permute.xlu0 %2063
      %2065 = vrot.lane.b32.xlu0 %v2062, 7
      %v2066 = vpop.permute.xlu0 %2065
      %v2067 = vsel %vm413, %v2064, %v2066
      %v2070 = vunpack.c.l.b16 %v738
      %v2071 = vunpack.c.h.b16 %v738
      %v2072 = vunpack.c.l.b16 %v739
      %v2073 = vpack.c.b16 %v2070, %v2070
      %v2074 = vpack.c.b16 %v2071, %v2071
      %v2075 = vpack.c.b16 %v2072, %v2072
      %2076 = vrot.lane.b32.xlu0 %v2073, 127
      %v2077 = vpop.permute.xlu0 %2076
      %2078 = vrot.lane.b32.xlu0 %v2074, 127
      %v2079 = vpop.permute.xlu0 %2078
      %2080 = vrot.lane.b32.xlu0 %v2075, 127
      %v2081 = vpop.permute.xlu0 %2080
      %v2082 = vsel %vm1066, %v2077, %v2079
      %v2083 = vsel %vm1066, %v2079, %v2081
      %v2085 = vunpack.c.l.b16 %v753
      %v2086 = vunpack.c.h.b16 %v753
      %v2087 = vpack.c.b16 %v2085, %v2085
      %v2088 = vpack.c.b16 %v2086, %v2086
      %2089 = vrot.lane.b32.xlu0 %v2087, 7
      %v2090 = vpop.permute.xlu0 %2089
      %2091 = vrot.lane.b32.xlu0 %v2088, 7
      %v2092 = vpop.permute.xlu0 %2091
      %v2093 = vsel %vm413, %v2090, %v2092
      %v2095 = vunpack.c.l.b16 %v767
      %v2096 = vunpack.c.h.b16 %v767
      %v2097 = vpack.c.b16 %v2095, %v2095
      %v2098 = vpack.c.b16 %v2096, %v2096
      %2099 = vrot.lane.b32.xlu0 %v2097, 7
      %v2100 = vpop.permute.xlu0 %2099
      %2101 = vrot.lane.b32.xlu0 %v2098, 7
      %v2102 = vpop.permute.xlu0 %2101
      %v2103 = vsel %vm413, %v2100, %v2102
      %2104 = vrot.lane.b32.xlu0 %v2073, 111
      %v2105 = vpop.permute.xlu0 %2104
      %2106 = vrot.lane.b32.xlu0 %v2074, 111
      %v2107 = vpop.permute.xlu0 %2106
      %2108 = vrot.lane.b32.xlu0 %v2075, 111
      %v2109 = vpop.permute.xlu0 %2108
      %v2110 = vsel %vm1469, %v2105, %v2107
      %v2111 = vsel %vm1469, %v2107, %v2109
      %v2113 = vunpack.c.l.b16 %v781
      %v2114 = vunpack.c.h.b16 %v781
      %v2115 = vpack.c.b16 %v2113, %v2113
      %v2116 = vpack.c.b16 %v2114, %v2114
      %2117 = vrot.lane.b32.xlu0 %v2115, 7
      %v2118 = vpop.permute.xlu0 %2117
      %2119 = vrot.lane.b32.xlu0 %v2116, 7
      %v2120 = vpop.permute.xlu0 %2119
      %v2121 = vsel %vm413, %v2118, %v2120
      %v2123 = vunpack.c.l.b16 %v795
      %v2124 = vunpack.c.h.b16 %v795
      %v2125 = vpack.c.b16 %v2123, %v2123
      %v2126 = vpack.c.b16 %v2124, %v2124
      %2127 = vrot.lane.b32.xlu0 %v2125, 7
      %v2128 = vpop.permute.xlu0 %2127
      %2129 = vrot.lane.b32.xlu0 %v2126, 7
      %v2130 = vpop.permute.xlu0 %2129
      %v2131 = vsel %vm413, %v2128, %v2130
      %vm2132 = vcmask 1043456
      %v2135 = vsel %vm2132, %v2064, %v2082
      %v2138 = vsel %vm2132, %v2067, %v2083
      %v2141 = vsel %vm2132, %v2066, %v2081
      %v2144 = vsel %vm2132, %v2090, %v2100
      %v2147 = vsel %vm2132, %v2093, %v2103
      %v2150 = vsel %vm2132, %v2092, %v2102
      %v2153 = vsel %vm2132, %v2110, %v2118
      %v2156 = vsel %vm2132, %v2111, %v2121
      %v2159 = vsel %vm2132, %v2109, %v2120
      %v2161 = vunpack.c.l.b16 %v809
      %v2162 = vunpack.c.h.b16 %v809
      %v2163 = vpack.c.b16 %v2161, %v2161
      %v2164 = vpack.c.b16 %v2162, %v2162
      %2165 = vrot.lane.b32.xlu0 %v2163, 40
      %v2166 = vpop.permute.xlu0 %2165
      %2167 = vrot.lane.b32.xlu0 %v2164, 40
      %v2168 = vpop.permute.xlu0 %2167
      %vm2169 = vcmask 326656
      %v2170 = vsel %vm2169, %v2166, %v2168
      %v2173 = vsel %vm2132, %v2073, %v2166
      %v2176 = vsel %vm2132, %v2074, %v2170
      %v2179 = vsel %vm2132, %v2075, %v2168
      %v2183 = vrot.slane %v2173, 4
      %v2184 = vrot.slane %v2176, 4
      %v2185 = vrot.slane %v2179, 4
      %2186 = vrot.lane.b32.xlu0 %v2183, 95
      %v2187 = vpop.permute.xlu0 %2186
      %2188 = vrot.lane.b32.xlu0 %v2184, 95
      %v2189 = vpop.permute.xlu0 %2188
      %2190 = vrot.lane.b32.xlu0 %v2185, 95
      %v2191 = vpop.permute.xlu0 %2190
      %v2192 = vsel %vm1872, %v2187, %v2189
      %v2193 = vsel %vm1872, %v2189, %v2191
      %v2196 = vsel %vm2132, %v2128, %v2192
      %v2199 = vsel %vm2132, %v2131, %v2193
      %v2202 = vsel %vm2132, %v2130, %v2191
      %v2203 = vld [vmem:[%s2] sm:$0xff]
      %v2204 = vld [vmem:[%s2 + $0x8] sm:$0xff]
      %v2205 = vld [vmem:[%s2 + $0x10] sm:$0xff]
      %v2206 = vld [vmem:[%s2 + $0x18] sm:$0xff]
      %v2207 = vld [vmem:[%s2 + $0x20] sm:$0xff]
      %v2208 = vld [vmem:[%s2 + $0x28] sm:$0xff]
      %v2209 = vld [vmem:[%s2 + $0x30] sm:$0xff]
      %v2210 = vld [vmem:[%s2 + $0x38] sm:$0xff]
      %v2211 = vld [vmem:[%s2 + $0x40] sm:$0xff]
      %v2212 = vld [vmem:[%s2 + $0x48] sm:$0xff]
      %v2213 = vld [vmem:[%s2 + $0x50] sm:$0xff]
      %v2214 = vld [vmem:[%s2 + $0x58] sm:$0xff]
      %v2215 = vld [vmem:[%s2 + $0x60] sm:$0xff]
      %v2216 = vld [vmem:[%s2 + $0x68] sm:$0xff]
      %v2217 = vld [vmem:[%s2 + $0x70] sm:$0xff]
      %v2218 = vld [vmem:[%s2 + $0x78] sm:$0xff]
      %v2219 = vld [vmem:[%s2 + $0x80] sm:$0xff]
      %v2220 = vld [vmem:[%s2 + $0x88] sm:$0xff]
      %v2221 = vld [vmem:[%s2 + $0x90] sm:$0xff]
      %v2222 = vld [vmem:[%s2 + $0x98] sm:$0xff]
      %v2223 = vld [vmem:[%s3] sm:$0xff]
      %v2224 = vld [vmem:[%s3 + $0x8] sm:$0xff]
      %v2225 = vld [vmem:[%s3 + $0x10] sm:$0xff]
      %v2226 = vld [vmem:[%s3 + $0x18] sm:$0xff]
      %2228 = vset.pattern.permute.xlu0 0
      %2229 = vperm.xlu0 %2228, %v2223
      %v2230 = vpop.permute.xlu0 %2229
      %2233 = vset.pattern.permute.xlu0 0
      %2234 = vperm.xlu0 %2233, %v2224
      %v2235 = vpop.permute.xlu0 %2234
      %2238 = vset.pattern.permute.xlu0 0
      %2239 = vperm.xlu0 %2238, %v2225
      %v2240 = vpop.permute.xlu0 %2239
      %2243 = vset.pattern.permute.xlu0 0
      %2244 = vperm.xlu0 %2243, %v2226
      %v2245 = vpop.permute.xlu0 %2244
      %v2267 = vunpack.c.l.b16 %v2203
      %v2268 = vunpack.c.h.b16 %v2203
      %v2269 = vunpack.c.l.b16 %v2204
      %v2270 = vunpack.c.h.b16 %v2204
      %v2271 = vunpack.c.l.b16 %v2205
      %v2272 = vunpack.c.h.b16 %v2205
      %v2273 = vunpack.c.l.b16 %v2206
      %v2274 = vunpack.c.h.b16 %v2206
      %v2275 = vunpack.c.l.b16 %v2207
      %v2276 = vunpack.c.h.b16 %v2207
      %v2277 = vunpack.c.l.b16 %v2208
      %v2278 = vunpack.c.h.b16 %v2208
      %v2279 = vunpack.c.l.b16 %v2209
      %v2280 = vunpack.c.h.b16 %v2209
      %v2281 = vunpack.c.l.b16 %v2210
      %v2282 = vunpack.c.h.b16 %v2210
      %v2283 = vunpack.c.l.b16 %v2211
      %v2284 = vunpack.c.h.b16 %v2211
      %v2285 = vunpack.c.l.b16 %v2212
      %v2286 = vunpack.c.h.b16 %v2212
      %v2287 = vunpack.c.l.b16 %v2213
      %v2288 = vunpack.c.h.b16 %v2213
      %v2289 = vunpack.c.l.b16 %v2214
      %v2290 = vunpack.c.h.b16 %v2214
      %v2291 = vunpack.c.l.b16 %v2215
      %v2292 = vunpack.c.h.b16 %v2215
      %v2293 = vunpack.c.l.b16 %v2216
      %v2294 = vunpack.c.h.b16 %v2216
      %v2295 = vunpack.c.l.b16 %v2217
      %v2296 = vunpack.c.h.b16 %v2217
      %v2297 = vunpack.c.l.b16 %v2218
      %v2298 = vunpack.c.h.b16 %v2218
      %v2299 = vunpack.c.l.b16 %v2219
      %v2300 = vunpack.c.h.b16 %v2219
      %v2301 = vunpack.c.l.b16 %v2220
      %v2302 = vunpack.c.h.b16 %v2220
      %v2303 = vunpack.c.l.b16 %v2221
      %v2304 = vunpack.c.h.b16 %v2221
      %v2305 = vunpack.c.l.b16 %v2222
      %v2306 = vunpack.c.h.b16 %v2222
      %v2307 = vpack.c.b16 %v2277, %v2267
      %v2308 = vpack.c.b16 %v2278, %v2268
      %v2309 = vpack.c.b16 %v2279, %v2269
      %v2310 = vpack.c.b16 %v2280, %v2270
      %v2311 = vpack.c.b16 %v2281, %v2271
      %v2312 = vpack.c.b16 %v2282, %v2272
      %v2313 = vpack.c.b16 %v2283, %v2273
      %v2314 = vpack.c.b16 %v2284, %v2274
      %v2315 = vpack.c.b16 %v2285, %v2275
      %v2316 = vpack.c.b16 %v2286, %v2276
      %v2317 = vpack.c.b16 %v2297, %v2287
      %v2318 = vpack.c.b16 %v2298, %v2288
      %v2319 = vpack.c.b16 %v2299, %v2289
      %v2320 = vpack.c.b16 %v2300, %v2290
      %v2321 = vpack.c.b16 %v2301, %v2291
      %v2322 = vpack.c.b16 %v2302, %v2292
      %v2323 = vpack.c.b16 %v2303, %v2293
      %v2324 = vpack.c.b16 %v2304, %v2294
      %v2325 = vpack.c.b16 %v2305, %v2295
      %v2326 = vpack.c.b16 %v2306, %v2296
      %2357 = vrot.lane.b32.xlu0 %v890, 121
      %v2358 = vpop.permute.xlu0 %2357
      %2359 = vrot.lane.b32.xlu0 %v891, 121
      %v2360 = vpop.permute.xlu0 %2359
      %2361 = vrot.lane.b32.xlu0 %v892, 121
      %v2362 = vpop.permute.xlu0 %2361
      %2363 = vrot.lane.b32.xlu0 %v893, 121
      %v2364 = vpop.permute.xlu0 %2363
      %2365 = vrot.lane.b32.xlu0 %v894, 121
      %v2366 = vpop.permute.xlu0 %2365
      %2367 = vrot.lane.b32.xlu0 %v895, 121
      %v2368 = vpop.permute.xlu0 %2367
      %2369 = vrot.lane.b32.xlu0 %v896, 121
      %v2370 = vpop.permute.xlu0 %2369
      %2371 = vrot.lane.b32.xlu0 %v897, 121
      %v2372 = vpop.permute.xlu0 %2371
      %2373 = vrot.lane.b32.xlu0 %v898, 121
      %v2374 = vpop.permute.xlu0 %2373
      %2375 = vrot.lane.b32.xlu0 %v899, 121
      %v2376 = vpop.permute.xlu0 %2375
      %2377 = vrot.lane.b32.xlu0 %v900, 121
      %v2378 = vpop.permute.xlu0 %2377
      %2379 = vrot.lane.b32.xlu0 %v901, 121
      %v2380 = vpop.permute.xlu0 %2379
      %2381 = vrot.lane.b32.xlu0 %v902, 121
      %v2382 = vpop.permute.xlu0 %2381
      %2383 = vrot.lane.b32.xlu0 %v903, 121
      %v2384 = vpop.permute.xlu0 %2383
      %2385 = vrot.lane.b32.xlu0 %v904, 121
      %v2386 = vpop.permute.xlu0 %2385
      %2387 = vrot.lane.b32.xlu0 %v905, 121
      %v2388 = vpop.permute.xlu0 %2387
      %2389 = vrot.lane.b32.xlu0 %v906, 121
      %v2390 = vpop.permute.xlu0 %2389
      %2391 = vrot.lane.b32.xlu0 %v907, 121
      %v2392 = vpop.permute.xlu0 %2391
      %2393 = vrot.lane.b32.xlu0 %v908, 121
      %v2394 = vpop.permute.xlu0 %2393
      %2395 = vrot.lane.b32.xlu0 %v909, 121
      %v2396 = vpop.permute.xlu0 %2395
      %2397 = vrot.lane.b32.xlu0 %v910, 121
      %v2398 = vpop.permute.xlu0 %2397
      %2399 = vrot.lane.b32.xlu0 %v911, 121
      %v2400 = vpop.permute.xlu0 %2399
      %2401 = vrot.lane.b32.xlu0 %v912, 121
      %v2402 = vpop.permute.xlu0 %2401
      %2403 = vrot.lane.b32.xlu0 %v913, 121
      %v2404 = vpop.permute.xlu0 %2403
      %2405 = vrot.lane.b32.xlu0 %v1067, 121
      %v2406 = vpop.permute.xlu0 %2405
      %2407 = vrot.lane.b32.xlu0 %v1068, 121
      %v2408 = vpop.permute.xlu0 %2407
      %2409 = vrot.lane.b32.xlu0 %v1023, 121
      %v2410 = vpop.permute.xlu0 %2409
      %2411 = vrot.lane.b32.xlu0 %v1069, 121
      %v2412 = vpop.permute.xlu0 %2411
      %2413 = vrot.lane.b32.xlu0 %v1070, 121
      %v2414 = vpop.permute.xlu0 %2413
      %2415 = vrot.lane.b32.xlu0 %v1029, 121
      %v2416 = vpop.permute.xlu0 %2415
      %2417 = vrot.lane.b32.xlu0 %v1071, 121
      %v2418 = vpop.permute.xlu0 %2417
      %2419 = vrot.lane.b32.xlu0 %v1072, 121
      %v2420 = vpop.permute.xlu0 %2419
      %2421 = vrot.lane.b32.xlu0 %v1035, 121
      %v2422 = vpop.permute.xlu0 %2421
      %2423 = vrot.lane.b32.xlu0 %v1073, 121
      %v2424 = vpop.permute.xlu0 %2423
      %2425 = vrot.lane.b32.xlu0 %v1074, 121
      %v2426 = vpop.permute.xlu0 %2425
      %2427 = vrot.lane.b32.xlu0 %v1041, 121
      %v2428 = vpop.permute.xlu0 %2427
      %2429 = vrot.lane.b32.xlu0 %v1075, 121
      %v2430 = vpop.permute.xlu0 %2429
      %2431 = vrot.lane.b32.xlu0 %v1076, 121
      %v2432 = vpop.permute.xlu0 %2431
      %2433 = vrot.lane.b32.xlu0 %v1047, 121
      %v2434 = vpop.permute.xlu0 %2433
      %2435 = vrot.lane.b32.xlu0 %v1077, 121
      %v2436 = vpop.permute.xlu0 %2435
      %2437 = vrot.lane.b32.xlu0 %v1078, 121
      %v2438 = vpop.permute.xlu0 %2437
      %2439 = vrot.lane.b32.xlu0 %v1053, 121
      %v2440 = vpop.permute.xlu0 %2439
      %2441 = vrot.lane.b32.xlu0 %v1079, 121
      %v2442 = vpop.permute.xlu0 %2441
      %2443 = vrot.lane.b32.xlu0 %v1080, 121
      %v2444 = vpop.permute.xlu0 %2443
      %2445 = vrot.lane.b32.xlu0 %v1059, 121
      %v2446 = vpop.permute.xlu0 %2445
      %2447 = vrot.lane.b32.xlu0 %v1081, 121
      %v2448 = vpop.permute.xlu0 %2447
      %2449 = vrot.lane.b32.xlu0 %v1082, 121
      %v2450 = vpop.permute.xlu0 %2449
      %2451 = vrot.lane.b32.xlu0 %v1065, 121
      %v2452 = vpop.permute.xlu0 %2451
      %2453 = vrot.lane.b32.xlu0 %v1236, 121
      %v2454 = vpop.permute.xlu0 %2453
      %2455 = vrot.lane.b32.xlu0 %v1237, 121
      %v2456 = vpop.permute.xlu0 %2455
      %2457 = vrot.lane.b32.xlu0 %v1192, 121
      %v2458 = vpop.permute.xlu0 %2457
      %2459 = vrot.lane.b32.xlu0 %v1238, 121
      %v2460 = vpop.permute.xlu0 %2459
      %2461 = vrot.lane.b32.xlu0 %v1239, 121
      %v2462 = vpop.permute.xlu0 %2461
      %2463 = vrot.lane.b32.xlu0 %v1198, 121
      %v2464 = vpop.permute.xlu0 %2463
      %2465 = vrot.lane.b32.xlu0 %v1240, 121
      %v2466 = vpop.permute.xlu0 %2465
      %2467 = vrot.lane.b32.xlu0 %v1241, 121
      %v2468 = vpop.permute.xlu0 %2467
      %2469 = vrot.lane.b32.xlu0 %v1204, 121
      %v2470 = vpop.permute.xlu0 %2469
      %2471 = vrot.lane.b32.xlu0 %v1242, 121
      %v2472 = vpop.permute.xlu0 %2471
      %2473 = vrot.lane.b32.xlu0 %v1243, 121
      %v2474 = vpop.permute.xlu0 %2473
      %2475 = vrot.lane.b32.xlu0 %v1210, 121
      %v2476 = vpop.permute.xlu0 %2475
      %2477 = vrot.lane.b32.xlu0 %v1244, 121
      %v2478 = vpop.permute.xlu0 %2477
      %2479 = vrot.lane.b32.xlu0 %v1245, 121
      %v2480 = vpop.permute.xlu0 %2479
      %2481 = vrot.lane.b32.xlu0 %v1216, 121
      %v2482 = vpop.permute.xlu0 %2481
      %2483 = vrot.lane.b32.xlu0 %v1246, 121
      %v2484 = vpop.permute.xlu0 %2483
      %2485 = vrot.lane.b32.xlu0 %v1247, 121
      %v2486 = vpop.permute.xlu0 %2485
      %2487 = vrot.lane.b32.xlu0 %v1222, 121
      %v2488 = vpop.permute.xlu0 %2487
      %2489 = vrot.lane.b32.xlu0 %v1248, 121
      %v2490 = vpop.permute.xlu0 %2489
      %2491 = vrot.lane.b32.xlu0 %v1249, 121
      %v2492 = vpop.permute.xlu0 %2491
      %2493 = vrot.lane.b32.xlu0 %v1228, 121
      %v2494 = vpop.permute.xlu0 %2493
      %2495 = vrot.lane.b32.xlu0 %v1250, 121
      %v2496 = vpop.permute.xlu0 %2495
      %2497 = vrot.lane.b32.xlu0 %v1251, 121
      %v2498 = vpop.permute.xlu0 %2497
      %2499 = vrot.lane.b32.xlu0 %v1234, 121
      %v2500 = vpop.permute.xlu0 %2499
      %2501 = vrot.lane.b32.xlu0 %v1405, 121
      %v2502 = vpop.permute.xlu0 %2501
      %2503 = vrot.lane.b32.xlu0 %v1406, 121
      %v2504 = vpop.permute.xlu0 %2503
      %2505 = vrot.lane.b32.xlu0 %v1361, 121
      %v2506 = vpop.permute.xlu0 %2505
      %2507 = vrot.lane.b32.xlu0 %v1407, 121
      %v2508 = vpop.permute.xlu0 %2507
      %2509 = vrot.lane.b32.xlu0 %v1408, 121
      %v2510 = vpop.permute.xlu0 %2509
      %2511 = vrot.lane.b32.xlu0 %v1367, 121
      %v2512 = vpop.permute.xlu0 %2511
      %2513 = vrot.lane.b32.xlu0 %v1409, 121
      %v2514 = vpop.permute.xlu0 %2513
      %2515 = vrot.lane.b32.xlu0 %v1410, 121
      %v2516 = vpop.permute.xlu0 %2515
      %2517 = vrot.lane.b32.xlu0 %v1373, 121
      %v2518 = vpop.permute.xlu0 %2517
      %2519 = vrot.lane.b32.xlu0 %v1411, 121
      %v2520 = vpop.permute.xlu0 %2519
      %2521 = vrot.lane.b32.xlu0 %v1412, 121
      %v2522 = vpop.permute.xlu0 %2521
      %2523 = vrot.lane.b32.xlu0 %v1379, 121
      %v2524 = vpop.permute.xlu0 %2523
      %2525 = vrot.lane.b32.xlu0 %v1413, 121
      %v2526 = vpop.permute.xlu0 %2525
      %2527 = vrot.lane.b32.xlu0 %v1414, 121
      %v2528 = vpop.permute.xlu0 %2527
      %2529 = vrot.lane.b32.xlu0 %v1385, 121
      %v2530 = vpop.permute.xlu0 %2529
      %2531 = vrot.lane.b32.xlu0 %v1415, 121
      %v2532 = vpop.permute.xlu0 %2531
      %2533 = vrot.lane.b32.xlu0 %v1416, 121
      %v2534 = vpop.permute.xlu0 %2533
      %2535 = vrot.lane.b32.xlu0 %v1391, 121
      %v2536 = vpop.permute.xlu0 %2535
      %2537 = vrot.lane.b32.xlu0 %v1417, 121
      %v2538 = vpop.permute.xlu0 %2537
      %2539 = vrot.lane.b32.xlu0 %v1418, 121
      %v2540 = vpop.permute.xlu0 %2539
      %2541 = vrot.lane.b32.xlu0 %v1397, 121
      %v2542 = vpop.permute.xlu0 %2541
      %2543 = vrot.lane.b32.xlu0 %v1419, 121
      %v2544 = vpop.permute.xlu0 %2543
      %2545 = vrot.lane.b32.xlu0 %v1420, 121
      %v2546 = vpop.permute.xlu0 %2545
      %2547 = vrot.lane.b32.xlu0 %v1403, 121
      %v2548 = vpop.permute.xlu0 %2547
      %2549 = vrot.lane.b32.xlu0 %v1470, 121
      %v2550 = vpop.permute.xlu0 %2549
      %2551 = vrot.lane.b32.xlu0 %v1471, 121
      %v2552 = vpop.permute.xlu0 %2551
      %2553 = vrot.lane.b32.xlu0 %v1426, 121
      %v2554 = vpop.permute.xlu0 %2553
      %2555 = vrot.lane.b32.xlu0 %v1472, 121
      %v2556 = vpop.permute.xlu0 %2555
      %2557 = vrot.lane.b32.xlu0 %v1473, 121
      %v2558 = vpop.permute.xlu0 %2557
      %2559 = vrot.lane.b32.xlu0 %v1432, 121
      %v2560 = vpop.permute.xlu0 %2559
      %2561 = vrot.lane.b32.xlu0 %v1474, 121
      %v2562 = vpop.permute.xlu0 %2561
      %2563 = vrot.lane.b32.xlu0 %v1475, 121
      %v2564 = vpop.permute.xlu0 %2563
      %2565 = vrot.lane.b32.xlu0 %v1438, 121
      %v2566 = vpop.permute.xlu0 %2565
      %2567 = vrot.lane.b32.xlu0 %v1476, 121
      %v2568 = vpop.permute.xlu0 %2567
      %2569 = vrot.lane.b32.xlu0 %v1477, 121
      %v2570 = vpop.permute.xlu0 %2569
      %2571 = vrot.lane.b32.xlu0 %v1444, 121
      %v2572 = vpop.permute.xlu0 %2571
      %2573 = vrot.lane.b32.xlu0 %v1478, 121
      %v2574 = vpop.permute.xlu0 %2573
      %2575 = vrot.lane.b32.xlu0 %v1479, 121
      %v2576 = vpop.permute.xlu0 %2575
      %2577 = vrot.lane.b32.xlu0 %v1450, 121
      %v2578 = vpop.permute.xlu0 %2577
      %2579 = vrot.lane.b32.xlu0 %v1480, 121
      %v2580 = vpop.permute.xlu0 %2579
      %2581 = vrot.lane.b32.xlu0 %v1481, 121
      %v2582 = vpop.permute.xlu0 %2581
      %2583 = vrot.lane.b32.xlu0 %v1456, 121
      %v2584 = vpop.permute.xlu0 %2583
      %2585 = vrot.lane.b32.xlu0 %v1482, 121
      %v2586 = vpop.permute.xlu0 %2585
      %2587 = vrot.lane.b32.xlu0 %v1483, 121
      %v2588 = vpop.permute.xlu0 %2587
      %2589 = vrot.lane.b32.xlu0 %v1462, 121
      %v2590 = vpop.permute.xlu0 %2589
      %2591 = vrot.lane.b32.xlu0 %v1484, 121
      %v2592 = vpop.permute.xlu0 %2591
      %2593 = vrot.lane.b32.xlu0 %v1485, 121
      %v2594 = vpop.permute.xlu0 %2593
      %2595 = vrot.lane.b32.xlu0 %v1468, 121
      %v2596 = vpop.permute.xlu0 %2595
      %2597 = vrot.lane.b32.xlu0 %v1639, 121
      %v2598 = vpop.permute.xlu0 %2597
      %2599 = vrot.lane.b32.xlu0 %v1640, 121
      %v2600 = vpop.permute.xlu0 %2599
      %2601 = vrot.lane.b32.xlu0 %v1595, 121
      %v2602 = vpop.permute.xlu0 %2601
      %2603 = vrot.lane.b32.xlu0 %v1641, 121
      %v2604 = vpop.permute.xlu0 %2603
      %2605 = vrot.lane.b32.xlu0 %v1642, 121
      %v2606 = vpop.permute.xlu0 %2605
      %2607 = vrot.lane.b32.xlu0 %v1601, 121
      %v2608 = vpop.permute.xlu0 %2607
      %2609 = vrot.lane.b32.xlu0 %v1643, 121
      %v2610 = vpop.permute.xlu0 %2609
      %2611 = vrot.lane.b32.xlu0 %v1644, 121
      %v2612 = vpop.permute.xlu0 %2611
      %2613 = vrot.lane.b32.xlu0 %v1607, 121
      %v2614 = vpop.permute.xlu0 %2613
      %2615 = vrot.lane.b32.xlu0 %v1645, 121
      %v2616 = vpop.permute.xlu0 %2615
      %2617 = vrot.lane.b32.xlu0 %v1646, 121
      %v2618 = vpop.permute.xlu0 %2617
      %2619 = vrot.lane.b32.xlu0 %v1613, 121
      %v2620 = vpop.permute.xlu0 %2619
      %2621 = vrot.lane.b32.xlu0 %v1647, 121
      %v2622 = vpop.permute.xlu0 %2621
      %2623 = vrot.lane.b32.xlu0 %v1648, 121
      %v2624 = vpop.permute.xlu0 %2623
      %2625 = vrot.lane.b32.xlu0 %v1619, 121
      %v2626 = vpop.permute.xlu0 %2625
      %2627 = vrot.lane.b32.xlu0 %v1649, 121
      %v2628 = vpop.permute.xlu0 %2627
      %2629 = vrot.lane.b32.xlu0 %v1650, 121
      %v2630 = vpop.permute.xlu0 %2629
      %2631 = vrot.lane.b32.xlu0 %v1625, 121
      %v2632 = vpop.permute.xlu0 %2631
      %2633 = vrot.lane.b32.xlu0 %v1651, 121
      %v2634 = vpop.permute.xlu0 %2633
      %2635 = vrot.lane.b32.xlu0 %v1652, 121
      %v2636 = vpop.permute.xlu0 %2635
      %2637 = vrot.lane.b32.xlu0 %v1631, 121
      %v2638 = vpop.permute.xlu0 %2637
      %2639 = vrot.lane.b32.xlu0 %v1653, 121
      %v2640 = vpop.permute.xlu0 %2639
      %2641 = vrot.lane.b32.xlu0 %v1654, 121
      %v2642 = vpop.permute.xlu0 %2641
      %2643 = vrot.lane.b32.xlu0 %v1637, 121
      %v2644 = vpop.permute.xlu0 %2643
      %2645 = vrot.lane.b32.xlu0 %v1808, 121
      %v2646 = vpop.permute.xlu0 %2645
      %2647 = vrot.lane.b32.xlu0 %v1809, 121
      %v2648 = vpop.permute.xlu0 %2647
      %2649 = vrot.lane.b32.xlu0 %v1764, 121
      %v2650 = vpop.permute.xlu0 %2649
      %2651 = vrot.lane.b32.xlu0 %v1810, 121
      %v2652 = vpop.permute.xlu0 %2651
      %2653 = vrot.lane.b32.xlu0 %v1811, 121
      %v2654 = vpop.permute.xlu0 %2653
      %2655 = vrot.lane.b32.xlu0 %v1770, 121
      %v2656 = vpop.permute.xlu0 %2655
      %2657 = vrot.lane.b32.xlu0 %v1812, 121
      %v2658 = vpop.permute.xlu0 %2657
      %2659 = vrot.lane.b32.xlu0 %v1813, 121
      %v2660 = vpop.permute.xlu0 %2659
      %2661 = vrot.lane.b32.xlu0 %v1776, 121
      %v2662 = vpop.permute.xlu0 %2661
      %2663 = vrot.lane.b32.xlu0 %v1814, 121
      %v2664 = vpop.permute.xlu0 %2663
      %2665 = vrot.lane.b32.xlu0 %v1815, 121
      %v2666 = vpop.permute.xlu0 %2665
      %2667 = vrot.lane.b32.xlu0 %v1782, 121
      %v2668 = vpop.permute.xlu0 %2667
      %2669 = vrot.lane.b32.xlu0 %v1816, 121
      %v2670 = vpop.permute.xlu0 %2669
      %2671 = vrot.lane.b32.xlu0 %v1817, 121
      %v2672 = vpop.permute.xlu0 %2671
      %2673 = vrot.lane.b32.xlu0 %v1788, 121
      %v2674 = vpop.permute.xlu0 %2673
      %2675 = vrot.lane.b32.xlu0 %v1818, 121
      %v2676 = vpop.permute.xlu0 %2675
      %2677 = vrot.lane.b32.xlu0 %v1819, 121
      %v2678 = vpop.permute.xlu0 %2677
      %2679 = vrot.lane.b32.xlu0 %v1794, 121
      %v2680 = vpop.permute.xlu0 %2679
      %2681 = vrot.lane.b32.xlu0 %v1820, 121
      %v2682 = vpop.permute.xlu0 %2681
      %2683 = vrot.lane.b32.xlu0 %v1821, 121
      %v2684 = vpop.permute.xlu0 %2683
      %2685 = vrot.lane.b32.xlu0 %v1800, 121
      %v2686 = vpop.permute.xlu0 %2685
      %2687 = vrot.lane.b32.xlu0 %v1822, 121
      %v2688 = vpop.permute.xlu0 %2687
      %2689 = vrot.lane.b32.xlu0 %v1823, 121
      %v2690 = vpop.permute.xlu0 %2689
      %2691 = vrot.lane.b32.xlu0 %v1806, 121
      %v2692 = vpop.permute.xlu0 %2691
      %2693 = vrot.lane.b32.xlu0 %v1873, 121
      %v2694 = vpop.permute.xlu0 %2693
      %2695 = vrot.lane.b32.xlu0 %v1874, 121
      %v2696 = vpop.permute.xlu0 %2695
      %2697 = vrot.lane.b32.xlu0 %v1829, 121
      %v2698 = vpop.permute.xlu0 %2697
      %2699 = vrot.lane.b32.xlu0 %v1875, 121
      %v2700 = vpop.permute.xlu0 %2699
      %2701 = vrot.lane.b32.xlu0 %v1876, 121
      %v2702 = vpop.permute.xlu0 %2701
      %2703 = vrot.lane.b32.xlu0 %v1835, 121
      %v2704 = vpop.permute.xlu0 %2703
      %2705 = vrot.lane.b32.xlu0 %v1877, 121
      %v2706 = vpop.permute.xlu0 %2705
      %2707 = vrot.lane.b32.xlu0 %v1878, 121
      %v2708 = vpop.permute.xlu0 %2707
      %2709 = vrot.lane.b32.xlu0 %v1841, 121
      %v2710 = vpop.permute.xlu0 %2709
      %2711 = vrot.lane.b32.xlu0 %v1879, 121
      %v2712 = vpop.permute.xlu0 %2711
      %2713 = vrot.lane.b32.xlu0 %v1880, 121
      %v2714 = vpop.permute.xlu0 %2713
      %2715 = vrot.lane.b32.xlu0 %v1847, 121
      %v2716 = vpop.permute.xlu0 %2715
      %2717 = vrot.lane.b32.xlu0 %v1881, 121
      %v2718 = vpop.permute.xlu0 %2717
      %2719 = vrot.lane.b32.xlu0 %v1882, 121
      %v2720 = vpop.permute.xlu0 %2719
      %2721 = vrot.lane.b32.xlu0 %v1853, 121
      %v2722 = vpop.permute.xlu0 %2721
      %2723 = vrot.lane.b32.xlu0 %v1883, 121
      %v2724 = vpop.permute.xlu0 %2723
      %2725 = vrot.lane.b32.xlu0 %v1884, 121
      %v2726 = vpop.permute.xlu0 %2725
      %2727 = vrot.lane.b32.xlu0 %v1859, 121
      %v2728 = vpop.permute.xlu0 %2727
      %2729 = vrot.lane.b32.xlu0 %v1885, 121
      %v2730 = vpop.permute.xlu0 %2729
      %2731 = vrot.lane.b32.xlu0 %v1886, 121
      %v2732 = vpop.permute.xlu0 %2731
      %2733 = vrot.lane.b32.xlu0 %v1865, 121
      %v2734 = vpop.permute.xlu0 %2733
      %2735 = vrot.lane.b32.xlu0 %v1887, 121
      %v2736 = vpop.permute.xlu0 %2735
      %2737 = vrot.lane.b32.xlu0 %v1888, 121
      %v2738 = vpop.permute.xlu0 %2737
      %2739 = vrot.lane.b32.xlu0 %v1871, 121
      %v2740 = vpop.permute.xlu0 %2739
      %2741 = vrot.lane.b32.xlu0 %v2042, 121
      %v2742 = vpop.permute.xlu0 %2741
      %2743 = vrot.lane.b32.xlu0 %v2043, 121
      %v2744 = vpop.permute.xlu0 %2743
      %2745 = vrot.lane.b32.xlu0 %v1998, 121
      %v2746 = vpop.permute.xlu0 %2745
      %2747 = vrot.lane.b32.xlu0 %v2044, 121
      %v2748 = vpop.permute.xlu0 %2747
      %2749 = vrot.lane.b32.xlu0 %v2045, 121
      %v2750 = vpop.permute.xlu0 %2749
      %2751 = vrot.lane.b32.xlu0 %v2004, 121
      %v2752 = vpop.permute.xlu0 %2751
      %2753 = vrot.lane.b32.xlu0 %v2046, 121
      %v2754 = vpop.permute.xlu0 %2753
      %2755 = vrot.lane.b32.xlu0 %v2047, 121
      %v2756 = vpop.permute.xlu0 %2755
      %2757 = vrot.lane.b32.xlu0 %v2010, 121
      %v2758 = vpop.permute.xlu0 %2757
      %2759 = vrot.lane.b32.xlu0 %v2048, 121
      %v2760 = vpop.permute.xlu0 %2759
      %2761 = vrot.lane.b32.xlu0 %v2049, 121
      %v2762 = vpop.permute.xlu0 %2761
      %2763 = vrot.lane.b32.xlu0 %v2016, 121
      %v2764 = vpop.permute.xlu0 %2763
      %2765 = vrot.lane.b32.xlu0 %v2050, 121
      %v2766 = vpop.permute.xlu0 %2765
      %2767 = vrot.lane.b32.xlu0 %v2051, 121
      %v2768 = vpop.permute.xlu0 %2767
      %2769 = vrot.lane.b32.xlu0 %v2022, 121
      %v2770 = vpop.permute.xlu0 %2769
      %2771 = vrot.lane.b32.xlu0 %v2052, 121
      %v2772 = vpop.permute.xlu0 %2771
      %2773 = vrot.lane.b32.xlu0 %v2053, 121
      %v2774 = vpop.permute.xlu0 %2773
      %2775 = vrot.lane.b32.xlu0 %v2028, 121
      %v2776 = vpop.permute.xlu0 %2775
      %2777 = vrot.lane.b32.xlu0 %v2054, 121
      %v2778 = vpop.permute.xlu0 %2777
      %2779 = vrot.lane.b32.xlu0 %v2055, 121
      %v2780 = vpop.permute.xlu0 %2779
      %2781 = vrot.lane.b32.xlu0 %v2034, 121
      %v2782 = vpop.permute.xlu0 %2781
      %2783 = vrot.lane.b32.xlu0 %v2056, 121
      %v2784 = vpop.permute.xlu0 %2783
      %2785 = vrot.lane.b32.xlu0 %v2057, 121
      %v2786 = vpop.permute.xlu0 %2785
      %2787 = vrot.lane.b32.xlu0 %v2040, 121
      %v2788 = vpop.permute.xlu0 %2787
      %2789 = vrot.lane.b32.xlu0 %v2135, 121
      %v2790 = vpop.permute.xlu0 %2789
      %2791 = vrot.lane.b32.xlu0 %v2138, 121
      %v2792 = vpop.permute.xlu0 %2791
      %2793 = vrot.lane.b32.xlu0 %v2141, 121
      %v2794 = vpop.permute.xlu0 %2793
      %2795 = vrot.lane.b32.xlu0 %v2144, 121
      %v2796 = vpop.permute.xlu0 %2795
      %2797 = vrot.lane.b32.xlu0 %v2147, 121
      %v2798 = vpop.permute.xlu0 %2797
      %2799 = vrot.lane.b32.xlu0 %v2150, 121
      %v2800 = vpop.permute.xlu0 %2799
      %2801 = vrot.lane.b32.xlu0 %v2153, 121
      %v2802 = vpop.permute.xlu0 %2801
      %2803 = vrot.lane.b32.xlu0 %v2156, 121
      %v2804 = vpop.permute.xlu0 %2803
      %2805 = vrot.lane.b32.xlu0 %v2159, 121
      %v2806 = vpop.permute.xlu0 %2805
      %2807 = vrot.lane.b32.xlu0 %v2196, 121
      %v2808 = vpop.permute.xlu0 %2807
      %2809 = vrot.lane.b32.xlu0 %v2199, 121
      %v2810 = vpop.permute.xlu0 %2809
      %2811 = vrot.lane.b32.xlu0 %v2202, 121
      %v2812 = vpop.permute.xlu0 %2811
      %2813 = vrot.lane.b32.xlu0 %v2192, 121
      %v2814 = vpop.permute.xlu0 %2813
      %2815 = vrot.lane.b32.xlu0 %v2193, 121
      %v2816 = vpop.permute.xlu0 %2815
      %2817 = vrot.lane.b32.xlu0 %v2191, 121
      %v2818 = vpop.permute.xlu0 %2817
      %vm2819 = vcmask 990208
      %v2820 = vsel %vm2819, %v2358, %v2360
      %v2821 = vsel %vm2819, %v2360, %v2362
      %v2822 = vsel %vm2819, %v2364, %v2366
      %v2823 = vsel %vm2819, %v2366, %v2368
      %v2824 = vsel %vm2819, %v2370, %v2372
      %v2825 = vsel %vm2819, %v2372, %v2374
      %v2826 = vsel %vm2819, %v2376, %v2378
      %v2827 = vsel %vm2819, %v2378, %v2380
      %v2828 = vsel %vm2819, %v2382, %v2384
      %v2829 = vsel %vm2819, %v2384, %v2386
      %v2830 = vsel %vm2819, %v2388, %v2390
      %v2831 = vsel %vm2819, %v2390, %v2392
      %v2832 = vsel %vm2819, %v2394, %v2396
      %v2833 = vsel %vm2819, %v2396, %v2398
      %v2834 = vsel %vm2819, %v2400, %v2402
      %v2835 = vsel %vm2819, %v2402, %v2404
      %v2836 = vsel %vm2819, %v2406, %v2408
      %v2837 = vsel %vm2819, %v2408, %v2410
      %v2838 = vsel %vm2819, %v2412, %v2414
      %v2839 = vsel %vm2819, %v2414, %v2416
      %v2840 = vsel %vm2819, %v2418, %v2420
      %v2841 = vsel %vm2819, %v2420, %v2422
      %v2842 = vsel %vm2819, %v2424, %v2426
      %v2843 = vsel %vm2819, %v2426, %v2428
      %v2844 = vsel %vm2819, %v2430, %v2432
      %v2845 = vsel %vm2819, %v2432, %v2434
      %v2846 = vsel %vm2819, %v2436, %v2438
      %v2847 = vsel %vm2819, %v2438, %v2440
      %v2848 = vsel %vm2819, %v2442, %v2444
      %v2849 = vsel %vm2819, %v2444, %v2446
      %v2850 = vsel %vm2819, %v2448, %v2450
      %v2851 = vsel %vm2819, %v2450, %v2452
      %v2852 = vsel %vm2819, %v2454, %v2456
      %v2853 = vsel %vm2819, %v2456, %v2458
      %v2854 = vsel %vm2819, %v2460, %v2462
      %v2855 = vsel %vm2819, %v2462, %v2464
      %v2856 = vsel %vm2819, %v2466, %v2468
      %v2857 = vsel %vm2819, %v2468, %v2470
      %v2858 = vsel %vm2819, %v2472, %v2474
      %v2859 = vsel %vm2819, %v2474, %v2476
      %v2860 = vsel %vm2819, %v2478, %v2480
      %v2861 = vsel %vm2819, %v2480, %v2482
      %v2862 = vsel %vm2819, %v2484, %v2486
      %v2863 = vsel %vm2819, %v2486, %v2488
      %v2864 = vsel %vm2819, %v2490, %v2492
      %v2865 = vsel %vm2819, %v2492, %v2494
      %v2866 = vsel %vm2819, %v2496, %v2498
      %v2867 = vsel %vm2819, %v2498, %v2500
      %v2868 = vsel %vm2819, %v2502, %v2504
      %v2869 = vsel %vm2819, %v2504, %v2506
      %v2870 = vsel %vm2819, %v2508, %v2510
      %v2871 = vsel %vm2819, %v2510, %v2512
      %v2872 = vsel %vm2819, %v2514, %v2516
      %v2873 = vsel %vm2819, %v2516, %v2518
      %v2874 = vsel %vm2819, %v2520, %v2522
      %v2875 = vsel %vm2819, %v2522, %v2524
      %v2876 = vsel %vm2819, %v2526, %v2528
      %v2877 = vsel %vm2819, %v2528, %v2530
      %v2878 = vsel %vm2819, %v2532, %v2534
      %v2879 = vsel %vm2819, %v2534, %v2536
      %v2880 = vsel %vm2819, %v2538, %v2540
      %v2881 = vsel %vm2819, %v2540, %v2542
      %v2882 = vsel %vm2819, %v2544, %v2546
      %v2883 = vsel %vm2819, %v2546, %v2548
      %v2884 = vsel %vm2819, %v2550, %v2552
      %v2885 = vsel %vm2819, %v2552, %v2554
      %v2886 = vsel %vm2819, %v2556, %v2558
      %v2887 = vsel %vm2819, %v2558, %v2560
      %v2888 = vsel %vm2819, %v2562, %v2564
      %v2889 = vsel %vm2819, %v2564, %v2566
      %v2890 = vsel %vm2819, %v2568, %v2570
      %v2891 = vsel %vm2819, %v2570, %v2572
      %v2892 = vsel %vm2819, %v2574, %v2576
      %v2893 = vsel %vm2819, %v2576, %v2578
      %v2894 = vsel %vm2819, %v2580, %v2582
      %v2895 = vsel %vm2819, %v2582, %v2584
      %v2896 = vsel %vm2819, %v2586, %v2588
      %v2897 = vsel %vm2819, %v2588, %v2590
      %v2898 = vsel %vm2819, %v2592, %v2594
      %v2899 = vsel %vm2819, %v2594, %v2596
      %v2900 = vsel %vm2819, %v2598, %v2600
      %v2901 = vsel %vm2819, %v2600, %v2602
      %v2902 = vsel %vm2819, %v2604, %v2606
      %v2903 = vsel %vm2819, %v2606, %v2608
      %v2904 = vsel %vm2819, %v2610, %v2612
      %v2905 = vsel %vm2819, %v2612, %v2614
      %v2906 = vsel %vm2819, %v2616, %v2618
      %v2907 = vsel %vm2819, %v2618, %v2620
      %v2908 = vsel %vm2819, %v2622, %v2624
      %v2909 = vsel %vm2819, %v2624, %v2626
      %v2910 = vsel %vm2819, %v2628, %v2630
      %v2911 = vsel %vm2819, %v2630, %v2632
      %v2912 = vsel %vm2819, %v2634, %v2636
      %v2913 = vsel %vm2819, %v2636, %v2638
      %v2914 = vsel %vm2819, %v2640, %v2642
      %v2915 = vsel %vm2819, %v2642, %v2644
      %v2916 = vsel %vm2819, %v2646, %v2648
      %v2917 = vsel %vm2819, %v2648, %v2650
      %v2918 = vsel %vm2819, %v2652, %v2654
      %v2919 = vsel %vm2819, %v2654, %v2656
      %v2920 = vsel %vm2819, %v2658, %v2660
      %v2921 = vsel %vm2819, %v2660, %v2662
      %v2922 = vsel %vm2819, %v2664, %v2666
      %v2923 = vsel %vm2819, %v2666, %v2668
      %v2924 = vsel %vm2819, %v2670, %v2672
      %v2925 = vsel %vm2819, %v2672, %v2674
      %v2926 = vsel %vm2819, %v2676, %v2678
      %v2927 = vsel %vm2819, %v2678, %v2680
      %v2928 = vsel %vm2819, %v2682, %v2684
      %v2929 = vsel %vm2819, %v2684, %v2686
      %v2930 = vsel %vm2819, %v2688, %v2690
      %v2931 = vsel %vm2819, %v2690, %v2692
      %v2932 = vsel %vm2819, %v2694, %v2696
      %v2933 = vsel %vm2819, %v2696, %v2698
      %v2934 = vsel %vm2819, %v2700, %v2702
      %v2935 = vsel %vm2819, %v2702, %v2704
      %v2936 = vsel %vm2819, %v2706, %v2708
      %v2937 = vsel %vm2819, %v2708, %v2710
      %v2938 = vsel %vm2819, %v2712, %v2714
      %v2939 = vsel %vm2819, %v2714, %v2716
      %v2940 = vsel %vm2819, %v2718, %v2720
      %v2941 = vsel %vm2819, %v2720, %v2722
      %v2942 = vsel %vm2819, %v2724, %v2726
      %v2943 = vsel %vm2819, %v2726, %v2728
      %v2944 = vsel %vm2819, %v2730, %v2732
      %v2945 = vsel %vm2819, %v2732, %v2734
      %v2946 = vsel %vm2819, %v2736, %v2738
      %v2947 = vsel %vm2819, %v2738, %v2740
      %v2948 = vsel %vm2819, %v2742, %v2744
      %v2949 = vsel %vm2819, %v2744, %v2746
      %v2950 = vsel %vm2819, %v2748, %v2750
      %v2951 = vsel %vm2819, %v2750, %v2752
      %v2952 = vsel %vm2819, %v2754, %v2756
      %v2953 = vsel %vm2819, %v2756, %v2758
      %v2954 = vsel %vm2819, %v2760, %v2762
      %v2955 = vsel %vm2819, %v2762, %v2764
      %v2956 = vsel %vm2819, %v2766, %v2768
      %v2957 = vsel %vm2819, %v2768, %v2770
      %v2958 = vsel %vm2819, %v2772, %v2774
      %v2959 = vsel %vm2819, %v2774, %v2776
      %v2960 = vsel %vm2819, %v2778, %v2780
      %v2961 = vsel %vm2819, %v2780, %v2782
      %v2962 = vsel %vm2819, %v2784, %v2786
      %v2963 = vsel %vm2819, %v2786, %v2788
      %v2964 = vsel %vm2819, %v2790, %v2792
      %v2965 = vsel %vm2819, %v2792, %v2794
      %v2966 = vsel %vm2819, %v2796, %v2798
      %v2967 = vsel %vm2819, %v2798, %v2800
      %v2968 = vsel %vm2819, %v2802, %v2804
      %v2969 = vsel %vm2819, %v2804, %v2806
      %v2970 = vsel %vm2819, %v2808, %v2810
      %v2971 = vsel %vm2819, %v2810, %v2812
      %v2972 = vsel %vm2819, %v2814, %v2816
      %v2973 = vsel %vm2819, %v2816, %v2818
      %vm3126 = vcmask 588800
      %v3128 = vsel %vm3126, %v2316, 0
      %v3131 = vsel %vm3126, %v2326, 0
      %v3134 = vsel %vm2132, %v2972, 0
      %v3137 = vsel %vm2132, %v2973, 0
      %3139 = vmatpush.bf16.msra.mxu0 %v2834
      %3140 = vmatpush.bf16.msra.mxu0 %v2832
      %3141 = vmatpush.bf16.msra.mxu0 %v2830
      %3142 = vmatpush.bf16.msra.mxu0 %v2828
      %3143 = vmatpush.bf16.msra.mxu0 %v2826
      %3144 = vmatpush.bf16.msra.mxu0 %v2824
      %3145 = vmatpush.bf16.msra.mxu0 %v2822
      %3146 = vmatpush.bf16.msra.mxu0 %v2820
      %3147 = vmatmul.bf16.gmra.mxu0 %v2307
      %v3148 = vpop.f32.mrf.mxu0
      %v3149 = vadd.f32 %v2230, %v3148
      %v3150 = vpop.f32.mrf.mxu0
      %v3151 = vadd.f32 %v2235, %v3150
      %3152 = vmatmul.bf16.gmra.mxu0 %v2317
      %v3153 = vpop.f32.mrf.mxu0
      %v3154 = vadd.f32 %v2240, %v3153
      %v3155 = vpop.f32.mrf.mxu0
      %v3156 = vadd.f32 %v2245, %v3155
      %3157 = vdwg.mxu0
      %3158 = vmatpush.bf16.msra.mxu0 %v2850
      %3159 = vmatpush.bf16.msra.mxu0 %v2848
      %3160 = vmatpush.bf16.msra.mxu0 %v2846
      %3161 = vmatpush.bf16.msra.mxu0 %v2844
      %3162 = vmatpush.bf16.msra.mxu0 %v2842
      %3163 = vmatpush.bf16.msra.mxu0 %v2840
      %3164 = vmatpush.bf16.msra.mxu0 %v2838
      %3165 = vmatpush.bf16.msra.mxu0 %v2836
      %3166 = vmatmul.bf16.gmra.mxu0 %v2308
      %v3167 = vpop.f32.mrf.mxu0
      %v3168 = vadd.f32 %v3149, %v3167
      %v3169 = vpop.f32.mrf.mxu0
      %v3170 = vadd.f32 %v3151, %v3169
      %3171 = vmatmul.bf16.gmra.mxu0 %v2318
      %v3172 = vpop.f32.mrf.mxu0
      %v3173 = vadd.f32 %v3154, %v3172
      %v3174 = vpop.f32.mrf.mxu0
      %v3175 = vadd.f32 %v3156, %v3174
      %3176 = vdwg.mxu0
      %3177 = vmatpush.bf16.msra.mxu0 %v2866
      %3178 = vmatpush.bf16.msra.mxu0 %v2864
      %3179 = vmatpush.bf16.msra.mxu0 %v2862
      %3180 = vmatpush.bf16.msra.mxu0 %v2860
      %3181 = vmatpush.bf16.msra.mxu0 %v2858
      %3182 = vmatpush.bf16.msra.mxu0 %v2856
      %3183 = vmatpush.bf16.msra.mxu0 %v2854
      %3184 = vmatpush.bf16.msra.mxu0 %v2852
      %3185 = vmatmul.bf16.gmra.mxu0 %v2309
      %v3186 = vpop.f32.mrf.mxu0
      %v3187 = vadd.f32 %v3168, %v3186
      %v3188 = vpop.f32.mrf.mxu0
      %v3189 = vadd.f32 %v3170, %v3188
      %3190 = vmatmul.bf16.gmra.mxu0 %v2319
      %v3191 = vpop.f32.mrf.mxu0
      %v3192 = vadd.f32 %v3173, %v3191
      %v3193 = vpop.f32.mrf.mxu0
      %v3194 = vadd.f32 %v3175, %v3193
      %3195 = vdwg.mxu0
      %3196 = vmatpush.bf16.msra.mxu0 %v2882
      %3197 = vmatpush.bf16.msra.mxu0 %v2880
      %3198 = vmatpush.bf16.msra.mxu0 %v2878
      %3199 = vmatpush.bf16.msra.mxu0 %v2876
      %3200 = vmatpush.bf16.msra.mxu0 %v2874
      %3201 = vmatpush.bf16.msra.mxu0 %v2872
      %3202 = vmatpush.bf16.msra.mxu0 %v2870
      %3203 = vmatpush.bf16.msra.mxu0 %v2868
      %3204 = vmatmul.bf16.gmra.mxu0 %v2310
      %v3205 = vpop.f32.mrf.mxu0
      %v3206 = vadd.f32 %v3187, %v3205
      %v3207 = vpop.f32.mrf.mxu0
      %v3208 = vadd.f32 %v3189, %v3207
      %3209 = vmatmul.bf16.gmra.mxu0 %v2320
      %v3210 = vpop.f32.mrf.mxu0
      %v3211 = vadd.f32 %v3192, %v3210
      %v3212 = vpop.f32.mrf.mxu0
      %v3213 = vadd.f32 %v3194, %v3212
      %3214 = vdwg.mxu0
      %3215 = vmatpush.bf16.msra.mxu0 %v2898
      %3216 = vmatpush.bf16.msra.mxu0 %v2896
      %3217 = vmatpush.bf16.msra.mxu0 %v2894
      %3218 = vmatpush.bf16.msra.mxu0 %v2892
      %3219 = vmatpush.bf16.msra.mxu0 %v2890
      %3220 = vmatpush.bf16.msra.mxu0 %v2888
      %3221 = vmatpush.bf16.msra.mxu0 %v2886
      %3222 = vmatpush.bf16.msra.mxu0 %v2884
      %3223 = vmatmul.bf16.gmra.mxu0 %v2311
      %v3224 = vpop.f32.mrf.mxu0
      %v3225 = vadd.f32 %v3206, %v3224
      %v3226 = vpop.f32.mrf.mxu0
      %v3227 = vadd.f32 %v3208, %v3226
      %3228 = vmatmul.bf16.gmra.mxu0 %v2321
      %v3229 = vpop.f32.mrf.mxu0
      %v3230 = vadd.f32 %v3211, %v3229
      %v3231 = vpop.f32.mrf.mxu0
      %v3232 = vadd.f32 %v3213, %v3231
      %3233 = vdwg.mxu0
      %3234 = vmatpush.bf16.msra.mxu0 %v2914
      %3235 = vmatpush.bf16.msra.mxu0 %v2912
      %3236 = vmatpush.bf16.msra.mxu0 %v2910
      %3237 = vmatpush.bf16.msra.mxu0 %v2908
      %3238 = vmatpush.bf16.msra.mxu0 %v2906
      %3239 = vmatpush.bf16.msra.mxu0 %v2904
      %3240 = vmatpush.bf16.msra.mxu0 %v2902
      %3241 = vmatpush.bf16.msra.mxu0 %v2900
      %3242 = vmatmul.bf16.gmra.mxu0 %v2312
      %v3243 = vpop.f32.mrf.mxu0
      %v3244 = vadd.f32 %v3225, %v3243
      %v3245 = vpop.f32.mrf.mxu0
      %v3246 = vadd.f32 %v3227, %v3245
      %3247 = vmatmul.bf16.gmra.mxu0 %v2322
      %v3248 = vpop.f32.mrf.mxu0
      %v3249 = vadd.f32 %v3230, %v3248
      %v3250 = vpop.f32.mrf.mxu0
      %v3251 = vadd.f32 %v3232, %v3250
      %3252 = vdwg.mxu0
      %3253 = vmatpush.bf16.msra.mxu0 %v2930
      %3254 = vmatpush.bf16.msra.mxu0 %v2928
      %3255 = vmatpush.bf16.msra.mxu0 %v2926
      %3256 = vmatpush.bf16.msra.mxu0 %v2924
      %3257 = vmatpush.bf16.msra.mxu0 %v2922
      %3258 = vmatpush.bf16.msra.mxu0 %v2920
      %3259 = vmatpush.bf16.msra.mxu0 %v2918
      %3260 = vmatpush.bf16.msra.mxu0 %v2916
      %3261 = vmatmul.bf16.gmra.mxu0 %v2313
      %v3262 = vpop.f32.mrf.mxu0
      %v3263 = vadd.f32 %v3244, %v3262
      %v3264 = vpop.f32.mrf.mxu0
      %v3265 = vadd.f32 %v3246, %v3264
      %3266 = vmatmul.bf16.gmra.mxu0 %v2323
      %v3267 = vpop.f32.mrf.mxu0
      %v3268 = vadd.f32 %v3249, %v3267
      %v3269 = vpop.f32.mrf.mxu0
      %v3270 = vadd.f32 %v3251, %v3269
      %3271 = vdwg.mxu0
      %3272 = vmatpush.bf16.msra.mxu0 %v2946
      %3273 = vmatpush.bf16.msra.mxu0 %v2944
      %3274 = vmatpush.bf16.msra.mxu0 %v2942
      %3275 = vmatpush.bf16.msra.mxu0 %v2940
      %3276 = vmatpush.bf16.msra.mxu0 %v2938
      %3277 = vmatpush.bf16.msra.mxu0 %v2936
      %3278 = vmatpush.bf16.msra.mxu0 %v2934
      %3279 = vmatpush.bf16.msra.mxu0 %v2932
      %3280 = vmatmul.bf16.gmra.mxu0 %v2314
      %v3281 = vpop.f32.mrf.mxu0
      %v3282 = vadd.f32 %v3263, %v3281
      %v3283 = vpop.f32.mrf.mxu0
      %v3284 = vadd.f32 %v3265, %v3283
      %3285 = vmatmul.bf16.gmra.mxu0 %v2324
      %v3286 = vpop.f32.mrf.mxu0
      %v3287 = vadd.f32 %v3268, %v3286
      %v3288 = vpop.f32.mrf.mxu0
      %v3289 = vadd.f32 %v3270, %v3288
      %3290 = vdwg.mxu0
      %3291 = vmatpush.bf16.msra.mxu0 %v2962
      %3292 = vmatpush.bf16.msra.mxu0 %v2960
      %3293 = vmatpush.bf16.msra.mxu0 %v2958
      %3294 = vmatpush.bf16.msra.mxu0 %v2956
      %3295 = vmatpush.bf16.msra.mxu0 %v2954
      %3296 = vmatpush.bf16.msra.mxu0 %v2952
      %3297 = vmatpush.bf16.msra.mxu0 %v2950
      %3298 = vmatpush.bf16.msra.mxu0 %v2948
      %3299 = vmatmul.bf16.gmra.mxu0 %v2315
      %v3300 = vpop.f32.mrf.mxu0
      %v3301 = vadd.f32 %v3282, %v3300
      %v3302 = vpop.f32.mrf.mxu0
      %v3303 = vadd.f32 %v3284, %v3302
      %3304 = vmatmul.bf16.gmra.mxu0 %v2325
      %v3305 = vpop.f32.mrf.mxu0
      %v3306 = vadd.f32 %v3287, %v3305
      %v3307 = vpop.f32.mrf.mxu0
      %v3308 = vadd.f32 %v3289, %v3307
      %3309 = vdwg.mxu0
      %3310 = vmatpush.bf16.msra.mxu0 0
      %3311 = vmatpush.bf16.msra.mxu0 0
      %3312 = vmatpush.bf16.msra.mxu0 0
      %3313 = vmatpush.bf16.msra.mxu0 %v3134
      %3314 = vmatpush.bf16.msra.mxu0 %v2970
      %3315 = vmatpush.bf16.msra.mxu0 %v2968
      %3316 = vmatpush.bf16.msra.mxu0 %v2966
      %3317 = vmatpush.bf16.msra.mxu0 %v2964
      %3318 = vmatmul.bf16.gmra.mxu0 %v3128
      %v3319 = vpop.f32.mrf.mxu0
      %v3320 = vadd.f32 %v3301, %v3319
      %v3321 = vpop.f32.mrf.mxu0
      %v3322 = vadd.f32 %v3303, %v3321
      %3323 = vmatmul.bf16.gmra.mxu0 %v3131
      %v3324 = vpop.f32.mrf.mxu0
      %v3325 = vadd.f32 %v3306, %v3324
      %v3326 = vpop.f32.mrf.mxu0
      %v3327 = vadd.f32 %v3308, %v3326
      %3328 = vdwg.mxu0
      %3329 = vmatpush.bf16.msra.mxu0 %v2835
      %3330 = vmatpush.bf16.msra.mxu0 %v2833
      %3331 = vmatpush.bf16.msra.mxu0 %v2831
      %3332 = vmatpush.bf16.msra.mxu0 %v2829
      %3333 = vmatpush.bf16.msra.mxu0 %v2827
      %3334 = vmatpush.bf16.msra.mxu0 %v2825
      %3335 = vmatpush.bf16.msra.mxu0 %v2823
      %3336 = vmatpush.bf16.msra.mxu0 %v2821
      %3337 = vmatmul.bf16.gmra.mxu0 %v2307
      %v3338 = vpop.f32.mrf.mxu0
      %v3339 = vadd.f32 %v2230, %v3338
      %v3340 = vpop.f32.mrf.mxu0
      %v3341 = vadd.f32 %v2235, %v3340
      %3342 = vmatmul.bf16.gmra.mxu0 %v2317
      %v3343 = vpop.f32.mrf.mxu0
      %v3344 = vadd.f32 %v2240, %v3343
      %v3345 = vpop.f32.mrf.mxu0
      %v3346 = vadd.f32 %v2245, %v3345
      %3347 = vdwg.mxu0
      %3348 = vmatpush.bf16.msra.mxu0 %v2851
      %3349 = vmatpush.bf16.msra.mxu0 %v2849
      %3350 = vmatpush.bf16.msra.mxu0 %v2847
      %3351 = vmatpush.bf16.msra.mxu0 %v2845
      %3352 = vmatpush.bf16.msra.mxu0 %v2843
      %3353 = vmatpush.bf16.msra.mxu0 %v2841
      %3354 = vmatpush.bf16.msra.mxu0 %v2839
      %3355 = vmatpush.bf16.msra.mxu0 %v2837
      %3356 = vmatmul.bf16.gmra.mxu0 %v2308
      %v3357 = vpop.f32.mrf.mxu0
      %v3358 = vadd.f32 %v3339, %v3357
      %v3359 = vpop.f32.mrf.mxu0
      %v3360 = vadd.f32 %v3341, %v3359
      %3361 = vmatmul.bf16.gmra.mxu0 %v2318
      %v3362 = vpop.f32.mrf.mxu0
      %v3363 = vadd.f32 %v3344, %v3362
      %v3364 = vpop.f32.mrf.mxu0
      %v3365 = vadd.f32 %v3346, %v3364
      %3366 = vdwg.mxu0
      %3367 = vmatpush.bf16.msra.mxu0 %v2867
      %3368 = vmatpush.bf16.msra.mxu0 %v2865
      %3369 = vmatpush.bf16.msra.mxu0 %v2863
      %3370 = vmatpush.bf16.msra.mxu0 %v2861
      %3371 = vmatpush.bf16.msra.mxu0 %v2859
      %3372 = vmatpush.bf16.msra.mxu0 %v2857
      %3373 = vmatpush.bf16.msra.mxu0 %v2855
      %3374 = vmatpush.bf16.msra.mxu0 %v2853
      %3375 = vmatmul.bf16.gmra.mxu0 %v2309
      %v3376 = vpop.f32.mrf.mxu0
      %v3377 = vadd.f32 %v3358, %v3376
      %v3378 = vpop.f32.mrf.mxu0
      %v3379 = vadd.f32 %v3360, %v3378
      %3380 = vmatmul.bf16.gmra.mxu0 %v2319
      %v3381 = vpop.f32.mrf.mxu0
      %v3382 = vadd.f32 %v3363, %v3381
      %v3383 = vpop.f32.mrf.mxu0
      %v3384 = vadd.f32 %v3365, %v3383
      %3385 = vdwg.mxu0
      %3386 = vmatpush.bf16.msra.mxu0 %v2883
      %3387 = vmatpush.bf16.msra.mxu0 %v2881
      %3388 = vmatpush.bf16.msra.mxu0 %v2879
      %3389 = vmatpush.bf16.msra.mxu0 %v2877
      %3390 = vmatpush.bf16.msra.mxu0 %v2875
      %3391 = vmatpush.bf16.msra.mxu0 %v2873
      %3392 = vmatpush.bf16.msra.mxu0 %v2871
      %3393 = vmatpush.bf16.msra.mxu0 %v2869
      %3394 = vmatmul.bf16.gmra.mxu0 %v2310
      %v3395 = vpop.f32.mrf.mxu0
      %v3396 = vadd.f32 %v3377, %v3395
      %v3397 = vpop.f32.mrf.mxu0
      %v3398 = vadd.f32 %v3379, %v3397
      %3399 = vmatmul.bf16.gmra.mxu0 %v2320
      %v3400 = vpop.f32.mrf.mxu0
      %v3401 = vadd.f32 %v3382, %v3400
      %v3402 = vpop.f32.mrf.mxu0
      %v3403 = vadd.f32 %v3384, %v3402
      %3404 = vdwg.mxu0
      %3405 = vmatpush.bf16.msra.mxu0 %v2899
      %3406 = vmatpush.bf16.msra.mxu0 %v2897
      %3407 = vmatpush.bf16.msra.mxu0 %v2895
      %3408 = vmatpush.bf16.msra.mxu0 %v2893
      %3409 = vmatpush.bf16.msra.mxu0 %v2891
      %3410 = vmatpush.bf16.msra.mxu0 %v2889
      %3411 = vmatpush.bf16.msra.mxu0 %v2887
      %3412 = vmatpush.bf16.msra.mxu0 %v2885
      %3413 = vmatmul.bf16.gmra.mxu0 %v2311
      %v3414 = vpop.f32.mrf.mxu0
      %v3415 = vadd.f32 %v3396, %v3414
      %v3416 = vpop.f32.mrf.mxu0
      %v3417 = vadd.f32 %v3398, %v3416
      %3418 = vmatmul.bf16.gmra.mxu0 %v2321
      %v3419 = vpop.f32.mrf.mxu0
      %v3420 = vadd.f32 %v3401, %v3419
      %v3421 = vpop.f32.mrf.mxu0
      %v3422 = vadd.f32 %v3403, %v3421
      %3423 = vdwg.mxu0
      %3424 = vmatpush.bf16.msra.mxu0 %v2915
      %3425 = vmatpush.bf16.msra.mxu0 %v2913
      %3426 = vmatpush.bf16.msra.mxu0 %v2911
      %3427 = vmatpush.bf16.msra.mxu0 %v2909
      %3428 = vmatpush.bf16.msra.mxu0 %v2907
      %3429 = vmatpush.bf16.msra.mxu0 %v2905
      %3430 = vmatpush.bf16.msra.mxu0 %v2903
      %3431 = vmatpush.bf16.msra.mxu0 %v2901
      %3432 = vmatmul.bf16.gmra.mxu0 %v2312
      %v3433 = vpop.f32.mrf.mxu0
      %v3434 = vadd.f32 %v3415, %v3433
      %v3435 = vpop.f32.mrf.mxu0
      %v3436 = vadd.f32 %v3417, %v3435
      %3437 = vmatmul.bf16.gmra.mxu0 %v2322
      %v3438 = vpop.f32.mrf.mxu0
      %v3439 = vadd.f32 %v3420, %v3438
      %v3440 = vpop.f32.mrf.mxu0
      %v3441 = vadd.f32 %v3422, %v3440
      %3442 = vdwg.mxu0
      %3443 = vmatpush.bf16.msra.mxu0 %v2931
      %3444 = vmatpush.bf16.msra.mxu0 %v2929
      %3445 = vmatpush.bf16.msra.mxu0 %v2927
      %3446 = vmatpush.bf16.msra.mxu0 %v2925
      %3447 = vmatpush.bf16.msra.mxu0 %v2923
      %3448 = vmatpush.bf16.msra.mxu0 %v2921
      %3449 = vmatpush.bf16.msra.mxu0 %v2919
      %3450 = vmatpush.bf16.msra.mxu0 %v2917
      %3451 = vmatmul.bf16.gmra.mxu0 %v2313
      %v3452 = vpop.f32.mrf.mxu0
      %v3453 = vadd.f32 %v3434, %v3452
      %v3454 = vpop.f32.mrf.mxu0
      %v3455 = vadd.f32 %v3436, %v3454
      %3456 = vmatmul.bf16.gmra.mxu0 %v2323
      %v3457 = vpop.f32.mrf.mxu0
      %v3458 = vadd.f32 %v3439, %v3457
      %v3459 = vpop.f32.mrf.mxu0
      %v3460 = vadd.f32 %v3441, %v3459
      %3461 = vdwg.mxu0
      %3462 = vmatpush.bf16.msra.mxu0 %v2947
      %3463 = vmatpush.bf16.msra.mxu0 %v2945
      %3464 = vmatpush.bf16.msra.mxu0 %v2943
      %3465 = vmatpush.bf16.msra.mxu0 %v2941
      %3466 = vmatpush.bf16.msra.mxu0 %v2939
      %3467 = vmatpush.bf16.msra.mxu0 %v2937
      %3468 = vmatpush.bf16.msra.mxu0 %v2935
      %3469 = vmatpush.bf16.msra.mxu0 %v2933
      %3470 = vmatmul.bf16.gmra.mxu0 %v2314
      %v3471 = vpop.f32.mrf.mxu0
      %v3472 = vadd.f32 %v3453, %v3471
      %v3473 = vpop.f32.mrf.mxu0
      %v3474 = vadd.f32 %v3455, %v3473
      %3475 = vmatmul.bf16.gmra.mxu0 %v2324
      %v3476 = vpop.f32.mrf.mxu0
      %v3477 = vadd.f32 %v3458, %v3476
      %v3478 = vpop.f32.mrf.mxu0
      %v3479 = vadd.f32 %v3460, %v3478
      %3480 = vdwg.mxu0
      %3481 = vmatpush.bf16.msra.mxu0 %v2963
      %3482 = vmatpush.bf16.msra.mxu0 %v2961
      %3483 = vmatpush.bf16.msra.mxu0 %v2959
      %3484 = vmatpush.bf16.msra.mxu0 %v2957
      %3485 = vmatpush.bf16.msra.mxu0 %v2955
      %3486 = vmatpush.bf16.msra.mxu0 %v2953
      %3487 = vmatpush.bf16.msra.mxu0 %v2951
      %3488 = vmatpush.bf16.msra.mxu0 %v2949
      %3489 = vmatmul.bf16.gmra.mxu0 %v2315
      %v3490 = vpop.f32.mrf.mxu0
      %v3491 = vadd.f32 %v3472, %v3490
      %v3492 = vpop.f32.mrf.mxu0
      %v3493 = vadd.f32 %v3474, %v3492
      %3494 = vmatmul.bf16.gmra.mxu0 %v2325
      %v3495 = vpop.f32.mrf.mxu0
      %v3496 = vadd.f32 %v3477, %v3495
      %v3497 = vpop.f32.mrf.mxu0
      %v3498 = vadd.f32 %v3479, %v3497
      %3499 = vdwg.mxu0
      %3500 = vmatpush.bf16.msra.mxu0 0
      %3501 = vmatpush.bf16.msra.mxu0 0
      %3502 = vmatpush.bf16.msra.mxu0 0
      %3503 = vmatpush.bf16.msra.mxu0 %v3137
      %3504 = vmatpush.bf16.msra.mxu0 %v2971
      %3505 = vmatpush.bf16.msra.mxu0 %v2969
      %3506 = vmatpush.bf16.msra.mxu0 %v2967
      %3507 = vmatpush.bf16.msra.mxu0 %v2965
      %3508 = vmatmul.bf16.gmra.mxu0 %v3128
      %v3509 = vpop.f32.mrf.mxu0
      %v3510 = vadd.f32 %v3491, %v3509
      %v3511 = vpop.f32.mrf.mxu0
      %v3512 = vadd.f32 %v3493, %v3511
      %3513 = vmatmul.bf16.gmra.mxu0 %v3131
      %v3514 = vpop.f32.mrf.mxu0
      %v3515 = vadd.f32 %v3496, %v3514
      %v3516 = vpop.f32.mrf.mxu0
      %v3517 = vadd.f32 %v3498, %v3516
      %3518 = vdwg.mxu0
      %v3519 = vmax.f32 %v3320, 0.0
      %v3520 = vmax.f32 %v3510, 0.0
      %v3521 = vmax.f32 %v3322, 0.0
      %v3522 = vmax.f32 %v3512, 0.0
      %v3523 = vmax.f32 %v3325, 0.0
      %v3524 = vmax.f32 %v3515, 0.0
      %v3525 = vmax.f32 %v3327, 0.0
      %v3526 = vmax.f32 %v3517, 0.0
      %v3527 = vpack.c.bf16 %v3520, %v3519
      %v3528 = vpack.c.bf16 %v3522, %v3521
      %v3529 = vpack.c.bf16 %v3524, %v3523
      %v3530 = vpack.c.bf16 %v3526, %v3525
      %3531 = vst [vmem:[#allocation2 + $0x4] sm:$0xff] %v3527
      %3532 = vst [vmem:[#allocation2 + $0x14] sm:$0xff] %v3528
      %3533 = vst [vmem:[#allocation2 + $0x24] sm:$0xff] %v3529
      %3534 = vst [vmem:[#allocation2 + $0x34] sm:$0xff] %v3530
      %v3535 = vld [vmem:[#allocation2] sm:$0xff]
      %v3536 = vld [vmem:[#allocation2 + $0x8] sm:$0xf]
      %v3537 = vld [vmem:[#allocation2 + $0x10] sm:$0xff]
      %v3538 = vld [vmem:[#allocation2 + $0x18] sm:$0xf]
      %v3539 = vld [vmem:[#allocation2 + $0x20] sm:$0xff]
      %v3540 = vld [vmem:[#allocation2 + $0x28] sm:$0xf]
      %v3541 = vld [vmem:[#allocation2 + $0x30] sm:$0xff]
      %v3542 = vld [vmem:[#allocation2 + $0x38] sm:$0xf]
      %3543 = vrot.lane.b32.xlu0 %v409, 111
      %v3544 = vpop.permute.xlu0 %3543
      %v3545 = vrot.slane %v3544, 4
      %v3546 = vsel %vm1469, %v3545, %v3544
      %v3547 = vunpack.c.l.b16 %v3546
      %v3548 = vunpack.c.h.b16 %v3546
      %v3549 = vunpack.c.l.b16 0
      %v3550 = vunpack.c.h.b16 0
      %vm3551 = vcmp.ne.s32.totalorder %v3547, %v3549
      %vm3552 = vcmp.ne.s32.totalorder %v3548, %v3550
      %vm3553 = vmpackc.low %vm3552, %vm3551
      %v3554 = vunpack.c.l.b16 %v3545
      %v3555 = vunpack.c.h.b16 %v3545
      %v3556 = vunpack.c.l.b16 0
      %v3557 = vunpack.c.h.b16 0
      %vm3558 = vcmp.ne.s32.totalorder %v3554, %v3556
      %vm3559 = vcmp.ne.s32.totalorder %v3555, %v3557
      %vm3560 = vmpackc.low %vm3559, %vm3558
      %v3561 = vsel %vm3553, %v3535, 0
      %v3562 = vsel %vm3560, %v3536, 0
      %v3563 = vsel %vm3553, %v3537, 0
      %v3564 = vsel %vm3560, %v3538, 0
      %v3565 = vsel %vm3553, %v3539, 0
      %v3566 = vsel %vm3560, %v3540, 0
      %v3567 = vsel %vm3553, %v3541, 0
      %v3568 = vsel %vm3560, %v3542, 0
      %3569 = vrot.lane.b32.xlu0 %v462, 113
      %v3570 = vpop.permute.xlu0 %3569
      %v3571 = vrot.slane %v3570, 4
      %vm3572 = vcmask 924672
      %v3573 = vsel %vm3572, %v3571, %v3570
      %v3574 = vunpack.c.l.b16 %v3573
      %v3575 = vunpack.c.h.b16 %v3573
      %v3576 = vunpack.c.l.b16 0
      %v3577 = vunpack.c.h.b16 0
      %vm3578 = vcmp.ne.s32.totalorder %v3574, %v3576
      %vm3579 = vcmp.ne.s32.totalorder %v3575, %v3577
      %vm3580 = vmpackc.low %vm3579, %vm3578
      %v3581 = vunpack.c.l.b16 %v3571
      %v3582 = vunpack.c.h.b16 %v3571
      %v3583 = vunpack.c.l.b16 0
      %v3584 = vunpack.c.h.b16 0
      %vm3585 = vcmp.ne.s32.totalorder %v3581, %v3583
      %vm3586 = vcmp.ne.s32.totalorder %v3582, %v3584
      %vm3587 = vmpackc.low %vm3586, %vm3585
      %v3588 = vsel %vm3580, %v3535, 0
      %v3589 = vsel %vm3587, %v3536, 0
      %v3590 = vsel %vm3580, %v3537, 0
      %v3591 = vsel %vm3587, %v3538, 0
      %v3592 = vsel %vm3580, %v3539, 0
      %v3593 = vsel %vm3587, %v3540, 0
      %v3594 = vsel %vm3580, %v3541, 0
      %v3595 = vsel %vm3587, %v3542, 0
      %3596 = vrot.lane.b32.xlu0 %v409, 127
      %v3597 = vpop.permute.xlu0 %3596
      %v3598 = vrot.slane %v3597, 4
      %v3599 = vsel %vm1066, %v3598, %v3597
      %v3600 = vunpack.c.l.b16 %v3599
      %v3601 = vunpack.c.h.b16 %v3599
      %v3602 = vunpack.c.l.b16 0
      %v3603 = vunpack.c.h.b16 0
      %vm3604 = vcmp.ne.s32.totalorder %v3600, %v3602
      %vm3605 = vcmp.ne.s32.totalorder %v3601, %v3603
      %vm3606 = vmpackc.low %vm3605, %vm3604
      %v3607 = vunpack.c.l.b16 %v3598
      %v3608 = vunpack.c.h.b16 %v3598
      %v3609 = vunpack.c.l.b16 0
      %v3610 = vunpack.c.h.b16 0
      %vm3611 = vcmp.ne.s32.totalorder %v3607, %v3609
      %vm3612 = vcmp.ne.s32.totalorder %v3608, %v3610
      %vm3613 = vmpackc.low %vm3612, %vm3611
      %v3614 = vsel %vm3606, %v3535, 0
      %v3615 = vsel %vm3613, %v3536, 0
      %v3616 = vsel %vm3606, %v3537, 0
      %v3617 = vsel %vm3613, %v3538, 0
      %v3618 = vsel %vm3606, %v3539, 0
      %v3619 = vsel %vm3613, %v3540, 0
      %v3620 = vsel %vm3606, %v3541, 0
      %v3621 = vsel %vm3613, %v3542, 0
      %v3622 = vld [vmem:[#allocation2 + $0x4] sm:$0xff]
      %v3623 = vld [vmem:[#allocation2 + $0x14] sm:$0xff]
      %v3624 = vld [vmem:[#allocation2 + $0x24] sm:$0xff]
      %v3625 = vld [vmem:[#allocation2 + $0x34] sm:$0xff]
      %v3626 = vld [vmem:[#allocation2 + $0x4] sm:$0xff]
      %v3627 = vld [vmem:[#allocation2 + $0xc] sm:$0xf]
      %v3628 = vld [vmem:[#allocation2 + $0x14] sm:$0xff]
      %v3629 = vld [vmem:[#allocation2 + $0x1c] sm:$0xf]
      %v3630 = vld [vmem:[#allocation2 + $0x24] sm:$0xff]
      %v3631 = vld [vmem:[#allocation2 + $0x2c] sm:$0xf]
      %v3632 = vld [vmem:[#allocation2 + $0x34] sm:$0xff]
      %v3633 = vld [vmem:[#allocation2 + $0x3c] sm:$0xf]
      %3634 = vrot.lane.b32.xlu0 %v462, 1
      %v3635 = vpop.permute.xlu0 %3634
      %v3636 = vrot.slane %v3635, 4
      %vm3637 = vcmask 7168
      %v3638 = vsel %vm3637, %v3636, %v3635
      %v3639 = vunpack.c.l.b16 %v3638
      %v3640 = vunpack.c.h.b16 %v3638
      %v3641 = vunpack.c.l.b16 0
      %v3642 = vunpack.c.h.b16 0
      %vm3643 = vcmp.ne.s32.totalorder %v3639, %v3641
      %vm3644 = vcmp.ne.s32.totalorder %v3640, %v3642
      %vm3645 = vmpackc.low %vm3644, %vm3643
      %v3646 = vunpack.c.l.b16 %v3636
      %v3647 = vunpack.c.h.b16 %v3636
      %v3648 = vunpack.c.l.b16 0
      %v3649 = vunpack.c.h.b16 0
      %vm3650 = vcmp.ne.s32.totalorder %v3646, %v3648
      %vm3651 = vcmp.ne.s32.totalorder %v3647, %v3649
      %vm3652 = vmpackc.low %vm3651, %vm3650
      %v3653 = vsel %vm3645, %v3626, 0
      %v3654 = vsel %vm3652, %v3627, 0
      %v3655 = vsel %vm3645, %v3628, 0
      %v3656 = vsel %vm3652, %v3629, 0
      %v3657 = vsel %vm3645, %v3630, 0
      %v3658 = vsel %vm3652, %v3631, 0
      %v3659 = vsel %vm3645, %v3632, 0
      %v3660 = vsel %vm3652, %v3633, 0
      %3661 = vrot.lane.b32.xlu0 %v409, 15
      %v3662 = vpop.permute.xlu0 %3661
      %v3663 = vrot.slane %v3662, 4
      %vm3664 = vcmask 121856
      %v3665 = vsel %vm3664, %v3663, %v3662
      %v3666 = vunpack.c.l.b16 %v3665
      %v3667 = vunpack.c.h.b16 %v3665
      %v3668 = vunpack.c.l.b16 0
      %v3669 = vunpack.c.h.b16 0
      %vm3670 = vcmp.ne.s32.totalorder %v3666, %v3668
      %vm3671 = vcmp.ne.s32.totalorder %v3667, %v3669
      %vm3672 = vmpackc.low %vm3671, %vm3670
      %v3673 = vunpack.c.l.b16 %v3663
      %v3674 = vunpack.c.h.b16 %v3663
      %v3675 = vunpack.c.l.b16 0
      %v3676 = vunpack.c.h.b16 0
      %vm3677 = vcmp.ne.s32.totalorder %v3673, %v3675
      %vm3678 = vcmp.ne.s32.totalorder %v3674, %v3676
      %vm3679 = vmpackc.low %vm3678, %vm3677
      %v3680 = vsel %vm3672, %v3626, 0
      %v3681 = vsel %vm3679, %v3627, 0
      %v3682 = vsel %vm3672, %v3628, 0
      %v3683 = vsel %vm3679, %v3629, 0
      %v3684 = vsel %vm3672, %v3630, 0
      %v3685 = vsel %vm3679, %v3631, 0
      %v3686 = vsel %vm3672, %v3632, 0
      %v3687 = vsel %vm3679, %v3633, 0
      %3688 = vrot.lane.b32.xlu0 %v462, 17
      %v3689 = vpop.permute.xlu0 %3688
      %v3690 = vrot.slane %v3689, 4
      %vm3691 = vcmask 138240
      %v3692 = vsel %vm3691, %v3690, %v3689
      %v3693 = vunpack.c.l.b16 %v3692
      %v3694 = vunpack.c.h.b16 %v3692
      %v3695 = vunpack.c.l.b16 0
      %v3696 = vunpack.c.h.b16 0
      %vm3697 = vcmp.ne.s32.totalorder %v3693, %v3695
      %vm3698 = vcmp.ne.s32.totalorder %v3694, %v3696
      %vm3699 = vmpackc.low %vm3698, %vm3697
      %v3700 = vunpack.c.l.b16 %v3690
      %v3701 = vunpack.c.h.b16 %v3690
      %v3702 = vunpack.c.l.b16 0
      %v3703 = vunpack.c.h.b16 0
      %vm3704 = vcmp.ne.s32.totalorder %v3700, %v3702
      %vm3705 = vcmp.ne.s32.totalorder %v3701, %v3703
      %vm3706 = vmpackc.low %vm3705, %vm3704
      %v3707 = vsel %vm3699, %v3626, 0
      %v3708 = vsel %vm3706, %v3627, 0
      %v3709 = vsel %vm3699, %v3628, 0
      %v3710 = vsel %vm3706, %v3629, 0
      %v3711 = vsel %vm3699, %v3630, 0
      %v3712 = vsel %vm3706, %v3631, 0
      %v3713 = vsel %vm3699, %v3632, 0
      %v3714 = vsel %vm3706, %v3633, 0
      %v3723 = vunpack.c.l.b16 %v3561
      %v3724 = vunpack.c.h.b16 %v3561
      %v3725 = vunpack.c.l.b16 %v3562
      %v3726 = vunpack.c.l.b16 %v3563
      %v3727 = vunpack.c.h.b16 %v3563
      %v3728 = vunpack.c.l.b16 %v3564
      %v3729 = vunpack.c.l.b16 %v3565
      %v3730 = vunpack.c.h.b16 %v3565
      %v3731 = vunpack.c.l.b16 %v3566
      %v3732 = vunpack.c.l.b16 %v3567
      %v3733 = vunpack.c.h.b16 %v3567
      %v3734 = vunpack.c.l.b16 %v3568
      %v3735 = vpack.c.b16 %v3726, %v3723
      %v3736 = vpack.c.b16 %v3727, %v3724
      %v3737 = vpack.c.b16 %v3728, %v3725
      %v3738 = vpack.c.b16 %v3732, %v3729
      %v3739 = vpack.c.b16 %v3733, %v3730
      %v3740 = vpack.c.b16 %v3734, %v3731
      %v3749 = vunpack.c.l.b16 %v3535
      %v3750 = vunpack.c.h.b16 %v3535
      %v3751 = vunpack.c.l.b16 %v3536
      %v3752 = vunpack.c.l.b16 %v3537
      %v3753 = vunpack.c.h.b16 %v3537
      %v3754 = vunpack.c.l.b16 %v3538
      %v3755 = vunpack.c.l.b16 %v3539
      %v3756 = vunpack.c.h.b16 %v3539
      %v3757 = vunpack.c.l.b16 %v3540
      %v3758 = vunpack.c.l.b16 %v3541
      %v3759 = vunpack.c.h.b16 %v3541
      %v3760 = vunpack.c.l.b16 %v3542
      %v3761 = vpack.c.b16 %v3752, %v3749
      %v3762 = vpack.c.b16 %v3753, %v3750
      %v3763 = vpack.c.b16 %v3754, %v3751
      %v3764 = vpack.c.b16 %v3758, %v3755
      %v3765 = vpack.c.b16 %v3759, %v3756
      %v3766 = vpack.c.b16 %v3760, %v3757
      %3767 = vrot.lane.b32.xlu0 %v3761, 127
      %v3768 = vpop.permute.xlu0 %3767
      %3769 = vrot.lane.b32.xlu0 %v3762, 127
      %v3770 = vpop.permute.xlu0 %3769
      %3771 = vrot.lane.b32.xlu0 %v3763, 127
      %v3772 = vpop.permute.xlu0 %3771
      %3773 = vrot.lane.b32.xlu0 %v3764, 127
      %v3774 = vpop.permute.xlu0 %3773
      %3775 = vrot.lane.b32.xlu0 %v3765, 127
      %v3776 = vpop.permute.xlu0 %3775
      %3777 = vrot.lane.b32.xlu0 %v3766, 127
      %v3778 = vpop.permute.xlu0 %3777
      %v3779 = vsel %vm1066, %v3768, %v3770
      %v3780 = vsel %vm1066, %v3770, %v3772
      %v3781 = vsel %vm1066, %v3774, %v3776
      %v3782 = vsel %vm1066, %v3776, %v3778
      %v3791 = vunpack.c.l.b16 %v3588
      %v3792 = vunpack.c.h.b16 %v3588
      %v3793 = vunpack.c.l.b16 %v3589
      %v3794 = vunpack.c.l.b16 %v3590
      %v3795 = vunpack.c.h.b16 %v3590
      %v3796 = vunpack.c.l.b16 %v3591
      %v3797 = vunpack.c.l.b16 %v3592
      %v3798 = vunpack.c.h.b16 %v3592
      %v3799 = vunpack.c.l.b16 %v3593
      %v3800 = vunpack.c.l.b16 %v3594
      %v3801 = vunpack.c.h.b16 %v3594
      %v3802 = vunpack.c.l.b16 %v3595
      %v3803 = vpack.c.b16 %v3794, %v3791
      %v3804 = vpack.c.b16 %v3795, %v3792
      %v3805 = vpack.c.b16 %v3796, %v3793
      %v3806 = vpack.c.b16 %v3800, %v3797
      %v3807 = vpack.c.b16 %v3801, %v3798
      %v3808 = vpack.c.b16 %v3802, %v3799
      %3809 = vrot.lane.b32.xlu0 %v3803, 126
      %v3810 = vpop.permute.xlu0 %3809
      %3811 = vrot.lane.b32.xlu0 %v3804, 126
      %v3812 = vpop.permute.xlu0 %3811
      %3813 = vrot.lane.b32.xlu0 %v3805, 126
      %v3814 = vpop.permute.xlu0 %3813
      %3815 = vrot.lane.b32.xlu0 %v3806, 126
      %v3816 = vpop.permute.xlu0 %3815
      %3817 = vrot.lane.b32.xlu0 %v3807, 126
      %v3818 = vpop.permute.xlu0 %3817
      %3819 = vrot.lane.b32.xlu0 %v3808, 126
      %v3820 = vpop.permute.xlu0 %3819
      %v3821 = vsel %vm1235, %v3810, %v3812
      %v3822 = vsel %vm1235, %v3812, %v3814
      %v3823 = vsel %vm1235, %v3816, %v3818
      %v3824 = vsel %vm1235, %v3818, %v3820
      %v3833 = vunpack.c.l.b16 %v3614
      %v3834 = vunpack.c.h.b16 %v3614
      %v3835 = vunpack.c.l.b16 %v3615
      %v3836 = vunpack.c.l.b16 %v3616
      %v3837 = vunpack.c.h.b16 %v3616
      %v3838 = vunpack.c.l.b16 %v3617
      %v3839 = vunpack.c.l.b16 %v3618
      %v3840 = vunpack.c.h.b16 %v3618
      %v3841 = vunpack.c.l.b16 %v3619
      %v3842 = vunpack.c.l.b16 %v3620
      %v3843 = vunpack.c.h.b16 %v3620
      %v3844 = vunpack.c.l.b16 %v3621
      %v3845 = vpack.c.b16 %v3836, %v3833
      %v3846 = vpack.c.b16 %v3837, %v3834
      %v3847 = vpack.c.b16 %v3838, %v3835
      %v3848 = vpack.c.b16 %v3842, %v3839
      %v3849 = vpack.c.b16 %v3843, %v3840
      %v3850 = vpack.c.b16 %v3844, %v3841
      %3851 = vrot.lane.b32.xlu0 %v3845, 112
      %v3852 = vpop.permute.xlu0 %3851
      %3853 = vrot.lane.b32.xlu0 %v3846, 112
      %v3854 = vpop.permute.xlu0 %3853
      %3855 = vrot.lane.b32.xlu0 %v3847, 112
      %v3856 = vpop.permute.xlu0 %3855
      %3857 = vrot.lane.b32.xlu0 %v3848, 112
      %v3858 = vpop.permute.xlu0 %3857
      %3859 = vrot.lane.b32.xlu0 %v3849, 112
      %v3860 = vpop.permute.xlu0 %3859
      %3861 = vrot.lane.b32.xlu0 %v3850, 112
      %v3862 = vpop.permute.xlu0 %3861
      %v3863 = vsel %vm1404, %v3852, %v3854
      %v3864 = vsel %vm1404, %v3854, %v3856
      %v3865 = vsel %vm1404, %v3858, %v3860
      %v3866 = vsel %vm1404, %v3860, %v3862
      %v3871 = vunpack.c.l.b16 %v3622
      %v3872 = vunpack.c.h.b16 %v3622
      %v3873 = vunpack.c.l.b16 %v3623
      %v3874 = vunpack.c.h.b16 %v3623
      %v3875 = vunpack.c.l.b16 %v3624
      %v3876 = vunpack.c.h.b16 %v3624
      %v3877 = vunpack.c.l.b16 %v3625
      %v3878 = vunpack.c.h.b16 %v3625
      %v3879 = vpack.c.b16 %v3873, %v3871
      %v3880 = vpack.c.b16 %v3874, %v3872
      %v3881 = vpack.c.b16 %v3877, %v3875
      %v3882 = vpack.c.b16 %v3878, %v3876
      %3883 = vrot.lane.b32.xlu0 %v3879, 111
      %v3884 = vpop.permute.xlu0 %3883
      %3885 = vrot.lane.b32.xlu0 %v3880, 111
      %v3886 = vpop.permute.xlu0 %3885
      %3887 = vrot.lane.b32.xlu0 %v3881, 111
      %v3888 = vpop.permute.xlu0 %3887
      %3889 = vrot.lane.b32.xlu0 %v3882, 111
      %v3890 = vpop.permute.xlu0 %3889
      %v3891 = vsel %vm1469, %v3884, %v3886
      %v3892 = vsel %vm1469, %v3888, %v3890
      %v3901 = vunpack.c.l.b16 %v3653
      %v3902 = vunpack.c.h.b16 %v3653
      %v3903 = vunpack.c.l.b16 %v3654
      %v3904 = vunpack.c.l.b16 %v3655
      %v3905 = vunpack.c.h.b16 %v3655
      %v3906 = vunpack.c.l.b16 %v3656
      %v3907 = vunpack.c.l.b16 %v3657
      %v3908 = vunpack.c.h.b16 %v3657
      %v3909 = vunpack.c.l.b16 %v3658
      %v3910 = vunpack.c.l.b16 %v3659
      %v3911 = vunpack.c.h.b16 %v3659
      %v3912 = vunpack.c.l.b16 %v3660
      %v3913 = vpack.c.b16 %v3904, %v3901
      %v3914 = vpack.c.b16 %v3905, %v3902
      %v3915 = vpack.c.b16 %v3906, %v3903
      %v3916 = vpack.c.b16 %v3910, %v3907
      %v3917 = vpack.c.b16 %v3911, %v3908
      %v3918 = vpack.c.b16 %v3912, %v3909
      %3919 = vrot.lane.b32.xlu0 %v3913, 110
      %v3920 = vpop.permute.xlu0 %3919
      %3921 = vrot.lane.b32.xlu0 %v3914, 110
      %v3922 = vpop.permute.xlu0 %3921
      %3923 = vrot.lane.b32.xlu0 %v3915, 110
      %v3924 = vpop.permute.xlu0 %3923
      %3925 = vrot.lane.b32.xlu0 %v3916, 110
      %v3926 = vpop.permute.xlu0 %3925
      %3927 = vrot.lane.b32.xlu0 %v3917, 110
      %v3928 = vpop.permute.xlu0 %3927
      %3929 = vrot.lane.b32.xlu0 %v3918, 110
      %v3930 = vpop.permute.xlu0 %3929
      %v3931 = vsel %vm1638, %v3920, %v3922
      %v3932 = vsel %vm1638, %v3922, %v3924
      %v3933 = vsel %vm1638, %v3926, %v3928
      %v3934 = vsel %vm1638, %v3928, %v3930
      %v3943 = vunpack.c.l.b16 %v3680
      %v3944 = vunpack.c.h.b16 %v3680
      %v3945 = vunpack.c.l.b16 %v3681
      %v3946 = vunpack.c.l.b16 %v3682
      %v3947 = vunpack.c.h.b16 %v3682
      %v3948 = vunpack.c.l.b16 %v3683
      %v3949 = vunpack.c.l.b16 %v3684
      %v3950 = vunpack.c.h.b16 %v3684
      %v3951 = vunpack.c.l.b16 %v3685
      %v3952 = vunpack.c.l.b16 %v3686
      %v3953 = vunpack.c.h.b16 %v3686
      %v3954 = vunpack.c.l.b16 %v3687
      %v3955 = vpack.c.b16 %v3946, %v3943
      %v3956 = vpack.c.b16 %v3947, %v3944
      %v3957 = vpack.c.b16 %v3948, %v3945
      %v3958 = vpack.c.b16 %v3952, %v3949
      %v3959 = vpack.c.b16 %v3953, %v3950
      %v3960 = vpack.c.b16 %v3954, %v3951
      %3961 = vrot.lane.b32.xlu0 %v3955, 96
      %v3962 = vpop.permute.xlu0 %3961
      %3963 = vrot.lane.b32.xlu0 %v3956, 96
      %v3964 = vpop.permute.xlu0 %3963
      %3965 = vrot.lane.b32.xlu0 %v3957, 96
      %v3966 = vpop.permute.xlu0 %3965
      %3967 = vrot.lane.b32.xlu0 %v3958, 96
      %v3968 = vpop.permute.xlu0 %3967
      %3969 = vrot.lane.b32.xlu0 %v3959, 96
      %v3970 = vpop.permute.xlu0 %3969
      %3971 = vrot.lane.b32.xlu0 %v3960, 96
      %v3972 = vpop.permute.xlu0 %3971
      %v3973 = vsel %vm1807, %v3962, %v3964
      %v3974 = vsel %vm1807, %v3964, %v3966
      %v3975 = vsel %vm1807, %v3968, %v3970
      %v3976 = vsel %vm1807, %v3970, %v3972
      %v3985 = vunpack.c.l.b16 %v3626
      %v3986 = vunpack.c.h.b16 %v3626
      %v3987 = vunpack.c.l.b16 %v3627
      %v3988 = vunpack.c.l.b16 %v3628
      %v3989 = vunpack.c.h.b16 %v3628
      %v3990 = vunpack.c.l.b16 %v3629
      %v3991 = vunpack.c.l.b16 %v3630
      %v3992 = vunpack.c.h.b16 %v3630
      %v3993 = vunpack.c.l.b16 %v3631
      %v3994 = vunpack.c.l.b16 %v3632
      %v3995 = vunpack.c.h.b16 %v3632
      %v3996 = vunpack.c.l.b16 %v3633
      %v3997 = vpack.c.b16 %v3988, %v3985
      %v3998 = vpack.c.b16 %v3989, %v3986
      %v3999 = vpack.c.b16 %v3990, %v3987
      %v4000 = vpack.c.b16 %v3994, %v3991
      %v4001 = vpack.c.b16 %v3995, %v3992
      %v4002 = vpack.c.b16 %v3996, %v3993
      %4003 = vrot.lane.b32.xlu0 %v3997, 95
      %v4004 = vpop.permute.xlu0 %4003
      %4005 = vrot.lane.b32.xlu0 %v3998, 95
      %v4006 = vpop.permute.xlu0 %4005
      %4007 = vrot.lane.b32.xlu0 %v3999, 95
      %v4008 = vpop.permute.xlu0 %4007
      %4009 = vrot.lane.b32.xlu0 %v4000, 95
      %v4010 = vpop.permute.xlu0 %4009
      %4011 = vrot.lane.b32.xlu0 %v4001, 95
      %v4012 = vpop.permute.xlu0 %4011
      %4013 = vrot.lane.b32.xlu0 %v4002, 95
      %v4014 = vpop.permute.xlu0 %4013
      %v4015 = vsel %vm1872, %v4004, %v4006
      %v4016 = vsel %vm1872, %v4006, %v4008
      %v4017 = vsel %vm1872, %v4010, %v4012
      %v4018 = vsel %vm1872, %v4012, %v4014
      %v4027 = vunpack.c.l.b16 %v3707
      %v4028 = vunpack.c.h.b16 %v3707
      %v4029 = vunpack.c.l.b16 %v3708
      %v4030 = vunpack.c.l.b16 %v3709
      %v4031 = vunpack.c.h.b16 %v3709
      %v4032 = vunpack.c.l.b16 %v3710
      %v4033 = vunpack.c.l.b16 %v3711
      %v4034 = vunpack.c.h.b16 %v3711
      %v4035 = vunpack.c.l.b16 %v3712
      %v4036 = vunpack.c.l.b16 %v3713
      %v4037 = vunpack.c.h.b16 %v3713
      %v4038 = vunpack.c.l.b16 %v3714
      %v4039 = vpack.c.b16 %v4030, %v4027
      %v4040 = vpack.c.b16 %v4031, %v4028
      %v4041 = vpack.c.b16 %v4032, %v4029
      %v4042 = vpack.c.b16 %v4036, %v4033
      %v4043 = vpack.c.b16 %v4037, %v4034
      %v4044 = vpack.c.b16 %v4038, %v4035
      %4045 = vrot.lane.b32.xlu0 %v4039, 94
      %v4046 = vpop.permute.xlu0 %4045
      %4047 = vrot.lane.b32.xlu0 %v4040, 94
      %v4048 = vpop.permute.xlu0 %4047
      %4049 = vrot.lane.b32.xlu0 %v4041, 94
      %v4050 = vpop.permute.xlu0 %4049
      %4051 = vrot.lane.b32.xlu0 %v4042, 94
      %v4052 = vpop.permute.xlu0 %4051
      %4053 = vrot.lane.b32.xlu0 %v4043, 94
      %v4054 = vpop.permute.xlu0 %4053
      %4055 = vrot.lane.b32.xlu0 %v4044, 94
      %v4056 = vpop.permute.xlu0 %4055
      %v4057 = vsel %vm2041, %v4046, %v4048
      %v4058 = vsel %vm2041, %v4048, %v4050
      %v4059 = vsel %vm2041, %v4052, %v4054
      %v4060 = vsel %vm2041, %v4054, %v4056
      %v4061 = vld [vmem:[%s4] sm:$0xff]
      %v4062 = vld [vmem:[%s4 + $0x8] sm:$0xf]
      %v4063 = vld [vmem:[%s4 + $0xc] sm:$0xff]
      %v4064 = vld [vmem:[%s4 + $0x14] sm:$0xf]
      %v4065 = vld [vmem:[%s4 + $0x18] sm:$0xff]
      %v4066 = vld [vmem:[%s4 + $0x20] sm:$0xf]
      %v4067 = vld [vmem:[%s4 + $0x24] sm:$0xff]
      %v4068 = vld [vmem:[%s4 + $0x2c] sm:$0xf]
      %v4069 = vld [vmem:[%s5] sm:$0xff]
      %v4070 = vld [vmem:[%s5 + $0x8] sm:$0xff]
      %v4071 = vld [vmem:[%s5 + $0x10] sm:$0xff]
      %v4072 = vld [vmem:[%s5 + $0x18] sm:$0xff]
      %4074 = vset.pattern.permute.xlu0 0
      %4075 = vperm.xlu0 %4074, %v4069
      %v4076 = vpop.permute.xlu0 %4075
      %4079 = vset.pattern.permute.xlu0 0
      %4080 = vperm.xlu0 %4079, %v4070
      %v4081 = vpop.permute.xlu0 %4080
      %4084 = vset.pattern.permute.xlu0 0
      %4085 = vperm.xlu0 %4084, %v4071
      %v4086 = vpop.permute.xlu0 %4085
      %4089 = vset.pattern.permute.xlu0 0
      %4090 = vperm.xlu0 %4089, %v4072
      %v4091 = vpop.permute.xlu0 %4090
      %v4101 = vunpack.c.l.b16 %v4061
      %v4102 = vunpack.c.h.b16 %v4061
      %v4103 = vunpack.c.l.b16 %v4062
      %v4104 = vunpack.c.l.b16 %v4063
      %v4105 = vunpack.c.h.b16 %v4063
      %v4106 = vunpack.c.l.b16 %v4064
      %v4107 = vunpack.c.l.b16 %v4065
      %v4108 = vunpack.c.h.b16 %v4065
      %v4109 = vunpack.c.l.b16 %v4066
      %v4110 = vunpack.c.l.b16 %v4067
      %v4111 = vunpack.c.h.b16 %v4067
      %v4112 = vunpack.c.l.b16 %v4068
      %v4113 = vpack.c.b16 %v4104, %v4101
      %v4114 = vpack.c.b16 %v4105, %v4102
      %v4115 = vpack.c.b16 %v4106, %v4103
      %v4116 = vpack.c.b16 %v4110, %v4107
      %v4117 = vpack.c.b16 %v4111, %v4108
      %v4118 = vpack.c.b16 %v4112, %v4109
      %4123 = vrot.lane.b32.xlu0 %v3735, 17
      %v4124 = vpop.permute.xlu0 %4123
      %4125 = vrot.lane.b32.xlu0 %v3736, 17
      %v4126 = vpop.permute.xlu0 %4125
      %4127 = vrot.lane.b32.xlu0 %v3737, 17
      %v4128 = vpop.permute.xlu0 %4127
      %4129 = vrot.lane.b32.xlu0 %v3738, 17
      %v4130 = vpop.permute.xlu0 %4129
      %4131 = vrot.lane.b32.xlu0 %v3739, 17
      %v4132 = vpop.permute.xlu0 %4131
      %4133 = vrot.lane.b32.xlu0 %v3740, 17
      %v4134 = vpop.permute.xlu0 %4133
      %4135 = vrot.lane.b32.xlu0 %v3779, 17
      %v4136 = vpop.permute.xlu0 %4135
      %4137 = vrot.lane.b32.xlu0 %v3780, 17
      %v4138 = vpop.permute.xlu0 %4137
      %4139 = vrot.lane.b32.xlu0 %v3772, 17
      %v4140 = vpop.permute.xlu0 %4139
      %4141 = vrot.lane.b32.xlu0 %v3781, 17
      %v4142 = vpop.permute.xlu0 %4141
      %4143 = vrot.lane.b32.xlu0 %v3782, 17
      %v4144 = vpop.permute.xlu0 %4143
      %4145 = vrot.lane.b32.xlu0 %v3778, 17
      %v4146 = vpop.permute.xlu0 %4145
      %4147 = vrot.lane.b32.xlu0 %v3821, 17
      %v4148 = vpop.permute.xlu0 %4147
      %4149 = vrot.lane.b32.xlu0 %v3822, 17
      %v4150 = vpop.permute.xlu0 %4149
      %4151 = vrot.lane.b32.xlu0 %v3814, 17
      %v4152 = vpop.permute.xlu0 %4151
      %4153 = vrot.lane.b32.xlu0 %v3823, 17
      %v4154 = vpop.permute.xlu0 %4153
      %4155 = vrot.lane.b32.xlu0 %v3824, 17
      %v4156 = vpop.permute.xlu0 %4155
      %4157 = vrot.lane.b32.xlu0 %v3820, 17
      %v4158 = vpop.permute.xlu0 %4157
      %4159 = vrot.lane.b32.xlu0 %v3863, 17
      %v4160 = vpop.permute.xlu0 %4159
      %4161 = vrot.lane.b32.xlu0 %v3864, 17
      %v4162 = vpop.permute.xlu0 %4161
      %4163 = vrot.lane.b32.xlu0 %v3856, 17
      %v4164 = vpop.permute.xlu0 %4163
      %4165 = vrot.lane.b32.xlu0 %v3865, 17
      %v4166 = vpop.permute.xlu0 %4165
      %4167 = vrot.lane.b32.xlu0 %v3866, 17
      %v4168 = vpop.permute.xlu0 %4167
      %4169 = vrot.lane.b32.xlu0 %v3862, 17
      %v4170 = vpop.permute.xlu0 %4169
      %4171 = vrot.lane.b32.xlu0 %v3884, 17
      %v4172 = vpop.permute.xlu0 %4171
      %4173 = vrot.lane.b32.xlu0 %v3891, 17
      %v4174 = vpop.permute.xlu0 %4173
      %4175 = vrot.lane.b32.xlu0 %v3886, 17
      %v4176 = vpop.permute.xlu0 %4175
      %4177 = vrot.lane.b32.xlu0 %v3888, 17
      %v4178 = vpop.permute.xlu0 %4177
      %4179 = vrot.lane.b32.xlu0 %v3892, 17
      %v4180 = vpop.permute.xlu0 %4179
      %4181 = vrot.lane.b32.xlu0 %v3890, 17
      %v4182 = vpop.permute.xlu0 %4181
      %4183 = vrot.lane.b32.xlu0 %v3920, 17
      %v4184 = vpop.permute.xlu0 %4183
      %4185 = vrot.lane.b32.xlu0 %v3931, 17
      %v4186 = vpop.permute.xlu0 %4185
      %4187 = vrot.lane.b32.xlu0 %v3932, 17
      %v4188 = vpop.permute.xlu0 %4187
      %4189 = vrot.lane.b32.xlu0 %v3926, 17
      %v4190 = vpop.permute.xlu0 %4189
      %4191 = vrot.lane.b32.xlu0 %v3933, 17
      %v4192 = vpop.permute.xlu0 %4191
      %4193 = vrot.lane.b32.xlu0 %v3934, 17
      %v4194 = vpop.permute.xlu0 %4193
      %4195 = vrot.lane.b32.xlu0 %v3962, 17
      %v4196 = vpop.permute.xlu0 %4195
      %4197 = vrot.lane.b32.xlu0 %v3973, 17
      %v4198 = vpop.permute.xlu0 %4197
      %4199 = vrot.lane.b32.xlu0 %v3974, 17
      %v4200 = vpop.permute.xlu0 %4199
      %4201 = vrot.lane.b32.xlu0 %v3968, 17
      %v4202 = vpop.permute.xlu0 %4201
      %4203 = vrot.lane.b32.xlu0 %v3975, 17
      %v4204 = vpop.permute.xlu0 %4203
      %4205 = vrot.lane.b32.xlu0 %v3976, 17
      %v4206 = vpop.permute.xlu0 %4205
      %4207 = vrot.lane.b32.xlu0 %v4004, 17
      %v4208 = vpop.permute.xlu0 %4207
      %4209 = vrot.lane.b32.xlu0 %v4015, 17
      %v4210 = vpop.permute.xlu0 %4209
      %4211 = vrot.lane.b32.xlu0 %v4016, 17
      %v4212 = vpop.permute.xlu0 %4211
      %4213 = vrot.lane.b32.xlu0 %v4010, 17
      %v4214 = vpop.permute.xlu0 %4213
      %4215 = vrot.lane.b32.xlu0 %v4017, 17
      %v4216 = vpop.permute.xlu0 %4215
      %4217 = vrot.lane.b32.xlu0 %v4018, 17
      %v4218 = vpop.permute.xlu0 %4217
      %4219 = vrot.lane.b32.xlu0 %v4046, 17
      %v4220 = vpop.permute.xlu0 %4219
      %4221 = vrot.lane.b32.xlu0 %v4057, 17
      %v4222 = vpop.permute.xlu0 %4221
      %4223 = vrot.lane.b32.xlu0 %v4058, 17
      %v4224 = vpop.permute.xlu0 %4223
      %4225 = vrot.lane.b32.xlu0 %v4052, 17
      %v4226 = vpop.permute.xlu0 %4225
      %4227 = vrot.lane.b32.xlu0 %v4059, 17
      %v4228 = vpop.permute.xlu0 %4227
      %4229 = vrot.lane.b32.xlu0 %v4060, 17
      %v4230 = vpop.permute.xlu0 %4229
      %v4231 = vsel %vm3691, %v4124, %v4126
      %v4232 = vsel %vm3691, %v4126, %v4128
      %v4233 = vsel %vm3691, %v4130, %v4132
      %v4234 = vsel %vm3691, %v4132, %v4134
      %v4235 = vsel %vm3691, %v4136, %v4138
      %v4236 = vsel %vm3691, %v4138, %v4140
      %v4237 = vsel %vm3691, %v4142, %v4144
      %v4238 = vsel %vm3691, %v4144, %v4146
      %v4239 = vsel %vm3691, %v4148, %v4150
      %v4240 = vsel %vm3691, %v4150, %v4152
      %v4241 = vsel %vm3691, %v4154, %v4156
      %v4242 = vsel %vm3691, %v4156, %v4158
      %v4243 = vsel %vm3691, %v4160, %v4162
      %v4244 = vsel %vm3691, %v4162, %v4164
      %v4245 = vsel %vm3691, %v4166, %v4168
      %v4246 = vsel %vm3691, %v4168, %v4170
      %v4247 = vsel %vm3691, %v4172, %v4174
      %v4248 = vsel %vm3691, %v4174, %v4176
      %v4249 = vsel %vm3691, %v4178, %v4180
      %v4250 = vsel %vm3691, %v4180, %v4182
      %v4251 = vsel %vm3691, %v4184, %v4186
      %v4252 = vsel %vm3691, %v4186, %v4188
      %v4253 = vsel %vm3691, %v4190, %v4192
      %v4254 = vsel %vm3691, %v4192, %v4194
      %v4255 = vsel %vm3691, %v4196, %v4198
      %v4256 = vsel %vm3691, %v4198, %v4200
      %v4257 = vsel %vm3691, %v4202, %v4204
      %v4258 = vsel %vm3691, %v4204, %v4206
      %v4259 = vsel %vm3691, %v4208, %v4210
      %v4260 = vsel %vm3691, %v4210, %v4212
      %v4261 = vsel %vm3691, %v4214, %v4216
      %v4262 = vsel %vm3691, %v4216, %v4218
      %v4263 = vsel %vm3691, %v4220, %v4222
      %v4264 = vsel %vm3691, %v4222, %v4224
      %v4265 = vsel %vm3691, %v4226, %v4228
      %v4266 = vsel %vm3691, %v4228, %v4230
      %vm4303 = vcmask 261120
      %v4305 = vsel %vm4303, %v4115, 0
      %v4308 = vsel %vm4303, %v4118, 0
      %4310 = vmatpush.bf16.msra.mxu0 %v4245
      %4311 = vmatpush.bf16.msra.mxu0 %v4243
      %4312 = vmatpush.bf16.msra.mxu0 %v4241
      %4313 = vmatpush.bf16.msra.mxu0 %v4239
      %4314 = vmatpush.bf16.msra.mxu0 %v4237
      %4315 = vmatpush.bf16.msra.mxu0 %v4235
      %4316 = vmatpush.bf16.msra.mxu0 %v4233
      %4317 = vmatpush.bf16.msra.mxu0 %v4231
      %4318 = vmatmul.bf16.gmra.mxu0 %v4113
      %v4319 = vpop.f32.mrf.mxu0
      %v4320 = vadd.f32 %v4076, %v4319
      %v4321 = vpop.f32.mrf.mxu0
      %v4322 = vadd.f32 %v4081, %v4321
      %4323 = vmatmul.bf16.gmra.mxu0 %v4116
      %v4324 = vpop.f32.mrf.mxu0
      %v4325 = vadd.f32 %v4086, %v4324
      %v4326 = vpop.f32.mrf.mxu0
      %v4327 = vadd.f32 %v4091, %v4326
      %4328 = vdwg.mxu0
      %4329 = vmatpush.bf16.msra.mxu0 %v4261
      %4330 = vmatpush.bf16.msra.mxu0 %v4259
      %4331 = vmatpush.bf16.msra.mxu0 %v4257
      %4332 = vmatpush.bf16.msra.mxu0 %v4255
      %4333 = vmatpush.bf16.msra.mxu0 %v4253
      %4334 = vmatpush.bf16.msra.mxu0 %v4251
      %4335 = vmatpush.bf16.msra.mxu0 %v4249
      %4336 = vmatpush.bf16.msra.mxu0 %v4247
      %4337 = vmatmul.bf16.gmra.mxu0 %v4114
      %v4338 = vpop.f32.mrf.mxu0
      %v4339 = vadd.f32 %v4320, %v4338
      %v4340 = vpop.f32.mrf.mxu0
      %v4341 = vadd.f32 %v4322, %v4340
      %4342 = vmatmul.bf16.gmra.mxu0 %v4117
      %v4343 = vpop.f32.mrf.mxu0
      %v4344 = vadd.f32 %v4325, %v4343
      %v4345 = vpop.f32.mrf.mxu0
      %v4346 = vadd.f32 %v4327, %v4345
      %4347 = vdwg.mxu0
      %4348 = vmatpush.bf16.msra.mxu0 0
      %4349 = vmatpush.bf16.msra.mxu0 0
      %4350 = vmatpush.bf16.msra.mxu0 0
      %4351 = vmatpush.bf16.msra.mxu0 0
      %4352 = vmatpush.bf16.msra.mxu0 0
      %4353 = vmatpush.bf16.msra.mxu0 0
      %4354 = vmatpush.bf16.msra.mxu0 %v4265
      %4355 = vmatpush.bf16.msra.mxu0 %v4263
      %4356 = vmatmul.bf16.gmra.mxu0 %v4305
      %v4357 = vpop.f32.mrf.mxu0
      %v4358 = vadd.f32 %v4339, %v4357
      %v4359 = vpop.f32.mrf.mxu0
      %v4360 = vadd.f32 %v4341, %v4359
      %4361 = vmatmul.bf16.gmra.mxu0 %v4308
      %v4362 = vpop.f32.mrf.mxu0
      %v4363 = vadd.f32 %v4344, %v4362
      %v4364 = vpop.f32.mrf.mxu0
      %v4365 = vadd.f32 %v4346, %v4364
      %4366 = vdwg.mxu0
      %4367 = vmatpush.bf16.msra.mxu0 %v4246
      %4368 = vmatpush.bf16.msra.mxu0 %v4244
      %4369 = vmatpush.bf16.msra.mxu0 %v4242
      %4370 = vmatpush.bf16.msra.mxu0 %v4240
      %4371 = vmatpush.bf16.msra.mxu0 %v4238
      %4372 = vmatpush.bf16.msra.mxu0 %v4236
      %4373 = vmatpush.bf16.msra.mxu0 %v4234
      %4374 = vmatpush.bf16.msra.mxu0 %v4232
      %4375 = vmatmul.bf16.gmra.mxu0 %v4113
      %v4376 = vpop.f32.mrf.mxu0
      %v4377 = vadd.f32 %v4076, %v4376
      %v4378 = vpop.f32.mrf.mxu0
      %v4379 = vadd.f32 %v4081, %v4378
      %4380 = vmatmul.bf16.gmra.mxu0 %v4116
      %v4381 = vpop.f32.mrf.mxu0
      %v4382 = vadd.f32 %v4086, %v4381
      %v4383 = vpop.f32.mrf.mxu0
      %v4384 = vadd.f32 %v4091, %v4383
      %4385 = vdwg.mxu0
      %4386 = vmatpush.bf16.msra.mxu0 %v4262
      %4387 = vmatpush.bf16.msra.mxu0 %v4260
      %4388 = vmatpush.bf16.msra.mxu0 %v4258
      %4389 = vmatpush.bf16.msra.mxu0 %v4256
      %4390 = vmatpush.bf16.msra.mxu0 %v4254
      %4391 = vmatpush.bf16.msra.mxu0 %v4252
      %4392 = vmatpush.bf16.msra.mxu0 %v4250
      %4393 = vmatpush.bf16.msra.mxu0 %v4248
      %4394 = vmatmul.bf16.gmra.mxu0 %v4114
      %v4395 = vpop.f32.mrf.mxu0
      %v4396 = vadd.f32 %v4377, %v4395
      %v4397 = vpop.f32.mrf.mxu0
      %v4398 = vadd.f32 %v4379, %v4397
      %4399 = vmatmul.bf16.gmra.mxu0 %v4117
      %v4400 = vpop.f32.mrf.mxu0
      %v4401 = vadd.f32 %v4382, %v4400
      %v4402 = vpop.f32.mrf.mxu0
      %v4403 = vadd.f32 %v4384, %v4402
      %4404 = vdwg.mxu0
      %4405 = vmatpush.bf16.msra.mxu0 0
      %4406 = vmatpush.bf16.msra.mxu0 0
      %4407 = vmatpush.bf16.msra.mxu0 0
      %4408 = vmatpush.bf16.msra.mxu0 0
      %4409 = vmatpush.bf16.msra.mxu0 0
      %4410 = vmatpush.bf16.msra.mxu0 0
      %4411 = vmatpush.bf16.msra.mxu0 %v4266
      %4412 = vmatpush.bf16.msra.mxu0 %v4264
      %4413 = vmatmul.bf16.gmra.mxu0 %v4305
      %v4414 = vpop.f32.mrf.mxu0
      %v4415 = vadd.f32 %v4396, %v4414
      %v4416 = vpop.f32.mrf.mxu0
      %v4417 = vadd.f32 %v4398, %v4416
      %4418 = vmatmul.bf16.gmra.mxu0 %v4308
      %v4419 = vpop.f32.mrf.mxu0
      %v4420 = vadd.f32 %v4401, %v4419
      %v4421 = vpop.f32.mrf.mxu0
      %v4422 = vadd.f32 %v4403, %v4421
      %4423 = vdwg.mxu0
      %v4424 = vmax.f32 %v4358, 0.0
      %v4425 = vmax.f32 %v4415, 0.0
      %v4426 = vmax.f32 %v4360, 0.0
      %v4427 = vmax.f32 %v4417, 0.0
      %v4428 = vmax.f32 %v4363, 0.0
      %v4429 = vmax.f32 %v4420, 0.0
      %v4430 = vmax.f32 %v4365, 0.0
      %v4431 = vmax.f32 %v4422, 0.0
      %v4432 = vpack.c.bf16 %v4425, %v4424
      %v4433 = vpack.c.bf16 %v4427, %v4426
      %v4434 = vpack.c.bf16 %v4429, %v4428
      %v4435 = vpack.c.bf16 %v4431, %v4430
      %4436 = vst [vmem:[#allocation2 + $0x4] sm:$0xff] %v4432
      %4437 = vst [vmem:[#allocation2 + $0x14] sm:$0xff] %v4433
      %4438 = vst [vmem:[#allocation2 + $0x24] sm:$0xff] %v4434
      %4439 = vst [vmem:[#allocation2 + $0x34] sm:$0xff] %v4435
      %v4440 = vld [vmem:[#allocation2] sm:$0xff]
      %v4441 = vld [vmem:[#allocation2 + $0x8] sm:$0xf]
      %v4442 = vld [vmem:[#allocation2 + $0x10] sm:$0xff]
      %v4443 = vld [vmem:[#allocation2 + $0x18] sm:$0xf]
      %v4444 = vld [vmem:[#allocation2 + $0x20] sm:$0xff]
      %v4445 = vld [vmem:[#allocation2 + $0x28] sm:$0xf]
      %v4446 = vld [vmem:[#allocation2 + $0x30] sm:$0xff]
      %v4447 = vld [vmem:[#allocation2 + $0x38] sm:$0xf]
      %v4448 = vsel %vm3553, %v4440, 0
      %v4449 = vsel %vm3560, %v4441, 0
      %v4450 = vsel %vm3553, %v4442, 0
      %v4451 = vsel %vm3560, %v4443, 0
      %v4452 = vsel %vm3553, %v4444, 0
      %v4453 = vsel %vm3560, %v4445, 0
      %v4454 = vsel %vm3553, %v4446, 0
      %v4455 = vsel %vm3560, %v4447, 0
      %v4456 = vsel %vm3580, %v4440, 0
      %v4457 = vsel %vm3587, %v4441, 0
      %v4458 = vsel %vm3580, %v4442, 0
      %v4459 = vsel %vm3587, %v4443, 0
      %v4460 = vsel %vm3580, %v4444, 0
      %v4461 = vsel %vm3587, %v4445, 0
      %v4462 = vsel %vm3580, %v4446, 0
      %v4463 = vsel %vm3587, %v4447, 0
      %v4464 = vsel %vm3606, %v4440, 0
      %v4465 = vsel %vm3613, %v4441, 0
      %v4466 = vsel %vm3606, %v4442, 0
      %v4467 = vsel %vm3613, %v4443, 0
      %v4468 = vsel %vm3606, %v4444, 0
      %v4469 = vsel %vm3613, %v4445, 0
      %v4470 = vsel %vm3606, %v4446, 0
      %v4471 = vsel %vm3613, %v4447, 0
      %v4472 = vld [vmem:[#allocation2 + $0x4] sm:$0xff]
      %v4473 = vld [vmem:[#allocation2 + $0x14] sm:$0xff]
      %v4474 = vld [vmem:[#allocation2 + $0x24] sm:$0xff]
      %v4475 = vld [vmem:[#allocation2 + $0x34] sm:$0xff]
      %v4476 = vld [vmem:[#allocation2 + $0x4] sm:$0xff]
      %v4477 = vld [vmem:[#allocation2 + $0xc] sm:$0xf]
      %v4478 = vld [vmem:[#allocation2 + $0x14] sm:$0xff]
      %v4479 = vld [vmem:[#allocation2 + $0x1c] sm:$0xf]
      %v4480 = vld [vmem:[#allocation2 + $0x24] sm:$0xff]
      %v4481 = vld [vmem:[#allocation2 + $0x2c] sm:$0xf]
      %v4482 = vld [vmem:[#allocation2 + $0x34] sm:$0xff]
      %v4483 = vld [vmem:[#allocation2 + $0x3c] sm:$0xf]
      %v4484 = vsel %vm3645, %v4476, 0
      %v4485 = vsel %vm3652, %v4477, 0
      %v4486 = vsel %vm3645, %v4478, 0
      %v4487 = vsel %vm3652, %v4479, 0
      %v4488 = vsel %vm3645, %v4480, 0
      %v4489 = vsel %vm3652, %v4481, 0
      %v4490 = vsel %vm3645, %v4482, 0
      %v4491 = vsel %vm3652, %v4483, 0
      %v4492 = vsel %vm3672, %v4476, 0
      %v4493 = vsel %vm3679, %v4477, 0
      %v4494 = vsel %vm3672, %v4478, 0
      %v4495 = vsel %vm3679, %v4479, 0
      %v4496 = vsel %vm3672, %v4480, 0
      %v4497 = vsel %vm3679, %v4481, 0
      %v4498 = vsel %vm3672, %v4482, 0
      %v4499 = vsel %vm3679, %v4483, 0
      %v4500 = vsel %vm3699, %v4476, 0
      %v4501 = vsel %vm3706, %v4477, 0
      %v4502 = vsel %vm3699, %v4478, 0
      %v4503 = vsel %vm3706, %v4479, 0
      %v4504 = vsel %vm3699, %v4480, 0
      %v4505 = vsel %vm3706, %v4481, 0
      %v4506 = vsel %vm3699, %v4482, 0
      %v4507 = vsel %vm3706, %v4483, 0
      %v4516 = vunpack.c.l.b16 %v4448
      %v4517 = vunpack.c.h.b16 %v4448
      %v4518 = vunpack.c.l.b16 %v4449
      %v4519 = vunpack.c.l.b16 %v4450
      %v4520 = vunpack.c.h.b16 %v4450
      %v4521 = vunpack.c.l.b16 %v4451
      %v4522 = vunpack.c.l.b16 %v4452
      %v4523 = vunpack.c.h.b16 %v4452
      %v4524 = vunpack.c.l.b16 %v4453
      %v4525 = vunpack.c.l.b16 %v4454
      %v4526 = vunpack.c.h.b16 %v4454
      %v4527 = vunpack.c.l.b16 %v4455
      %v4528 = vpack.c.b16 %v4519, %v4516
      %v4529 = vpack.c.b16 %v4520, %v4517
      %v4530 = vpack.c.b16 %v4521, %v4518
      %v4531 = vpack.c.b16 %v4525, %v4522
      %v4532 = vpack.c.b16 %v4526, %v4523
      %v4533 = vpack.c.b16 %v4527, %v4524
      %v4542 = vunpack.c.l.b16 %v4440
      %v4543 = vunpack.c.h.b16 %v4440
      %v4544 = vunpack.c.l.b16 %v4441
      %v4545 = vunpack.c.l.b16 %v4442
      %v4546 = vunpack.c.h.b16 %v4442
      %v4547 = vunpack.c.l.b16 %v4443
      %v4548 = vunpack.c.l.b16 %v4444
      %v4549 = vunpack.c.h.b16 %v4444
      %v4550 = vunpack.c.l.b16 %v4445
      %v4551 = vunpack.c.l.b16 %v4446
      %v4552 = vunpack.c.h.b16 %v4446
      %v4553 = vunpack.c.l.b16 %v4447
      %v4554 = vpack.c.b16 %v4545, %v4542
      %v4555 = vpack.c.b16 %v4546, %v4543
      %v4556 = vpack.c.b16 %v4547, %v4544
      %v4557 = vpack.c.b16 %v4551, %v4548
      %v4558 = vpack.c.b16 %v4552, %v4549
      %v4559 = vpack.c.b16 %v4553, %v4550
      %4560 = vrot.lane.b32.xlu0 %v4554, 127
      %v4561 = vpop.permute.xlu0 %4560
      %4562 = vrot.lane.b32.xlu0 %v4555, 127
      %v4563 = vpop.permute.xlu0 %4562
      %4564 = vrot.lane.b32.xlu0 %v4556, 127
      %v4565 = vpop.permute.xlu0 %4564
      %4566 = vrot.lane.b32.xlu0 %v4557, 127
      %v4567 = vpop.permute.xlu0 %4566
      %4568 = vrot.lane.b32.xlu0 %v4558, 127
      %v4569 = vpop.permute.xlu0 %4568
      %4570 = vrot.lane.b32.xlu0 %v4559, 127
      %v4571 = vpop.permute.xlu0 %4570
      %v4572 = vsel %vm1066, %v4561, %v4563
      %v4573 = vsel %vm1066, %v4563, %v4565
      %v4574 = vsel %vm1066, %v4567, %v4569
      %v4575 = vsel %vm1066, %v4569, %v4571
      %v4584 = vunpack.c.l.b16 %v4456
      %v4585 = vunpack.c.h.b16 %v4456
      %v4586 = vunpack.c.l.b16 %v4457
      %v4587 = vunpack.c.l.b16 %v4458
      %v4588 = vunpack.c.h.b16 %v4458
      %v4589 = vunpack.c.l.b16 %v4459
      %v4590 = vunpack.c.l.b16 %v4460
      %v4591 = vunpack.c.h.b16 %v4460
      %v4592 = vunpack.c.l.b16 %v4461
      %v4593 = vunpack.c.l.b16 %v4462
      %v4594 = vunpack.c.h.b16 %v4462
      %v4595 = vunpack.c.l.b16 %v4463
      %v4596 = vpack.c.b16 %v4587, %v4584
      %v4597 = vpack.c.b16 %v4588, %v4585
      %v4598 = vpack.c.b16 %v4589, %v4586
      %v4599 = vpack.c.b16 %v4593, %v4590
      %v4600 = vpack.c.b16 %v4594, %v4591
      %v4601 = vpack.c.b16 %v4595, %v4592
      %4602 = vrot.lane.b32.xlu0 %v4596, 126
      %v4603 = vpop.permute.xlu0 %4602
      %4604 = vrot.lane.b32.xlu0 %v4597, 126
      %v4605 = vpop.permute.xlu0 %4604
      %4606 = vrot.lane.b32.xlu0 %v4598, 126
      %v4607 = vpop.permute.xlu0 %4606
      %4608 = vrot.lane.b32.xlu0 %v4599, 126
      %v4609 = vpop.permute.xlu0 %4608
      %4610 = vrot.lane.b32.xlu0 %v4600, 126
      %v4611 = vpop.permute.xlu0 %4610
      %4612 = vrot.lane.b32.xlu0 %v4601, 126
      %v4613 = vpop.permute.xlu0 %4612
      %v4614 = vsel %vm1235, %v4603, %v4605
      %v4615 = vsel %vm1235, %v4605, %v4607
      %v4616 = vsel %vm1235, %v4609, %v4611
      %v4617 = vsel %vm1235, %v4611, %v4613
      %v4626 = vunpack.c.l.b16 %v4464
      %v4627 = vunpack.c.h.b16 %v4464
      %v4628 = vunpack.c.l.b16 %v4465
      %v4629 = vunpack.c.l.b16 %v4466
      %v4630 = vunpack.c.h.b16 %v4466
      %v4631 = vunpack.c.l.b16 %v4467
      %v4632 = vunpack.c.l.b16 %v4468
      %v4633 = vunpack.c.h.b16 %v4468
      %v4634 = vunpack.c.l.b16 %v4469
      %v4635 = vunpack.c.l.b16 %v4470
      %v4636 = vunpack.c.h.b16 %v4470
      %v4637 = vunpack.c.l.b16 %v4471
      %v4638 = vpack.c.b16 %v4629, %v4626
      %v4639 = vpack.c.b16 %v4630, %v4627
      %v4640 = vpack.c.b16 %v4631, %v4628
      %v4641 = vpack.c.b16 %v4635, %v4632
      %v4642 = vpack.c.b16 %v4636, %v4633
      %v4643 = vpack.c.b16 %v4637, %v4634
      %4644 = vrot.lane.b32.xlu0 %v4638, 112
      %v4645 = vpop.permute.xlu0 %4644
      %4646 = vrot.lane.b32.xlu0 %v4639, 112
      %v4647 = vpop.permute.xlu0 %4646
      %4648 = vrot.lane.b32.xlu0 %v4640, 112
      %v4649 = vpop.permute.xlu0 %4648
      %4650 = vrot.lane.b32.xlu0 %v4641, 112
      %v4651 = vpop.permute.xlu0 %4650
      %4652 = vrot.lane.b32.xlu0 %v4642, 112
      %v4653 = vpop.permute.xlu0 %4652
      %4654 = vrot.lane.b32.xlu0 %v4643, 112
      %v4655 = vpop.permute.xlu0 %4654
      %v4656 = vsel %vm1404, %v4645, %v4647
      %v4657 = vsel %vm1404, %v4647, %v4649
      %v4658 = vsel %vm1404, %v4651, %v4653
      %v4659 = vsel %vm1404, %v4653, %v4655
      %v4664 = vunpack.c.l.b16 %v4472
      %v4665 = vunpack.c.h.b16 %v4472
      %v4666 = vunpack.c.l.b16 %v4473
      %v4667 = vunpack.c.h.b16 %v4473
      %v4668 = vunpack.c.l.b16 %v4474
      %v4669 = vunpack.c.h.b16 %v4474
      %v4670 = vunpack.c.l.b16 %v4475
      %v4671 = vunpack.c.h.b16 %v4475
      %v4672 = vpack.c.b16 %v4666, %v4664
      %v4673 = vpack.c.b16 %v4667, %v4665
      %v4674 = vpack.c.b16 %v4670, %v4668
      %v4675 = vpack.c.b16 %v4671, %v4669
      %4676 = vrot.lane.b32.xlu0 %v4672, 111
      %v4677 = vpop.permute.xlu0 %4676
      %4678 = vrot.lane.b32.xlu0 %v4673, 111
      %v4679 = vpop.permute.xlu0 %4678
      %4680 = vrot.lane.b32.xlu0 %v4674, 111
      %v4681 = vpop.permute.xlu0 %4680
      %4682 = vrot.lane.b32.xlu0 %v4675, 111
      %v4683 = vpop.permute.xlu0 %4682
      %v4684 = vsel %vm1469, %v4677, %v4679
      %v4685 = vsel %vm1469, %v4681, %v4683
      %v4694 = vunpack.c.l.b16 %v4484
      %v4695 = vunpack.c.h.b16 %v4484
      %v4696 = vunpack.c.l.b16 %v4485
      %v4697 = vunpack.c.l.b16 %v4486
      %v4698 = vunpack.c.h.b16 %v4486
      %v4699 = vunpack.c.l.b16 %v4487
      %v4700 = vunpack.c.l.b16 %v4488
      %v4701 = vunpack.c.h.b16 %v4488
      %v4702 = vunpack.c.l.b16 %v4489
      %v4703 = vunpack.c.l.b16 %v4490
      %v4704 = vunpack.c.h.b16 %v4490
      %v4705 = vunpack.c.l.b16 %v4491
      %v4706 = vpack.c.b16 %v4697, %v4694
      %v4707 = vpack.c.b16 %v4698, %v4695
      %v4708 = vpack.c.b16 %v4699, %v4696
      %v4709 = vpack.c.b16 %v4703, %v4700
      %v4710 = vpack.c.b16 %v4704, %v4701
      %v4711 = vpack.c.b16 %v4705, %v4702
      %4712 = vrot.lane.b32.xlu0 %v4706, 110
      %v4713 = vpop.permute.xlu0 %4712
      %4714 = vrot.lane.b32.xlu0 %v4707, 110
      %v4715 = vpop.permute.xlu0 %4714
      %4716 = vrot.lane.b32.xlu0 %v4708, 110
      %v4717 = vpop.permute.xlu0 %4716
      %4718 = vrot.lane.b32.xlu0 %v4709, 110
      %v4719 = vpop.permute.xlu0 %4718
      %4720 = vrot.lane.b32.xlu0 %v4710, 110
      %v4721 = vpop.permute.xlu0 %4720
      %4722 = vrot.lane.b32.xlu0 %v4711, 110
      %v4723 = vpop.permute.xlu0 %4722
      %v4724 = vsel %vm1638, %v4713, %v4715
      %v4725 = vsel %vm1638, %v4715, %v4717
      %v4726 = vsel %vm1638, %v4719, %v4721
      %v4727 = vsel %vm1638, %v4721, %v4723
      %v4736 = vunpack.c.l.b16 %v4492
      %v4737 = vunpack.c.h.b16 %v4492
      %v4738 = vunpack.c.l.b16 %v4493
      %v4739 = vunpack.c.l.b16 %v4494
      %v4740 = vunpack.c.h.b16 %v4494
      %v4741 = vunpack.c.l.b16 %v4495
      %v4742 = vunpack.c.l.b16 %v4496
      %v4743 = vunpack.c.h.b16 %v4496
      %v4744 = vunpack.c.l.b16 %v4497
      %v4745 = vunpack.c.l.b16 %v4498
      %v4746 = vunpack.c.h.b16 %v4498
      %v4747 = vunpack.c.l.b16 %v4499
      %v4748 = vpack.c.b16 %v4739, %v4736
      %v4749 = vpack.c.b16 %v4740, %v4737
      %v4750 = vpack.c.b16 %v4741, %v4738
      %v4751 = vpack.c.b16 %v4745, %v4742
      %v4752 = vpack.c.b16 %v4746, %v4743
      %v4753 = vpack.c.b16 %v4747, %v4744
      %4754 = vrot.lane.b32.xlu0 %v4748, 96
      %v4755 = vpop.permute.xlu0 %4754
      %4756 = vrot.lane.b32.xlu0 %v4749, 96
      %v4757 = vpop.permute.xlu0 %4756
      %4758 = vrot.lane.b32.xlu0 %v4750, 96
      %v4759 = vpop.permute.xlu0 %4758
      %4760 = vrot.lane.b32.xlu0 %v4751, 96
      %v4761 = vpop.permute.xlu0 %4760
      %4762 = vrot.lane.b32.xlu0 %v4752, 96
      %v4763 = vpop.permute.xlu0 %4762
      %4764 = vrot.lane.b32.xlu0 %v4753, 96
      %v4765 = vpop.permute.xlu0 %4764
      %v4766 = vsel %vm1807, %v4755, %v4757
      %v4767 = vsel %vm1807, %v4757, %v4759
      %v4768 = vsel %vm1807, %v4761, %v4763
      %v4769 = vsel %vm1807, %v4763, %v4765
      %v4778 = vunpack.c.l.b16 %v4476
      %v4779 = vunpack.c.h.b16 %v4476
      %v4780 = vunpack.c.l.b16 %v4477
      %v4781 = vunpack.c.l.b16 %v4478
      %v4782 = vunpack.c.h.b16 %v4478
      %v4783 = vunpack.c.l.b16 %v4479
      %v4784 = vunpack.c.l.b16 %v4480
      %v4785 = vunpack.c.h.b16 %v4480
      %v4786 = vunpack.c.l.b16 %v4481
      %v4787 = vunpack.c.l.b16 %v4482
      %v4788 = vunpack.c.h.b16 %v4482
      %v4789 = vunpack.c.l.b16 %v4483
      %v4790 = vpack.c.b16 %v4781, %v4778
      %v4791 = vpack.c.b16 %v4782, %v4779
      %v4792 = vpack.c.b16 %v4783, %v4780
      %v4793 = vpack.c.b16 %v4787, %v4784
      %v4794 = vpack.c.b16 %v4788, %v4785
      %v4795 = vpack.c.b16 %v4789, %v4786
      %4796 = vrot.lane.b32.xlu0 %v4790, 95
      %v4797 = vpop.permute.xlu0 %4796
      %4798 = vrot.lane.b32.xlu0 %v4791, 95
      %v4799 = vpop.permute.xlu0 %4798
      %4800 = vrot.lane.b32.xlu0 %v4792, 95
      %v4801 = vpop.permute.xlu0 %4800
      %4802 = vrot.lane.b32.xlu0 %v4793, 95
      %v4803 = vpop.permute.xlu0 %4802
      %4804 = vrot.lane.b32.xlu0 %v4794, 95
      %v4805 = vpop.permute.xlu0 %4804
      %4806 = vrot.lane.b32.xlu0 %v4795, 95
      %v4807 = vpop.permute.xlu0 %4806
      %v4808 = vsel %vm1872, %v4797, %v4799
      %v4809 = vsel %vm1872, %v4799, %v4801
      %v4810 = vsel %vm1872, %v4803, %v4805
      %v4811 = vsel %vm1872, %v4805, %v4807
      %v4820 = vunpack.c.l.b16 %v4500
      %v4821 = vunpack.c.h.b16 %v4500
      %v4822 = vunpack.c.l.b16 %v4501
      %v4823 = vunpack.c.l.b16 %v4502
      %v4824 = vunpack.c.h.b16 %v4502
      %v4825 = vunpack.c.l.b16 %v4503
      %v4826 = vunpack.c.l.b16 %v4504
      %v4827 = vunpack.c.h.b16 %v4504
      %v4828 = vunpack.c.l.b16 %v4505
      %v4829 = vunpack.c.l.b16 %v4506
      %v4830 = vunpack.c.h.b16 %v4506
      %v4831 = vunpack.c.l.b16 %v4507
      %v4832 = vpack.c.b16 %v4823, %v4820
      %v4833 = vpack.c.b16 %v4824, %v4821
      %v4834 = vpack.c.b16 %v4825, %v4822
      %v4835 = vpack.c.b16 %v4829, %v4826
      %v4836 = vpack.c.b16 %v4830, %v4827
      %v4837 = vpack.c.b16 %v4831, %v4828
      %4838 = vrot.lane.b32.xlu0 %v4832, 94
      %v4839 = vpop.permute.xlu0 %4838
      %4840 = vrot.lane.b32.xlu0 %v4833, 94
      %v4841 = vpop.permute.xlu0 %4840
      %4842 = vrot.lane.b32.xlu0 %v4834, 94
      %v4843 = vpop.permute.xlu0 %4842
      %4844 = vrot.lane.b32.xlu0 %v4835, 94
      %v4845 = vpop.permute.xlu0 %4844
      %4846 = vrot.lane.b32.xlu0 %v4836, 94
      %v4847 = vpop.permute.xlu0 %4846
      %4848 = vrot.lane.b32.xlu0 %v4837, 94
      %v4849 = vpop.permute.xlu0 %4848
      %v4850 = vsel %vm2041, %v4839, %v4841
      %v4851 = vsel %vm2041, %v4841, %v4843
      %v4852 = vsel %vm2041, %v4845, %v4847
      %v4853 = vsel %vm2041, %v4847, %v4849
      %s4854 = scalar_lea.vmem %s4, 48
      %v4855 = vld [vmem:[%s4854] sm:$0xff]
      %v4856 = vld [vmem:[%s4854 + $0x8] sm:$0xf]
      %v4857 = vld [vmem:[%s4854 + $0xc] sm:$0xff]
      %v4858 = vld [vmem:[%s4854 + $0x14] sm:$0xf]
      %v4859 = vld [vmem:[%s4854 + $0x18] sm:$0xff]
      %v4860 = vld [vmem:[%s4854 + $0x20] sm:$0xf]
      %v4861 = vld [vmem:[%s4854 + $0x24] sm:$0xff]
      %v4862 = vld [vmem:[%s4854 + $0x2c] sm:$0xf]
      %s4863 = scalar_lea.vmem %s5, 32
      %v4864 = vld [vmem:[%s4863] sm:$0xff]
      %v4865 = vld [vmem:[%s4863 + $0x8] sm:$0xff]
      %v4866 = vld [vmem:[%s4863 + $0x10] sm:$0xff]
      %v4867 = vld [vmem:[%s4863 + $0x18] sm:$0xff]
      %4869 = vset.pattern.permute.xlu0 0
      %4870 = vperm.xlu0 %4869, %v4864
      %v4871 = vpop.permute.xlu0 %4870
      %4874 = vset.pattern.permute.xlu0 0
      %4875 = vperm.xlu0 %4874, %v4865
      %v4876 = vpop.permute.xlu0 %4875
      %4879 = vset.pattern.permute.xlu0 0
      %4880 = vperm.xlu0 %4879, %v4866
      %v4881 = vpop.permute.xlu0 %4880
      %4884 = vset.pattern.permute.xlu0 0
      %4885 = vperm.xlu0 %4884, %v4867
      %v4886 = vpop.permute.xlu0 %4885
      %v4896 = vunpack.c.l.b16 %v4855
      %v4897 = vunpack.c.h.b16 %v4855
      %v4898 = vunpack.c.l.b16 %v4856
      %v4899 = vunpack.c.l.b16 %v4857
      %v4900 = vunpack.c.h.b16 %v4857
      %v4901 = vunpack.c.l.b16 %v4858
      %v4902 = vunpack.c.l.b16 %v4859
      %v4903 = vunpack.c.h.b16 %v4859
      %v4904 = vunpack.c.l.b16 %v4860
      %v4905 = vunpack.c.l.b16 %v4861
      %v4906 = vunpack.c.h.b16 %v4861
      %v4907 = vunpack.c.l.b16 %v4862
      %v4908 = vpack.c.b16 %v4899, %v4896
      %v4909 = vpack.c.b16 %v4900, %v4897
      %v4910 = vpack.c.b16 %v4901, %v4898
      %v4911 = vpack.c.b16 %v4905, %v4902
      %v4912 = vpack.c.b16 %v4906, %v4903
      %v4913 = vpack.c.b16 %v4907, %v4904
      %4918 = vrot.lane.b32.xlu0 %v4528, 17
      %v4919 = vpop.permute.xlu0 %4918
      %4920 = vrot.lane.b32.xlu0 %v4529, 17
      %v4921 = vpop.permute.xlu0 %4920
      %4922 = vrot.lane.b32.xlu0 %v4530, 17
      %v4923 = vpop.permute.xlu0 %4922
      %4924 = vrot.lane.b32.xlu0 %v4531, 17
      %v4925 = vpop.permute.xlu0 %4924
      %4926 = vrot.lane.b32.xlu0 %v4532, 17
      %v4927 = vpop.permute.xlu0 %4926
      %4928 = vrot.lane.b32.xlu0 %v4533, 17
      %v4929 = vpop.permute.xlu0 %4928
      %4930 = vrot.lane.b32.xlu0 %v4572, 17
      %v4931 = vpop.permute.xlu0 %4930
      %4932 = vrot.lane.b32.xlu0 %v4573, 17
      %v4933 = vpop.permute.xlu0 %4932
      %4934 = vrot.lane.b32.xlu0 %v4565, 17
      %v4935 = vpop.permute.xlu0 %4934
      %4936 = vrot.lane.b32.xlu0 %v4574, 17
      %v4937 = vpop.permute.xlu0 %4936
      %4938 = vrot.lane.b32.xlu0 %v4575, 17
      %v4939 = vpop.permute.xlu0 %4938
      %4940 = vrot.lane.b32.xlu0 %v4571, 17
      %v4941 = vpop.permute.xlu0 %4940
      %4942 = vrot.lane.b32.xlu0 %v4614, 17
      %v4943 = vpop.permute.xlu0 %4942
      %4944 = vrot.lane.b32.xlu0 %v4615, 17
      %v4945 = vpop.permute.xlu0 %4944
      %4946 = vrot.lane.b32.xlu0 %v4607, 17
      %v4947 = vpop.permute.xlu0 %4946
      %4948 = vrot.lane.b32.xlu0 %v4616, 17
      %v4949 = vpop.permute.xlu0 %4948
      %4950 = vrot.lane.b32.xlu0 %v4617, 17
      %v4951 = vpop.permute.xlu0 %4950
      %4952 = vrot.lane.b32.xlu0 %v4613, 17
      %v4953 = vpop.permute.xlu0 %4952
      %4954 = vrot.lane.b32.xlu0 %v4656, 17
      %v4955 = vpop.permute.xlu0 %4954
      %4956 = vrot.lane.b32.xlu0 %v4657, 17
      %v4957 = vpop.permute.xlu0 %4956
      %4958 = vrot.lane.b32.xlu0 %v4649, 17
      %v4959 = vpop.permute.xlu0 %4958
      %4960 = vrot.lane.b32.xlu0 %v4658, 17
      %v4961 = vpop.permute.xlu0 %4960
      %4962 = vrot.lane.b32.xlu0 %v4659, 17
      %v4963 = vpop.permute.xlu0 %4962
      %4964 = vrot.lane.b32.xlu0 %v4655, 17
      %v4965 = vpop.permute.xlu0 %4964
      %4966 = vrot.lane.b32.xlu0 %v4677, 17
      %v4967 = vpop.permute.xlu0 %4966
      %4968 = vrot.lane.b32.xlu0 %v4684, 17
      %v4969 = vpop.permute.xlu0 %4968
      %4970 = vrot.lane.b32.xlu0 %v4679, 17
      %v4971 = vpop.permute.xlu0 %4970
      %4972 = vrot.lane.b32.xlu0 %v4681, 17
      %v4973 = vpop.permute.xlu0 %4972
      %4974 = vrot.lane.b32.xlu0 %v4685, 17
      %v4975 = vpop.permute.xlu0 %4974
      %4976 = vrot.lane.b32.xlu0 %v4683, 17
      %v4977 = vpop.permute.xlu0 %4976
      %4978 = vrot.lane.b32.xlu0 %v4713, 17
      %v4979 = vpop.permute.xlu0 %4978
      %4980 = vrot.lane.b32.xlu0 %v4724, 17
      %v4981 = vpop.permute.xlu0 %4980
      %4982 = vrot.lane.b32.xlu0 %v4725, 17
      %v4983 = vpop.permute.xlu0 %4982
      %4984 = vrot.lane.b32.xlu0 %v4719, 17
      %v4985 = vpop.permute.xlu0 %4984
      %4986 = vrot.lane.b32.xlu0 %v4726, 17
      %v4987 = vpop.permute.xlu0 %4986
      %4988 = vrot.lane.b32.xlu0 %v4727, 17
      %v4989 = vpop.permute.xlu0 %4988
      %4990 = vrot.lane.b32.xlu0 %v4755, 17
      %v4991 = vpop.permute.xlu0 %4990
      %4992 = vrot.lane.b32.xlu0 %v4766, 17
      %v4993 = vpop.permute.xlu0 %4992
      %4994 = vrot.lane.b32.xlu0 %v4767, 17
      %v4995 = vpop.permute.xlu0 %4994
      %4996 = vrot.lane.b32.xlu0 %v4761, 17
      %v4997 = vpop.permute.xlu0 %4996
      %4998 = vrot.lane.b32.xlu0 %v4768, 17
      %v4999 = vpop.permute.xlu0 %4998
      %5000 = vrot.lane.b32.xlu0 %v4769, 17
      %v5001 = vpop.permute.xlu0 %5000
      %5002 = vrot.lane.b32.xlu0 %v4797, 17
      %v5003 = vpop.permute.xlu0 %5002
      %5004 = vrot.lane.b32.xlu0 %v4808, 17
      %v5005 = vpop.permute.xlu0 %5004
      %5006 = vrot.lane.b32.xlu0 %v4809, 17
      %v5007 = vpop.permute.xlu0 %5006
      %5008 = vrot.lane.b32.xlu0 %v4803, 17
      %v5009 = vpop.permute.xlu0 %5008
      %5010 = vrot.lane.b32.xlu0 %v4810, 17
      %v5011 = vpop.permute.xlu0 %5010
      %5012 = vrot.lane.b32.xlu0 %v4811, 17
      %v5013 = vpop.permute.xlu0 %5012
      %5014 = vrot.lane.b32.xlu0 %v4839, 17
      %v5015 = vpop.permute.xlu0 %5014
      %5016 = vrot.lane.b32.xlu0 %v4850, 17
      %v5017 = vpop.permute.xlu0 %5016
      %5018 = vrot.lane.b32.xlu0 %v4851, 17
      %v5019 = vpop.permute.xlu0 %5018
      %5020 = vrot.lane.b32.xlu0 %v4845, 17
      %v5021 = vpop.permute.xlu0 %5020
      %5022 = vrot.lane.b32.xlu0 %v4852, 17
      %v5023 = vpop.permute.xlu0 %5022
      %5024 = vrot.lane.b32.xlu0 %v4853, 17
      %v5025 = vpop.permute.xlu0 %5024
      %v5026 = vsel %vm3691, %v4919, %v4921
      %v5027 = vsel %vm3691, %v4921, %v4923
      %v5028 = vsel %vm3691, %v4925, %v4927
      %v5029 = vsel %vm3691, %v4927, %v4929
      %v5030 = vsel %vm3691, %v4931, %v4933
      %v5031 = vsel %vm3691, %v4933, %v4935
      %v5032 = vsel %vm3691, %v4937, %v4939
      %v5033 = vsel %vm3691, %v4939, %v4941
      %v5034 = vsel %vm3691, %v4943, %v4945
      %v5035 = vsel %vm3691, %v4945, %v4947
      %v5036 = vsel %vm3691, %v4949, %v4951
      %v5037 = vsel %vm3691, %v4951, %v4953
      %v5038 = vsel %vm3691, %v4955, %v4957
      %v5039 = vsel %vm3691, %v4957, %v4959
      %v5040 = vsel %vm3691, %v4961, %v4963
      %v5041 = vsel %vm3691, %v4963, %v4965
      %v5042 = vsel %vm3691, %v4967, %v4969
      %v5043 = vsel %vm3691, %v4969, %v4971
      %v5044 = vsel %vm3691, %v4973, %v4975
      %v5045 = vsel %vm3691, %v4975, %v4977
      %v5046 = vsel %vm3691, %v4979, %v4981
      %v5047 = vsel %vm3691, %v4981, %v4983
      %v5048 = vsel %vm3691, %v4985, %v4987
      %v5049 = vsel %vm3691, %v4987, %v4989
      %v5050 = vsel %vm3691, %v4991, %v4993
      %v5051 = vsel %vm3691, %v4993, %v4995
      %v5052 = vsel %vm3691, %v4997, %v4999
      %v5053 = vsel %vm3691, %v4999, %v5001
      %v5054 = vsel %vm3691, %v5003, %v5005
      %v5055 = vsel %vm3691, %v5005, %v5007
      %v5056 = vsel %vm3691, %v5009, %v5011
      %v5057 = vsel %vm3691, %v5011, %v5013
      %v5058 = vsel %vm3691, %v5015, %v5017
      %v5059 = vsel %vm3691, %v5017, %v5019
      %v5060 = vsel %vm3691, %v5021, %v5023
      %v5061 = vsel %vm3691, %v5023, %v5025
      %v5099 = vsel %vm4303, %v4910, 0
      %v5102 = vsel %vm4303, %v4913, 0
      %5104 = vmatpush.bf16.msra.mxu0 %v5040
      %5105 = vmatpush.bf16.msra.mxu0 %v5038
      %5106 = vmatpush.bf16.msra.mxu0 %v5036
      %5107 = vmatpush.bf16.msra.mxu0 %v5034
      %5108 = vmatpush.bf16.msra.mxu0 %v5032
      %5109 = vmatpush.bf16.msra.mxu0 %v5030
      %5110 = vmatpush.bf16.msra.mxu0 %v5028
      %5111 = vmatpush.bf16.msra.mxu0 %v5026
      %5112 = vmatmul.bf16.gmra.mxu0 %v4908
      %v5113 = vpop.f32.mrf.mxu0
      %v5114 = vadd.f32 %v4871, %v5113
      %v5115 = vpop.f32.mrf.mxu0
      %v5116 = vadd.f32 %v4876, %v5115
      %5117 = vmatmul.bf16.gmra.mxu0 %v4911
      %v5118 = vpop.f32.mrf.mxu0
      %v5119 = vadd.f32 %v4881, %v5118
      %v5120 = vpop.f32.mrf.mxu0
      %v5121 = vadd.f32 %v4886, %v5120
      %5122 = vdwg.mxu0
      %5123 = vmatpush.bf16.msra.mxu0 %v5056
      %5124 = vmatpush.bf16.msra.mxu0 %v5054
      %5125 = vmatpush.bf16.msra.mxu0 %v5052
      %5126 = vmatpush.bf16.msra.mxu0 %v5050
      %5127 = vmatpush.bf16.msra.mxu0 %v5048
      %5128 = vmatpush.bf16.msra.mxu0 %v5046
      %5129 = vmatpush.bf16.msra.mxu0 %v5044
      %5130 = vmatpush.bf16.msra.mxu0 %v5042
      %5131 = vmatmul.bf16.gmra.mxu0 %v4909
      %v5132 = vpop.f32.mrf.mxu0
      %v5133 = vadd.f32 %v5114, %v5132
      %v5134 = vpop.f32.mrf.mxu0
      %v5135 = vadd.f32 %v5116, %v5134
      %5136 = vmatmul.bf16.gmra.mxu0 %v4912
      %v5137 = vpop.f32.mrf.mxu0
      %v5138 = vadd.f32 %v5119, %v5137
      %v5139 = vpop.f32.mrf.mxu0
      %v5140 = vadd.f32 %v5121, %v5139
      %5141 = vdwg.mxu0
      %5142 = vmatpush.bf16.msra.mxu0 0
      %5143 = vmatpush.bf16.msra.mxu0 0
      %5144 = vmatpush.bf16.msra.mxu0 0
      %5145 = vmatpush.bf16.msra.mxu0 0
      %5146 = vmatpush.bf16.msra.mxu0 0
      %5147 = vmatpush.bf16.msra.mxu0 0
      %5148 = vmatpush.bf16.msra.mxu0 %v5060
      %5149 = vmatpush.bf16.msra.mxu0 %v5058
      %5150 = vmatmul.bf16.gmra.mxu0 %v5099
      %v5151 = vpop.f32.mrf.mxu0
      %v5152 = vadd.f32 %v5133, %v5151
      %v5153 = vpop.f32.mrf.mxu0
      %v5154 = vadd.f32 %v5135, %v5153
      %5155 = vmatmul.bf16.gmra.mxu0 %v5102
      %v5156 = vpop.f32.mrf.mxu0
      %v5157 = vadd.f32 %v5138, %v5156
      %v5158 = vpop.f32.mrf.mxu0
      %v5159 = vadd.f32 %v5140, %v5158
      %5160 = vdwg.mxu0
      %5161 = vmatpush.bf16.msra.mxu0 %v5041
      %5162 = vmatpush.bf16.msra.mxu0 %v5039
      %5163 = vmatpush.bf16.msra.mxu0 %v5037
      %5164 = vmatpush.bf16.msra.mxu0 %v5035
      %5165 = vmatpush.bf16.msra.mxu0 %v5033
      %5166 = vmatpush.bf16.msra.mxu0 %v5031
      %5167 = vmatpush.bf16.msra.mxu0 %v5029
      %5168 = vmatpush.bf16.msra.mxu0 %v5027
      %5169 = vmatmul.bf16.gmra.mxu0 %v4908
      %v5170 = vpop.f32.mrf.mxu0
      %v5171 = vadd.f32 %v4871, %v5170
      %v5172 = vpop.f32.mrf.mxu0
      %v5173 = vadd.f32 %v4876, %v5172
      %5174 = vmatmul.bf16.gmra.mxu0 %v4911
      %v5175 = vpop.f32.mrf.mxu0
      %v5176 = vadd.f32 %v4881, %v5175
      %v5177 = vpop.f32.mrf.mxu0
      %v5178 = vadd.f32 %v4886, %v5177
      %5179 = vdwg.mxu0
      %5180 = vmatpush.bf16.msra.mxu0 %v5057
      %5181 = vmatpush.bf16.msra.mxu0 %v5055
      %5182 = vmatpush.bf16.msra.mxu0 %v5053
      %5183 = vmatpush.bf16.msra.mxu0 %v5051
      %5184 = vmatpush.bf16.msra.mxu0 %v5049
      %5185 = vmatpush.bf16.msra.mxu0 %v5047
      %5186 = vmatpush.bf16.msra.mxu0 %v5045
      %5187 = vmatpush.bf16.msra.mxu0 %v5043
      %5188 = vmatmul.bf16.gmra.mxu0 %v4909
      %v5189 = vpop.f32.mrf.mxu0
      %v5190 = vadd.f32 %v5171, %v5189
      %v5191 = vpop.f32.mrf.mxu0
      %v5192 = vadd.f32 %v5173, %v5191
      %5193 = vmatmul.bf16.gmra.mxu0 %v4912
      %v5194 = vpop.f32.mrf.mxu0
      %v5195 = vadd.f32 %v5176, %v5194
      %v5196 = vpop.f32.mrf.mxu0
      %v5197 = vadd.f32 %v5178, %v5196
      %5198 = vdwg.mxu0
      %5199 = vmatpush.bf16.msra.mxu0 0
      %5200 = vmatpush.bf16.msra.mxu0 0
      %5201 = vmatpush.bf16.msra.mxu0 0
      %5202 = vmatpush.bf16.msra.mxu0 0
      %5203 = vmatpush.bf16.msra.mxu0 0
      %5204 = vmatpush.bf16.msra.mxu0 0
      %5205 = vmatpush.bf16.msra.mxu0 %v5061
      %5206 = vmatpush.bf16.msra.mxu0 %v5059
      %5207 = vmatmul.bf16.gmra.mxu0 %v5099
      %v5208 = vpop.f32.mrf.mxu0
      %v5209 = vadd.f32 %v5190, %v5208
      %v5210 = vpop.f32.mrf.mxu0
      %v5211 = vadd.f32 %v5192, %v5210
      %5212 = vmatmul.bf16.gmra.mxu0 %v5102
      %v5213 = vpop.f32.mrf.mxu0
      %v5214 = vadd.f32 %v5195, %v5213
      %v5215 = vpop.f32.mrf.mxu0
      %v5216 = vadd.f32 %v5197, %v5215
      %5217 = vdwg.mxu0
      %v5218 = vadd.f32 %v3519, %v5152
      %v5219 = vadd.f32 %v3520, %v5209
      %v5220 = vadd.f32 %v3521, %v5154
      %v5221 = vadd.f32 %v3522, %v5211
      %v5222 = vadd.f32 %v3523, %v5157
      %v5223 = vadd.f32 %v3524, %v5214
      %v5224 = vadd.f32 %v3525, %v5159
      %v5225 = vadd.f32 %v3526, %v5216
      %v5226 = vpack.c.bf16 %v5219, %v5218
      %v5227 = vpack.c.bf16 %v5221, %v5220
      %v5228 = vpack.c.bf16 %v5223, %v5222
      %v5229 = vpack.c.bf16 %v5225, %v5224
      %5230 = vst [vmem:[#allocation2 + $0x4] sm:$0xff] %v5226
      %5231 = vst [vmem:[#allocation2 + $0x14] sm:$0xff] %v5227
      %5232 = vst [vmem:[#allocation2 + $0x24] sm:$0xff] %v5228
      %5233 = vst [vmem:[#allocation2 + $0x34] sm:$0xff] %v5229
      %v5234 = vld [vmem:[#allocation2] sm:$0xff]
      %v5235 = vld [vmem:[#allocation2 + $0x8] sm:$0xf]
      %v5236 = vld [vmem:[#allocation2 + $0x10] sm:$0xff]
      %v5237 = vld [vmem:[#allocation2 + $0x18] sm:$0xf]
      %v5238 = vld [vmem:[#allocation2 + $0x20] sm:$0xff]
      %v5239 = vld [vmem:[#allocation2 + $0x28] sm:$0xf]
      %v5240 = vld [vmem:[#allocation2 + $0x30] sm:$0xff]
      %v5241 = vld [vmem:[#allocation2 + $0x38] sm:$0xf]
      %v5242 = vsel %vm3553, %v5234, 0
      %v5243 = vsel %vm3560, %v5235, 0
      %v5244 = vsel %vm3553, %v5236, 0
      %v5245 = vsel %vm3560, %v5237, 0
      %v5246 = vsel %vm3553, %v5238, 0
      %v5247 = vsel %vm3560, %v5239, 0
      %v5248 = vsel %vm3553, %v5240, 0
      %v5249 = vsel %vm3560, %v5241, 0
      %v5250 = vsel %vm3580, %v5234, 0
      %v5251 = vsel %vm3587, %v5235, 0
      %v5252 = vsel %vm3580, %v5236, 0
      %v5253 = vsel %vm3587, %v5237, 0
      %v5254 = vsel %vm3580, %v5238, 0
      %v5255 = vsel %vm3587, %v5239, 0
      %v5256 = vsel %vm3580, %v5240, 0
      %v5257 = vsel %vm3587, %v5241, 0
      %v5258 = vsel %vm3606, %v5234, 0
      %v5259 = vsel %vm3613, %v5235, 0
      %v5260 = vsel %vm3606, %v5236, 0
      %v5261 = vsel %vm3613, %v5237, 0
      %v5262 = vsel %vm3606, %v5238, 0
      %v5263 = vsel %vm3613, %v5239, 0
      %v5264 = vsel %vm3606, %v5240, 0
      %v5265 = vsel %vm3613, %v5241, 0
      %v5266 = vld [vmem:[#allocation2 + $0x4] sm:$0xff]
      %v5267 = vld [vmem:[#allocation2 + $0x14] sm:$0xff]
      %v5268 = vld [vmem:[#allocation2 + $0x24] sm:$0xff]
      %v5269 = vld [vmem:[#allocation2 + $0x34] sm:$0xff]
      %v5270 = vld [vmem:[#allocation2 + $0x4] sm:$0xff]
      %v5271 = vld [vmem:[#allocation2 + $0xc] sm:$0xf]
      %v5272 = vld [vmem:[#allocation2 + $0x14] sm:$0xff]
      %v5273 = vld [vmem:[#allocation2 + $0x1c] sm:$0xf]
      %v5274 = vld [vmem:[#allocation2 + $0x24] sm:$0xff]
      %v5275 = vld [vmem:[#allocation2 + $0x2c] sm:$0xf]
      %v5276 = vld [vmem:[#allocation2 + $0x34] sm:$0xff]
      %v5277 = vld [vmem:[#allocation2 + $0x3c] sm:$0xf]
      %v5278 = vsel %vm3645, %v5270, 0
      %v5279 = vsel %vm3652, %v5271, 0
      %v5280 = vsel %vm3645, %v5272, 0
      %v5281 = vsel %vm3652, %v5273, 0
      %v5282 = vsel %vm3645, %v5274, 0
      %v5283 = vsel %vm3652, %v5275, 0
      %v5284 = vsel %vm3645, %v5276, 0
      %v5285 = vsel %vm3652, %v5277, 0
      %v5286 = vsel %vm3672, %v5270, 0
      %v5287 = vsel %vm3679, %v5271, 0
      %v5288 = vsel %vm3672, %v5272, 0
      %v5289 = vsel %vm3679, %v5273, 0
      %v5290 = vsel %vm3672, %v5274, 0
      %v5291 = vsel %vm3679, %v5275, 0
      %v5292 = vsel %vm3672, %v5276, 0
      %v5293 = vsel %vm3679, %v5277, 0
      %v5294 = vsel %vm3699, %v5270, 0
      %v5295 = vsel %vm3706, %v5271, 0
      %v5296 = vsel %vm3699, %v5272, 0
      %v5297 = vsel %vm3706, %v5273, 0
      %v5298 = vsel %vm3699, %v5274, 0
      %v5299 = vsel %vm3706, %v5275, 0
      %v5300 = vsel %vm3699, %v5276, 0
      %v5301 = vsel %vm3706, %v5277, 0
      %v5310 = vunpack.c.l.b16 %v5242
      %v5311 = vunpack.c.h.b16 %v5242
      %v5312 = vunpack.c.l.b16 %v5243
      %v5313 = vunpack.c.l.b16 %v5244
      %v5314 = vunpack.c.h.b16 %v5244
      %v5315 = vunpack.c.l.b16 %v5245
      %v5316 = vunpack.c.l.b16 %v5246
      %v5317 = vunpack.c.h.b16 %v5246
      %v5318 = vunpack.c.l.b16 %v5247
      %v5319 = vunpack.c.l.b16 %v5248
      %v5320 = vunpack.c.h.b16 %v5248
      %v5321 = vunpack.c.l.b16 %v5249
      %v5322 = vpack.c.b16 %v5313, %v5310
      %v5323 = vpack.c.b16 %v5314, %v5311
      %v5324 = vpack.c.b16 %v5315, %v5312
      %v5325 = vpack.c.b16 %v5319, %v5316
      %v5326 = vpack.c.b16 %v5320, %v5317
      %v5327 = vpack.c.b16 %v5321, %v5318
      %v5336 = vunpack.c.l.b16 %v5234
      %v5337 = vunpack.c.h.b16 %v5234
      %v5338 = vunpack.c.l.b16 %v5235
      %v5339 = vunpack.c.l.b16 %v5236
      %v5340 = vunpack.c.h.b16 %v5236
      %v5341 = vunpack.c.l.b16 %v5237
      %v5342 = vunpack.c.l.b16 %v5238
      %v5343 = vunpack.c.h.b16 %v5238
      %v5344 = vunpack.c.l.b16 %v5239
      %v5345 = vunpack.c.l.b16 %v5240
      %v5346 = vunpack.c.h.b16 %v5240
      %v5347 = vunpack.c.l.b16 %v5241
      %v5348 = vpack.c.b16 %v5339, %v5336
      %v5349 = vpack.c.b16 %v5340, %v5337
      %v5350 = vpack.c.b16 %v5341, %v5338
      %v5351 = vpack.c.b16 %v5345, %v5342
      %v5352 = vpack.c.b16 %v5346, %v5343
      %v5353 = vpack.c.b16 %v5347, %v5344
      %5354 = vrot.lane.b32.xlu0 %v5348, 127
      %v5355 = vpop.permute.xlu0 %5354
      %5356 = vrot.lane.b32.xlu0 %v5349, 127
      %v5357 = vpop.permute.xlu0 %5356
      %5358 = vrot.lane.b32.xlu0 %v5350, 127
      %v5359 = vpop.permute.xlu0 %5358
      %5360 = vrot.lane.b32.xlu0 %v5351, 127
      %v5361 = vpop.permute.xlu0 %5360
      %5362 = vrot.lane.b32.xlu0 %v5352, 127
      %v5363 = vpop.permute.xlu0 %5362
      %5364 = vrot.lane.b32.xlu0 %v5353, 127
      %v5365 = vpop.permute.xlu0 %5364
      %v5366 = vsel %vm1066, %v5355, %v5357
      %v5367 = vsel %vm1066, %v5357, %v5359
      %v5368 = vsel %vm1066, %v5361, %v5363
      %v5369 = vsel %vm1066, %v5363, %v5365
      %v5378 = vunpack.c.l.b16 %v5250
      %v5379 = vunpack.c.h.b16 %v5250
      %v5380 = vunpack.c.l.b16 %v5251
      %v5381 = vunpack.c.l.b16 %v5252
      %v5382 = vunpack.c.h.b16 %v5252
      %v5383 = vunpack.c.l.b16 %v5253
      %v5384 = vunpack.c.l.b16 %v5254
      %v5385 = vunpack.c.h.b16 %v5254
      %v5386 = vunpack.c.l.b16 %v5255
      %v5387 = vunpack.c.l.b16 %v5256
      %v5388 = vunpack.c.h.b16 %v5256
      %v5389 = vunpack.c.l.b16 %v5257
      %v5390 = vpack.c.b16 %v5381, %v5378
      %v5391 = vpack.c.b16 %v5382, %v5379
      %v5392 = vpack.c.b16 %v5383, %v5380
      %v5393 = vpack.c.b16 %v5387, %v5384
      %v5394 = vpack.c.b16 %v5388, %v5385
      %v5395 = vpack.c.b16 %v5389, %v5386
      %5396 = vrot.lane.b32.xlu0 %v5390, 126
      %v5397 = vpop.permute.xlu0 %5396
      %5398 = vrot.lane.b32.xlu0 %v5391, 126
      %v5399 = vpop.permute.xlu0 %5398
      %5400 = vrot.lane.b32.xlu0 %v5392, 126
      %v5401 = vpop.permute.xlu0 %5400
      %5402 = vrot.lane.b32.xlu0 %v5393, 126
      %v5403 = vpop.permute.xlu0 %5402
      %5404 = vrot.lane.b32.xlu0 %v5394, 126
      %v5405 = vpop.permute.xlu0 %5404
      %5406 = vrot.lane.b32.xlu0 %v5395, 126
      %v5407 = vpop.permute.xlu0 %5406
      %v5408 = vsel %vm1235, %v5397, %v5399
      %v5409 = vsel %vm1235, %v5399, %v5401
      %v5410 = vsel %vm1235, %v5403, %v5405
      %v5411 = vsel %vm1235, %v5405, %v5407
      %v5420 = vunpack.c.l.b16 %v5258
      %v5421 = vunpack.c.h.b16 %v5258
      %v5422 = vunpack.c.l.b16 %v5259
      %v5423 = vunpack.c.l.b16 %v5260
      %v5424 = vunpack.c.h.b16 %v5260
      %v5425 = vunpack.c.l.b16 %v5261
      %v5426 = vunpack.c.l.b16 %v5262
      %v5427 = vunpack.c.h.b16 %v5262
      %v5428 = vunpack.c.l.b16 %v5263
      %v5429 = vunpack.c.l.b16 %v5264
      %v5430 = vunpack.c.h.b16 %v5264
      %v5431 = vunpack.c.l.b16 %v5265
      %v5432 = vpack.c.b16 %v5423, %v5420
      %v5433 = vpack.c.b16 %v5424, %v5421
      %v5434 = vpack.c.b16 %v5425, %v5422
      %v5435 = vpack.c.b16 %v5429, %v5426
      %v5436 = vpack.c.b16 %v5430, %v5427
      %v5437 = vpack.c.b16 %v5431, %v5428
      %5438 = vrot.lane.b32.xlu0 %v5432, 112
      %v5439 = vpop.permute.xlu0 %5438
      %5440 = vrot.lane.b32.xlu0 %v5433, 112
      %v5441 = vpop.permute.xlu0 %5440
      %5442 = vrot.lane.b32.xlu0 %v5434, 112
      %v5443 = vpop.permute.xlu0 %5442
      %5444 = vrot.lane.b32.xlu0 %v5435, 112
      %v5445 = vpop.permute.xlu0 %5444
      %5446 = vrot.lane.b32.xlu0 %v5436, 112
      %v5447 = vpop.permute.xlu0 %5446
      %5448 = vrot.lane.b32.xlu0 %v5437, 112
      %v5449 = vpop.permute.xlu0 %5448
      %v5450 = vsel %vm1404, %v5439, %v5441
      %v5451 = vsel %vm1404, %v5441, %v5443
      %v5452 = vsel %vm1404, %v5445, %v5447
      %v5453 = vsel %vm1404, %v5447, %v5449
      %v5458 = vunpack.c.l.b16 %v5266
      %v5459 = vunpack.c.h.b16 %v5266
      %v5460 = vunpack.c.l.b16 %v5267
      %v5461 = vunpack.c.h.b16 %v5267
      %v5462 = vunpack.c.l.b16 %v5268
      %v5463 = vunpack.c.h.b16 %v5268
      %v5464 = vunpack.c.l.b16 %v5269
      %v5465 = vunpack.c.h.b16 %v5269
      %v5466 = vpack.c.b16 %v5460, %v5458
      %v5467 = vpack.c.b16 %v5461, %v5459
      %v5468 = vpack.c.b16 %v5464, %v5462
      %v5469 = vpack.c.b16 %v5465, %v5463
      %5470 = vrot.lane.b32.xlu0 %v5466, 111
      %v5471 = vpop.permute.xlu0 %5470
      %5472 = vrot.lane.b32.xlu0 %v5467, 111
      %v5473 = vpop.permute.xlu0 %5472
      %5474 = vrot.lane.b32.xlu0 %v5468, 111
      %v5475 = vpop.permute.xlu0 %5474
      %5476 = vrot.lane.b32.xlu0 %v5469, 111
      %v5477 = vpop.permute.xlu0 %5476
      %v5478 = vsel %vm1469, %v5471, %v5473
      %v5479 = vsel %vm1469, %v5475, %v5477
      %v5488 = vunpack.c.l.b16 %v5278
      %v5489 = vunpack.c.h.b16 %v5278
      %v5490 = vunpack.c.l.b16 %v5279
      %v5491 = vunpack.c.l.b16 %v5280
      %v5492 = vunpack.c.h.b16 %v5280
      %v5493 = vunpack.c.l.b16 %v5281
      %v5494 = vunpack.c.l.b16 %v5282
      %v5495 = vunpack.c.h.b16 %v5282
      %v5496 = vunpack.c.l.b16 %v5283
      %v5497 = vunpack.c.l.b16 %v5284
      %v5498 = vunpack.c.h.b16 %v5284
      %v5499 = vunpack.c.l.b16 %v5285
      %v5500 = vpack.c.b16 %v5491, %v5488
      %v5501 = vpack.c.b16 %v5492, %v5489
      %v5502 = vpack.c.b16 %v5493, %v5490
      %v5503 = vpack.c.b16 %v5497, %v5494
      %v5504 = vpack.c.b16 %v5498, %v5495
      %v5505 = vpack.c.b16 %v5499, %v5496
      %5506 = vrot.lane.b32.xlu0 %v5500, 110
      %v5507 = vpop.permute.xlu0 %5506
      %5508 = vrot.lane.b32.xlu0 %v5501, 110
      %v5509 = vpop.permute.xlu0 %5508
      %5510 = vrot.lane.b32.xlu0 %v5502, 110
      %v5511 = vpop.permute.xlu0 %5510
      %5512 = vrot.lane.b32.xlu0 %v5503, 110
      %v5513 = vpop.permute.xlu0 %5512
      %5514 = vrot.lane.b32.xlu0 %v5504, 110
      %v5515 = vpop.permute.xlu0 %5514
      %5516 = vrot.lane.b32.xlu0 %v5505, 110
      %v5517 = vpop.permute.xlu0 %5516
      %v5518 = vsel %vm1638, %v5507, %v5509
      %v5519 = vsel %vm1638, %v5509, %v5511
      %v5520 = vsel %vm1638, %v5513, %v5515
      %v5521 = vsel %vm1638, %v5515, %v5517
      %v5530 = vunpack.c.l.b16 %v5286
      %v5531 = vunpack.c.h.b16 %v5286
      %v5532 = vunpack.c.l.b16 %v5287
      %v5533 = vunpack.c.l.b16 %v5288
      %v5534 = vunpack.c.h.b16 %v5288
      %v5535 = vunpack.c.l.b16 %v5289
      %v5536 = vunpack.c.l.b16 %v5290
      %v5537 = vunpack.c.h.b16 %v5290
      %v5538 = vunpack.c.l.b16 %v5291
      %v5539 = vunpack.c.l.b16 %v5292
      %v5540 = vunpack.c.h.b16 %v5292
      %v5541 = vunpack.c.l.b16 %v5293
      %v5542 = vpack.c.b16 %v5533, %v5530
      %v5543 = vpack.c.b16 %v5534, %v5531
      %v5544 = vpack.c.b16 %v5535, %v5532
      %v5545 = vpack.c.b16 %v5539, %v5536
      %v5546 = vpack.c.b16 %v5540, %v5537
      %v5547 = vpack.c.b16 %v5541, %v5538
      %5548 = vrot.lane.b32.xlu0 %v5542, 96
      %v5549 = vpop.permute.xlu0 %5548
      %5550 = vrot.lane.b32.xlu0 %v5543, 96
      %v5551 = vpop.permute.xlu0 %5550
      %5552 = vrot.lane.b32.xlu0 %v5544, 96
      %v5553 = vpop.permute.xlu0 %5552
      %5554 = vrot.lane.b32.xlu0 %v5545, 96
      %v5555 = vpop.permute.xlu0 %5554
      %5556 = vrot.lane.b32.xlu0 %v5546, 96
      %v5557 = vpop.permute.xlu0 %5556
      %5558 = vrot.lane.b32.xlu0 %v5547, 96
      %v5559 = vpop.permute.xlu0 %5558
      %v5560 = vsel %vm1807, %v5549, %v5551
      %v5561 = vsel %vm1807, %v5551, %v5553
      %v5562 = vsel %vm1807, %v5555, %v5557
      %v5563 = vsel %vm1807, %v5557, %v5559
      %v5572 = vunpack.c.l.b16 %v5270
      %v5573 = vunpack.c.h.b16 %v5270
      %v5574 = vunpack.c.l.b16 %v5271
      %v5575 = vunpack.c.l.b16 %v5272
      %v5576 = vunpack.c.h.b16 %v5272
      %v5577 = vunpack.c.l.b16 %v5273
      %v5578 = vunpack.c.l.b16 %v5274
      %v5579 = vunpack.c.h.b16 %v5274
      %v5580 = vunpack.c.l.b16 %v5275
      %v5581 = vunpack.c.l.b16 %v5276
      %v5582 = vunpack.c.h.b16 %v5276
      %v5583 = vunpack.c.l.b16 %v5277
      %v5584 = vpack.c.b16 %v5575, %v5572
      %v5585 = vpack.c.b16 %v5576, %v5573
      %v5586 = vpack.c.b16 %v5577, %v5574
      %v5587 = vpack.c.b16 %v5581, %v5578
      %v5588 = vpack.c.b16 %v5582, %v5579
      %v5589 = vpack.c.b16 %v5583, %v5580
      %5590 = vrot.lane.b32.xlu0 %v5584, 95
      %v5591 = vpop.permute.xlu0 %5590
      %5592 = vrot.lane.b32.xlu0 %v5585, 95
      %v5593 = vpop.permute.xlu0 %5592
      %5594 = vrot.lane.b32.xlu0 %v5586, 95
      %v5595 = vpop.permute.xlu0 %5594
      %5596 = vrot.lane.b32.xlu0 %v5587, 95
      %v5597 = vpop.permute.xlu0 %5596
      %5598 = vrot.lane.b32.xlu0 %v5588, 95
      %v5599 = vpop.permute.xlu0 %5598
      %5600 = vrot.lane.b32.xlu0 %v5589, 95
      %v5601 = vpop.permute.xlu0 %5600
      %v5602 = vsel %vm1872, %v5591, %v5593
      %v5603 = vsel %vm1872, %v5593, %v5595
      %v5604 = vsel %vm1872, %v5597, %v5599
      %v5605 = vsel %vm1872, %v5599, %v5601
      %v5614 = vunpack.c.l.b16 %v5294
      %v5615 = vunpack.c.h.b16 %v5294
      %v5616 = vunpack.c.l.b16 %v5295
      %v5617 = vunpack.c.l.b16 %v5296
      %v5618 = vunpack.c.h.b16 %v5296
      %v5619 = vunpack.c.l.b16 %v5297
      %v5620 = vunpack.c.l.b16 %v5298
      %v5621 = vunpack.c.h.b16 %v5298
      %v5622 = vunpack.c.l.b16 %v5299
      %v5623 = vunpack.c.l.b16 %v5300
      %v5624 = vunpack.c.h.b16 %v5300
      %v5625 = vunpack.c.l.b16 %v5301
      %v5626 = vpack.c.b16 %v5617, %v5614
      %v5627 = vpack.c.b16 %v5618, %v5615
      %v5628 = vpack.c.b16 %v5619, %v5616
      %v5629 = vpack.c.b16 %v5623, %v5620
      %v5630 = vpack.c.b16 %v5624, %v5621
      %v5631 = vpack.c.b16 %v5625, %v5622
      %5632 = vrot.lane.b32.xlu0 %v5626, 94
      %v5633 = vpop.permute.xlu0 %5632
      %5634 = vrot.lane.b32.xlu0 %v5627, 94
      %v5635 = vpop.permute.xlu0 %5634
      %5636 = vrot.lane.b32.xlu0 %v5628, 94
      %v5637 = vpop.permute.xlu0 %5636
      %5638 = vrot.lane.b32.xlu0 %v5629, 94
      %v5639 = vpop.permute.xlu0 %5638
      %5640 = vrot.lane.b32.xlu0 %v5630, 94
      %v5641 = vpop.permute.xlu0 %5640
      %5642 = vrot.lane.b32.xlu0 %v5631, 94
      %v5643 = vpop.permute.xlu0 %5642
      %v5644 = vsel %vm2041, %v5633, %v5635
      %v5645 = vsel %vm2041, %v5635, %v5637
      %v5646 = vsel %vm2041, %v5639, %v5641
      %v5647 = vsel %vm2041, %v5641, %v5643
      %s5648 = scalar_lea.vmem %s4, 96
      %v5649 = vld [vmem:[%s5648] sm:$0xff]
      %v5650 = vld [vmem:[%s5648 + $0x8] sm:$0xf]
      %v5651 = vld [vmem:[%s5648 + $0xc] sm:$0xff]
      %v5652 = vld [vmem:[%s5648 + $0x14] sm:$0xf]
      %v5653 = vld [vmem:[%s5648 + $0x18] sm:$0xff]
      %v5654 = vld [vmem:[%s5648 + $0x20] sm:$0xf]
      %v5655 = vld [vmem:[%s5648 + $0x24] sm:$0xff]
      %v5656 = vld [vmem:[%s5648 + $0x2c] sm:$0xf]
      %s5657 = scalar_lea.vmem %s5, 64
      %v5658 = vld [vmem:[%s5657] sm:$0xff]
      %v5659 = vld [vmem:[%s5657 + $0x8] sm:$0xff]
      %v5660 = vld [vmem:[%s5657 + $0x10] sm:$0xff]
      %v5661 = vld [vmem:[%s5657 + $0x18] sm:$0xff]
      %5663 = vset.pattern.permute.xlu0 0
      %5664 = vperm.xlu0 %5663, %v5658
      %v5665 = vpop.permute.xlu0 %5664
      %5668 = vset.pattern.permute.xlu0 0
      %5669 = vperm.xlu0 %5668, %v5659
      %v5670 = vpop.permute.xlu0 %5669
      %5673 = vset.pattern.permute.xlu0 0
      %5674 = vperm.xlu0 %5673, %v5660
      %v5675 = vpop.permute.xlu0 %5674
      %5678 = vset.pattern.permute.xlu0 0
      %5679 = vperm.xlu0 %5678, %v5661
      %v5680 = vpop.permute.xlu0 %5679
      %v5690 = vunpack.c.l.b16 %v5649
      %v5691 = vunpack.c.h.b16 %v5649
      %v5692 = vunpack.c.l.b16 %v5650
      %v5693 = vunpack.c.l.b16 %v5651
      %v5694 = vunpack.c.h.b16 %v5651
      %v5695 = vunpack.c.l.b16 %v5652
      %v5696 = vunpack.c.l.b16 %v5653
      %v5697 = vunpack.c.h.b16 %v5653
      %v5698 = vunpack.c.l.b16 %v5654
      %v5699 = vunpack.c.l.b16 %v5655
      %v5700 = vunpack.c.h.b16 %v5655
      %v5701 = vunpack.c.l.b16 %v5656
      %v5702 = vpack.c.b16 %v5693, %v5690
      %v5703 = vpack.c.b16 %v5694, %v5691
      %v5704 = vpack.c.b16 %v5695, %v5692
      %v5705 = vpack.c.b16 %v5699, %v5696
      %v5706 = vpack.c.b16 %v5700, %v5697
      %v5707 = vpack.c.b16 %v5701, %v5698
      %5712 = vrot.lane.b32.xlu0 %v5322, 17
      %v5713 = vpop.permute.xlu0 %5712
      %5714 = vrot.lane.b32.xlu0 %v5323, 17
      %v5715 = vpop.permute.xlu0 %5714
      %5716 = vrot.lane.b32.xlu0 %v5324, 17
      %v5717 = vpop.permute.xlu0 %5716
      %5718 = vrot.lane.b32.xlu0 %v5325, 17
      %v5719 = vpop.permute.xlu0 %5718
      %5720 = vrot.lane.b32.xlu0 %v5326, 17
      %v5721 = vpop.permute.xlu0 %5720
      %5722 = vrot.lane.b32.xlu0 %v5327, 17
      %v5723 = vpop.permute.xlu0 %5722
      %5724 = vrot.lane.b32.xlu0 %v5366, 17
      %v5725 = vpop.permute.xlu0 %5724
      %5726 = vrot.lane.b32.xlu0 %v5367, 17
      %v5727 = vpop.permute.xlu0 %5726
      %5728 = vrot.lane.b32.xlu0 %v5359, 17
      %v5729 = vpop.permute.xlu0 %5728
      %5730 = vrot.lane.b32.xlu0 %v5368, 17
      %v5731 = vpop.permute.xlu0 %5730
      %5732 = vrot.lane.b32.xlu0 %v5369, 17
      %v5733 = vpop.permute.xlu0 %5732
      %5734 = vrot.lane.b32.xlu0 %v5365, 17
      %v5735 = vpop.permute.xlu0 %5734
      %5736 = vrot.lane.b32.xlu0 %v5408, 17
      %v5737 = vpop.permute.xlu0 %5736
      %5738 = vrot.lane.b32.xlu0 %v5409, 17
      %v5739 = vpop.permute.xlu0 %5738
      %5740 = vrot.lane.b32.xlu0 %v5401, 17
      %v5741 = vpop.permute.xlu0 %5740
      %5742 = vrot.lane.b32.xlu0 %v5410, 17
      %v5743 = vpop.permute.xlu0 %5742
      %5744 = vrot.lane.b32.xlu0 %v5411, 17
      %v5745 = vpop.permute.xlu0 %5744
      %5746 = vrot.lane.b32.xlu0 %v5407, 17
      %v5747 = vpop.permute.xlu0 %5746
      %5748 = vrot.lane.b32.xlu0 %v5450, 17
      %v5749 = vpop.permute.xlu0 %5748
      %5750 = vrot.lane.b32.xlu0 %v5451, 17
      %v5751 = vpop.permute.xlu0 %5750
      %5752 = vrot.lane.b32.xlu0 %v5443, 17
      %v5753 = vpop.permute.xlu0 %5752
      %5754 = vrot.lane.b32.xlu0 %v5452, 17
      %v5755 = vpop.permute.xlu0 %5754
      %5756 = vrot.lane.b32.xlu0 %v5453, 17
      %v5757 = vpop.permute.xlu0 %5756
      %5758 = vrot.lane.b32.xlu0 %v5449, 17
      %v5759 = vpop.permute.xlu0 %5758
      %5760 = vrot.lane.b32.xlu0 %v5471, 17
      %v5761 = vpop.permute.xlu0 %5760
      %5762 = vrot.lane.b32.xlu0 %v5478, 17
      %v5763 = vpop.permute.xlu0 %5762
      %5764 = vrot.lane.b32.xlu0 %v5473, 17
      %v5765 = vpop.permute.xlu0 %5764
      %5766 = vrot.lane.b32.xlu0 %v5475, 17
      %v5767 = vpop.permute.xlu0 %5766
      %5768 = vrot.lane.b32.xlu0 %v5479, 17
      %v5769 = vpop.permute.xlu0 %5768
      %5770 = vrot.lane.b32.xlu0 %v5477, 17
      %v5771 = vpop.permute.xlu0 %5770
      %5772 = vrot.lane.b32.xlu0 %v5507, 17
      %v5773 = vpop.permute.xlu0 %5772
      %5774 = vrot.lane.b32.xlu0 %v5518, 17
      %v5775 = vpop.permute.xlu0 %5774
      %5776 = vrot.lane.b32.xlu0 %v5519, 17
      %v5777 = vpop.permute.xlu0 %5776
      %5778 = vrot.lane.b32.xlu0 %v5513, 17
      %v5779 = vpop.permute.xlu0 %5778
      %5780 = vrot.lane.b32.xlu0 %v5520, 17
      %v5781 = vpop.permute.xlu0 %5780
      %5782 = vrot.lane.b32.xlu0 %v5521, 17
      %v5783 = vpop.permute.xlu0 %5782
      %5784 = vrot.lane.b32.xlu0 %v5549, 17
      %v5785 = vpop.permute.xlu0 %5784
      %5786 = vrot.lane.b32.xlu0 %v5560, 17
      %v5787 = vpop.permute.xlu0 %5786
      %5788 = vrot.lane.b32.xlu0 %v5561, 17
      %v5789 = vpop.permute.xlu0 %5788
      %5790 = vrot.lane.b32.xlu0 %v5555, 17
      %v5791 = vpop.permute.xlu0 %5790
      %5792 = vrot.lane.b32.xlu0 %v5562, 17
      %v5793 = vpop.permute.xlu0 %5792
      %5794 = vrot.lane.b32.xlu0 %v5563, 17
      %v5795 = vpop.permute.xlu0 %5794
      %5796 = vrot.lane.b32.xlu0 %v5591, 17
      %v5797 = vpop.permute.xlu0 %5796
      %5798 = vrot.lane.b32.xlu0 %v5602, 17
      %v5799 = vpop.permute.xlu0 %5798
      %5800 = vrot.lane.b32.xlu0 %v5603, 17
      %v5801 = vpop.permute.xlu0 %5800
      %5802 = vrot.lane.b32.xlu0 %v5597, 17
      %v5803 = vpop.permute.xlu0 %5802
      %5804 = vrot.lane.b32.xlu0 %v5604, 17
      %v5805 = vpop.permute.xlu0 %5804
      %5806 = vrot.lane.b32.xlu0 %v5605, 17
      %v5807 = vpop.permute.xlu0 %5806
      %5808 = vrot.lane.b32.xlu0 %v5633, 17
      %v5809 = vpop.permute.xlu0 %5808
      %5810 = vrot.lane.b32.xlu0 %v5644, 17
      %v5811 = vpop.permute.xlu0 %5810
      %5812 = vrot.lane.b32.xlu0 %v5645, 17
      %v5813 = vpop.permute.xlu0 %5812
      %5814 = vrot.lane.b32.xlu0 %v5639, 17
      %v5815 = vpop.permute.xlu0 %5814
      %5816 = vrot.lane.b32.xlu0 %v5646, 17
      %v5817 = vpop.permute.xlu0 %5816
      %5818 = vrot.lane.b32.xlu0 %v5647, 17
      %v5819 = vpop.permute.xlu0 %5818
      %v5820 = vsel %vm3691, %v5713, %v5715
      %v5821 = vsel %vm3691, %v5715, %v5717
      %v5822 = vsel %vm3691, %v5719, %v5721
      %v5823 = vsel %vm3691, %v5721, %v5723
      %v5824 = vsel %vm3691, %v5725, %v5727
      %v5825 = vsel %vm3691, %v5727, %v5729
      %v5826 = vsel %vm3691, %v5731, %v5733
      %v5827 = vsel %vm3691, %v5733, %v5735
      %v5828 = vsel %vm3691, %v5737, %v5739
      %v5829 = vsel %vm3691, %v5739, %v5741
      %v5830 = vsel %vm3691, %v5743, %v5745
      %v5831 = vsel %vm3691, %v5745, %v5747
      %v5832 = vsel %vm3691, %v5749, %v5751
      %v5833 = vsel %vm3691, %v5751, %v5753
      %v5834 = vsel %vm3691, %v5755, %v5757
      %v5835 = vsel %vm3691, %v5757, %v5759
      %v5836 = vsel %vm3691, %v5761, %v5763
      %v5837 = vsel %vm3691, %v5763, %v5765
      %v5838 = vsel %vm3691, %v5767, %v5769
      %v5839 = vsel %vm3691, %v5769, %v5771
      %v5840 = vsel %vm3691, %v5773, %v5775
      %v5841 = vsel %vm3691, %v5775, %v5777
      %v5842 = vsel %vm3691, %v5779, %v5781
      %v5843 = vsel %vm3691, %v5781, %v5783
      %v5844 = vsel %vm3691, %v5785, %v5787
      %v5845 = vsel %vm3691, %v5787, %v5789
      %v5846 = vsel %vm3691, %v5791, %v5793
      %v5847 = vsel %vm3691, %v5793, %v5795
      %v5848 = vsel %vm3691, %v5797, %v5799
      %v5849 = vsel %vm3691, %v5799, %v5801
      %v5850 = vsel %vm3691, %v5803, %v5805
      %v5851 = vsel %vm3691, %v5805, %v5807
      %v5852 = vsel %vm3691, %v5809, %v5811
      %v5853 = vsel %vm3691, %v5811, %v5813
      %v5854 = vsel %vm3691, %v5815, %v5817
      %v5855 = vsel %vm3691, %v5817, %v5819
      %v5893 = vsel %vm4303, %v5704, 0
      %v5896 = vsel %vm4303, %v5707, 0
      %5898 = vmatpush.bf16.msra.mxu0 %v5834
      %5899 = vmatpush.bf16.msra.mxu0 %v5832
      %5900 = vmatpush.bf16.msra.mxu0 %v5830
      %5901 = vmatpush.bf16.msra.mxu0 %v5828
      %5902 = vmatpush.bf16.msra.mxu0 %v5826
      %5903 = vmatpush.bf16.msra.mxu0 %v5824
      %5904 = vmatpush.bf16.msra.mxu0 %v5822
      %5905 = vmatpush.bf16.msra.mxu0 %v5820
      %5906 = vmatmul.bf16.gmra.mxu0 %v5702
      %v5907 = vpop.f32.mrf.mxu0
      %v5908 = vadd.f32 %v5665, %v5907
      %v5909 = vpop.f32.mrf.mxu0
      %v5910 = vadd.f32 %v5670, %v5909
      %5911 = vmatmul.bf16.gmra.mxu0 %v5705
      %v5912 = vpop.f32.mrf.mxu0
      %v5913 = vadd.f32 %v5675, %v5912
      %v5914 = vpop.f32.mrf.mxu0
      %v5915 = vadd.f32 %v5680, %v5914
      %5916 = vdwg.mxu0
      %5917 = vmatpush.bf16.msra.mxu0 %v5850
      %5918 = vmatpush.bf16.msra.mxu0 %v5848
      %5919 = vmatpush.bf16.msra.mxu0 %v5846
      %5920 = vmatpush.bf16.msra.mxu0 %v5844
      %5921 = vmatpush.bf16.msra.mxu0 %v5842
      %5922 = vmatpush.bf16.msra.mxu0 %v5840
      %5923 = vmatpush.bf16.msra.mxu0 %v5838
      %5924 = vmatpush.bf16.msra.mxu0 %v5836
      %5925 = vmatmul.bf16.gmra.mxu0 %v5703
      %v5926 = vpop.f32.mrf.mxu0
      %v5927 = vadd.f32 %v5908, %v5926
      %v5928 = vpop.f32.mrf.mxu0
      %v5929 = vadd.f32 %v5910, %v5928
      %5930 = vmatmul.bf16.gmra.mxu0 %v5706
      %v5931 = vpop.f32.mrf.mxu0
      %v5932 = vadd.f32 %v5913, %v5931
      %v5933 = vpop.f32.mrf.mxu0
      %v5934 = vadd.f32 %v5915, %v5933
      %5935 = vdwg.mxu0
      %5936 = vmatpush.bf16.msra.mxu0 0
      %5937 = vmatpush.bf16.msra.mxu0 0
      %5938 = vmatpush.bf16.msra.mxu0 0
      %5939 = vmatpush.bf16.msra.mxu0 0
      %5940 = vmatpush.bf16.msra.mxu0 0
      %5941 = vmatpush.bf16.msra.mxu0 0
      %5942 = vmatpush.bf16.msra.mxu0 %v5854
      %5943 = vmatpush.bf16.msra.mxu0 %v5852
      %5944 = vmatmul.bf16.gmra.mxu0 %v5893
      %v5945 = vpop.f32.mrf.mxu0
      %v5946 = vadd.f32 %v5927, %v5945
      %v5947 = vpop.f32.mrf.mxu0
      %v5948 = vadd.f32 %v5929, %v5947
      %5949 = vmatmul.bf16.gmra.mxu0 %v5896
      %v5950 = vpop.f32.mrf.mxu0
      %v5951 = vadd.f32 %v5932, %v5950
      %v5952 = vpop.f32.mrf.mxu0
      %v5953 = vadd.f32 %v5934, %v5952
      %5954 = vdwg.mxu0
      %5955 = vmatpush.bf16.msra.mxu0 %v5835
      %5956 = vmatpush.bf16.msra.mxu0 %v5833
      %5957 = vmatpush.bf16.msra.mxu0 %v5831
      %5958 = vmatpush.bf16.msra.mxu0 %v5829
      %5959 = vmatpush.bf16.msra.mxu0 %v5827
      %5960 = vmatpush.bf16.msra.mxu0 %v5825
      %5961 = vmatpush.bf16.msra.mxu0 %v5823
      %5962 = vmatpush.bf16.msra.mxu0 %v5821
      %5963 = vmatmul.bf16.gmra.mxu0 %v5702
      %v5964 = vpop.f32.mrf.mxu0
      %v5965 = vadd.f32 %v5665, %v5964
      %v5966 = vpop.f32.mrf.mxu0
      %v5967 = vadd.f32 %v5670, %v5966
      %5968 = vmatmul.bf16.gmra.mxu0 %v5705
      %v5969 = vpop.f32.mrf.mxu0
      %v5970 = vadd.f32 %v5675, %v5969
      %v5971 = vpop.f32.mrf.mxu0
      %v5972 = vadd.f32 %v5680, %v5971
      %5973 = vdwg.mxu0
      %5974 = vmatpush.bf16.msra.mxu0 %v5851
      %5975 = vmatpush.bf16.msra.mxu0 %v5849
      %5976 = vmatpush.bf16.msra.mxu0 %v5847
      %5977 = vmatpush.bf16.msra.mxu0 %v5845
      %5978 = vmatpush.bf16.msra.mxu0 %v5843
      %5979 = vmatpush.bf16.msra.mxu0 %v5841
      %5980 = vmatpush.bf16.msra.mxu0 %v5839
      %5981 = vmatpush.bf16.msra.mxu0 %v5837
      %5982 = vmatmul.bf16.gmra.mxu0 %v5703
      %v5983 = vpop.f32.mrf.mxu0
      %v5984 = vadd.f32 %v5965, %v5983
      %v5985 = vpop.f32.mrf.mxu0
      %v5986 = vadd.f32 %v5967, %v5985
      %5987 = vmatmul.bf16.gmra.mxu0 %v5706
      %v5988 = vpop.f32.mrf.mxu0
      %v5989 = vadd.f32 %v5970, %v5988
      %v5990 = vpop.f32.mrf.mxu0
      %v5991 = vadd.f32 %v5972, %v5990
      %5992 = vdwg.mxu0
      %5993 = vmatpush.bf16.msra.mxu0 0
      %5994 = vmatpush.bf16.msra.mxu0 0
      %5995 = vmatpush.bf16.msra.mxu0 0
      %5996 = vmatpush.bf16.msra.mxu0 0
      %5997 = vmatpush.bf16.msra.mxu0 0
      %5998 = vmatpush.bf16.msra.mxu0 0
      %5999 = vmatpush.bf16.msra.mxu0 %v5855
      %6000 = vmatpush.bf16.msra.mxu0 %v5853
      %6001 = vmatmul.bf16.gmra.mxu0 %v5893
      %v6002 = vpop.f32.mrf.mxu0
      %v6003 = vadd.f32 %v5984, %v6002
      %v6004 = vpop.f32.mrf.mxu0
      %v6005 = vadd.f32 %v5986, %v6004
      %6006 = vmatmul.bf16.gmra.mxu0 %v5896
      %v6007 = vpop.f32.mrf.mxu0
      %v6008 = vadd.f32 %v5989, %v6007
      %v6009 = vpop.f32.mrf.mxu0
      %v6010 = vadd.f32 %v5991, %v6009
      %6011 = vdwg.mxu0
      %v6012 = vmax.f32 %v5946, 0.0
      %v6013 = vmax.f32 %v6003, 0.0
      %v6014 = vmax.f32 %v5948, 0.0
      %v6015 = vmax.f32 %v6005, 0.0
      %v6016 = vmax.f32 %v5951, 0.0
      %v6017 = vmax.f32 %v6008, 0.0
      %v6018 = vmax.f32 %v5953, 0.0
      %v6019 = vmax.f32 %v6010, 0.0
      %v6020 = vpack.c.bf16 %v6013, %v6012
      %v6021 = vpack.c.bf16 %v6015, %v6014
      %v6022 = vpack.c.bf16 %v6017, %v6016
      %v6023 = vpack.c.bf16 %v6019, %v6018
      %6024 = vst [vmem:[#allocation2 + $0x4] sm:$0xff] %v6020
      %6025 = vst [vmem:[#allocation2 + $0x14] sm:$0xff] %v6021
      %6026 = vst [vmem:[#allocation2 + $0x24] sm:$0xff] %v6022
      %6027 = vst [vmem:[#allocation2 + $0x34] sm:$0xff] %v6023
      %v6028 = vld [vmem:[#allocation2] sm:$0xff]
      %v6029 = vld [vmem:[#allocation2 + $0x8] sm:$0xf]
      %v6030 = vld [vmem:[#allocation2 + $0x10] sm:$0xff]
      %v6031 = vld [vmem:[#allocation2 + $0x18] sm:$0xf]
      %v6032 = vld [vmem:[#allocation2 + $0x20] sm:$0xff]
      %v6033 = vld [vmem:[#allocation2 + $0x28] sm:$0xf]
      %v6034 = vld [vmem:[#allocation2 + $0x30] sm:$0xff]
      %v6035 = vld [vmem:[#allocation2 + $0x38] sm:$0xf]
      %v6036 = vsel %vm3553, %v6028, 0
      %v6037 = vsel %vm3560, %v6029, 0
      %v6038 = vsel %vm3553, %v6030, 0
      %v6039 = vsel %vm3560, %v6031, 0
      %v6040 = vsel %vm3553, %v6032, 0
      %v6041 = vsel %vm3560, %v6033, 0
      %v6042 = vsel %vm3553, %v6034, 0
      %v6043 = vsel %vm3560, %v6035, 0
      %v6044 = vsel %vm3580, %v6028, 0
      %v6045 = vsel %vm3587, %v6029, 0
      %v6046 = vsel %vm3580, %v6030, 0
      %v6047 = vsel %vm3587, %v6031, 0
      %v6048 = vsel %vm3580, %v6032, 0
      %v6049 = vsel %vm3587, %v6033, 0
      %v6050 = vsel %vm3580, %v6034, 0
      %v6051 = vsel %vm3587, %v6035, 0
      %v6052 = vsel %vm3606, %v6028, 0
      %v6053 = vsel %vm3613, %v6029, 0
      %v6054 = vsel %vm3606, %v6030, 0
      %v6055 = vsel %vm3613, %v6031, 0
      %v6056 = vsel %vm3606, %v6032, 0
      %v6057 = vsel %vm3613, %v6033, 0
      %v6058 = vsel %vm3606, %v6034, 0
      %v6059 = vsel %vm3613, %v6035, 0
      %v6060 = vld [vmem:[#allocation2 + $0x4] sm:$0xff]
      %v6061 = vld [vmem:[#allocation2 + $0x14] sm:$0xff]
      %v6062 = vld [vmem:[#allocation2 + $0x24] sm:$0xff]
      %v6063 = vld [vmem:[#allocation2 + $0x34] sm:$0xff]
      %v6064 = vld [vmem:[#allocation2 + $0x4] sm:$0xff]
      %v6065 = vld [vmem:[#allocation2 + $0xc] sm:$0xf]
      %v6066 = vld [vmem:[#allocation2 + $0x14] sm:$0xff]
      %v6067 = vld [vmem:[#allocation2 + $0x1c] sm:$0xf]
      %v6068 = vld [vmem:[#allocation2 + $0x24] sm:$0xff]
      %v6069 = vld [vmem:[#allocation2 + $0x2c] sm:$0xf]
      %v6070 = vld [vmem:[#allocation2 + $0x34] sm:$0xff]
      %v6071 = vld [vmem:[#allocation2 + $0x3c] sm:$0xf]
      %v6072 = vsel %vm3645, %v6064, 0
      %v6073 = vsel %vm3652, %v6065, 0
      %v6074 = vsel %vm3645, %v6066, 0
      %v6075 = vsel %vm3652, %v6067, 0
      %v6076 = vsel %vm3645, %v6068, 0
      %v6077 = vsel %vm3652, %v6069, 0
      %v6078 = vsel %vm3645, %v6070, 0
      %v6079 = vsel %vm3652, %v6071, 0
      %v6080 = vsel %vm3672, %v6064, 0
      %v6081 = vsel %vm3679, %v6065, 0
      %v6082 = vsel %vm3672, %v6066, 0
      %v6083 = vsel %vm3679, %v6067, 0
      %v6084 = vsel %vm3672, %v6068, 0
      %v6085 = vsel %vm3679, %v6069, 0
      %v6086 = vsel %vm3672, %v6070, 0
      %v6087 = vsel %vm3679, %v6071, 0
      %v6088 = vsel %vm3699, %v6064, 0
      %v6089 = vsel %vm3706, %v6065, 0
      %v6090 = vsel %vm3699, %v6066, 0
      %v6091 = vsel %vm3706, %v6067, 0
      %v6092 = vsel %vm3699, %v6068, 0
      %v6093 = vsel %vm3706, %v6069, 0
      %v6094 = vsel %vm3699, %v6070, 0
      %v6095 = vsel %vm3706, %v6071, 0
      %v6104 = vunpack.c.l.b16 %v6036
      %v6105 = vunpack.c.h.b16 %v6036
      %v6106 = vunpack.c.l.b16 %v6037
      %v6107 = vunpack.c.l.b16 %v6038
      %v6108 = vunpack.c.h.b16 %v6038
      %v6109 = vunpack.c.l.b16 %v6039
      %v6110 = vunpack.c.l.b16 %v6040
      %v6111 = vunpack.c.h.b16 %v6040
      %v6112 = vunpack.c.l.b16 %v6041
      %v6113 = vunpack.c.l.b16 %v6042
      %v6114 = vunpack.c.h.b16 %v6042
      %v6115 = vunpack.c.l.b16 %v6043
      %v6116 = vpack.c.b16 %v6107, %v6104
      %v6117 = vpack.c.b16 %v6108, %v6105
      %v6118 = vpack.c.b16 %v6109, %v6106
      %v6119 = vpack.c.b16 %v6113, %v6110
      %v6120 = vpack.c.b16 %v6114, %v6111
      %v6121 = vpack.c.b16 %v6115, %v6112
      %v6130 = vunpack.c.l.b16 %v6028
      %v6131 = vunpack.c.h.b16 %v6028
      %v6132 = vunpack.c.l.b16 %v6029
      %v6133 = vunpack.c.l.b16 %v6030
      %v6134 = vunpack.c.h.b16 %v6030
      %v6135 = vunpack.c.l.b16 %v6031
      %v6136 = vunpack.c.l.b16 %v6032
      %v6137 = vunpack.c.h.b16 %v6032
      %v6138 = vunpack.c.l.b16 %v6033
      %v6139 = vunpack.c.l.b16 %v6034
      %v6140 = vunpack.c.h.b16 %v6034
      %v6141 = vunpack.c.l.b16 %v6035
      %v6142 = vpack.c.b16 %v6133, %v6130
      %v6143 = vpack.c.b16 %v6134, %v6131
      %v6144 = vpack.c.b16 %v6135, %v6132
      %v6145 = vpack.c.b16 %v6139, %v6136
      %v6146 = vpack.c.b16 %v6140, %v6137
      %v6147 = vpack.c.b16 %v6141, %v6138
      %6148 = vrot.lane.b32.xlu0 %v6142, 127
      %v6149 = vpop.permute.xlu0 %6148
      %6150 = vrot.lane.b32.xlu0 %v6143, 127
      %v6151 = vpop.permute.xlu0 %6150
      %6152 = vrot.lane.b32.xlu0 %v6144, 127
      %v6153 = vpop.permute.xlu0 %6152
      %6154 = vrot.lane.b32.xlu0 %v6145, 127
      %v6155 = vpop.permute.xlu0 %6154
      %6156 = vrot.lane.b32.xlu0 %v6146, 127
      %v6157 = vpop.permute.xlu0 %6156
      %6158 = vrot.lane.b32.xlu0 %v6147, 127
      %v6159 = vpop.permute.xlu0 %6158
      %v6160 = vsel %vm1066, %v6149, %v6151
      %v6161 = vsel %vm1066, %v6151, %v6153
      %v6162 = vsel %vm1066, %v6155, %v6157
      %v6163 = vsel %vm1066, %v6157, %v6159
      %v6172 = vunpack.c.l.b16 %v6044
      %v6173 = vunpack.c.h.b16 %v6044
      %v6174 = vunpack.c.l.b16 %v6045
      %v6175 = vunpack.c.l.b16 %v6046
      %v6176 = vunpack.c.h.b16 %v6046
      %v6177 = vunpack.c.l.b16 %v6047
      %v6178 = vunpack.c.l.b16 %v6048
      %v6179 = vunpack.c.h.b16 %v6048
      %v6180 = vunpack.c.l.b16 %v6049
      %v6181 = vunpack.c.l.b16 %v6050
      %v6182 = vunpack.c.h.b16 %v6050
      %v6183 = vunpack.c.l.b16 %v6051
      %v6184 = vpack.c.b16 %v6175, %v6172
      %v6185 = vpack.c.b16 %v6176, %v6173
      %v6186 = vpack.c.b16 %v6177, %v6174
      %v6187 = vpack.c.b16 %v6181, %v6178
      %v6188 = vpack.c.b16 %v6182, %v6179
      %v6189 = vpack.c.b16 %v6183, %v6180
      %6190 = vrot.lane.b32.xlu0 %v6184, 126
      %v6191 = vpop.permute.xlu0 %6190
      %6192 = vrot.lane.b32.xlu0 %v6185, 126
      %v6193 = vpop.permute.xlu0 %6192
      %6194 = vrot.lane.b32.xlu0 %v6186, 126
      %v6195 = vpop.permute.xlu0 %6194
      %6196 = vrot.lane.b32.xlu0 %v6187, 126
      %v6197 = vpop.permute.xlu0 %6196
      %6198 = vrot.lane.b32.xlu0 %v6188, 126
      %v6199 = vpop.permute.xlu0 %6198
      %6200 = vrot.lane.b32.xlu0 %v6189, 126
      %v6201 = vpop.permute.xlu0 %6200
      %v6202 = vsel %vm1235, %v6191, %v6193
      %v6203 = vsel %vm1235, %v6193, %v6195
      %v6204 = vsel %vm1235, %v6197, %v6199
      %v6205 = vsel %vm1235, %v6199, %v6201
      %v6214 = vunpack.c.l.b16 %v6052
      %v6215 = vunpack.c.h.b16 %v6052
      %v6216 = vunpack.c.l.b16 %v6053
      %v6217 = vunpack.c.l.b16 %v6054
      %v6218 = vunpack.c.h.b16 %v6054
      %v6219 = vunpack.c.l.b16 %v6055
      %v6220 = vunpack.c.l.b16 %v6056
      %v6221 = vunpack.c.h.b16 %v6056
      %v6222 = vunpack.c.l.b16 %v6057
      %v6223 = vunpack.c.l.b16 %v6058
      %v6224 = vunpack.c.h.b16 %v6058
      %v6225 = vunpack.c.l.b16 %v6059
      %v6226 = vpack.c.b16 %v6217, %v6214
      %v6227 = vpack.c.b16 %v6218, %v6215
      %v6228 = vpack.c.b16 %v6219, %v6216
      %v6229 = vpack.c.b16 %v6223, %v6220
      %v6230 = vpack.c.b16 %v6224, %v6221
      %v6231 = vpack.c.b16 %v6225, %v6222
      %6232 = vrot.lane.b32.xlu0 %v6226, 112
      %v6233 = vpop.permute.xlu0 %6232
      %6234 = vrot.lane.b32.xlu0 %v6227, 112
      %v6235 = vpop.permute.xlu0 %6234
      %6236 = vrot.lane.b32.xlu0 %v6228, 112
      %v6237 = vpop.permute.xlu0 %6236
      %6238 = vrot.lane.b32.xlu0 %v6229, 112
      %v6239 = vpop.permute.xlu0 %6238
      %6240 = vrot.lane.b32.xlu0 %v6230, 112
      %v6241 = vpop.permute.xlu0 %6240
      %6242 = vrot.lane.b32.xlu0 %v6231, 112
      %v6243 = vpop.permute.xlu0 %6242
      %v6244 = vsel %vm1404, %v6233, %v6235
      %v6245 = vsel %vm1404, %v6235, %v6237
      %v6246 = vsel %vm1404, %v6239, %v6241
      %v6247 = vsel %vm1404, %v6241, %v6243
      %v6252 = vunpack.c.l.b16 %v6060
      %v6253 = vunpack.c.h.b16 %v6060
      %v6254 = vunpack.c.l.b16 %v6061
      %v6255 = vunpack.c.h.b16 %v6061
      %v6256 = vunpack.c.l.b16 %v6062
      %v6257 = vunpack.c.h.b16 %v6062
      %v6258 = vunpack.c.l.b16 %v6063
      %v6259 = vunpack.c.h.b16 %v6063
      %v6260 = vpack.c.b16 %v6254, %v6252
      %v6261 = vpack.c.b16 %v6255, %v6253
      %v6262 = vpack.c.b16 %v6258, %v6256
      %v6263 = vpack.c.b16 %v6259, %v6257
      %6264 = vrot.lane.b32.xlu0 %v6260, 111
      %v6265 = vpop.permute.xlu0 %6264
      %6266 = vrot.lane.b32.xlu0 %v6261, 111
      %v6267 = vpop.permute.xlu0 %6266
      %6268 = vrot.lane.b32.xlu0 %v6262, 111
      %v6269 = vpop.permute.xlu0 %6268
      %6270 = vrot.lane.b32.xlu0 %v6263, 111
      %v6271 = vpop.permute.xlu0 %6270
      %v6272 = vsel %vm1469, %v6265, %v6267
      %v6273 = vsel %vm1469, %v6269, %v6271
      %v6282 = vunpack.c.l.b16 %v6072
      %v6283 = vunpack.c.h.b16 %v6072
      %v6284 = vunpack.c.l.b16 %v6073
      %v6285 = vunpack.c.l.b16 %v6074
      %v6286 = vunpack.c.h.b16 %v6074
      %v6287 = vunpack.c.l.b16 %v6075
      %v6288 = vunpack.c.l.b16 %v6076
      %v6289 = vunpack.c.h.b16 %v6076
      %v6290 = vunpack.c.l.b16 %v6077
      %v6291 = vunpack.c.l.b16 %v6078
      %v6292 = vunpack.c.h.b16 %v6078
      %v6293 = vunpack.c.l.b16 %v6079
      %v6294 = vpack.c.b16 %v6285, %v6282
      %v6295 = vpack.c.b16 %v6286, %v6283
      %v6296 = vpack.c.b16 %v6287, %v6284
      %v6297 = vpack.c.b16 %v6291, %v6288
      %v6298 = vpack.c.b16 %v6292, %v6289
      %v6299 = vpack.c.b16 %v6293, %v6290
      %6300 = vrot.lane.b32.xlu0 %v6294, 110
      %v6301 = vpop.permute.xlu0 %6300
      %6302 = vrot.lane.b32.xlu0 %v6295, 110
      %v6303 = vpop.permute.xlu0 %6302
      %6304 = vrot.lane.b32.xlu0 %v6296, 110
      %v6305 = vpop.permute.xlu0 %6304
      %6306 = vrot.lane.b32.xlu0 %v6297, 110
      %v6307 = vpop.permute.xlu0 %6306
      %6308 = vrot.lane.b32.xlu0 %v6298, 110
      %v6309 = vpop.permute.xlu0 %6308
      %6310 = vrot.lane.b32.xlu0 %v6299, 110
      %v6311 = vpop.permute.xlu0 %6310
      %v6312 = vsel %vm1638, %v6301, %v6303
      %v6313 = vsel %vm1638, %v6303, %v6305
      %v6314 = vsel %vm1638, %v6307, %v6309
      %v6315 = vsel %vm1638, %v6309, %v6311
      %v6324 = vunpack.c.l.b16 %v6080
      %v6325 = vunpack.c.h.b16 %v6080
      %v6326 = vunpack.c.l.b16 %v6081
      %v6327 = vunpack.c.l.b16 %v6082
      %v6328 = vunpack.c.h.b16 %v6082
      %v6329 = vunpack.c.l.b16 %v6083
      %v6330 = vunpack.c.l.b16 %v6084
      %v6331 = vunpack.c.h.b16 %v6084
      %v6332 = vunpack.c.l.b16 %v6085
      %v6333 = vunpack.c.l.b16 %v6086
      %v6334 = vunpack.c.h.b16 %v6086
      %v6335 = vunpack.c.l.b16 %v6087
      %v6336 = vpack.c.b16 %v6327, %v6324
      %v6337 = vpack.c.b16 %v6328, %v6325
      %v6338 = vpack.c.b16 %v6329, %v6326
      %v6339 = vpack.c.b16 %v6333, %v6330
      %v6340 = vpack.c.b16 %v6334, %v6331
      %v6341 = vpack.c.b16 %v6335, %v6332
      %6342 = vrot.lane.b32.xlu0 %v6336, 96
      %v6343 = vpop.permute.xlu0 %6342
      %6344 = vrot.lane.b32.xlu0 %v6337, 96
      %v6345 = vpop.permute.xlu0 %6344
      %6346 = vrot.lane.b32.xlu0 %v6338, 96
      %v6347 = vpop.permute.xlu0 %6346
      %6348 = vrot.lane.b32.xlu0 %v6339, 96
      %v6349 = vpop.permute.xlu0 %6348
      %6350 = vrot.lane.b32.xlu0 %v6340, 96
      %v6351 = vpop.permute.xlu0 %6350
      %6352 = vrot.lane.b32.xlu0 %v6341, 96
      %v6353 = vpop.permute.xlu0 %6352
      %v6354 = vsel %vm1807, %v6343, %v6345
      %v6355 = vsel %vm1807, %v6345, %v6347
      %v6356 = vsel %vm1807, %v6349, %v6351
      %v6357 = vsel %vm1807, %v6351, %v6353
      %v6366 = vunpack.c.l.b16 %v6064
      %v6367 = vunpack.c.h.b16 %v6064
      %v6368 = vunpack.c.l.b16 %v6065
      %v6369 = vunpack.c.l.b16 %v6066
      %v6370 = vunpack.c.h.b16 %v6066
      %v6371 = vunpack.c.l.b16 %v6067
      %v6372 = vunpack.c.l.b16 %v6068
      %v6373 = vunpack.c.h.b16 %v6068
      %v6374 = vunpack.c.l.b16 %v6069
      %v6375 = vunpack.c.l.b16 %v6070
      %v6376 = vunpack.c.h.b16 %v6070
      %v6377 = vunpack.c.l.b16 %v6071
      %v6378 = vpack.c.b16 %v6369, %v6366
      %v6379 = vpack.c.b16 %v6370, %v6367
      %v6380 = vpack.c.b16 %v6371, %v6368
      %v6381 = vpack.c.b16 %v6375, %v6372
      %v6382 = vpack.c.b16 %v6376, %v6373
      %v6383 = vpack.c.b16 %v6377, %v6374
      %6384 = vrot.lane.b32.xlu0 %v6378, 95
      %v6385 = vpop.permute.xlu0 %6384
      %6386 = vrot.lane.b32.xlu0 %v6379, 95
      %v6387 = vpop.permute.xlu0 %6386
      %6388 = vrot.lane.b32.xlu0 %v6380, 95
      %v6389 = vpop.permute.xlu0 %6388
      %6390 = vrot.lane.b32.xlu0 %v6381, 95
      %v6391 = vpop.permute.xlu0 %6390
      %6392 = vrot.lane.b32.xlu0 %v6382, 95
      %v6393 = vpop.permute.xlu0 %6392
      %6394 = vrot.lane.b32.xlu0 %v6383, 95
      %v6395 = vpop.permute.xlu0 %6394
      %v6396 = vsel %vm1872, %v6385, %v6387
      %v6397 = vsel %vm1872, %v6387, %v6389
      %v6398 = vsel %vm1872, %v6391, %v6393
      %v6399 = vsel %vm1872, %v6393, %v6395
      %v6408 = vunpack.c.l.b16 %v6088
      %v6409 = vunpack.c.h.b16 %v6088
      %v6410 = vunpack.c.l.b16 %v6089
      %v6411 = vunpack.c.l.b16 %v6090
      %v6412 = vunpack.c.h.b16 %v6090
      %v6413 = vunpack.c.l.b16 %v6091
      %v6414 = vunpack.c.l.b16 %v6092
      %v6415 = vunpack.c.h.b16 %v6092
      %v6416 = vunpack.c.l.b16 %v6093
      %v6417 = vunpack.c.l.b16 %v6094
      %v6418 = vunpack.c.h.b16 %v6094
      %v6419 = vunpack.c.l.b16 %v6095
      %v6420 = vpack.c.b16 %v6411, %v6408
      %v6421 = vpack.c.b16 %v6412, %v6409
      %v6422 = vpack.c.b16 %v6413, %v6410
      %v6423 = vpack.c.b16 %v6417, %v6414
      %v6424 = vpack.c.b16 %v6418, %v6415
      %v6425 = vpack.c.b16 %v6419, %v6416
      %6426 = vrot.lane.b32.xlu0 %v6420, 94
      %v6427 = vpop.permute.xlu0 %6426
      %6428 = vrot.lane.b32.xlu0 %v6421, 94
      %v6429 = vpop.permute.xlu0 %6428
      %6430 = vrot.lane.b32.xlu0 %v6422, 94
      %v6431 = vpop.permute.xlu0 %6430
      %6432 = vrot.lane.b32.xlu0 %v6423, 94
      %v6433 = vpop.permute.xlu0 %6432
      %6434 = vrot.lane.b32.xlu0 %v6424, 94
      %v6435 = vpop.permute.xlu0 %6434
      %6436 = vrot.lane.b32.xlu0 %v6425, 94
      %v6437 = vpop.permute.xlu0 %6436
      %v6438 = vsel %vm2041, %v6427, %v6429
      %v6439 = vsel %vm2041, %v6429, %v6431
      %v6440 = vsel %vm2041, %v6433, %v6435
      %v6441 = vsel %vm2041, %v6435, %v6437
      %s6442 = scalar_lea.vmem %s4, 144
      %v6443 = vld [vmem:[%s6442] sm:$0xff]
      %v6444 = vld [vmem:[%s6442 + $0x8] sm:$0xf]
      %v6445 = vld [vmem:[%s6442 + $0xc] sm:$0xff]
      %v6446 = vld [vmem:[%s6442 + $0x14] sm:$0xf]
      %v6447 = vld [vmem:[%s6442 + $0x18] sm:$0xff]
      %v6448 = vld [vmem:[%s6442 + $0x20] sm:$0xf]
      %v6449 = vld [vmem:[%s6442 + $0x24] sm:$0xff]
      %v6450 = vld [vmem:[%s6442 + $0x2c] sm:$0xf]
      %s6451 = scalar_lea.vmem %s5, 96
      %v6452 = vld [vmem:[%s6451] sm:$0xff]
      %v6453 = vld [vmem:[%s6451 + $0x8] sm:$0xff]
      %v6454 = vld [vmem:[%s6451 + $0x10] sm:$0xff]
      %v6455 = vld [vmem:[%s6451 + $0x18] sm:$0xff]
      %6457 = vset.pattern.permute.xlu0 0
      %6458 = vperm.xlu0 %6457, %v6452
      %v6459 = vpop.permute.xlu0 %6458
      %6462 = vset.pattern.permute.xlu0 0
      %6463 = vperm.xlu0 %6462, %v6453
      %v6464 = vpop.permute.xlu0 %6463
      %6467 = vset.pattern.permute.xlu0 0
      %6468 = vperm.xlu0 %6467, %v6454
      %v6469 = vpop.permute.xlu0 %6468
      %6472 = vset.pattern.permute.xlu0 0
      %6473 = vperm.xlu0 %6472, %v6455
      %v6474 = vpop.permute.xlu0 %6473
      %v6484 = vunpack.c.l.b16 %v6443
      %v6485 = vunpack.c.h.b16 %v6443
      %v6486 = vunpack.c.l.b16 %v6444
      %v6487 = vunpack.c.l.b16 %v6445
      %v6488 = vunpack.c.h.b16 %v6445
      %v6489 = vunpack.c.l.b16 %v6446
      %v6490 = vunpack.c.l.b16 %v6447
      %v6491 = vunpack.c.h.b16 %v6447
      %v6492 = vunpack.c.l.b16 %v6448
      %v6493 = vunpack.c.l.b16 %v6449
      %v6494 = vunpack.c.h.b16 %v6449
      %v6495 = vunpack.c.l.b16 %v6450
      %v6496 = vpack.c.b16 %v6487, %v6484
      %v6497 = vpack.c.b16 %v6488, %v6485
      %v6498 = vpack.c.b16 %v6489, %v6486
      %v6499 = vpack.c.b16 %v6493, %v6490
      %v6500 = vpack.c.b16 %v6494, %v6491
      %v6501 = vpack.c.b16 %v6495, %v6492
      %6506 = vrot.lane.b32.xlu0 %v6116, 17
      %v6507 = vpop.permute.xlu0 %6506
      %6508 = vrot.lane.b32.xlu0 %v6117, 17
      %v6509 = vpop.permute.xlu0 %6508
      %6510 = vrot.lane.b32.xlu0 %v6118, 17
      %v6511 = vpop.permute.xlu0 %6510
      %6512 = vrot.lane.b32.xlu0 %v6119, 17
      %v6513 = vpop.permute.xlu0 %6512
      %6514 = vrot.lane.b32.xlu0 %v6120, 17
      %v6515 = vpop.permute.xlu0 %6514
      %6516 = vrot.lane.b32.xlu0 %v6121, 17
      %v6517 = vpop.permute.xlu0 %6516
      %6518 = vrot.lane.b32.xlu0 %v6160, 17
      %v6519 = vpop.permute.xlu0 %6518
      %6520 = vrot.lane.b32.xlu0 %v6161, 17
      %v6521 = vpop.permute.xlu0 %6520
      %6522 = vrot.lane.b32.xlu0 %v6153, 17
      %v6523 = vpop.permute.xlu0 %6522
      %6524 = vrot.lane.b32.xlu0 %v6162, 17
      %v6525 = vpop.permute.xlu0 %6524
      %6526 = vrot.lane.b32.xlu0 %v6163, 17
      %v6527 = vpop.permute.xlu0 %6526
      %6528 = vrot.lane.b32.xlu0 %v6159, 17
      %v6529 = vpop.permute.xlu0 %6528
      %6530 = vrot.lane.b32.xlu0 %v6202, 17
      %v6531 = vpop.permute.xlu0 %6530
      %6532 = vrot.lane.b32.xlu0 %v6203, 17
      %v6533 = vpop.permute.xlu0 %6532
      %6534 = vrot.lane.b32.xlu0 %v6195, 17
      %v6535 = vpop.permute.xlu0 %6534
      %6536 = vrot.lane.b32.xlu0 %v6204, 17
      %v6537 = vpop.permute.xlu0 %6536
      %6538 = vrot.lane.b32.xlu0 %v6205, 17
      %v6539 = vpop.permute.xlu0 %6538
      %6540 = vrot.lane.b32.xlu0 %v6201, 17
      %v6541 = vpop.permute.xlu0 %6540
      %6542 = vrot.lane.b32.xlu0 %v6244, 17
      %v6543 = vpop.permute.xlu0 %6542
      %6544 = vrot.lane.b32.xlu0 %v6245, 17
      %v6545 = vpop.permute.xlu0 %6544
      %6546 = vrot.lane.b32.xlu0 %v6237, 17
      %v6547 = vpop.permute.xlu0 %6546
      %6548 = vrot.lane.b32.xlu0 %v6246, 17
      %v6549 = vpop.permute.xlu0 %6548
      %6550 = vrot.lane.b32.xlu0 %v6247, 17
      %v6551 = vpop.permute.xlu0 %6550
      %6552 = vrot.lane.b32.xlu0 %v6243, 17
      %v6553 = vpop.permute.xlu0 %6552
      %6554 = vrot.lane.b32.xlu0 %v6265, 17
      %v6555 = vpop.permute.xlu0 %6554
      %6556 = vrot.lane.b32.xlu0 %v6272, 17
      %v6557 = vpop.permute.xlu0 %6556
      %6558 = vrot.lane.b32.xlu0 %v6267, 17
      %v6559 = vpop.permute.xlu0 %6558
      %6560 = vrot.lane.b32.xlu0 %v6269, 17
      %v6561 = vpop.permute.xlu0 %6560
      %6562 = vrot.lane.b32.xlu0 %v6273, 17
      %v6563 = vpop.permute.xlu0 %6562
      %6564 = vrot.lane.b32.xlu0 %v6271, 17
      %v6565 = vpop.permute.xlu0 %6564
      %6566 = vrot.lane.b32.xlu0 %v6301, 17
      %v6567 = vpop.permute.xlu0 %6566
      %6568 = vrot.lane.b32.xlu0 %v6312, 17
      %v6569 = vpop.permute.xlu0 %6568
      %6570 = vrot.lane.b32.xlu0 %v6313, 17
      %v6571 = vpop.permute.xlu0 %6570
      %6572 = vrot.lane.b32.xlu0 %v6307, 17
      %v6573 = vpop.permute.xlu0 %6572
      %6574 = vrot.lane.b32.xlu0 %v6314, 17
      %v6575 = vpop.permute.xlu0 %6574
      %6576 = vrot.lane.b32.xlu0 %v6315, 17
      %v6577 = vpop.permute.xlu0 %6576
      %6578 = vrot.lane.b32.xlu0 %v6343, 17
      %v6579 = vpop.permute.xlu0 %6578
      %6580 = vrot.lane.b32.xlu0 %v6354, 17
      %v6581 = vpop.permute.xlu0 %6580
      %6582 = vrot.lane.b32.xlu0 %v6355, 17
      %v6583 = vpop.permute.xlu0 %6582
      %6584 = vrot.lane.b32.xlu0 %v6349, 17
      %v6585 = vpop.permute.xlu0 %6584
      %6586 = vrot.lane.b32.xlu0 %v6356, 17
      %v6587 = vpop.permute.xlu0 %6586
      %6588 = vrot.lane.b32.xlu0 %v6357, 17
      %v6589 = vpop.permute.xlu0 %6588
      %6590 = vrot.lane.b32.xlu0 %v6385, 17
      %v6591 = vpop.permute.xlu0 %6590
      %6592 = vrot.lane.b32.xlu0 %v6396, 17
      %v6593 = vpop.permute.xlu0 %6592
      %6594 = vrot.lane.b32.xlu0 %v6397, 17
      %v6595 = vpop.permute.xlu0 %6594
      %6596 = vrot.lane.b32.xlu0 %v6391, 17
      %v6597 = vpop.permute.xlu0 %6596
      %6598 = vrot.lane.b32.xlu0 %v6398, 17
      %v6599 = vpop.permute.xlu0 %6598
      %6600 = vrot.lane.b32.xlu0 %v6399, 17
      %v6601 = vpop.permute.xlu0 %6600
      %6602 = vrot.lane.b32.xlu0 %v6427, 17
      %v6603 = vpop.permute.xlu0 %6602
      %6604 = vrot.lane.b32.xlu0 %v6438, 17
      %v6605 = vpop.permute.xlu0 %6604
      %6606 = vrot.lane.b32.xlu0 %v6439, 17
      %v6607 = vpop.permute.xlu0 %6606
      %6608 = vrot.lane.b32.xlu0 %v6433, 17
      %v6609 = vpop.permute.xlu0 %6608
      %6610 = vrot.lane.b32.xlu0 %v6440, 17
      %v6611 = vpop.permute.xlu0 %6610
      %6612 = vrot.lane.b32.xlu0 %v6441, 17
      %v6613 = vpop.permute.xlu0 %6612
      %v6614 = vsel %vm3691, %v6507, %v6509
      %v6615 = vsel %vm3691, %v6509, %v6511
      %v6616 = vsel %vm3691, %v6513, %v6515
      %v6617 = vsel %vm3691, %v6515, %v6517
      %v6618 = vsel %vm3691, %v6519, %v6521
      %v6619 = vsel %vm3691, %v6521, %v6523
      %v6620 = vsel %vm3691, %v6525, %v6527
      %v6621 = vsel %vm3691, %v6527, %v6529
      %v6622 = vsel %vm3691, %v6531, %v6533
      %v6623 = vsel %vm3691, %v6533, %v6535
      %v6624 = vsel %vm3691, %v6537, %v6539
      %v6625 = vsel %vm3691, %v6539, %v6541
      %v6626 = vsel %vm3691, %v6543, %v6545
      %v6627 = vsel %vm3691, %v6545, %v6547
      %v6628 = vsel %vm3691, %v6549, %v6551
      %v6629 = vsel %vm3691, %v6551, %v6553
      %v6630 = vsel %vm3691, %v6555, %v6557
      %v6631 = vsel %vm3691, %v6557, %v6559
      %v6632 = vsel %vm3691, %v6561, %v6563
      %v6633 = vsel %vm3691, %v6563, %v6565
      %v6634 = vsel %vm3691, %v6567, %v6569
      %v6635 = vsel %vm3691, %v6569, %v6571
      %v6636 = vsel %vm3691, %v6573, %v6575
      %v6637 = vsel %vm3691, %v6575, %v6577
      %v6638 = vsel %vm3691, %v6579, %v6581
      %v6639 = vsel %vm3691, %v6581, %v6583
      %v6640 = vsel %vm3691, %v6585, %v6587
      %v6641 = vsel %vm3691, %v6587, %v6589
      %v6642 = vsel %vm3691, %v6591, %v6593
      %v6643 = vsel %vm3691, %v6593, %v6595
      %v6644 = vsel %vm3691, %v6597, %v6599
      %v6645 = vsel %vm3691, %v6599, %v6601
      %v6646 = vsel %vm3691, %v6603, %v6605
      %v6647 = vsel %vm3691, %v6605, %v6607
      %v6648 = vsel %vm3691, %v6609, %v6611
      %v6649 = vsel %vm3691, %v6611, %v6613
      %v6687 = vsel %vm4303, %v6498, 0
      %v6690 = vsel %vm4303, %v6501, 0
      %6692 = vmatpush.bf16.msra.mxu0 %v6628
      %6693 = vmatpush.bf16.msra.mxu0 %v6626
      %6694 = vmatpush.bf16.msra.mxu0 %v6624
      %6695 = vmatpush.bf16.msra.mxu0 %v6622
      %6696 = vmatpush.bf16.msra.mxu0 %v6620
      %6697 = vmatpush.bf16.msra.mxu0 %v6618
      %6698 = vmatpush.bf16.msra.mxu0 %v6616
      %6699 = vmatpush.bf16.msra.mxu0 %v6614
      %6700 = vmatmul.bf16.gmra.mxu0 %v6496
      %v6701 = vpop.f32.mrf.mxu0
      %v6702 = vadd.f32 %v6459, %v6701
      %v6703 = vpop.f32.mrf.mxu0
      %v6704 = vadd.f32 %v6464, %v6703
      %6705 = vmatmul.bf16.gmra.mxu0 %v6499
      %v6706 = vpop.f32.mrf.mxu0
      %v6707 = vadd.f32 %v6469, %v6706
      %v6708 = vpop.f32.mrf.mxu0
      %v6709 = vadd.f32 %v6474, %v6708
      %6710 = vdwg.mxu0
      %6711 = vmatpush.bf16.msra.mxu0 %v6644
      %6712 = vmatpush.bf16.msra.mxu0 %v6642
      %6713 = vmatpush.bf16.msra.mxu0 %v6640
      %6714 = vmatpush.bf16.msra.mxu0 %v6638
      %6715 = vmatpush.bf16.msra.mxu0 %v6636
      %6716 = vmatpush.bf16.msra.mxu0 %v6634
      %6717 = vmatpush.bf16.msra.mxu0 %v6632
      %6718 = vmatpush.bf16.msra.mxu0 %v6630
      %6719 = vmatmul.bf16.gmra.mxu0 %v6497
      %v6720 = vpop.f32.mrf.mxu0
      %v6721 = vadd.f32 %v6702, %v6720
      %v6722 = vpop.f32.mrf.mxu0
      %v6723 = vadd.f32 %v6704, %v6722
      %6724 = vmatmul.bf16.gmra.mxu0 %v6500
      %v6725 = vpop.f32.mrf.mxu0
      %v6726 = vadd.f32 %v6707, %v6725
      %v6727 = vpop.f32.mrf.mxu0
      %v6728 = vadd.f32 %v6709, %v6727
      %6729 = vdwg.mxu0
      %6730 = vmatpush.bf16.msra.mxu0 0
      %6731 = vmatpush.bf16.msra.mxu0 0
      %6732 = vmatpush.bf16.msra.mxu0 0
      %6733 = vmatpush.bf16.msra.mxu0 0
      %6734 = vmatpush.bf16.msra.mxu0 0
      %6735 = vmatpush.bf16.msra.mxu0 0
      %6736 = vmatpush.bf16.msra.mxu0 %v6648
      %6737 = vmatpush.bf16.msra.mxu0 %v6646
      %6738 = vmatmul.bf16.gmra.mxu0 %v6687
      %v6739 = vpop.f32.mrf.mxu0
      %v6740 = vadd.f32 %v6721, %v6739
      %v6741 = vpop.f32.mrf.mxu0
      %v6742 = vadd.f32 %v6723, %v6741
      %6743 = vmatmul.bf16.gmra.mxu0 %v6690
      %v6744 = vpop.f32.mrf.mxu0
      %v6745 = vadd.f32 %v6726, %v6744
      %v6746 = vpop.f32.mrf.mxu0
      %v6747 = vadd.f32 %v6728, %v6746
      %6748 = vdwg.mxu0
      %6749 = vmatpush.bf16.msra.mxu0 %v6629
      %6750 = vmatpush.bf16.msra.mxu0 %v6627
      %6751 = vmatpush.bf16.msra.mxu0 %v6625
      %6752 = vmatpush.bf16.msra.mxu0 %v6623
      %6753 = vmatpush.bf16.msra.mxu0 %v6621
      %6754 = vmatpush.bf16.msra.mxu0 %v6619
      %6755 = vmatpush.bf16.msra.mxu0 %v6617
      %6756 = vmatpush.bf16.msra.mxu0 %v6615
      %6757 = vmatmul.bf16.gmra.mxu0 %v6496
      %v6758 = vpop.f32.mrf.mxu0
      %v6759 = vadd.f32 %v6459, %v6758
      %v6760 = vpop.f32.mrf.mxu0
      %v6761 = vadd.f32 %v6464, %v6760
      %6762 = vmatmul.bf16.gmra.mxu0 %v6499
      %v6763 = vpop.f32.mrf.mxu0
      %v6764 = vadd.f32 %v6469, %v6763
      %v6765 = vpop.f32.mrf.mxu0
      %v6766 = vadd.f32 %v6474, %v6765
      %6767 = vdwg.mxu0
      %6768 = vmatpush.bf16.msra.mxu0 %v6645
      %6769 = vmatpush.bf16.msra.mxu0 %v6643
      %6770 = vmatpush.bf16.msra.mxu0 %v6641
      %6771 = vmatpush.bf16.msra.mxu0 %v6639
      %6772 = vmatpush.bf16.msra.mxu0 %v6637
      %6773 = vmatpush.bf16.msra.mxu0 %v6635
      %6774 = vmatpush.bf16.msra.mxu0 %v6633
      %6775 = vmatpush.bf16.msra.mxu0 %v6631
      %6776 = vmatmul.bf16.gmra.mxu0 %v6497
      %v6777 = vpop.f32.mrf.mxu0
      %v6778 = vadd.f32 %v6759, %v6777
      %v6779 = vpop.f32.mrf.mxu0
      %v6780 = vadd.f32 %v6761, %v6779
      %6781 = vmatmul.bf16.gmra.mxu0 %v6500
      %v6782 = vpop.f32.mrf.mxu0
      %v6783 = vadd.f32 %v6764, %v6782
      %v6784 = vpop.f32.mrf.mxu0
      %v6785 = vadd.f32 %v6766, %v6784
      %6786 = vdwg.mxu0
      %6787 = vmatpush.bf16.msra.mxu0 0
      %6788 = vmatpush.bf16.msra.mxu0 0
      %6789 = vmatpush.bf16.msra.mxu0 0
      %6790 = vmatpush.bf16.msra.mxu0 0
      %6791 = vmatpush.bf16.msra.mxu0 0
      %6792 = vmatpush.bf16.msra.mxu0 0
      %6793 = vmatpush.bf16.msra.mxu0 %v6649
      %6794 = vmatpush.bf16.msra.mxu0 %v6647
      %6795 = vmatmul.bf16.gmra.mxu0 %v6687
      %v6796 = vpop.f32.mrf.mxu0
      %v6797 = vadd.f32 %v6778, %v6796
      %v6798 = vpop.f32.mrf.mxu0
      %v6799 = vadd.f32 %v6780, %v6798
      %6800 = vmatmul.bf16.gmra.mxu0 %v6690
      %v6801 = vpop.f32.mrf.mxu0
      %v6802 = vadd.f32 %v6783, %v6801
      %v6803 = vpop.f32.mrf.mxu0
      %v6804 = vadd.f32 %v6785, %v6803
      %6805 = vdwg.mxu0
      %v6806 = vadd.f32 %v5218, %v6740
      %v6807 = vadd.f32 %v5219, %v6797
      %v6808 = vadd.f32 %v5220, %v6742
      %v6809 = vadd.f32 %v5221, %v6799
      %v6810 = vadd.f32 %v5222, %v6745
      %v6811 = vadd.f32 %v5223, %v6802
      %v6812 = vadd.f32 %v5224, %v6747
      %v6813 = vadd.f32 %v5225, %v6804
      %v6814 = vpack.c.bf16 %v6807, %v6806
      %v6815 = vpack.c.bf16 %v6809, %v6808
      %v6816 = vpack.c.bf16 %v6811, %v6810
      %v6817 = vpack.c.bf16 %v6813, %v6812
      %6818 = vst [vmem:[#allocation2 + $0x4] sm:$0xff] %v6814
      %6819 = vst [vmem:[#allocation2 + $0x14] sm:$0xff] %v6815
      %6820 = vst [vmem:[#allocation2 + $0x24] sm:$0xff] %v6816
      %6821 = vst [vmem:[#allocation2 + $0x34] sm:$0xff] %v6817
      %v6822 = vld [vmem:[#allocation2] sm:$0xff]
      %v6823 = vld [vmem:[#allocation2 + $0x8] sm:$0xf]
      %v6824 = vld [vmem:[#allocation2 + $0x10] sm:$0xff]
      %v6825 = vld [vmem:[#allocation2 + $0x18] sm:$0xf]
      %v6826 = vld [vmem:[#allocation2 + $0x20] sm:$0xff]
      %v6827 = vld [vmem:[#allocation2 + $0x28] sm:$0xf]
      %v6828 = vld [vmem:[#allocation2 + $0x30] sm:$0xff]
      %v6829 = vld [vmem:[#allocation2 + $0x38] sm:$0xf]
      %v6830 = vsel %vm3553, %v6822, 0
      %v6831 = vsel %vm3560, %v6823, 0
      %v6832 = vsel %vm3553, %v6824, 0
      %v6833 = vsel %vm3560, %v6825, 0
      %v6834 = vsel %vm3553, %v6826, 0
      %v6835 = vsel %vm3560, %v6827, 0
      %v6836 = vsel %vm3553, %v6828, 0
      %v6837 = vsel %vm3560, %v6829, 0
      %v6838 = vsel %vm3580, %v6822, 0
      %v6839 = vsel %vm3587, %v6823, 0
      %v6840 = vsel %vm3580, %v6824, 0
      %v6841 = vsel %vm3587, %v6825, 0
      %v6842 = vsel %vm3580, %v6826, 0
      %v6843 = vsel %vm3587, %v6827, 0
      %v6844 = vsel %vm3580, %v6828, 0
      %v6845 = vsel %vm3587, %v6829, 0
      %v6846 = vsel %vm3606, %v6822, 0
      %v6847 = vsel %vm3613, %v6823, 0
      %v6848 = vsel %vm3606, %v6824, 0
      %v6849 = vsel %vm3613, %v6825, 0
      %v6850 = vsel %vm3606, %v6826, 0
      %v6851 = vsel %vm3613, %v6827, 0
      %v6852 = vsel %vm3606, %v6828, 0
      %v6853 = vsel %vm3613, %v6829, 0
      %v6854 = vld [vmem:[#allocation2 + $0x4] sm:$0xff]
      %v6855 = vld [vmem:[#allocation2 + $0x14] sm:$0xff]
      %v6856 = vld [vmem:[#allocation2 + $0x24] sm:$0xff]
      %v6857 = vld [vmem:[#allocation2 + $0x34] sm:$0xff]
      %v6858 = vld [vmem:[#allocation2 + $0x4] sm:$0xff]
      %v6859 = vld [vmem:[#allocation2 + $0xc] sm:$0xf]
      %v6860 = vld [vmem:[#allocation2 + $0x14] sm:$0xff]
      %v6861 = vld [vmem:[#allocation2 + $0x1c] sm:$0xf]
      %v6862 = vld [vmem:[#allocation2 + $0x24] sm:$0xff]
      %v6863 = vld [vmem:[#allocation2 + $0x2c] sm:$0xf]
      %v6864 = vld [vmem:[#allocation2 + $0x34] sm:$0xff]
      %v6865 = vld [vmem:[#allocation2 + $0x3c] sm:$0xf]
      %v6866 = vsel %vm3645, %v6858, 0
      %v6867 = vsel %vm3652, %v6859, 0
      %v6868 = vsel %vm3645, %v6860, 0
      %v6869 = vsel %vm3652, %v6861, 0
      %v6870 = vsel %vm3645, %v6862, 0
      %v6871 = vsel %vm3652, %v6863, 0
      %v6872 = vsel %vm3645, %v6864, 0
      %v6873 = vsel %vm3652, %v6865, 0
      %v6874 = vsel %vm3672, %v6858, 0
      %v6875 = vsel %vm3679, %v6859, 0
      %v6876 = vsel %vm3672, %v6860, 0
      %v6877 = vsel %vm3679, %v6861, 0
      %v6878 = vsel %vm3672, %v6862, 0
      %v6879 = vsel %vm3679, %v6863, 0
      %v6880 = vsel %vm3672, %v6864, 0
      %v6881 = vsel %vm3679, %v6865, 0
      %v6882 = vsel %vm3699, %v6858, 0
      %v6883 = vsel %vm3706, %v6859, 0
      %v6884 = vsel %vm3699, %v6860, 0
      %v6885 = vsel %vm3706, %v6861, 0
      %v6886 = vsel %vm3699, %v6862, 0
      %v6887 = vsel %vm3706, %v6863, 0
      %v6888 = vsel %vm3699, %v6864, 0
      %v6889 = vsel %vm3706, %v6865, 0
      %v6898 = vunpack.c.l.b16 %v6830
      %v6899 = vunpack.c.h.b16 %v6830
      %v6900 = vunpack.c.l.b16 %v6831
      %v6901 = vunpack.c.l.b16 %v6832
      %v6902 = vunpack.c.h.b16 %v6832
      %v6903 = vunpack.c.l.b16 %v6833
      %v6904 = vunpack.c.l.b16 %v6834
      %v6905 = vunpack.c.h.b16 %v6834
      %v6906 = vunpack.c.l.b16 %v6835
      %v6907 = vunpack.c.l.b16 %v6836
      %v6908 = vunpack.c.h.b16 %v6836
      %v6909 = vunpack.c.l.b16 %v6837
      %v6910 = vpack.c.b16 %v6901, %v6898
      %v6911 = vpack.c.b16 %v6902, %v6899
      %v6912 = vpack.c.b16 %v6903, %v6900
      %v6913 = vpack.c.b16 %v6907, %v6904
      %v6914 = vpack.c.b16 %v6908, %v6905
      %v6915 = vpack.c.b16 %v6909, %v6906
      %v6924 = vunpack.c.l.b16 %v6822
      %v6925 = vunpack.c.h.b16 %v6822
      %v6926 = vunpack.c.l.b16 %v6823
      %v6927 = vunpack.c.l.b16 %v6824
      %v6928 = vunpack.c.h.b16 %v6824
      %v6929 = vunpack.c.l.b16 %v6825
      %v6930 = vunpack.c.l.b16 %v6826
      %v6931 = vunpack.c.h.b16 %v6826
      %v6932 = vunpack.c.l.b16 %v6827
      %v6933 = vunpack.c.l.b16 %v6828
      %v6934 = vunpack.c.h.b16 %v6828
      %v6935 = vunpack.c.l.b16 %v6829
      %v6936 = vpack.c.b16 %v6927, %v6924
      %v6937 = vpack.c.b16 %v6928, %v6925
      %v6938 = vpack.c.b16 %v6929, %v6926
      %v6939 = vpack.c.b16 %v6933, %v6930
      %v6940 = vpack.c.b16 %v6934, %v6931
      %v6941 = vpack.c.b16 %v6935, %v6932
      %6942 = vrot.lane.b32.xlu0 %v6936, 127
      %v6943 = vpop.permute.xlu0 %6942
      %6944 = vrot.lane.b32.xlu0 %v6937, 127
      %v6945 = vpop.permute.xlu0 %6944
      %6946 = vrot.lane.b32.xlu0 %v6938, 127
      %v6947 = vpop.permute.xlu0 %6946
      %6948 = vrot.lane.b32.xlu0 %v6939, 127
      %v6949 = vpop.permute.xlu0 %6948
      %6950 = vrot.lane.b32.xlu0 %v6940, 127
      %v6951 = vpop.permute.xlu0 %6950
      %6952 = vrot.lane.b32.xlu0 %v6941, 127
      %v6953 = vpop.permute.xlu0 %6952
      %v6954 = vsel %vm1066, %v6943, %v6945
      %v6955 = vsel %vm1066, %v6945, %v6947
      %v6956 = vsel %vm1066, %v6949, %v6951
      %v6957 = vsel %vm1066, %v6951, %v6953
      %v6966 = vunpack.c.l.b16 %v6838
      %v6967 = vunpack.c.h.b16 %v6838
      %v6968 = vunpack.c.l.b16 %v6839
      %v6969 = vunpack.c.l.b16 %v6840
      %v6970 = vunpack.c.h.b16 %v6840
      %v6971 = vunpack.c.l.b16 %v6841
      %v6972 = vunpack.c.l.b16 %v6842
      %v6973 = vunpack.c.h.b16 %v6842
      %v6974 = vunpack.c.l.b16 %v6843
      %v6975 = vunpack.c.l.b16 %v6844
      %v6976 = vunpack.c.h.b16 %v6844
      %v6977 = vunpack.c.l.b16 %v6845
      %v6978 = vpack.c.b16 %v6969, %v6966
      %v6979 = vpack.c.b16 %v6970, %v6967
      %v6980 = vpack.c.b16 %v6971, %v6968
      %v6981 = vpack.c.b16 %v6975, %v6972
      %v6982 = vpack.c.b16 %v6976, %v6973
      %v6983 = vpack.c.b16 %v6977, %v6974
      %6984 = vrot.lane.b32.xlu0 %v6978, 126
      %v6985 = vpop.permute.xlu0 %6984
      %6986 = vrot.lane.b32.xlu0 %v6979, 126
      %v6987 = vpop.permute.xlu0 %6986
      %6988 = vrot.lane.b32.xlu0 %v6980, 126
      %v6989 = vpop.permute.xlu0 %6988
      %6990 = vrot.lane.b32.xlu0 %v6981, 126
      %v6991 = vpop.permute.xlu0 %6990
      %6992 = vrot.lane.b32.xlu0 %v6982, 126
      %v6993 = vpop.permute.xlu0 %6992
      %6994 = vrot.lane.b32.xlu0 %v6983, 126
      %v6995 = vpop.permute.xlu0 %6994
      %v6996 = vsel %vm1235, %v6985, %v6987
      %v6997 = vsel %vm1235, %v6987, %v6989
      %v6998 = vsel %vm1235, %v6991, %v6993
      %v6999 = vsel %vm1235, %v6993, %v6995
      %v7008 = vunpack.c.l.b16 %v6846
      %v7009 = vunpack.c.h.b16 %v6846
      %v7010 = vunpack.c.l.b16 %v6847
      %v7011 = vunpack.c.l.b16 %v6848
      %v7012 = vunpack.c.h.b16 %v6848
      %v7013 = vunpack.c.l.b16 %v6849
      %v7014 = vunpack.c.l.b16 %v6850
      %v7015 = vunpack.c.h.b16 %v6850
      %v7016 = vunpack.c.l.b16 %v6851
      %v7017 = vunpack.c.l.b16 %v6852
      %v7018 = vunpack.c.h.b16 %v6852
      %v7019 = vunpack.c.l.b16 %v6853
      %v7020 = vpack.c.b16 %v7011, %v7008
      %v7021 = vpack.c.b16 %v7012, %v7009
      %v7022 = vpack.c.b16 %v7013, %v7010
      %v7023 = vpack.c.b16 %v7017, %v7014
      %v7024 = vpack.c.b16 %v7018, %v7015
      %v7025 = vpack.c.b16 %v7019, %v7016
      %7026 = vrot.lane.b32.xlu0 %v7020, 112
      %v7027 = vpop.permute.xlu0 %7026
      %7028 = vrot.lane.b32.xlu0 %v7021, 112
      %v7029 = vpop.permute.xlu0 %7028
      %7030 = vrot.lane.b32.xlu0 %v7022, 112
      %v7031 = vpop.permute.xlu0 %7030
      %7032 = vrot.lane.b32.xlu0 %v7023, 112
      %v7033 = vpop.permute.xlu0 %7032
      %7034 = vrot.lane.b32.xlu0 %v7024, 112
      %v7035 = vpop.permute.xlu0 %7034
      %7036 = vrot.lane.b32.xlu0 %v7025, 112
      %v7037 = vpop.permute.xlu0 %7036
      %v7038 = vsel %vm1404, %v7027, %v7029
      %v7039 = vsel %vm1404, %v7029, %v7031
      %v7040 = vsel %vm1404, %v7033, %v7035
      %v7041 = vsel %vm1404, %v7035, %v7037
      %v7046 = vunpack.c.l.b16 %v6854
      %v7047 = vunpack.c.h.b16 %v6854
      %v7048 = vunpack.c.l.b16 %v6855
      %v7049 = vunpack.c.h.b16 %v6855
      %v7050 = vunpack.c.l.b16 %v6856
      %v7051 = vunpack.c.h.b16 %v6856
      %v7052 = vunpack.c.l.b16 %v6857
      %v7053 = vunpack.c.h.b16 %v6857
      %v7054 = vpack.c.b16 %v7048, %v7046
      %v7055 = vpack.c.b16 %v7049, %v7047
      %v7056 = vpack.c.b16 %v7052, %v7050
      %v7057 = vpack.c.b16 %v7053, %v7051
      %7058 = vrot.lane.b32.xlu0 %v7054, 111
      %v7059 = vpop.permute.xlu0 %7058
      %7060 = vrot.lane.b32.xlu0 %v7055, 111
      %v7061 = vpop.permute.xlu0 %7060
      %7062 = vrot.lane.b32.xlu0 %v7056, 111
      %v7063 = vpop.permute.xlu0 %7062
      %7064 = vrot.lane.b32.xlu0 %v7057, 111
      %v7065 = vpop.permute.xlu0 %7064
      %v7066 = vsel %vm1469, %v7059, %v7061
      %v7067 = vsel %vm1469, %v7063, %v7065
      %v7076 = vunpack.c.l.b16 %v6866
      %v7077 = vunpack.c.h.b16 %v6866
      %v7078 = vunpack.c.l.b16 %v6867
      %v7079 = vunpack.c.l.b16 %v6868
      %v7080 = vunpack.c.h.b16 %v6868
      %v7081 = vunpack.c.l.b16 %v6869
      %v7082 = vunpack.c.l.b16 %v6870
      %v7083 = vunpack.c.h.b16 %v6870
      %v7084 = vunpack.c.l.b16 %v6871
      %v7085 = vunpack.c.l.b16 %v6872
      %v7086 = vunpack.c.h.b16 %v6872
      %v7087 = vunpack.c.l.b16 %v6873
      %v7088 = vpack.c.b16 %v7079, %v7076
      %v7089 = vpack.c.b16 %v7080, %v7077
      %v7090 = vpack.c.b16 %v7081, %v7078
      %v7091 = vpack.c.b16 %v7085, %v7082
      %v7092 = vpack.c.b16 %v7086, %v7083
      %v7093 = vpack.c.b16 %v7087, %v7084
      %7094 = vrot.lane.b32.xlu0 %v7088, 110
      %v7095 = vpop.permute.xlu0 %7094
      %7096 = vrot.lane.b32.xlu0 %v7089, 110
      %v7097 = vpop.permute.xlu0 %7096
      %7098 = vrot.lane.b32.xlu0 %v7090, 110
      %v7099 = vpop.permute.xlu0 %7098
      %7100 = vrot.lane.b32.xlu0 %v7091, 110
      %v7101 = vpop.permute.xlu0 %7100
      %7102 = vrot.lane.b32.xlu0 %v7092, 110
      %v7103 = vpop.permute.xlu0 %7102
      %7104 = vrot.lane.b32.xlu0 %v7093, 110
      %v7105 = vpop.permute.xlu0 %7104
      %v7106 = vsel %vm1638, %v7095, %v7097
      %v7107 = vsel %vm1638, %v7097, %v7099
      %v7108 = vsel %vm1638, %v7101, %v7103
      %v7109 = vsel %vm1638, %v7103, %v7105
      %v7118 = vunpack.c.l.b16 %v6874
      %v7119 = vunpack.c.h.b16 %v6874
      %v7120 = vunpack.c.l.b16 %v6875
      %v7121 = vunpack.c.l.b16 %v6876
      %v7122 = vunpack.c.h.b16 %v6876
      %v7123 = vunpack.c.l.b16 %v6877
      %v7124 = vunpack.c.l.b16 %v6878
      %v7125 = vunpack.c.h.b16 %v6878
      %v7126 = vunpack.c.l.b16 %v6879
      %v7127 = vunpack.c.l.b16 %v6880
      %v7128 = vunpack.c.h.b16 %v6880
      %v7129 = vunpack.c.l.b16 %v6881
      %v7130 = vpack.c.b16 %v7121, %v7118
      %v7131 = vpack.c.b16 %v7122, %v7119
      %v7132 = vpack.c.b16 %v7123, %v7120
      %v7133 = vpack.c.b16 %v7127, %v7124
      %v7134 = vpack.c.b16 %v7128, %v7125
      %v7135 = vpack.c.b16 %v7129, %v7126
      %7136 = vrot.lane.b32.xlu0 %v7130, 96
      %v7137 = vpop.permute.xlu0 %7136
      %7138 = vrot.lane.b32.xlu0 %v7131, 96
      %v7139 = vpop.permute.xlu0 %7138
      %7140 = vrot.lane.b32.xlu0 %v7132, 96
      %v7141 = vpop.permute.xlu0 %7140
      %7142 = vrot.lane.b32.xlu0 %v7133, 96
      %v7143 = vpop.permute.xlu0 %7142
      %7144 = vrot.lane.b32.xlu0 %v7134, 96
      %v7145 = vpop.permute.xlu0 %7144
      %7146 = vrot.lane.b32.xlu0 %v7135, 96
      %v7147 = vpop.permute.xlu0 %7146
      %v7148 = vsel %vm1807, %v7137, %v7139
      %v7149 = vsel %vm1807, %v7139, %v7141
      %v7150 = vsel %vm1807, %v7143, %v7145
      %v7151 = vsel %vm1807, %v7145, %v7147
      %v7160 = vunpack.c.l.b16 %v6858
      %v7161 = vunpack.c.h.b16 %v6858
      %v7162 = vunpack.c.l.b16 %v6859
      %v7163 = vunpack.c.l.b16 %v6860
      %v7164 = vunpack.c.h.b16 %v6860
      %v7165 = vunpack.c.l.b16 %v6861
      %v7166 = vunpack.c.l.b16 %v6862
      %v7167 = vunpack.c.h.b16 %v6862
      %v7168 = vunpack.c.l.b16 %v6863
      %v7169 = vunpack.c.l.b16 %v6864
      %v7170 = vunpack.c.h.b16 %v6864
      %v7171 = vunpack.c.l.b16 %v6865
      %v7172 = vpack.c.b16 %v7163, %v7160
      %v7173 = vpack.c.b16 %v7164, %v7161
      %v7174 = vpack.c.b16 %v7165, %v7162
      %v7175 = vpack.c.b16 %v7169, %v7166
      %v7176 = vpack.c.b16 %v7170, %v7167
      %v7177 = vpack.c.b16 %v7171, %v7168
      %7178 = vrot.lane.b32.xlu0 %v7172, 95
      %v7179 = vpop.permute.xlu0 %7178
      %7180 = vrot.lane.b32.xlu0 %v7173, 95
      %v7181 = vpop.permute.xlu0 %7180
      %7182 = vrot.lane.b32.xlu0 %v7174, 95
      %v7183 = vpop.permute.xlu0 %7182
      %7184 = vrot.lane.b32.xlu0 %v7175, 95
      %v7185 = vpop.permute.xlu0 %7184
      %7186 = vrot.lane.b32.xlu0 %v7176, 95
      %v7187 = vpop.permute.xlu0 %7186
      %7188 = vrot.lane.b32.xlu0 %v7177, 95
      %v7189 = vpop.permute.xlu0 %7188
      %v7190 = vsel %vm1872, %v7179, %v7181
      %v7191 = vsel %vm1872, %v7181, %v7183
      %v7192 = vsel %vm1872, %v7185, %v7187
      %v7193 = vsel %vm1872, %v7187, %v7189
      %v7202 = vunpack.c.l.b16 %v6882
      %v7203 = vunpack.c.h.b16 %v6882
      %v7204 = vunpack.c.l.b16 %v6883
      %v7205 = vunpack.c.l.b16 %v6884
      %v7206 = vunpack.c.h.b16 %v6884
      %v7207 = vunpack.c.l.b16 %v6885
      %v7208 = vunpack.c.l.b16 %v6886
      %v7209 = vunpack.c.h.b16 %v6886
      %v7210 = vunpack.c.l.b16 %v6887
      %v7211 = vunpack.c.l.b16 %v6888
      %v7212 = vunpack.c.h.b16 %v6888
      %v7213 = vunpack.c.l.b16 %v6889
      %v7214 = vpack.c.b16 %v7205, %v7202
      %v7215 = vpack.c.b16 %v7206, %v7203
      %v7216 = vpack.c.b16 %v7207, %v7204
      %v7217 = vpack.c.b16 %v7211, %v7208
      %v7218 = vpack.c.b16 %v7212, %v7209
      %v7219 = vpack.c.b16 %v7213, %v7210
      %7220 = vrot.lane.b32.xlu0 %v7214, 94
      %v7221 = vpop.permute.xlu0 %7220
      %7222 = vrot.lane.b32.xlu0 %v7215, 94
      %v7223 = vpop.permute.xlu0 %7222
      %7224 = vrot.lane.b32.xlu0 %v7216, 94
      %v7225 = vpop.permute.xlu0 %7224
      %7226 = vrot.lane.b32.xlu0 %v7217, 94
      %v7227 = vpop.permute.xlu0 %7226
      %7228 = vrot.lane.b32.xlu0 %v7218, 94
      %v7229 = vpop.permute.xlu0 %7228
      %7230 = vrot.lane.b32.xlu0 %v7219, 94
      %v7231 = vpop.permute.xlu0 %7230
      %v7232 = vsel %vm2041, %v7221, %v7223
      %v7233 = vsel %vm2041, %v7223, %v7225
      %v7234 = vsel %vm2041, %v7227, %v7229
      %v7235 = vsel %vm2041, %v7229, %v7231
      %s7236 = scalar_lea.vmem %s4, 192
      %v7237 = vld [vmem:[%s7236] sm:$0xff]
      %v7238 = vld [vmem:[%s7236 + $0x8] sm:$0xf]
      %v7239 = vld [vmem:[%s7236 + $0xc] sm:$0xff]
      %v7240 = vld [vmem:[%s7236 + $0x14] sm:$0xf]
      %v7241 = vld [vmem:[%s7236 + $0x18] sm:$0xff]
      %v7242 = vld [vmem:[%s7236 + $0x20] sm:$0xf]
      %v7243 = vld [vmem:[%s7236 + $0x24] sm:$0xff]
      %v7244 = vld [vmem:[%s7236 + $0x2c] sm:$0xf]
      %s7245 = scalar_lea.vmem %s5, 128
      %v7246 = vld [vmem:[%s7245] sm:$0xff]
      %v7247 = vld [vmem:[%s7245 + $0x8] sm:$0xff]
      %v7248 = vld [vmem:[%s7245 + $0x10] sm:$0xff]
      %v7249 = vld [vmem:[%s7245 + $0x18] sm:$0xff]
      %7251 = vset.pattern.permute.xlu0 0
      %7252 = vperm.xlu0 %7251, %v7246
      %v7253 = vpop.permute.xlu0 %7252
      %7256 = vset.pattern.permute.xlu0 0
      %7257 = vperm.xlu0 %7256, %v7247
      %v7258 = vpop.permute.xlu0 %7257
      %7261 = vset.pattern.permute.xlu0 0
      %7262 = vperm.xlu0 %7261, %v7248
      %v7263 = vpop.permute.xlu0 %7262
      %7266 = vset.pattern.permute.xlu0 0
      %7267 = vperm.xlu0 %7266, %v7249
      %v7268 = vpop.permute.xlu0 %7267
      %v7278 = vunpack.c.l.b16 %v7237
      %v7279 = vunpack.c.h.b16 %v7237
      %v7280 = vunpack.c.l.b16 %v7238
      %v7281 = vunpack.c.l.b16 %v7239
      %v7282 = vunpack.c.h.b16 %v7239
      %v7283 = vunpack.c.l.b16 %v7240
      %v7284 = vunpack.c.l.b16 %v7241
      %v7285 = vunpack.c.h.b16 %v7241
      %v7286 = vunpack.c.l.b16 %v7242
      %v7287 = vunpack.c.l.b16 %v7243
      %v7288 = vunpack.c.h.b16 %v7243
      %v7289 = vunpack.c.l.b16 %v7244
      %v7290 = vpack.c.b16 %v7281, %v7278
      %v7291 = vpack.c.b16 %v7282, %v7279
      %v7292 = vpack.c.b16 %v7283, %v7280
      %v7293 = vpack.c.b16 %v7287, %v7284
      %v7294 = vpack.c.b16 %v7288, %v7285
      %v7295 = vpack.c.b16 %v7289, %v7286
      %7300 = vrot.lane.b32.xlu0 %v6910, 17
      %v7301 = vpop.permute.xlu0 %7300
      %7302 = vrot.lane.b32.xlu0 %v6911, 17
      %v7303 = vpop.permute.xlu0 %7302
      %7304 = vrot.lane.b32.xlu0 %v6912, 17
      %v7305 = vpop.permute.xlu0 %7304
      %7306 = vrot.lane.b32.xlu0 %v6913, 17
      %v7307 = vpop.permute.xlu0 %7306
      %7308 = vrot.lane.b32.xlu0 %v6914, 17
      %v7309 = vpop.permute.xlu0 %7308
      %7310 = vrot.lane.b32.xlu0 %v6915, 17
      %v7311 = vpop.permute.xlu0 %7310
      %7312 = vrot.lane.b32.xlu0 %v6954, 17
      %v7313 = vpop.permute.xlu0 %7312
      %7314 = vrot.lane.b32.xlu0 %v6955, 17
      %v7315 = vpop.permute.xlu0 %7314
      %7316 = vrot.lane.b32.xlu0 %v6947, 17
      %v7317 = vpop.permute.xlu0 %7316
      %7318 = vrot.lane.b32.xlu0 %v6956, 17
      %v7319 = vpop.permute.xlu0 %7318
      %7320 = vrot.lane.b32.xlu0 %v6957, 17
      %v7321 = vpop.permute.xlu0 %7320
      %7322 = vrot.lane.b32.xlu0 %v6953, 17
      %v7323 = vpop.permute.xlu0 %7322
      %7324 = vrot.lane.b32.xlu0 %v6996, 17
      %v7325 = vpop.permute.xlu0 %7324
      %7326 = vrot.lane.b32.xlu0 %v6997, 17
      %v7327 = vpop.permute.xlu0 %7326
      %7328 = vrot.lane.b32.xlu0 %v6989, 17
      %v7329 = vpop.permute.xlu0 %7328
      %7330 = vrot.lane.b32.xlu0 %v6998, 17
      %v7331 = vpop.permute.xlu0 %7330
      %7332 = vrot.lane.b32.xlu0 %v6999, 17
      %v7333 = vpop.permute.xlu0 %7332
      %7334 = vrot.lane.b32.xlu0 %v6995, 17
      %v7335 = vpop.permute.xlu0 %7334
      %7336 = vrot.lane.b32.xlu0 %v7038, 17
      %v7337 = vpop.permute.xlu0 %7336
      %7338 = vrot.lane.b32.xlu0 %v7039, 17
      %v7339 = vpop.permute.xlu0 %7338
      %7340 = vrot.lane.b32.xlu0 %v7031, 17
      %v7341 = vpop.permute.xlu0 %7340
      %7342 = vrot.lane.b32.xlu0 %v7040, 17
      %v7343 = vpop.permute.xlu0 %7342
      %7344 = vrot.lane.b32.xlu0 %v7041, 17
      %v7345 = vpop.permute.xlu0 %7344
      %7346 = vrot.lane.b32.xlu0 %v7037, 17
      %v7347 = vpop.permute.xlu0 %7346
      %7348 = vrot.lane.b32.xlu0 %v7059, 17
      %v7349 = vpop.permute.xlu0 %7348
      %7350 = vrot.lane.b32.xlu0 %v7066, 17
      %v7351 = vpop.permute.xlu0 %7350
      %7352 = vrot.lane.b32.xlu0 %v7061, 17
      %v7353 = vpop.permute.xlu0 %7352
      %7354 = vrot.lane.b32.xlu0 %v7063, 17
      %v7355 = vpop.permute.xlu0 %7354
      %7356 = vrot.lane.b32.xlu0 %v7067, 17
      %v7357 = vpop.permute.xlu0 %7356
      %7358 = vrot.lane.b32.xlu0 %v7065, 17
      %v7359 = vpop.permute.xlu0 %7358
      %7360 = vrot.lane.b32.xlu0 %v7095, 17
      %v7361 = vpop.permute.xlu0 %7360
      %7362 = vrot.lane.b32.xlu0 %v7106, 17
      %v7363 = vpop.permute.xlu0 %7362
      %7364 = vrot.lane.b32.xlu0 %v7107, 17
      %v7365 = vpop.permute.xlu0 %7364
      %7366 = vrot.lane.b32.xlu0 %v7101, 17
      %v7367 = vpop.permute.xlu0 %7366
      %7368 = vrot.lane.b32.xlu0 %v7108, 17
      %v7369 = vpop.permute.xlu0 %7368
      %7370 = vrot.lane.b32.xlu0 %v7109, 17
      %v7371 = vpop.permute.xlu0 %7370
      %7372 = vrot.lane.b32.xlu0 %v7137, 17
      %v7373 = vpop.permute.xlu0 %7372
      %7374 = vrot.lane.b32.xlu0 %v7148, 17
      %v7375 = vpop.permute.xlu0 %7374
      %7376 = vrot.lane.b32.xlu0 %v7149, 17
      %v7377 = vpop.permute.xlu0 %7376
      %7378 = vrot.lane.b32.xlu0 %v7143, 17
      %v7379 = vpop.permute.xlu0 %7378
      %7380 = vrot.lane.b32.xlu0 %v7150, 17
      %v7381 = vpop.permute.xlu0 %7380
      %7382 = vrot.lane.b32.xlu0 %v7151, 17
      %v7383 = vpop.permute.xlu0 %7382
      %7384 = vrot.lane.b32.xlu0 %v7179, 17
      %v7385 = vpop.permute.xlu0 %7384
      %7386 = vrot.lane.b32.xlu0 %v7190, 17
      %v7387 = vpop.permute.xlu0 %7386
      %7388 = vrot.lane.b32.xlu0 %v7191, 17
      %v7389 = vpop.permute.xlu0 %7388
      %7390 = vrot.lane.b32.xlu0 %v7185, 17
      %v7391 = vpop.permute.xlu0 %7390
      %7392 = vrot.lane.b32.xlu0 %v7192, 17
      %v7393 = vpop.permute.xlu0 %7392
      %7394 = vrot.lane.b32.xlu0 %v7193, 17
      %v7395 = vpop.permute.xlu0 %7394
      %7396 = vrot.lane.b32.xlu0 %v7221, 17
      %v7397 = vpop.permute.xlu0 %7396
      %7398 = vrot.lane.b32.xlu0 %v7232, 17
      %v7399 = vpop.permute.xlu0 %7398
      %7400 = vrot.lane.b32.xlu0 %v7233, 17
      %v7401 = vpop.permute.xlu0 %7400
      %7402 = vrot.lane.b32.xlu0 %v7227, 17
      %v7403 = vpop.permute.xlu0 %7402
      %7404 = vrot.lane.b32.xlu0 %v7234, 17
      %v7405 = vpop.permute.xlu0 %7404
      %7406 = vrot.lane.b32.xlu0 %v7235, 17
      %v7407 = vpop.permute.xlu0 %7406
      %v7408 = vsel %vm3691, %v7301, %v7303
      %v7409 = vsel %vm3691, %v7303, %v7305
      %v7410 = vsel %vm3691, %v7307, %v7309
      %v7411 = vsel %vm3691, %v7309, %v7311
      %v7412 = vsel %vm3691, %v7313, %v7315
      %v7413 = vsel %vm3691, %v7315, %v7317
      %v7414 = vsel %vm3691, %v7319, %v7321
      %v7415 = vsel %vm3691, %v7321, %v7323
      %v7416 = vsel %vm3691, %v7325, %v7327
      %v7417 = vsel %vm3691, %v7327, %v7329
      %v7418 = vsel %vm3691, %v7331, %v7333
      %v7419 = vsel %vm3691, %v7333, %v7335
      %v7420 = vsel %vm3691, %v7337, %v7339
      %v7421 = vsel %vm3691, %v7339, %v7341
      %v7422 = vsel %vm3691, %v7343, %v7345
      %v7423 = vsel %vm3691, %v7345, %v7347
      %v7424 = vsel %vm3691, %v7349, %v7351
      %v7425 = vsel %vm3691, %v7351, %v7353
      %v7426 = vsel %vm3691, %v7355, %v7357
      %v7427 = vsel %vm3691, %v7357, %v7359
      %v7428 = vsel %vm3691, %v7361, %v7363
      %v7429 = vsel %vm3691, %v7363, %v7365
      %v7430 = vsel %vm3691, %v7367, %v7369
      %v7431 = vsel %vm3691, %v7369, %v7371
      %v7432 = vsel %vm3691, %v7373, %v7375
      %v7433 = vsel %vm3691, %v7375, %v7377
      %v7434 = vsel %vm3691, %v7379, %v7381
      %v7435 = vsel %vm3691, %v7381, %v7383
      %v7436 = vsel %vm3691, %v7385, %v7387
      %v7437 = vsel %vm3691, %v7387, %v7389
      %v7438 = vsel %vm3691, %v7391, %v7393
      %v7439 = vsel %vm3691, %v7393, %v7395
      %v7440 = vsel %vm3691, %v7397, %v7399
      %v7441 = vsel %vm3691, %v7399, %v7401
      %v7442 = vsel %vm3691, %v7403, %v7405
      %v7443 = vsel %vm3691, %v7405, %v7407
      %v7481 = vsel %vm4303, %v7292, 0
      %v7484 = vsel %vm4303, %v7295, 0
      %7486 = vmatpush.bf16.msra.mxu0 %v7422
      %7487 = vmatpush.bf16.msra.mxu0 %v7420
      %7488 = vmatpush.bf16.msra.mxu0 %v7418
      %7489 = vmatpush.bf16.msra.mxu0 %v7416
      %7490 = vmatpush.bf16.msra.mxu0 %v7414
      %7491 = vmatpush.bf16.msra.mxu0 %v7412
      %7492 = vmatpush.bf16.msra.mxu0 %v7410
      %7493 = vmatpush.bf16.msra.mxu0 %v7408
      %7494 = vmatmul.bf16.gmra.mxu0 %v7290
      %v7495 = vpop.f32.mrf.mxu0
      %v7496 = vadd.f32 %v7253, %v7495
      %v7497 = vpop.f32.mrf.mxu0
      %v7498 = vadd.f32 %v7258, %v7497
      %7499 = vmatmul.bf16.gmra.mxu0 %v7293
      %v7500 = vpop.f32.mrf.mxu0
      %v7501 = vadd.f32 %v7263, %v7500
      %v7502 = vpop.f32.mrf.mxu0
      %v7503 = vadd.f32 %v7268, %v7502
      %7504 = vdwg.mxu0
      %7505 = vmatpush.bf16.msra.mxu0 %v7438
      %7506 = vmatpush.bf16.msra.mxu0 %v7436
      %7507 = vmatpush.bf16.msra.mxu0 %v7434
      %7508 = vmatpush.bf16.msra.mxu0 %v7432
      %7509 = vmatpush.bf16.msra.mxu0 %v7430
      %7510 = vmatpush.bf16.msra.mxu0 %v7428
      %7511 = vmatpush.bf16.msra.mxu0 %v7426
      %7512 = vmatpush.bf16.msra.mxu0 %v7424
      %7513 = vmatmul.bf16.gmra.mxu0 %v7291
      %v7514 = vpop.f32.mrf.mxu0
      %v7515 = vadd.f32 %v7496, %v7514
      %v7516 = vpop.f32.mrf.mxu0
      %v7517 = vadd.f32 %v7498, %v7516
      %7518 = vmatmul.bf16.gmra.mxu0 %v7294
      %v7519 = vpop.f32.mrf.mxu0
      %v7520 = vadd.f32 %v7501, %v7519
      %v7521 = vpop.f32.mrf.mxu0
      %v7522 = vadd.f32 %v7503, %v7521
      %7523 = vdwg.mxu0
      %7524 = vmatpush.bf16.msra.mxu0 0
      %7525 = vmatpush.bf16.msra.mxu0 0
      %7526 = vmatpush.bf16.msra.mxu0 0
      %7527 = vmatpush.bf16.msra.mxu0 0
      %7528 = vmatpush.bf16.msra.mxu0 0
      %7529 = vmatpush.bf16.msra.mxu0 0
      %7530 = vmatpush.bf16.msra.mxu0 %v7442
      %7531 = vmatpush.bf16.msra.mxu0 %v7440
      %7532 = vmatmul.bf16.gmra.mxu0 %v7481
      %v7533 = vpop.f32.mrf.mxu0
      %v7534 = vadd.f32 %v7515, %v7533
      %v7535 = vpop.f32.mrf.mxu0
      %v7536 = vadd.f32 %v7517, %v7535
      %7537 = vmatmul.bf16.gmra.mxu0 %v7484
      %v7538 = vpop.f32.mrf.mxu0
      %v7539 = vadd.f32 %v7520, %v7538
      %v7540 = vpop.f32.mrf.mxu0
      %v7541 = vadd.f32 %v7522, %v7540
      %7542 = vdwg.mxu0
      %7543 = vmatpush.bf16.msra.mxu0 %v7423
      %7544 = vmatpush.bf16.msra.mxu0 %v7421
      %7545 = vmatpush.bf16.msra.mxu0 %v7419
      %7546 = vmatpush.bf16.msra.mxu0 %v7417
      %7547 = vmatpush.bf16.msra.mxu0 %v7415
      %7548 = vmatpush.bf16.msra.mxu0 %v7413
      %7549 = vmatpush.bf16.msra.mxu0 %v7411
      %7550 = vmatpush.bf16.msra.mxu0 %v7409
      %7551 = vmatmul.bf16.gmra.mxu0 %v7290
      %v7552 = vpop.f32.mrf.mxu0
      %v7553 = vadd.f32 %v7253, %v7552
      %v7554 = vpop.f32.mrf.mxu0
      %v7555 = vadd.f32 %v7258, %v7554
      %7556 = vmatmul.bf16.gmra.mxu0 %v7293
      %v7557 = vpop.f32.mrf.mxu0
      %v7558 = vadd.f32 %v7263, %v7557
      %v7559 = vpop.f32.mrf.mxu0
      %v7560 = vadd.f32 %v7268, %v7559
      %7561 = vdwg.mxu0
      %7562 = vmatpush.bf16.msra.mxu0 %v7439
      %7563 = vmatpush.bf16.msra.mxu0 %v7437
      %7564 = vmatpush.bf16.msra.mxu0 %v7435
      %7565 = vmatpush.bf16.msra.mxu0 %v7433
      %7566 = vmatpush.bf16.msra.mxu0 %v7431
      %7567 = vmatpush.bf16.msra.mxu0 %v7429
      %7568 = vmatpush.bf16.msra.mxu0 %v7427
      %7569 = vmatpush.bf16.msra.mxu0 %v7425
      %7570 = vmatmul.bf16.gmra.mxu0 %v7291
      %v7571 = vpop.f32.mrf.mxu0
      %v7572 = vadd.f32 %v7553, %v7571
      %v7573 = vpop.f32.mrf.mxu0
      %v7574 = vadd.f32 %v7555, %v7573
      %7575 = vmatmul.bf16.gmra.mxu0 %v7294
      %v7576 = vpop.f32.mrf.mxu0
      %v7577 = vadd.f32 %v7558, %v7576
      %v7578 = vpop.f32.mrf.mxu0
      %v7579 = vadd.f32 %v7560, %v7578
      %7580 = vdwg.mxu0
      %7581 = vmatpush.bf16.msra.mxu0 0
      %7582 = vmatpush.bf16.msra.mxu0 0
      %7583 = vmatpush.bf16.msra.mxu0 0
      %7584 = vmatpush.bf16.msra.mxu0 0
      %7585 = vmatpush.bf16.msra.mxu0 0
      %7586 = vmatpush.bf16.msra.mxu0 0
      %7587 = vmatpush.bf16.msra.mxu0 %v7443
      %7588 = vmatpush.bf16.msra.mxu0 %v7441
      %7589 = vmatmul.bf16.gmra.mxu0 %v7481
      %v7590 = vpop.f32.mrf.mxu0
      %v7591 = vadd.f32 %v7572, %v7590
      %v7592 = vpop.f32.mrf.mxu0
      %v7593 = vadd.f32 %v7574, %v7592
      %7594 = vmatmul.bf16.gmra.mxu0 %v7484
      %v7595 = vpop.f32.mrf.mxu0
      %v7596 = vadd.f32 %v7577, %v7595
      %v7597 = vpop.f32.mrf.mxu0
      %v7598 = vadd.f32 %v7579, %v7597
      %7599 = vdwg.mxu0
      %v7600 = vmax.f32 %v7534, 0.0
      %v7601 = vmax.f32 %v7591, 0.0
      %v7602 = vmax.f32 %v7536, 0.0
      %v7603 = vmax.f32 %v7593, 0.0
      %v7604 = vmax.f32 %v7539, 0.0
      %v7605 = vmax.f32 %v7596, 0.0
      %v7606 = vmax.f32 %v7541, 0.0
      %v7607 = vmax.f32 %v7598, 0.0
      %v7608 = vpack.c.bf16 %v7601, %v7600
      %v7609 = vpack.c.bf16 %v7603, %v7602
      %v7610 = vpack.c.bf16 %v7605, %v7604
      %v7611 = vpack.c.bf16 %v7607, %v7606
      %7612 = vst [vmem:[#allocation2 + $0x4] sm:$0xff] %v7608
      %7613 = vst [vmem:[#allocation2 + $0x14] sm:$0xff] %v7609
      %7614 = vst [vmem:[#allocation2 + $0x24] sm:$0xff] %v7610
      %7615 = vst [vmem:[#allocation2 + $0x34] sm:$0xff] %v7611
      %v7616 = vld [vmem:[#allocation2] sm:$0xff]
      %v7617 = vld [vmem:[#allocation2 + $0x8] sm:$0xf]
      %v7618 = vld [vmem:[#allocation2 + $0x10] sm:$0xff]
      %v7619 = vld [vmem:[#allocation2 + $0x18] sm:$0xf]
      %v7620 = vld [vmem:[#allocation2 + $0x20] sm:$0xff]
      %v7621 = vld [vmem:[#allocation2 + $0x28] sm:$0xf]
      %v7622 = vld [vmem:[#allocation2 + $0x30] sm:$0xff]
      %v7623 = vld [vmem:[#allocation2 + $0x38] sm:$0xf]
      %v7624 = vsel %vm3553, %v7616, 0
      %v7625 = vsel %vm3560, %v7617, 0
      %v7626 = vsel %vm3553, %v7618, 0
      %v7627 = vsel %vm3560, %v7619, 0
      %v7628 = vsel %vm3553, %v7620, 0
      %v7629 = vsel %vm3560, %v7621, 0
      %v7630 = vsel %vm3553, %v7622, 0
      %v7631 = vsel %vm3560, %v7623, 0
      %v7632 = vsel %vm3580, %v7616, 0
      %v7633 = vsel %vm3587, %v7617, 0
      %v7634 = vsel %vm3580, %v7618, 0
      %v7635 = vsel %vm3587, %v7619, 0
      %v7636 = vsel %vm3580, %v7620, 0
      %v7637 = vsel %vm3587, %v7621, 0
      %v7638 = vsel %vm3580, %v7622, 0
      %v7639 = vsel %vm3587, %v7623, 0
      %v7640 = vsel %vm3606, %v7616, 0
      %v7641 = vsel %vm3613, %v7617, 0
      %v7642 = vsel %vm3606, %v7618, 0
      %v7643 = vsel %vm3613, %v7619, 0
      %v7644 = vsel %vm3606, %v7620, 0
      %v7645 = vsel %vm3613, %v7621, 0
      %v7646 = vsel %vm3606, %v7622, 0
      %v7647 = vsel %vm3613, %v7623, 0
      %v7648 = vld [vmem:[#allocation2 + $0x4] sm:$0xff]
      %v7649 = vld [vmem:[#allocation2 + $0x14] sm:$0xff]
      %v7650 = vld [vmem:[#allocation2 + $0x24] sm:$0xff]
      %v7651 = vld [vmem:[#allocation2 + $0x34] sm:$0xff]
      %v7652 = vld [vmem:[#allocation2 + $0x4] sm:$0xff]
      %v7653 = vld [vmem:[#allocation2 + $0xc] sm:$0xf]
      %v7654 = vld [vmem:[#allocation2 + $0x14] sm:$0xff]
      %v7655 = vld [vmem:[#allocation2 + $0x1c] sm:$0xf]
      %v7656 = vld [vmem:[#allocation2 + $0x24] sm:$0xff]
      %v7657 = vld [vmem:[#allocation2 + $0x2c] sm:$0xf]
      %v7658 = vld [vmem:[#allocation2 + $0x34] sm:$0xff]
      %v7659 = vld [vmem:[#allocation2 + $0x3c] sm:$0xf]
      %v7660 = vsel %vm3645, %v7652, 0
      %v7661 = vsel %vm3652, %v7653, 0
      %v7662 = vsel %vm3645, %v7654, 0
      %v7663 = vsel %vm3652, %v7655, 0
      %v7664 = vsel %vm3645, %v7656, 0
      %v7665 = vsel %vm3652, %v7657, 0
      %v7666 = vsel %vm3645, %v7658, 0
      %v7667 = vsel %vm3652, %v7659, 0
      %v7668 = vsel %vm3672, %v7652, 0
      %v7669 = vsel %vm3679, %v7653, 0
      %v7670 = vsel %vm3672, %v7654, 0
      %v7671 = vsel %vm3679, %v7655, 0
      %v7672 = vsel %vm3672, %v7656, 0
      %v7673 = vsel %vm3679, %v7657, 0
      %v7674 = vsel %vm3672, %v7658, 0
      %v7675 = vsel %vm3679, %v7659, 0
      %v7676 = vsel %vm3699, %v7652, 0
      %v7677 = vsel %vm3706, %v7653, 0
      %v7678 = vsel %vm3699, %v7654, 0
      %v7679 = vsel %vm3706, %v7655, 0
      %v7680 = vsel %vm3699, %v7656, 0
      %v7681 = vsel %vm3706, %v7657, 0
      %v7682 = vsel %vm3699, %v7658, 0
      %v7683 = vsel %vm3706, %v7659, 0
      %v7692 = vunpack.c.l.b16 %v7624
      %v7693 = vunpack.c.h.b16 %v7624
      %v7694 = vunpack.c.l.b16 %v7625
      %v7695 = vunpack.c.l.b16 %v7626
      %v7696 = vunpack.c.h.b16 %v7626
      %v7697 = vunpack.c.l.b16 %v7627
      %v7698 = vunpack.c.l.b16 %v7628
      %v7699 = vunpack.c.h.b16 %v7628
      %v7700 = vunpack.c.l.b16 %v7629
      %v7701 = vunpack.c.l.b16 %v7630
      %v7702 = vunpack.c.h.b16 %v7630
      %v7703 = vunpack.c.l.b16 %v7631
      %v7704 = vpack.c.b16 %v7695, %v7692
      %v7705 = vpack.c.b16 %v7696, %v7693
      %v7706 = vpack.c.b16 %v7697, %v7694
      %v7707 = vpack.c.b16 %v7701, %v7698
      %v7708 = vpack.c.b16 %v7702, %v7699
      %v7709 = vpack.c.b16 %v7703, %v7700
      %v7718 = vunpack.c.l.b16 %v7616
      %v7719 = vunpack.c.h.b16 %v7616
      %v7720 = vunpack.c.l.b16 %v7617
      %v7721 = vunpack.c.l.b16 %v7618
      %v7722 = vunpack.c.h.b16 %v7618
      %v7723 = vunpack.c.l.b16 %v7619
      %v7724 = vunpack.c.l.b16 %v7620
      %v7725 = vunpack.c.h.b16 %v7620
      %v7726 = vunpack.c.l.b16 %v7621
      %v7727 = vunpack.c.l.b16 %v7622
      %v7728 = vunpack.c.h.b16 %v7622
      %v7729 = vunpack.c.l.b16 %v7623
      %v7730 = vpack.c.b16 %v7721, %v7718
      %v7731 = vpack.c.b16 %v7722, %v7719
      %v7732 = vpack.c.b16 %v7723, %v7720
      %v7733 = vpack.c.b16 %v7727, %v7724
      %v7734 = vpack.c.b16 %v7728, %v7725
      %v7735 = vpack.c.b16 %v7729, %v7726
      %7736 = vrot.lane.b32.xlu0 %v7730, 127
      %v7737 = vpop.permute.xlu0 %7736
      %7738 = vrot.lane.b32.xlu0 %v7731, 127
      %v7739 = vpop.permute.xlu0 %7738
      %7740 = vrot.lane.b32.xlu0 %v7732, 127
      %v7741 = vpop.permute.xlu0 %7740
      %7742 = vrot.lane.b32.xlu0 %v7733, 127
      %v7743 = vpop.permute.xlu0 %7742
      %7744 = vrot.lane.b32.xlu0 %v7734, 127
      %v7745 = vpop.permute.xlu0 %7744
      %7746 = vrot.lane.b32.xlu0 %v7735, 127
      %v7747 = vpop.permute.xlu0 %7746
      %v7748 = vsel %vm1066, %v7737, %v7739
      %v7749 = vsel %vm1066, %v7739, %v7741
      %v7750 = vsel %vm1066, %v7743, %v7745
      %v7751 = vsel %vm1066, %v7745, %v7747
      %v7760 = vunpack.c.l.b16 %v7632
      %v7761 = vunpack.c.h.b16 %v7632
      %v7762 = vunpack.c.l.b16 %v7633
      %v7763 = vunpack.c.l.b16 %v7634
      %v7764 = vunpack.c.h.b16 %v7634
      %v7765 = vunpack.c.l.b16 %v7635
      %v7766 = vunpack.c.l.b16 %v7636
      %v7767 = vunpack.c.h.b16 %v7636
      %v7768 = vunpack.c.l.b16 %v7637
      %v7769 = vunpack.c.l.b16 %v7638
      %v7770 = vunpack.c.h.b16 %v7638
      %v7771 = vunpack.c.l.b16 %v7639
      %v7772 = vpack.c.b16 %v7763, %v7760
      %v7773 = vpack.c.b16 %v7764, %v7761
      %v7774 = vpack.c.b16 %v7765, %v7762
      %v7775 = vpack.c.b16 %v7769, %v7766
      %v7776 = vpack.c.b16 %v7770, %v7767
      %v7777 = vpack.c.b16 %v7771, %v7768
      %7778 = vrot.lane.b32.xlu0 %v7772, 126
      %v7779 = vpop.permute.xlu0 %7778
      %7780 = vrot.lane.b32.xlu0 %v7773, 126
      %v7781 = vpop.permute.xlu0 %7780
      %7782 = vrot.lane.b32.xlu0 %v7774, 126
      %v7783 = vpop.permute.xlu0 %7782
      %7784 = vrot.lane.b32.xlu0 %v7775, 126
      %v7785 = vpop.permute.xlu0 %7784
      %7786 = vrot.lane.b32.xlu0 %v7776, 126
      %v7787 = vpop.permute.xlu0 %7786
      %7788 = vrot.lane.b32.xlu0 %v7777, 126
      %v7789 = vpop.permute.xlu0 %7788
      %v7790 = vsel %vm1235, %v7779, %v7781
      %v7791 = vsel %vm1235, %v7781, %v7783
      %v7792 = vsel %vm1235, %v7785, %v7787
      %v7793 = vsel %vm1235, %v7787, %v7789
      %v7802 = vunpack.c.l.b16 %v7640
      %v7803 = vunpack.c.h.b16 %v7640
      %v7804 = vunpack.c.l.b16 %v7641
      %v7805 = vunpack.c.l.b16 %v7642
      %v7806 = vunpack.c.h.b16 %v7642
      %v7807 = vunpack.c.l.b16 %v7643
      %v7808 = vunpack.c.l.b16 %v7644
      %v7809 = vunpack.c.h.b16 %v7644
      %v7810 = vunpack.c.l.b16 %v7645
      %v7811 = vunpack.c.l.b16 %v7646
      %v7812 = vunpack.c.h.b16 %v7646
      %v7813 = vunpack.c.l.b16 %v7647
      %v7814 = vpack.c.b16 %v7805, %v7802
      %v7815 = vpack.c.b16 %v7806, %v7803
      %v7816 = vpack.c.b16 %v7807, %v7804
      %v7817 = vpack.c.b16 %v7811, %v7808
      %v7818 = vpack.c.b16 %v7812, %v7809
      %v7819 = vpack.c.b16 %v7813, %v7810
      %7820 = vrot.lane.b32.xlu0 %v7814, 112
      %v7821 = vpop.permute.xlu0 %7820
      %7822 = vrot.lane.b32.xlu0 %v7815, 112
      %v7823 = vpop.permute.xlu0 %7822
      %7824 = vrot.lane.b32.xlu0 %v7816, 112
      %v7825 = vpop.permute.xlu0 %7824
      %7826 = vrot.lane.b32.xlu0 %v7817, 112
      %v7827 = vpop.permute.xlu0 %7826
      %7828 = vrot.lane.b32.xlu0 %v7818, 112
      %v7829 = vpop.permute.xlu0 %7828
      %7830 = vrot.lane.b32.xlu0 %v7819, 112
      %v7831 = vpop.permute.xlu0 %7830
      %v7832 = vsel %vm1404, %v7821, %v7823
      %v7833 = vsel %vm1404, %v7823, %v7825
      %v7834 = vsel %vm1404, %v7827, %v7829
      %v7835 = vsel %vm1404, %v7829, %v7831
      %v7840 = vunpack.c.l.b16 %v7648
      %v7841 = vunpack.c.h.b16 %v7648
      %v7842 = vunpack.c.l.b16 %v7649
      %v7843 = vunpack.c.h.b16 %v7649
      %v7844 = vunpack.c.l.b16 %v7650
      %v7845 = vunpack.c.h.b16 %v7650
      %v7846 = vunpack.c.l.b16 %v7651
      %v7847 = vunpack.c.h.b16 %v7651
      %v7848 = vpack.c.b16 %v7842, %v7840
      %v7849 = vpack.c.b16 %v7843, %v7841
      %v7850 = vpack.c.b16 %v7846, %v7844
      %v7851 = vpack.c.b16 %v7847, %v7845
      %7852 = vrot.lane.b32.xlu0 %v7848, 111
      %v7853 = vpop.permute.xlu0 %7852
      %7854 = vrot.lane.b32.xlu0 %v7849, 111
      %v7855 = vpop.permute.xlu0 %7854
      %7856 = vrot.lane.b32.xlu0 %v7850, 111
      %v7857 = vpop.permute.xlu0 %7856
      %7858 = vrot.lane.b32.xlu0 %v7851, 111
      %v7859 = vpop.permute.xlu0 %7858
      %v7860 = vsel %vm1469, %v7853, %v7855
      %v7861 = vsel %vm1469, %v7857, %v7859
      %v7870 = vunpack.c.l.b16 %v7660
      %v7871 = vunpack.c.h.b16 %v7660
      %v7872 = vunpack.c.l.b16 %v7661
      %v7873 = vunpack.c.l.b16 %v7662
      %v7874 = vunpack.c.h.b16 %v7662
      %v7875 = vunpack.c.l.b16 %v7663
      %v7876 = vunpack.c.l.b16 %v7664
      %v7877 = vunpack.c.h.b16 %v7664
      %v7878 = vunpack.c.l.b16 %v7665
      %v7879 = vunpack.c.l.b16 %v7666
      %v7880 = vunpack.c.h.b16 %v7666
      %v7881 = vunpack.c.l.b16 %v7667
      %v7882 = vpack.c.b16 %v7873, %v7870
      %v7883 = vpack.c.b16 %v7874, %v7871
      %v7884 = vpack.c.b16 %v7875, %v7872
      %v7885 = vpack.c.b16 %v7879, %v7876
      %v7886 = vpack.c.b16 %v7880, %v7877
      %v7887 = vpack.c.b16 %v7881, %v7878
      %7888 = vrot.lane.b32.xlu0 %v7882, 110
      %v7889 = vpop.permute.xlu0 %7888
      %7890 = vrot.lane.b32.xlu0 %v7883, 110
      %v7891 = vpop.permute.xlu0 %7890
      %7892 = vrot.lane.b32.xlu0 %v7884, 110
      %v7893 = vpop.permute.xlu0 %7892
      %7894 = vrot.lane.b32.xlu0 %v7885, 110
      %v7895 = vpop.permute.xlu0 %7894
      %7896 = vrot.lane.b32.xlu0 %v7886, 110
      %v7897 = vpop.permute.xlu0 %7896
      %7898 = vrot.lane.b32.xlu0 %v7887, 110
      %v7899 = vpop.permute.xlu0 %7898
      %v7900 = vsel %vm1638, %v7889, %v7891
      %v7901 = vsel %vm1638, %v7891, %v7893
      %v7902 = vsel %vm1638, %v7895, %v7897
      %v7903 = vsel %vm1638, %v7897, %v7899
      %v7912 = vunpack.c.l.b16 %v7668
      %v7913 = vunpack.c.h.b16 %v7668
      %v7914 = vunpack.c.l.b16 %v7669
      %v7915 = vunpack.c.l.b16 %v7670
      %v7916 = vunpack.c.h.b16 %v7670
      %v7917 = vunpack.c.l.b16 %v7671
      %v7918 = vunpack.c.l.b16 %v7672
      %v7919 = vunpack.c.h.b16 %v7672
      %v7920 = vunpack.c.l.b16 %v7673
      %v7921 = vunpack.c.l.b16 %v7674
      %v7922 = vunpack.c.h.b16 %v7674
      %v7923 = vunpack.c.l.b16 %v7675
      %v7924 = vpack.c.b16 %v7915, %v7912
      %v7925 = vpack.c.b16 %v7916, %v7913
      %v7926 = vpack.c.b16 %v7917, %v7914
      %v7927 = vpack.c.b16 %v7921, %v7918
      %v7928 = vpack.c.b16 %v7922, %v7919
      %v7929 = vpack.c.b16 %v7923, %v7920
      %7930 = vrot.lane.b32.xlu0 %v7924, 96
      %v7931 = vpop.permute.xlu0 %7930
      %7932 = vrot.lane.b32.xlu0 %v7925, 96
      %v7933 = vpop.permute.xlu0 %7932
      %7934 = vrot.lane.b32.xlu0 %v7926, 96
      %v7935 = vpop.permute.xlu0 %7934
      %7936 = vrot.lane.b32.xlu0 %v7927, 96
      %v7937 = vpop.permute.xlu0 %7936
      %7938 = vrot.lane.b32.xlu0 %v7928, 96
      %v7939 = vpop.permute.xlu0 %7938
      %7940 = vrot.lane.b32.xlu0 %v7929, 96
      %v7941 = vpop.permute.xlu0 %7940
      %v7942 = vsel %vm1807, %v7931, %v7933
      %v7943 = vsel %vm1807, %v7933, %v7935
      %v7944 = vsel %vm1807, %v7937, %v7939
      %v7945 = vsel %vm1807, %v7939, %v7941
      %v7954 = vunpack.c.l.b16 %v7652
      %v7955 = vunpack.c.h.b16 %v7652
      %v7956 = vunpack.c.l.b16 %v7653
      %v7957 = vunpack.c.l.b16 %v7654
      %v7958 = vunpack.c.h.b16 %v7654
      %v7959 = vunpack.c.l.b16 %v7655
      %v7960 = vunpack.c.l.b16 %v7656
      %v7961 = vunpack.c.h.b16 %v7656
      %v7962 = vunpack.c.l.b16 %v7657
      %v7963 = vunpack.c.l.b16 %v7658
      %v7964 = vunpack.c.h.b16 %v7658
      %v7965 = vunpack.c.l.b16 %v7659
      %v7966 = vpack.c.b16 %v7957, %v7954
      %v7967 = vpack.c.b16 %v7958, %v7955
      %v7968 = vpack.c.b16 %v7959, %v7956
      %v7969 = vpack.c.b16 %v7963, %v7960
      %v7970 = vpack.c.b16 %v7964, %v7961
      %v7971 = vpack.c.b16 %v7965, %v7962
      %7972 = vrot.lane.b32.xlu0 %v7966, 95
      %v7973 = vpop.permute.xlu0 %7972
      %7974 = vrot.lane.b32.xlu0 %v7967, 95
      %v7975 = vpop.permute.xlu0 %7974
      %7976 = vrot.lane.b32.xlu0 %v7968, 95
      %v7977 = vpop.permute.xlu0 %7976
      %7978 = vrot.lane.b32.xlu0 %v7969, 95
      %v7979 = vpop.permute.xlu0 %7978
      %7980 = vrot.lane.b32.xlu0 %v7970, 95
      %v7981 = vpop.permute.xlu0 %7980
      %7982 = vrot.lane.b32.xlu0 %v7971, 95
      %v7983 = vpop.permute.xlu0 %7982
      %v7984 = vsel %vm1872, %v7973, %v7975
      %v7985 = vsel %vm1872, %v7975, %v7977
      %v7986 = vsel %vm1872, %v7979, %v7981
      %v7987 = vsel %vm1872, %v7981, %v7983
      %v7996 = vunpack.c.l.b16 %v7676
      %v7997 = vunpack.c.h.b16 %v7676
      %v7998 = vunpack.c.l.b16 %v7677
      %v7999 = vunpack.c.l.b16 %v7678
      %v8000 = vunpack.c.h.b16 %v7678
      %v8001 = vunpack.c.l.b16 %v7679
      %v8002 = vunpack.c.l.b16 %v7680
      %v8003 = vunpack.c.h.b16 %v7680
      %v8004 = vunpack.c.l.b16 %v7681
      %v8005 = vunpack.c.l.b16 %v7682
      %v8006 = vunpack.c.h.b16 %v7682
      %v8007 = vunpack.c.l.b16 %v7683
      %v8008 = vpack.c.b16 %v7999, %v7996
      %v8009 = vpack.c.b16 %v8000, %v7997
      %v8010 = vpack.c.b16 %v8001, %v7998
      %v8011 = vpack.c.b16 %v8005, %v8002
      %v8012 = vpack.c.b16 %v8006, %v8003
      %v8013 = vpack.c.b16 %v8007, %v8004
      %8014 = vrot.lane.b32.xlu0 %v8008, 94
      %v8015 = vpop.permute.xlu0 %8014
      %8016 = vrot.lane.b32.xlu0 %v8009, 94
      %v8017 = vpop.permute.xlu0 %8016
      %8018 = vrot.lane.b32.xlu0 %v8010, 94
      %v8019 = vpop.permute.xlu0 %8018
      %8020 = vrot.lane.b32.xlu0 %v8011, 94
      %v8021 = vpop.permute.xlu0 %8020
      %8022 = vrot.lane.b32.xlu0 %v8012, 94
      %v8023 = vpop.permute.xlu0 %8022
      %8024 = vrot.lane.b32.xlu0 %v8013, 94
      %v8025 = vpop.permute.xlu0 %8024
      %v8026 = vsel %vm2041, %v8015, %v8017
      %v8027 = vsel %vm2041, %v8017, %v8019
      %v8028 = vsel %vm2041, %v8021, %v8023
      %v8029 = vsel %vm2041, %v8023, %v8025
      %s8030 = scalar_lea.vmem %s4, 240
      %v8031 = vld [vmem:[%s8030] sm:$0xff]
      %v8032 = vld [vmem:[%s8030 + $0x8] sm:$0xf]
      %v8033 = vld [vmem:[%s8030 + $0xc] sm:$0xff]
      %v8034 = vld [vmem:[%s8030 + $0x14] sm:$0xf]
      %v8035 = vld [vmem:[%s8030 + $0x18] sm:$0xff]
      %v8036 = vld [vmem:[%s8030 + $0x20] sm:$0xf]
      %v8037 = vld [vmem:[%s8030 + $0x24] sm:$0xff]
      %v8038 = vld [vmem:[%s8030 + $0x2c] sm:$0xf]
      %s8039 = scalar_lea.vmem %s5, 160
      %v8040 = vld [vmem:[%s8039] sm:$0xff]
      %v8041 = vld [vmem:[%s8039 + $0x8] sm:$0xff]
      %v8042 = vld [vmem:[%s8039 + $0x10] sm:$0xff]
      %v8043 = vld [vmem:[%s8039 + $0x18] sm:$0xff]
      %8045 = vset.pattern.permute.xlu0 0
      %8046 = vperm.xlu0 %8045, %v8040
      %v8047 = vpop.permute.xlu0 %8046
      %8050 = vset.pattern.permute.xlu0 0
      %8051 = vperm.xlu0 %8050, %v8041
      %v8052 = vpop.permute.xlu0 %8051
      %8055 = vset.pattern.permute.xlu0 0
      %8056 = vperm.xlu0 %8055, %v8042
      %v8057 = vpop.permute.xlu0 %8056
      %8060 = vset.pattern.permute.xlu0 0
      %8061 = vperm.xlu0 %8060, %v8043
      %v8062 = vpop.permute.xlu0 %8061
      %v8072 = vunpack.c.l.b16 %v8031
      %v8073 = vunpack.c.h.b16 %v8031
      %v8074 = vunpack.c.l.b16 %v8032
      %v8075 = vunpack.c.l.b16 %v8033
      %v8076 = vunpack.c.h.b16 %v8033
      %v8077 = vunpack.c.l.b16 %v8034
      %v8078 = vunpack.c.l.b16 %v8035
      %v8079 = vunpack.c.h.b16 %v8035
      %v8080 = vunpack.c.l.b16 %v8036
      %v8081 = vunpack.c.l.b16 %v8037
      %v8082 = vunpack.c.h.b16 %v8037
      %v8083 = vunpack.c.l.b16 %v8038
      %v8084 = vpack.c.b16 %v8075, %v8072
      %v8085 = vpack.c.b16 %v8076, %v8073
      %v8086 = vpack.c.b16 %v8077, %v8074
      %v8087 = vpack.c.b16 %v8081, %v8078
      %v8088 = vpack.c.b16 %v8082, %v8079
      %v8089 = vpack.c.b16 %v8083, %v8080
      %8094 = vrot.lane.b32.xlu0 %v7704, 17
      %v8095 = vpop.permute.xlu0 %8094
      %8096 = vrot.lane.b32.xlu0 %v7705, 17
      %v8097 = vpop.permute.xlu0 %8096
      %8098 = vrot.lane.b32.xlu0 %v7706, 17
      %v8099 = vpop.permute.xlu0 %8098
      %8100 = vrot.lane.b32.xlu0 %v7707, 17
      %v8101 = vpop.permute.xlu0 %8100
      %8102 = vrot.lane.b32.xlu0 %v7708, 17
      %v8103 = vpop.permute.xlu0 %8102
      %8104 = vrot.lane.b32.xlu0 %v7709, 17
      %v8105 = vpop.permute.xlu0 %8104
      %8106 = vrot.lane.b32.xlu0 %v7748, 17
      %v8107 = vpop.permute.xlu0 %8106
      %8108 = vrot.lane.b32.xlu0 %v7749, 17
      %v8109 = vpop.permute.xlu0 %8108
      %8110 = vrot.lane.b32.xlu0 %v7741, 17
      %v8111 = vpop.permute.xlu0 %8110
      %8112 = vrot.lane.b32.xlu0 %v7750, 17
      %v8113 = vpop.permute.xlu0 %8112
      %8114 = vrot.lane.b32.xlu0 %v7751, 17
      %v8115 = vpop.permute.xlu0 %8114
      %8116 = vrot.lane.b32.xlu0 %v7747, 17
      %v8117 = vpop.permute.xlu0 %8116
      %8118 = vrot.lane.b32.xlu0 %v7790, 17
      %v8119 = vpop.permute.xlu0 %8118
      %8120 = vrot.lane.b32.xlu0 %v7791, 17
      %v8121 = vpop.permute.xlu0 %8120
      %8122 = vrot.lane.b32.xlu0 %v7783, 17
      %v8123 = vpop.permute.xlu0 %8122
      %8124 = vrot.lane.b32.xlu0 %v7792, 17
      %v8125 = vpop.permute.xlu0 %8124
      %8126 = vrot.lane.b32.xlu0 %v7793, 17
      %v8127 = vpop.permute.xlu0 %8126
      %8128 = vrot.lane.b32.xlu0 %v7789, 17
      %v8129 = vpop.permute.xlu0 %8128
      %8130 = vrot.lane.b32.xlu0 %v7832, 17
      %v8131 = vpop.permute.xlu0 %8130
      %8132 = vrot.lane.b32.xlu0 %v7833, 17
      %v8133 = vpop.permute.xlu0 %8132
      %8134 = vrot.lane.b32.xlu0 %v7825, 17
      %v8135 = vpop.permute.xlu0 %8134
      %8136 = vrot.lane.b32.xlu0 %v7834, 17
      %v8137 = vpop.permute.xlu0 %8136
      %8138 = vrot.lane.b32.xlu0 %v7835, 17
      %v8139 = vpop.permute.xlu0 %8138
      %8140 = vrot.lane.b32.xlu0 %v7831, 17
      %v8141 = vpop.permute.xlu0 %8140
      %8142 = vrot.lane.b32.xlu0 %v7853, 17
      %v8143 = vpop.permute.xlu0 %8142
      %8144 = vrot.lane.b32.xlu0 %v7860, 17
      %v8145 = vpop.permute.xlu0 %8144
      %8146 = vrot.lane.b32.xlu0 %v7855, 17
      %v8147 = vpop.permute.xlu0 %8146
      %8148 = vrot.lane.b32.xlu0 %v7857, 17
      %v8149 = vpop.permute.xlu0 %8148
      %8150 = vrot.lane.b32.xlu0 %v7861, 17
      %v8151 = vpop.permute.xlu0 %8150
      %8152 = vrot.lane.b32.xlu0 %v7859, 17
      %v8153 = vpop.permute.xlu0 %8152
      %8154 = vrot.lane.b32.xlu0 %v7889, 17
      %v8155 = vpop.permute.xlu0 %8154
      %8156 = vrot.lane.b32.xlu0 %v7900, 17
      %v8157 = vpop.permute.xlu0 %8156
      %8158 = vrot.lane.b32.xlu0 %v7901, 17
      %v8159 = vpop.permute.xlu0 %8158
      %8160 = vrot.lane.b32.xlu0 %v7895, 17
      %v8161 = vpop.permute.xlu0 %8160
      %8162 = vrot.lane.b32.xlu0 %v7902, 17
      %v8163 = vpop.permute.xlu0 %8162
      %8164 = vrot.lane.b32.xlu0 %v7903, 17
      %v8165 = vpop.permute.xlu0 %8164
      %8166 = vrot.lane.b32.xlu0 %v7931, 17
      %v8167 = vpop.permute.xlu0 %8166
      %8168 = vrot.lane.b32.xlu0 %v7942, 17
      %v8169 = vpop.permute.xlu0 %8168
      %8170 = vrot.lane.b32.xlu0 %v7943, 17
      %v8171 = vpop.permute.xlu0 %8170
      %8172 = vrot.lane.b32.xlu0 %v7937, 17
      %v8173 = vpop.permute.xlu0 %8172
      %8174 = vrot.lane.b32.xlu0 %v7944, 17
      %v8175 = vpop.permute.xlu0 %8174
      %8176 = vrot.lane.b32.xlu0 %v7945, 17
      %v8177 = vpop.permute.xlu0 %8176
      %8178 = vrot.lane.b32.xlu0 %v7973, 17
      %v8179 = vpop.permute.xlu0 %8178
      %8180 = vrot.lane.b32.xlu0 %v7984, 17
      %v8181 = vpop.permute.xlu0 %8180
      %8182 = vrot.lane.b32.xlu0 %v7985, 17
      %v8183 = vpop.permute.xlu0 %8182
      %8184 = vrot.lane.b32.xlu0 %v7979, 17
      %v8185 = vpop.permute.xlu0 %8184
      %8186 = vrot.lane.b32.xlu0 %v7986, 17
      %v8187 = vpop.permute.xlu0 %8186
      %8188 = vrot.lane.b32.xlu0 %v7987, 17
      %v8189 = vpop.permute.xlu0 %8188
      %8190 = vrot.lane.b32.xlu0 %v8015, 17
      %v8191 = vpop.permute.xlu0 %8190
      %8192 = vrot.lane.b32.xlu0 %v8026, 17
      %v8193 = vpop.permute.xlu0 %8192
      %8194 = vrot.lane.b32.xlu0 %v8027, 17
      %v8195 = vpop.permute.xlu0 %8194
      %8196 = vrot.lane.b32.xlu0 %v8021, 17
      %v8197 = vpop.permute.xlu0 %8196
      %8198 = vrot.lane.b32.xlu0 %v8028, 17
      %v8199 = vpop.permute.xlu0 %8198
      %8200 = vrot.lane.b32.xlu0 %v8029, 17
      %v8201 = vpop.permute.xlu0 %8200
      %v8202 = vsel %vm3691, %v8095, %v8097
      %v8203 = vsel %vm3691, %v8097, %v8099
      %v8204 = vsel %vm3691, %v8101, %v8103
      %v8205 = vsel %vm3691, %v8103, %v8105
      %v8206 = vsel %vm3691, %v8107, %v8109
      %v8207 = vsel %vm3691, %v8109, %v8111
      %v8208 = vsel %vm3691, %v8113, %v8115
      %v8209 = vsel %vm3691, %v8115, %v8117
      %v8210 = vsel %vm3691, %v8119, %v8121
      %v8211 = vsel %vm3691, %v8121, %v8123
      %v8212 = vsel %vm3691, %v8125, %v8127
      %v8213 = vsel %vm3691, %v8127, %v8129
      %v8214 = vsel %vm3691, %v8131, %v8133
      %v8215 = vsel %vm3691, %v8133, %v8135
      %v8216 = vsel %vm3691, %v8137, %v8139
      %v8217 = vsel %vm3691, %v8139, %v8141
      %v8218 = vsel %vm3691, %v8143, %v8145
      %v8219 = vsel %vm3691, %v8145, %v8147
      %v8220 = vsel %vm3691, %v8149, %v8151
      %v8221 = vsel %vm3691, %v8151, %v8153
      %v8222 = vsel %vm3691, %v8155, %v8157
      %v8223 = vsel %vm3691, %v8157, %v8159
      %v8224 = vsel %vm3691, %v8161, %v8163
      %v8225 = vsel %vm3691, %v8163, %v8165
      %v8226 = vsel %vm3691, %v8167, %v8169
      %v8227 = vsel %vm3691, %v8169, %v8171
      %v8228 = vsel %vm3691, %v8173, %v8175
      %v8229 = vsel %vm3691, %v8175, %v8177
      %v8230 = vsel %vm3691, %v8179, %v8181
      %v8231 = vsel %vm3691, %v8181, %v8183
      %v8232 = vsel %vm3691, %v8185, %v8187
      %v8233 = vsel %vm3691, %v8187, %v8189
      %v8234 = vsel %vm3691, %v8191, %v8193
      %v8235 = vsel %vm3691, %v8193, %v8195
      %v8236 = vsel %vm3691, %v8197, %v8199
      %v8237 = vsel %vm3691, %v8199, %v8201
      %v8275 = vsel %vm4303, %v8086, 0
      %v8278 = vsel %vm4303, %v8089, 0
      %8280 = vmatpush.bf16.msra.mxu0 %v8216
      %8281 = vmatpush.bf16.msra.mxu0 %v8214
      %8282 = vmatpush.bf16.msra.mxu0 %v8212
      %8283 = vmatpush.bf16.msra.mxu0 %v8210
      %8284 = vmatpush.bf16.msra.mxu0 %v8208
      %8285 = vmatpush.bf16.msra.mxu0 %v8206
      %8286 = vmatpush.bf16.msra.mxu0 %v8204
      %8287 = vmatpush.bf16.msra.mxu0 %v8202
      %8288 = vmatmul.bf16.gmra.mxu0 %v8084
      %v8289 = vpop.f32.mrf.mxu0
      %v8290 = vadd.f32 %v8047, %v8289
      %v8291 = vpop.f32.mrf.mxu0
      %v8292 = vadd.f32 %v8052, %v8291
      %8293 = vmatmul.bf16.gmra.mxu0 %v8087
      %v8294 = vpop.f32.mrf.mxu0
      %v8295 = vadd.f32 %v8057, %v8294
      %v8296 = vpop.f32.mrf.mxu0
      %v8297 = vadd.f32 %v8062, %v8296
      %8298 = vdwg.mxu0
      %8299 = vmatpush.bf16.msra.mxu0 %v8232
      %8300 = vmatpush.bf16.msra.mxu0 %v8230
      %8301 = vmatpush.bf16.msra.mxu0 %v8228
      %8302 = vmatpush.bf16.msra.mxu0 %v8226
      %8303 = vmatpush.bf16.msra.mxu0 %v8224
      %8304 = vmatpush.bf16.msra.mxu0 %v8222
      %8305 = vmatpush.bf16.msra.mxu0 %v8220
      %8306 = vmatpush.bf16.msra.mxu0 %v8218
      %8307 = vmatmul.bf16.gmra.mxu0 %v8085
      %v8308 = vpop.f32.mrf.mxu0
      %v8309 = vadd.f32 %v8290, %v8308
      %v8310 = vpop.f32.mrf.mxu0
      %v8311 = vadd.f32 %v8292, %v8310
      %8312 = vmatmul.bf16.gmra.mxu0 %v8088
      %v8313 = vpop.f32.mrf.mxu0
      %v8314 = vadd.f32 %v8295, %v8313
      %v8315 = vpop.f32.mrf.mxu0
      %v8316 = vadd.f32 %v8297, %v8315
      %8317 = vdwg.mxu0
      %8318 = vmatpush.bf16.msra.mxu0 0
      %8319 = vmatpush.bf16.msra.mxu0 0
      %8320 = vmatpush.bf16.msra.mxu0 0
      %8321 = vmatpush.bf16.msra.mxu0 0
      %8322 = vmatpush.bf16.msra.mxu0 0
      %8323 = vmatpush.bf16.msra.mxu0 0
      %8324 = vmatpush.bf16.msra.mxu0 %v8236
      %8325 = vmatpush.bf16.msra.mxu0 %v8234
      %8326 = vmatmul.bf16.gmra.mxu0 %v8275
      %v8327 = vpop.f32.mrf.mxu0
      %v8328 = vadd.f32 %v8309, %v8327
      %v8329 = vpop.f32.mrf.mxu0
      %v8330 = vadd.f32 %v8311, %v8329
      %8331 = vmatmul.bf16.gmra.mxu0 %v8278
      %v8332 = vpop.f32.mrf.mxu0
      %v8333 = vadd.f32 %v8314, %v8332
      %v8334 = vpop.f32.mrf.mxu0
      %v8335 = vadd.f32 %v8316, %v8334
      %8336 = vdwg.mxu0
      %8337 = vmatpush.bf16.msra.mxu0 %v8217
      %8338 = vmatpush.bf16.msra.mxu0 %v8215
      %8339 = vmatpush.bf16.msra.mxu0 %v8213
      %8340 = vmatpush.bf16.msra.mxu0 %v8211
      %8341 = vmatpush.bf16.msra.mxu0 %v8209
      %8342 = vmatpush.bf16.msra.mxu0 %v8207
      %8343 = vmatpush.bf16.msra.mxu0 %v8205
      %8344 = vmatpush.bf16.msra.mxu0 %v8203
      %8345 = vmatmul.bf16.gmra.mxu0 %v8084
      %v8346 = vpop.f32.mrf.mxu0
      %v8347 = vadd.f32 %v8047, %v8346
      %v8348 = vpop.f32.mrf.mxu0
      %v8349 = vadd.f32 %v8052, %v8348
      %8350 = vmatmul.bf16.gmra.mxu0 %v8087
      %v8351 = vpop.f32.mrf.mxu0
      %v8352 = vadd.f32 %v8057, %v8351
      %v8353 = vpop.f32.mrf.mxu0
      %v8354 = vadd.f32 %v8062, %v8353
      %8355 = vdwg.mxu0
      %8356 = vmatpush.bf16.msra.mxu0 %v8233
      %8357 = vmatpush.bf16.msra.mxu0 %v8231
      %8358 = vmatpush.bf16.msra.mxu0 %v8229
      %8359 = vmatpush.bf16.msra.mxu0 %v8227
      %8360 = vmatpush.bf16.msra.mxu0 %v8225
      %8361 = vmatpush.bf16.msra.mxu0 %v8223
      %8362 = vmatpush.bf16.msra.mxu0 %v8221
      %8363 = vmatpush.bf16.msra.mxu0 %v8219
      %8364 = vmatmul.bf16.gmra.mxu0 %v8085
      %v8365 = vpop.f32.mrf.mxu0
      %v8366 = vadd.f32 %v8347, %v8365
      %v8367 = vpop.f32.mrf.mxu0
      %v8368 = vadd.f32 %v8349, %v8367
      %8369 = vmatmul.bf16.gmra.mxu0 %v8088
      %v8370 = vpop.f32.mrf.mxu0
      %v8371 = vadd.f32 %v8352, %v8370
      %v8372 = vpop.f32.mrf.mxu0
      %v8373 = vadd.f32 %v8354, %v8372
      %8374 = vdwg.mxu0
      %8375 = vmatpush.bf16.msra.mxu0 0
      %8376 = vmatpush.bf16.msra.mxu0 0
      %8377 = vmatpush.bf16.msra.mxu0 0
      %8378 = vmatpush.bf16.msra.mxu0 0
      %8379 = vmatpush.bf16.msra.mxu0 0
      %8380 = vmatpush.bf16.msra.mxu0 0
      %8381 = vmatpush.bf16.msra.mxu0 %v8237
      %8382 = vmatpush.bf16.msra.mxu0 %v8235
      %8383 = vmatmul.bf16.gmra.mxu0 %v8275
      %v8384 = vpop.f32.mrf.mxu0
      %v8385 = vadd.f32 %v8366, %v8384
      %v8386 = vpop.f32.mrf.mxu0
      %v8387 = vadd.f32 %v8368, %v8386
      %8388 = vmatmul.bf16.gmra.mxu0 %v8278
      %v8389 = vpop.f32.mrf.mxu0
      %v8390 = vadd.f32 %v8371, %v8389
      %v8391 = vpop.f32.mrf.mxu0
      %v8392 = vadd.f32 %v8373, %v8391
      %8393 = vdwg.mxu0
      %v8394 = vadd.f32 %v6806, %v8328
      %v8395 = vadd.f32 %v6807, %v8385
      %v8396 = vadd.f32 %v6808, %v8330
      %v8397 = vadd.f32 %v6809, %v8387
      %v8398 = vadd.f32 %v6810, %v8333
      %v8399 = vadd.f32 %v6811, %v8390
      %v8400 = vadd.f32 %v6812, %v8335
      %v8401 = vadd.f32 %v6813, %v8392
      %v8402 = vpack.c.bf16 %v8395, %v8394
      %v8403 = vpack.c.bf16 %v8397, %v8396
      %v8404 = vpack.c.bf16 %v8399, %v8398
      %v8405 = vpack.c.bf16 %v8401, %v8400
      %8406 = vst [vmem:[#allocation2 + $0x4] sm:$0xff] %v8402
      %8407 = vst [vmem:[#allocation2 + $0x14] sm:$0xff] %v8403
      %8408 = vst [vmem:[#allocation2 + $0x24] sm:$0xff] %v8404
      %8409 = vst [vmem:[#allocation2 + $0x34] sm:$0xff] %v8405
      %v8410 = vld [vmem:[#allocation2] sm:$0xff]
      %v8411 = vld [vmem:[#allocation2 + $0x8] sm:$0xf]
      %v8412 = vld [vmem:[#allocation2 + $0x10] sm:$0xff]
      %v8413 = vld [vmem:[#allocation2 + $0x18] sm:$0xf]
      %v8414 = vld [vmem:[#allocation2 + $0x20] sm:$0xff]
      %v8415 = vld [vmem:[#allocation2 + $0x28] sm:$0xf]
      %v8416 = vld [vmem:[#allocation2 + $0x30] sm:$0xff]
      %v8417 = vld [vmem:[#allocation2 + $0x38] sm:$0xf]
      %v8418 = vsel %vm3553, %v8410, 0
      %v8419 = vsel %vm3560, %v8411, 0
      %v8420 = vsel %vm3553, %v8412, 0
      %v8421 = vsel %vm3560, %v8413, 0
      %v8422 = vsel %vm3553, %v8414, 0
      %v8423 = vsel %vm3560, %v8415, 0
      %v8424 = vsel %vm3553, %v8416, 0
      %v8425 = vsel %vm3560, %v8417, 0
      %v8426 = vsel %vm3580, %v8410, 0
      %v8427 = vsel %vm3587, %v8411, 0
      %v8428 = vsel %vm3580, %v8412, 0
      %v8429 = vsel %vm3587, %v8413, 0
      %v8430 = vsel %vm3580, %v8414, 0
      %v8431 = vsel %vm3587, %v8415, 0
      %v8432 = vsel %vm3580, %v8416, 0
      %v8433 = vsel %vm3587, %v8417, 0
      %v8434 = vsel %vm3606, %v8410, 0
      %v8435 = vsel %vm3613, %v8411, 0
      %v8436 = vsel %vm3606, %v8412, 0
      %v8437 = vsel %vm3613, %v8413, 0
      %v8438 = vsel %vm3606, %v8414, 0
      %v8439 = vsel %vm3613, %v8415, 0
      %v8440 = vsel %vm3606, %v8416, 0
      %v8441 = vsel %vm3613, %v8417, 0
      %v8442 = vld [vmem:[#allocation2 + $0x4] sm:$0xff]
      %v8443 = vld [vmem:[#allocation2 + $0x14] sm:$0xff]
      %v8444 = vld [vmem:[#allocation2 + $0x24] sm:$0xff]
      %v8445 = vld [vmem:[#allocation2 + $0x34] sm:$0xff]
      %v8446 = vld [vmem:[#allocation2 + $0x4] sm:$0xff]
      %v8447 = vld [vmem:[#allocation2 + $0xc] sm:$0xf]
      %v8448 = vld [vmem:[#allocation2 + $0x14] sm:$0xff]
      %v8449 = vld [vmem:[#allocation2 + $0x1c] sm:$0xf]
      %v8450 = vld [vmem:[#allocation2 + $0x24] sm:$0xff]
      %v8451 = vld [vmem:[#allocation2 + $0x2c] sm:$0xf]
      %v8452 = vld [vmem:[#allocation2 + $0x34] sm:$0xff]
      %v8453 = vld [vmem:[#allocation2 + $0x3c] sm:$0xf]
      %v8454 = vsel %vm3645, %v8446, 0
      %v8455 = vsel %vm3652, %v8447, 0
      %v8456 = vsel %vm3645, %v8448, 0
      %v8457 = vsel %vm3652, %v8449, 0
      %v8458 = vsel %vm3645, %v8450, 0
      %v8459 = vsel %vm3652, %v8451, 0
      %v8460 = vsel %vm3645, %v8452, 0
      %v8461 = vsel %vm3652, %v8453, 0
      %v8462 = vsel %vm3672, %v8446, 0
      %v8463 = vsel %vm3679, %v8447, 0
      %v8464 = vsel %vm3672, %v8448, 0
      %v8465 = vsel %vm3679, %v8449, 0
      %v8466 = vsel %vm3672, %v8450, 0
      %v8467 = vsel %vm3679, %v8451, 0
      %v8468 = vsel %vm3672, %v8452, 0
      %v8469 = vsel %vm3679, %v8453, 0
      %v8470 = vsel %vm3699, %v8446, 0
      %v8471 = vsel %vm3706, %v8447, 0
      %v8472 = vsel %vm3699, %v8448, 0
      %v8473 = vsel %vm3706, %v8449, 0
      %v8474 = vsel %vm3699, %v8450, 0
      %v8475 = vsel %vm3706, %v8451, 0
      %v8476 = vsel %vm3699, %v8452, 0
      %v8477 = vsel %vm3706, %v8453, 0
      %v8486 = vunpack.c.l.b16 %v8418
      %v8487 = vunpack.c.h.b16 %v8418
      %v8488 = vunpack.c.l.b16 %v8419
      %v8489 = vunpack.c.l.b16 %v8420
      %v8490 = vunpack.c.h.b16 %v8420
      %v8491 = vunpack.c.l.b16 %v8421
      %v8492 = vunpack.c.l.b16 %v8422
      %v8493 = vunpack.c.h.b16 %v8422
      %v8494 = vunpack.c.l.b16 %v8423
      %v8495 = vunpack.c.l.b16 %v8424
      %v8496 = vunpack.c.h.b16 %v8424
      %v8497 = vunpack.c.l.b16 %v8425
      %v8498 = vpack.c.b16 %v8489, %v8486
      %v8499 = vpack.c.b16 %v8490, %v8487
      %v8500 = vpack.c.b16 %v8491, %v8488
      %v8501 = vpack.c.b16 %v8495, %v8492
      %v8502 = vpack.c.b16 %v8496, %v8493
      %v8503 = vpack.c.b16 %v8497, %v8494
      %v8512 = vunpack.c.l.b16 %v8410
      %v8513 = vunpack.c.h.b16 %v8410
      %v8514 = vunpack.c.l.b16 %v8411
      %v8515 = vunpack.c.l.b16 %v8412
      %v8516 = vunpack.c.h.b16 %v8412
      %v8517 = vunpack.c.l.b16 %v8413
      %v8518 = vunpack.c.l.b16 %v8414
      %v8519 = vunpack.c.h.b16 %v8414
      %v8520 = vunpack.c.l.b16 %v8415
      %v8521 = vunpack.c.l.b16 %v8416
      %v8522 = vunpack.c.h.b16 %v8416
      %v8523 = vunpack.c.l.b16 %v8417
      %v8524 = vpack.c.b16 %v8515, %v8512
      %v8525 = vpack.c.b16 %v8516, %v8513
      %v8526 = vpack.c.b16 %v8517, %v8514
      %v8527 = vpack.c.b16 %v8521, %v8518
      %v8528 = vpack.c.b16 %v8522, %v8519
      %v8529 = vpack.c.b16 %v8523, %v8520
      %8530 = vrot.lane.b32.xlu0 %v8524, 127
      %v8531 = vpop.permute.xlu0 %8530
      %8532 = vrot.lane.b32.xlu0 %v8525, 127
      %v8533 = vpop.permute.xlu0 %8532
      %8534 = vrot.lane.b32.xlu0 %v8526, 127
      %v8535 = vpop.permute.xlu0 %8534
      %8536 = vrot.lane.b32.xlu0 %v8527, 127
      %v8537 = vpop.permute.xlu0 %8536
      %8538 = vrot.lane.b32.xlu0 %v8528, 127
      %v8539 = vpop.permute.xlu0 %8538
      %8540 = vrot.lane.b32.xlu0 %v8529, 127
      %v8541 = vpop.permute.xlu0 %8540
      %v8542 = vsel %vm1066, %v8531, %v8533
      %v8543 = vsel %vm1066, %v8533, %v8535
      %v8544 = vsel %vm1066, %v8537, %v8539
      %v8545 = vsel %vm1066, %v8539, %v8541
      %v8554 = vunpack.c.l.b16 %v8426
      %v8555 = vunpack.c.h.b16 %v8426
      %v8556 = vunpack.c.l.b16 %v8427
      %v8557 = vunpack.c.l.b16 %v8428
      %v8558 = vunpack.c.h.b16 %v8428
      %v8559 = vunpack.c.l.b16 %v8429
      %v8560 = vunpack.c.l.b16 %v8430
      %v8561 = vunpack.c.h.b16 %v8430
      %v8562 = vunpack.c.l.b16 %v8431
      %v8563 = vunpack.c.l.b16 %v8432
      %v8564 = vunpack.c.h.b16 %v8432
      %v8565 = vunpack.c.l.b16 %v8433
      %v8566 = vpack.c.b16 %v8557, %v8554
      %v8567 = vpack.c.b16 %v8558, %v8555
      %v8568 = vpack.c.b16 %v8559, %v8556
      %v8569 = vpack.c.b16 %v8563, %v8560
      %v8570 = vpack.c.b16 %v8564, %v8561
      %v8571 = vpack.c.b16 %v8565, %v8562
      %8572 = vrot.lane.b32.xlu0 %v8566, 126
      %v8573 = vpop.permute.xlu0 %8572
      %8574 = vrot.lane.b32.xlu0 %v8567, 126
      %v8575 = vpop.permute.xlu0 %8574
      %8576 = vrot.lane.b32.xlu0 %v8568, 126
      %v8577 = vpop.permute.xlu0 %8576
      %8578 = vrot.lane.b32.xlu0 %v8569, 126
      %v8579 = vpop.permute.xlu0 %8578
      %8580 = vrot.lane.b32.xlu0 %v8570, 126
      %v8581 = vpop.permute.xlu0 %8580
      %8582 = vrot.lane.b32.xlu0 %v8571, 126
      %v8583 = vpop.permute.xlu0 %8582
      %v8584 = vsel %vm1235, %v8573, %v8575
      %v8585 = vsel %vm1235, %v8575, %v8577
      %v8586 = vsel %vm1235, %v8579, %v8581
      %v8587 = vsel %vm1235, %v8581, %v8583
      %v8596 = vunpack.c.l.b16 %v8434
      %v8597 = vunpack.c.h.b16 %v8434
      %v8598 = vunpack.c.l.b16 %v8435
      %v8599 = vunpack.c.l.b16 %v8436
      %v8600 = vunpack.c.h.b16 %v8436
      %v8601 = vunpack.c.l.b16 %v8437
      %v8602 = vunpack.c.l.b16 %v8438
      %v8603 = vunpack.c.h.b16 %v8438
      %v8604 = vunpack.c.l.b16 %v8439
      %v8605 = vunpack.c.l.b16 %v8440
      %v8606 = vunpack.c.h.b16 %v8440
      %v8607 = vunpack.c.l.b16 %v8441
      %v8608 = vpack.c.b16 %v8599, %v8596
      %v8609 = vpack.c.b16 %v8600, %v8597
      %v8610 = vpack.c.b16 %v8601, %v8598
      %v8611 = vpack.c.b16 %v8605, %v8602
      %v8612 = vpack.c.b16 %v8606, %v8603
      %v8613 = vpack.c.b16 %v8607, %v8604
      %8614 = vrot.lane.b32.xlu0 %v8608, 112
      %v8615 = vpop.permute.xlu0 %8614
      %8616 = vrot.lane.b32.xlu0 %v8609, 112
      %v8617 = vpop.permute.xlu0 %8616
      %8618 = vrot.lane.b32.xlu0 %v8610, 112
      %v8619 = vpop.permute.xlu0 %8618
      %8620 = vrot.lane.b32.xlu0 %v8611, 112
      %v8621 = vpop.permute.xlu0 %8620
      %8622 = vrot.lane.b32.xlu0 %v8612, 112
      %v8623 = vpop.permute.xlu0 %8622
      %8624 = vrot.lane.b32.xlu0 %v8613, 112
      %v8625 = vpop.permute.xlu0 %8624
      %v8626 = vsel %vm1404, %v8615, %v8617
      %v8627 = vsel %vm1404, %v8617, %v8619
      %v8628 = vsel %vm1404, %v8621, %v8623
      %v8629 = vsel %vm1404, %v8623, %v8625
      %v8634 = vunpack.c.l.b16 %v8442
      %v8635 = vunpack.c.h.b16 %v8442
      %v8636 = vunpack.c.l.b16 %v8443
      %v8637 = vunpack.c.h.b16 %v8443
      %v8638 = vunpack.c.l.b16 %v8444
      %v8639 = vunpack.c.h.b16 %v8444
      %v8640 = vunpack.c.l.b16 %v8445
      %v8641 = vunpack.c.h.b16 %v8445
      %v8642 = vpack.c.b16 %v8636, %v8634
      %v8643 = vpack.c.b16 %v8637, %v8635
      %v8644 = vpack.c.b16 %v8640, %v8638
      %v8645 = vpack.c.b16 %v8641, %v8639
      %8646 = vrot.lane.b32.xlu0 %v8642, 111
      %v8647 = vpop.permute.xlu0 %8646
      %8648 = vrot.lane.b32.xlu0 %v8643, 111
      %v8649 = vpop.permute.xlu0 %8648
      %8650 = vrot.lane.b32.xlu0 %v8644, 111
      %v8651 = vpop.permute.xlu0 %8650
      %8652 = vrot.lane.b32.xlu0 %v8645, 111
      %v8653 = vpop.permute.xlu0 %8652
      %v8654 = vsel %vm1469, %v8647, %v8649
      %v8655 = vsel %vm1469, %v8651, %v8653
      %v8664 = vunpack.c.l.b16 %v8454
      %v8665 = vunpack.c.h.b16 %v8454
      %v8666 = vunpack.c.l.b16 %v8455
      %v8667 = vunpack.c.l.b16 %v8456
      %v8668 = vunpack.c.h.b16 %v8456
      %v8669 = vunpack.c.l.b16 %v8457
      %v8670 = vunpack.c.l.b16 %v8458
      %v8671 = vunpack.c.h.b16 %v8458
      %v8672 = vunpack.c.l.b16 %v8459
      %v8673 = vunpack.c.l.b16 %v8460
      %v8674 = vunpack.c.h.b16 %v8460
      %v8675 = vunpack.c.l.b16 %v8461
      %v8676 = vpack.c.b16 %v8667, %v8664
      %v8677 = vpack.c.b16 %v8668, %v8665
      %v8678 = vpack.c.b16 %v8669, %v8666
      %v8679 = vpack.c.b16 %v8673, %v8670
      %v8680 = vpack.c.b16 %v8674, %v8671
      %v8681 = vpack.c.b16 %v8675, %v8672
      %8682 = vrot.lane.b32.xlu0 %v8676, 110
      %v8683 = vpop.permute.xlu0 %8682
      %8684 = vrot.lane.b32.xlu0 %v8677, 110
      %v8685 = vpop.permute.xlu0 %8684
      %8686 = vrot.lane.b32.xlu0 %v8678, 110
      %v8687 = vpop.permute.xlu0 %8686
      %8688 = vrot.lane.b32.xlu0 %v8679, 110
      %v8689 = vpop.permute.xlu0 %8688
      %8690 = vrot.lane.b32.xlu0 %v8680, 110
      %v8691 = vpop.permute.xlu0 %8690
      %8692 = vrot.lane.b32.xlu0 %v8681, 110
      %v8693 = vpop.permute.xlu0 %8692
      %v8694 = vsel %vm1638, %v8683, %v8685
      %v8695 = vsel %vm1638, %v8685, %v8687
      %v8696 = vsel %vm1638, %v8689, %v8691
      %v8697 = vsel %vm1638, %v8691, %v8693
      %v8706 = vunpack.c.l.b16 %v8462
      %v8707 = vunpack.c.h.b16 %v8462
      %v8708 = vunpack.c.l.b16 %v8463
      %v8709 = vunpack.c.l.b16 %v8464
      %v8710 = vunpack.c.h.b16 %v8464
      %v8711 = vunpack.c.l.b16 %v8465
      %v8712 = vunpack.c.l.b16 %v8466
      %v8713 = vunpack.c.h.b16 %v8466
      %v8714 = vunpack.c.l.b16 %v8467
      %v8715 = vunpack.c.l.b16 %v8468
      %v8716 = vunpack.c.h.b16 %v8468
      %v8717 = vunpack.c.l.b16 %v8469
      %v8718 = vpack.c.b16 %v8709, %v8706
      %v8719 = vpack.c.b16 %v8710, %v8707
      %v8720 = vpack.c.b16 %v8711, %v8708
      %v8721 = vpack.c.b16 %v8715, %v8712
      %v8722 = vpack.c.b16 %v8716, %v8713
      %v8723 = vpack.c.b16 %v8717, %v8714
      %8724 = vrot.lane.b32.xlu0 %v8718, 96
      %v8725 = vpop.permute.xlu0 %8724
      %8726 = vrot.lane.b32.xlu0 %v8719, 96
      %v8727 = vpop.permute.xlu0 %8726
      %8728 = vrot.lane.b32.xlu0 %v8720, 96
      %v8729 = vpop.permute.xlu0 %8728
      %8730 = vrot.lane.b32.xlu0 %v8721, 96
      %v8731 = vpop.permute.xlu0 %8730
      %8732 = vrot.lane.b32.xlu0 %v8722, 96
      %v8733 = vpop.permute.xlu0 %8732
      %8734 = vrot.lane.b32.xlu0 %v8723, 96
      %v8735 = vpop.permute.xlu0 %8734
      %v8736 = vsel %vm1807, %v8725, %v8727
      %v8737 = vsel %vm1807, %v8727, %v8729
      %v8738 = vsel %vm1807, %v8731, %v8733
      %v8739 = vsel %vm1807, %v8733, %v8735
      %v8748 = vunpack.c.l.b16 %v8446
      %v8749 = vunpack.c.h.b16 %v8446
      %v8750 = vunpack.c.l.b16 %v8447
      %v8751 = vunpack.c.l.b16 %v8448
      %v8752 = vunpack.c.h.b16 %v8448
      %v8753 = vunpack.c.l.b16 %v8449
      %v8754 = vunpack.c.l.b16 %v8450
      %v8755 = vunpack.c.h.b16 %v8450
      %v8756 = vunpack.c.l.b16 %v8451
      %v8757 = vunpack.c.l.b16 %v8452
      %v8758 = vunpack.c.h.b16 %v8452
      %v8759 = vunpack.c.l.b16 %v8453
      %v8760 = vpack.c.b16 %v8751, %v8748
      %v8761 = vpack.c.b16 %v8752, %v8749
      %v8762 = vpack.c.b16 %v8753, %v8750
      %v8763 = vpack.c.b16 %v8757, %v8754
      %v8764 = vpack.c.b16 %v8758, %v8755
      %v8765 = vpack.c.b16 %v8759, %v8756
      %8766 = vrot.lane.b32.xlu0 %v8760, 95
      %v8767 = vpop.permute.xlu0 %8766
      %8768 = vrot.lane.b32.xlu0 %v8761, 95
      %v8769 = vpop.permute.xlu0 %8768
      %8770 = vrot.lane.b32.xlu0 %v8762, 95
      %v8771 = vpop.permute.xlu0 %8770
      %8772 = vrot.lane.b32.xlu0 %v8763, 95
      %v8773 = vpop.permute.xlu0 %8772
      %8774 = vrot.lane.b32.xlu0 %v8764, 95
      %v8775 = vpop.permute.xlu0 %8774
      %8776 = vrot.lane.b32.xlu0 %v8765, 95
      %v8777 = vpop.permute.xlu0 %8776
      %v8778 = vsel %vm1872, %v8767, %v8769
      %v8779 = vsel %vm1872, %v8769, %v8771
      %v8780 = vsel %vm1872, %v8773, %v8775
      %v8781 = vsel %vm1872, %v8775, %v8777
      %v8790 = vunpack.c.l.b16 %v8470
      %v8791 = vunpack.c.h.b16 %v8470
      %v8792 = vunpack.c.l.b16 %v8471
      %v8793 = vunpack.c.l.b16 %v8472
      %v8794 = vunpack.c.h.b16 %v8472
      %v8795 = vunpack.c.l.b16 %v8473
      %v8796 = vunpack.c.l.b16 %v8474
      %v8797 = vunpack.c.h.b16 %v8474
      %v8798 = vunpack.c.l.b16 %v8475
      %v8799 = vunpack.c.l.b16 %v8476
      %v8800 = vunpack.c.h.b16 %v8476
      %v8801 = vunpack.c.l.b16 %v8477
      %v8802 = vpack.c.b16 %v8793, %v8790
      %v8803 = vpack.c.b16 %v8794, %v8791
      %v8804 = vpack.c.b16 %v8795, %v8792
      %v8805 = vpack.c.b16 %v8799, %v8796
      %v8806 = vpack.c.b16 %v8800, %v8797
      %v8807 = vpack.c.b16 %v8801, %v8798
      %8808 = vrot.lane.b32.xlu0 %v8802, 94
      %v8809 = vpop.permute.xlu0 %8808
      %8810 = vrot.lane.b32.xlu0 %v8803, 94
      %v8811 = vpop.permute.xlu0 %8810
      %8812 = vrot.lane.b32.xlu0 %v8804, 94
      %v8813 = vpop.permute.xlu0 %8812
      %8814 = vrot.lane.b32.xlu0 %v8805, 94
      %v8815 = vpop.permute.xlu0 %8814
      %8816 = vrot.lane.b32.xlu0 %v8806, 94
      %v8817 = vpop.permute.xlu0 %8816
      %8818 = vrot.lane.b32.xlu0 %v8807, 94
      %v8819 = vpop.permute.xlu0 %8818
      %v8820 = vsel %vm2041, %v8809, %v8811
      %v8821 = vsel %vm2041, %v8811, %v8813
      %v8822 = vsel %vm2041, %v8815, %v8817
      %v8823 = vsel %vm2041, %v8817, %v8819
      %s8824 = scalar_lea.vmem %s4, 288
      %v8825 = vld [vmem:[%s8824] sm:$0xff]
      %v8826 = vld [vmem:[%s8824 + $0x8] sm:$0xf]
      %v8827 = vld [vmem:[%s8824 + $0xc] sm:$0xff]
      %v8828 = vld [vmem:[%s8824 + $0x14] sm:$0xf]
      %v8829 = vld [vmem:[%s8824 + $0x18] sm:$0xff]
      %v8830 = vld [vmem:[%s8824 + $0x20] sm:$0xf]
      %v8831 = vld [vmem:[%s8824 + $0x24] sm:$0xff]
      %v8832 = vld [vmem:[%s8824 + $0x2c] sm:$0xf]
      %s8833 = scalar_lea.vmem %s5, 192
      %v8834 = vld [vmem:[%s8833] sm:$0xff]
      %v8835 = vld [vmem:[%s8833 + $0x8] sm:$0xff]
      %v8836 = vld [vmem:[%s8833 + $0x10] sm:$0xff]
      %v8837 = vld [vmem:[%s8833 + $0x18] sm:$0xff]
      %8839 = vset.pattern.permute.xlu0 0
      %8840 = vperm.xlu0 %8839, %v8834
      %v8841 = vpop.permute.xlu0 %8840
      %8844 = vset.pattern.permute.xlu0 0
      %8845 = vperm.xlu0 %8844, %v8835
      %v8846 = vpop.permute.xlu0 %8845
      %8849 = vset.pattern.permute.xlu0 0
      %8850 = vperm.xlu0 %8849, %v8836
      %v8851 = vpop.permute.xlu0 %8850
      %8854 = vset.pattern.permute.xlu0 0
      %8855 = vperm.xlu0 %8854, %v8837
      %v8856 = vpop.permute.xlu0 %8855
      %v8866 = vunpack.c.l.b16 %v8825
      %v8867 = vunpack.c.h.b16 %v8825
      %v8868 = vunpack.c.l.b16 %v8826
      %v8869 = vunpack.c.l.b16 %v8827
      %v8870 = vunpack.c.h.b16 %v8827
      %v8871 = vunpack.c.l.b16 %v8828
      %v8872 = vunpack.c.l.b16 %v8829
      %v8873 = vunpack.c.h.b16 %v8829
      %v8874 = vunpack.c.l.b16 %v8830
      %v8875 = vunpack.c.l.b16 %v8831
      %v8876 = vunpack.c.h.b16 %v8831
      %v8877 = vunpack.c.l.b16 %v8832
      %v8878 = vpack.c.b16 %v8869, %v8866
      %v8879 = vpack.c.b16 %v8870, %v8867
      %v8880 = vpack.c.b16 %v8871, %v8868
      %v8881 = vpack.c.b16 %v8875, %v8872
      %v8882 = vpack.c.b16 %v8876, %v8873
      %v8883 = vpack.c.b16 %v8877, %v8874
      %8888 = vrot.lane.b32.xlu0 %v8498, 17
      %v8889 = vpop.permute.xlu0 %8888
      %8890 = vrot.lane.b32.xlu0 %v8499, 17
      %v8891 = vpop.permute.xlu0 %8890
      %8892 = vrot.lane.b32.xlu0 %v8500, 17
      %v8893 = vpop.permute.xlu0 %8892
      %8894 = vrot.lane.b32.xlu0 %v8501, 17
      %v8895 = vpop.permute.xlu0 %8894
      %8896 = vrot.lane.b32.xlu0 %v8502, 17
      %v8897 = vpop.permute.xlu0 %8896
      %8898 = vrot.lane.b32.xlu0 %v8503, 17
      %v8899 = vpop.permute.xlu0 %8898
      %8900 = vrot.lane.b32.xlu0 %v8542, 17
      %v8901 = vpop.permute.xlu0 %8900
      %8902 = vrot.lane.b32.xlu0 %v8543, 17
      %v8903 = vpop.permute.xlu0 %8902
      %8904 = vrot.lane.b32.xlu0 %v8535, 17
      %v8905 = vpop.permute.xlu0 %8904
      %8906 = vrot.lane.b32.xlu0 %v8544, 17
      %v8907 = vpop.permute.xlu0 %8906
      %8908 = vrot.lane.b32.xlu0 %v8545, 17
      %v8909 = vpop.permute.xlu0 %8908
      %8910 = vrot.lane.b32.xlu0 %v8541, 17
      %v8911 = vpop.permute.xlu0 %8910
      %8912 = vrot.lane.b32.xlu0 %v8584, 17
      %v8913 = vpop.permute.xlu0 %8912
      %8914 = vrot.lane.b32.xlu0 %v8585, 17
      %v8915 = vpop.permute.xlu0 %8914
      %8916 = vrot.lane.b32.xlu0 %v8577, 17
      %v8917 = vpop.permute.xlu0 %8916
      %8918 = vrot.lane.b32.xlu0 %v8586, 17
      %v8919 = vpop.permute.xlu0 %8918
      %8920 = vrot.lane.b32.xlu0 %v8587, 17
      %v8921 = vpop.permute.xlu0 %8920
      %8922 = vrot.lane.b32.xlu0 %v8583, 17
      %v8923 = vpop.permute.xlu0 %8922
      %8924 = vrot.lane.b32.xlu0 %v8626, 17
      %v8925 = vpop.permute.xlu0 %8924
      %8926 = vrot.lane.b32.xlu0 %v8627, 17
      %v8927 = vpop.permute.xlu0 %8926
      %8928 = vrot.lane.b32.xlu0 %v8619, 17
      %v8929 = vpop.permute.xlu0 %8928
      %8930 = vrot.lane.b32.xlu0 %v8628, 17
      %v8931 = vpop.permute.xlu0 %8930
      %8932 = vrot.lane.b32.xlu0 %v8629, 17
      %v8933 = vpop.permute.xlu0 %8932
      %8934 = vrot.lane.b32.xlu0 %v8625, 17
      %v8935 = vpop.permute.xlu0 %8934
      %8936 = vrot.lane.b32.xlu0 %v8647, 17
      %v8937 = vpop.permute.xlu0 %8936
      %8938 = vrot.lane.b32.xlu0 %v8654, 17
      %v8939 = vpop.permute.xlu0 %8938
      %8940 = vrot.lane.b32.xlu0 %v8649, 17
      %v8941 = vpop.permute.xlu0 %8940
      %8942 = vrot.lane.b32.xlu0 %v8651, 17
      %v8943 = vpop.permute.xlu0 %8942
      %8944 = vrot.lane.b32.xlu0 %v8655, 17
      %v8945 = vpop.permute.xlu0 %8944
      %8946 = vrot.lane.b32.xlu0 %v8653, 17
      %v8947 = vpop.permute.xlu0 %8946
      %8948 = vrot.lane.b32.xlu0 %v8683, 17
      %v8949 = vpop.permute.xlu0 %8948
      %8950 = vrot.lane.b32.xlu0 %v8694, 17
      %v8951 = vpop.permute.xlu0 %8950
      %8952 = vrot.lane.b32.xlu0 %v8695, 17
      %v8953 = vpop.permute.xlu0 %8952
      %8954 = vrot.lane.b32.xlu0 %v8689, 17
      %v8955 = vpop.permute.xlu0 %8954
      %8956 = vrot.lane.b32.xlu0 %v8696, 17
      %v8957 = vpop.permute.xlu0 %8956
      %8958 = vrot.lane.b32.xlu0 %v8697, 17
      %v8959 = vpop.permute.xlu0 %8958
      %8960 = vrot.lane.b32.xlu0 %v8725, 17
      %v8961 = vpop.permute.xlu0 %8960
      %8962 = vrot.lane.b32.xlu0 %v8736, 17
      %v8963 = vpop.permute.xlu0 %8962
      %8964 = vrot.lane.b32.xlu0 %v8737, 17
      %v8965 = vpop.permute.xlu0 %8964
      %8966 = vrot.lane.b32.xlu0 %v8731, 17
      %v8967 = vpop.permute.xlu0 %8966
      %8968 = vrot.lane.b32.xlu0 %v8738, 17
      %v8969 = vpop.permute.xlu0 %8968
      %8970 = vrot.lane.b32.xlu0 %v8739, 17
      %v8971 = vpop.permute.xlu0 %8970
      %8972 = vrot.lane.b32.xlu0 %v8767, 17
      %v8973 = vpop.permute.xlu0 %8972
      %8974 = vrot.lane.b32.xlu0 %v8778, 17
      %v8975 = vpop.permute.xlu0 %8974
      %8976 = vrot.lane.b32.xlu0 %v8779, 17
      %v8977 = vpop.permute.xlu0 %8976
      %8978 = vrot.lane.b32.xlu0 %v8773, 17
      %v8979 = vpop.permute.xlu0 %8978
      %8980 = vrot.lane.b32.xlu0 %v8780, 17
      %v8981 = vpop.permute.xlu0 %8980
      %8982 = vrot.lane.b32.xlu0 %v8781, 17
      %v8983 = vpop.permute.xlu0 %8982
      %8984 = vrot.lane.b32.xlu0 %v8809, 17
      %v8985 = vpop.permute.xlu0 %8984
      %8986 = vrot.lane.b32.xlu0 %v8820, 17
      %v8987 = vpop.permute.xlu0 %8986
      %8988 = vrot.lane.b32.xlu0 %v8821, 17
      %v8989 = vpop.permute.xlu0 %8988
      %8990 = vrot.lane.b32.xlu0 %v8815, 17
      %v8991 = vpop.permute.xlu0 %8990
      %8992 = vrot.lane.b32.xlu0 %v8822, 17
      %v8993 = vpop.permute.xlu0 %8992
      %8994 = vrot.lane.b32.xlu0 %v8823, 17
      %v8995 = vpop.permute.xlu0 %8994
      %v8996 = vsel %vm3691, %v8889, %v8891
      %v8997 = vsel %vm3691, %v8891, %v8893
      %v8998 = vsel %vm3691, %v8895, %v8897
      %v8999 = vsel %vm3691, %v8897, %v8899
      %v9000 = vsel %vm3691, %v8901, %v8903
      %v9001 = vsel %vm3691, %v8903, %v8905
      %v9002 = vsel %vm3691, %v8907, %v8909
      %v9003 = vsel %vm3691, %v8909, %v8911
      %v9004 = vsel %vm3691, %v8913, %v8915
      %v9005 = vsel %vm3691, %v8915, %v8917
      %v9006 = vsel %vm3691, %v8919, %v8921
      %v9007 = vsel %vm3691, %v8921, %v8923
      %v9008 = vsel %vm3691, %v8925, %v8927
      %v9009 = vsel %vm3691, %v8927, %v8929
      %v9010 = vsel %vm3691, %v8931, %v8933
      %v9011 = vsel %vm3691, %v8933, %v8935
      %v9012 = vsel %vm3691, %v8937, %v8939
      %v9013 = vsel %vm3691, %v8939, %v8941
      %v9014 = vsel %vm3691, %v8943, %v8945
      %v9015 = vsel %vm3691, %v8945, %v8947
      %v9016 = vsel %vm3691, %v8949, %v8951
      %v9017 = vsel %vm3691, %v8951, %v8953
      %v9018 = vsel %vm3691, %v8955, %v8957
      %v9019 = vsel %vm3691, %v8957, %v8959
      %v9020 = vsel %vm3691, %v8961, %v8963
      %v9021 = vsel %vm3691, %v8963, %v8965
      %v9022 = vsel %vm3691, %v8967, %v8969
      %v9023 = vsel %vm3691, %v8969, %v8971
      %v9024 = vsel %vm3691, %v8973, %v8975
      %v9025 = vsel %vm3691, %v8975, %v8977
      %v9026 = vsel %vm3691, %v8979, %v8981
      %v9027 = vsel %vm3691, %v8981, %v8983
      %v9028 = vsel %vm3691, %v8985, %v8987
      %v9029 = vsel %vm3691, %v8987, %v8989
      %v9030 = vsel %vm3691, %v8991, %v8993
      %v9031 = vsel %vm3691, %v8993, %v8995
      %v9069 = vsel %vm4303, %v8880, 0
      %v9072 = vsel %vm4303, %v8883, 0
      %9074 = vmatpush.bf16.msra.mxu0 %v9010
      %9075 = vmatpush.bf16.msra.mxu0 %v9008
      %9076 = vmatpush.bf16.msra.mxu0 %v9006
      %9077 = vmatpush.bf16.msra.mxu0 %v9004
      %9078 = vmatpush.bf16.msra.mxu0 %v9002
      %9079 = vmatpush.bf16.msra.mxu0 %v9000
      %9080 = vmatpush.bf16.msra.mxu0 %v8998
      %9081 = vmatpush.bf16.msra.mxu0 %v8996
      %9082 = vmatmul.bf16.gmra.mxu0 %v8878
      %v9083 = vpop.f32.mrf.mxu0
      %v9084 = vadd.f32 %v8841, %v9083
      %v9085 = vpop.f32.mrf.mxu0
      %v9086 = vadd.f32 %v8846, %v9085
      %9087 = vmatmul.bf16.gmra.mxu0 %v8881
      %v9088 = vpop.f32.mrf.mxu0
      %v9089 = vadd.f32 %v8851, %v9088
      %v9090 = vpop.f32.mrf.mxu0
      %v9091 = vadd.f32 %v8856, %v9090
      %9092 = vdwg.mxu0
      %9093 = vmatpush.bf16.msra.mxu0 %v9026
      %9094 = vmatpush.bf16.msra.mxu0 %v9024
      %9095 = vmatpush.bf16.msra.mxu0 %v9022
      %9096 = vmatpush.bf16.msra.mxu0 %v9020
      %9097 = vmatpush.bf16.msra.mxu0 %v9018
      %9098 = vmatpush.bf16.msra.mxu0 %v9016
      %9099 = vmatpush.bf16.msra.mxu0 %v9014
      %9100 = vmatpush.bf16.msra.mxu0 %v9012
      %9101 = vmatmul.bf16.gmra.mxu0 %v8879
      %v9102 = vpop.f32.mrf.mxu0
      %v9103 = vadd.f32 %v9084, %v9102
      %v9104 = vpop.f32.mrf.mxu0
      %v9105 = vadd.f32 %v9086, %v9104
      %9106 = vmatmul.bf16.gmra.mxu0 %v8882
      %v9107 = vpop.f32.mrf.mxu0
      %v9108 = vadd.f32 %v9089, %v9107
      %v9109 = vpop.f32.mrf.mxu0
      %v9110 = vadd.f32 %v9091, %v9109
      %9111 = vdwg.mxu0
      %9112 = vmatpush.bf16.msra.mxu0 0
      %9113 = vmatpush.bf16.msra.mxu0 0
      %9114 = vmatpush.bf16.msra.mxu0 0
      %9115 = vmatpush.bf16.msra.mxu0 0
      %9116 = vmatpush.bf16.msra.mxu0 0
      %9117 = vmatpush.bf16.msra.mxu0 0
      %9118 = vmatpush.bf16.msra.mxu0 %v9030
      %9119 = vmatpush.bf16.msra.mxu0 %v9028
      %9120 = vmatmul.bf16.gmra.mxu0 %v9069
      %v9121 = vpop.f32.mrf.mxu0
      %v9122 = vadd.f32 %v9103, %v9121
      %v9123 = vpop.f32.mrf.mxu0
      %v9124 = vadd.f32 %v9105, %v9123
      %9125 = vmatmul.bf16.gmra.mxu0 %v9072
      %v9126 = vpop.f32.mrf.mxu0
      %v9127 = vadd.f32 %v9108, %v9126
      %v9128 = vpop.f32.mrf.mxu0
      %v9129 = vadd.f32 %v9110, %v9128
      %9130 = vdwg.mxu0
      %9131 = vmatpush.bf16.msra.mxu0 %v9011
      %9132 = vmatpush.bf16.msra.mxu0 %v9009
      %9133 = vmatpush.bf16.msra.mxu0 %v9007
      %9134 = vmatpush.bf16.msra.mxu0 %v9005
      %9135 = vmatpush.bf16.msra.mxu0 %v9003
      %9136 = vmatpush.bf16.msra.mxu0 %v9001
      %9137 = vmatpush.bf16.msra.mxu0 %v8999
      %9138 = vmatpush.bf16.msra.mxu0 %v8997
      %9139 = vmatmul.bf16.gmra.mxu0 %v8878
      %v9140 = vpop.f32.mrf.mxu0
      %v9141 = vadd.f32 %v8841, %v9140
      %v9142 = vpop.f32.mrf.mxu0
      %v9143 = vadd.f32 %v8846, %v9142
      %9144 = vmatmul.bf16.gmra.mxu0 %v8881
      %v9145 = vpop.f32.mrf.mxu0
      %v9146 = vadd.f32 %v8851, %v9145
      %v9147 = vpop.f32.mrf.mxu0
      %v9148 = vadd.f32 %v8856, %v9147
      %9149 = vdwg.mxu0
      %9150 = vmatpush.bf16.msra.mxu0 %v9027
      %9151 = vmatpush.bf16.msra.mxu0 %v9025
      %9152 = vmatpush.bf16.msra.mxu0 %v9023
      %9153 = vmatpush.bf16.msra.mxu0 %v9021
      %9154 = vmatpush.bf16.msra.mxu0 %v9019
      %9155 = vmatpush.bf16.msra.mxu0 %v9017
      %9156 = vmatpush.bf16.msra.mxu0 %v9015
      %9157 = vmatpush.bf16.msra.mxu0 %v9013
      %9158 = vmatmul.bf16.gmra.mxu0 %v8879
      %v9159 = vpop.f32.mrf.mxu0
      %v9160 = vadd.f32 %v9141, %v9159
      %v9161 = vpop.f32.mrf.mxu0
      %v9162 = vadd.f32 %v9143, %v9161
      %9163 = vmatmul.bf16.gmra.mxu0 %v8882
      %v9164 = vpop.f32.mrf.mxu0
      %v9165 = vadd.f32 %v9146, %v9164
      %v9166 = vpop.f32.mrf.mxu0
      %v9167 = vadd.f32 %v9148, %v9166
      %9168 = vdwg.mxu0
      %9169 = vmatpush.bf16.msra.mxu0 0
      %9170 = vmatpush.bf16.msra.mxu0 0
      %9171 = vmatpush.bf16.msra.mxu0 0
      %9172 = vmatpush.bf16.msra.mxu0 0
      %9173 = vmatpush.bf16.msra.mxu0 0
      %9174 = vmatpush.bf16.msra.mxu0 0
      %9175 = vmatpush.bf16.msra.mxu0 %v9031
      %9176 = vmatpush.bf16.msra.mxu0 %v9029
      %9177 = vmatmul.bf16.gmra.mxu0 %v9069
      %v9178 = vpop.f32.mrf.mxu0
      %v9179 = vadd.f32 %v9160, %v9178
      %v9180 = vpop.f32.mrf.mxu0
      %v9181 = vadd.f32 %v9162, %v9180
      %9182 = vmatmul.bf16.gmra.mxu0 %v9072
      %v9183 = vpop.f32.mrf.mxu0
      %v9184 = vadd.f32 %v9165, %v9183
      %v9185 = vpop.f32.mrf.mxu0
      %v9186 = vadd.f32 %v9167, %v9185
      %9187 = vdwg.mxu0
      %v9188 = vmax.f32 %v9122, 0.0
      %v9189 = vmax.f32 %v9179, 0.0
      %v9190 = vmax.f32 %v9124, 0.0
      %v9191 = vmax.f32 %v9181, 0.0
      %v9192 = vmax.f32 %v9127, 0.0
      %v9193 = vmax.f32 %v9184, 0.0
      %v9194 = vmax.f32 %v9129, 0.0
      %v9195 = vmax.f32 %v9186, 0.0
      %v9196 = vpack.c.bf16 %v9189, %v9188
      %v9197 = vpack.c.bf16 %v9191, %v9190
      %v9198 = vpack.c.bf16 %v9193, %v9192
      %v9199 = vpack.c.bf16 %v9195, %v9194
      %9200 = vst [vmem:[#allocation2 + $0x4] sm:$0xff] %v9196
      %9201 = vst [vmem:[#allocation2 + $0x14] sm:$0xff] %v9197
      %9202 = vst [vmem:[#allocation2 + $0x24] sm:$0xff] %v9198
      %9203 = vst [vmem:[#allocation2 + $0x34] sm:$0xff] %v9199
      %v9204 = vld [vmem:[#allocation2] sm:$0xff]
      %v9205 = vld [vmem:[#allocation2 + $0x8] sm:$0xf]
      %v9206 = vld [vmem:[#allocation2 + $0x10] sm:$0xff]
      %v9207 = vld [vmem:[#allocation2 + $0x18] sm:$0xf]
      %v9208 = vld [vmem:[#allocation2 + $0x20] sm:$0xff]
      %v9209 = vld [vmem:[#allocation2 + $0x28] sm:$0xf]
      %v9210 = vld [vmem:[#allocation2 + $0x30] sm:$0xff]
      %v9211 = vld [vmem:[#allocation2 + $0x38] sm:$0xf]
      %v9212 = vsel %vm3553, %v9204, 0
      %v9213 = vsel %vm3560, %v9205, 0
      %v9214 = vsel %vm3553, %v9206, 0
      %v9215 = vsel %vm3560, %v9207, 0
      %v9216 = vsel %vm3553, %v9208, 0
      %v9217 = vsel %vm3560, %v9209, 0
      %v9218 = vsel %vm3553, %v9210, 0
      %v9219 = vsel %vm3560, %v9211, 0
      %v9220 = vsel %vm3580, %v9204, 0
      %v9221 = vsel %vm3587, %v9205, 0
      %v9222 = vsel %vm3580, %v9206, 0
      %v9223 = vsel %vm3587, %v9207, 0
      %v9224 = vsel %vm3580, %v9208, 0
      %v9225 = vsel %vm3587, %v9209, 0
      %v9226 = vsel %vm3580, %v9210, 0
      %v9227 = vsel %vm3587, %v9211, 0
      %v9228 = vsel %vm3606, %v9204, 0
      %v9229 = vsel %vm3613, %v9205, 0
      %v9230 = vsel %vm3606, %v9206, 0
      %v9231 = vsel %vm3613, %v9207, 0
      %v9232 = vsel %vm3606, %v9208, 0
      %v9233 = vsel %vm3613, %v9209, 0
      %v9234 = vsel %vm3606, %v9210, 0
      %v9235 = vsel %vm3613, %v9211, 0
      %v9236 = vld [vmem:[#allocation2 + $0x4] sm:$0xff]
      %v9237 = vld [vmem:[#allocation2 + $0x14] sm:$0xff]
      %v9238 = vld [vmem:[#allocation2 + $0x24] sm:$0xff]
      %v9239 = vld [vmem:[#allocation2 + $0x34] sm:$0xff]
      %v9240 = vld [vmem:[#allocation2 + $0x4] sm:$0xff]
      %v9241 = vld [vmem:[#allocation2 + $0xc] sm:$0xf]
      %v9242 = vld [vmem:[#allocation2 + $0x14] sm:$0xff]
      %v9243 = vld [vmem:[#allocation2 + $0x1c] sm:$0xf]
      %v9244 = vld [vmem:[#allocation2 + $0x24] sm:$0xff]
      %v9245 = vld [vmem:[#allocation2 + $0x2c] sm:$0xf]
      %v9246 = vld [vmem:[#allocation2 + $0x34] sm:$0xff]
      %v9247 = vld [vmem:[#allocation2 + $0x3c] sm:$0xf]
      %v9248 = vsel %vm3645, %v9240, 0
      %v9249 = vsel %vm3652, %v9241, 0
      %v9250 = vsel %vm3645, %v9242, 0
      %v9251 = vsel %vm3652, %v9243, 0
      %v9252 = vsel %vm3645, %v9244, 0
      %v9253 = vsel %vm3652, %v9245, 0
      %v9254 = vsel %vm3645, %v9246, 0
      %v9255 = vsel %vm3652, %v9247, 0
      %v9256 = vsel %vm3672, %v9240, 0
      %v9257 = vsel %vm3679, %v9241, 0
      %v9258 = vsel %vm3672, %v9242, 0
      %v9259 = vsel %vm3679, %v9243, 0
      %v9260 = vsel %vm3672, %v9244, 0
      %v9261 = vsel %vm3679, %v9245, 0
      %v9262 = vsel %vm3672, %v9246, 0
      %v9263 = vsel %vm3679, %v9247, 0
      %v9264 = vsel %vm3699, %v9240, 0
      %v9265 = vsel %vm3706, %v9241, 0
      %v9266 = vsel %vm3699, %v9242, 0
      %v9267 = vsel %vm3706, %v9243, 0
      %v9268 = vsel %vm3699, %v9244, 0
      %v9269 = vsel %vm3706, %v9245, 0
      %v9270 = vsel %vm3699, %v9246, 0
      %v9271 = vsel %vm3706, %v9247, 0
      %v9280 = vunpack.c.l.b16 %v9212
      %v9281 = vunpack.c.h.b16 %v9212
      %v9282 = vunpack.c.l.b16 %v9213
      %v9283 = vunpack.c.l.b16 %v9214
      %v9284 = vunpack.c.h.b16 %v9214
      %v9285 = vunpack.c.l.b16 %v9215
      %v9286 = vunpack.c.l.b16 %v9216
      %v9287 = vunpack.c.h.b16 %v9216
      %v9288 = vunpack.c.l.b16 %v9217
      %v9289 = vunpack.c.l.b16 %v9218
      %v9290 = vunpack.c.h.b16 %v9218
      %v9291 = vunpack.c.l.b16 %v9219
      %v9292 = vpack.c.b16 %v9283, %v9280
      %v9293 = vpack.c.b16 %v9284, %v9281
      %v9294 = vpack.c.b16 %v9285, %v9282
      %v9295 = vpack.c.b16 %v9289, %v9286
      %v9296 = vpack.c.b16 %v9290, %v9287
      %v9297 = vpack.c.b16 %v9291, %v9288
      %v9306 = vunpack.c.l.b16 %v9204
      %v9307 = vunpack.c.h.b16 %v9204
      %v9308 = vunpack.c.l.b16 %v9205
      %v9309 = vunpack.c.l.b16 %v9206
      %v9310 = vunpack.c.h.b16 %v9206
      %v9311 = vunpack.c.l.b16 %v9207
      %v9312 = vunpack.c.l.b16 %v9208
      %v9313 = vunpack.c.h.b16 %v9208
      %v9314 = vunpack.c.l.b16 %v9209
      %v9315 = vunpack.c.l.b16 %v9210
      %v9316 = vunpack.c.h.b16 %v9210
      %v9317 = vunpack.c.l.b16 %v9211
      %v9318 = vpack.c.b16 %v9309, %v9306
      %v9319 = vpack.c.b16 %v9310, %v9307
      %v9320 = vpack.c.b16 %v9311, %v9308
      %v9321 = vpack.c.b16 %v9315, %v9312
      %v9322 = vpack.c.b16 %v9316, %v9313
      %v9323 = vpack.c.b16 %v9317, %v9314
      %9324 = vrot.lane.b32.xlu0 %v9318, 127
      %v9325 = vpop.permute.xlu0 %9324
      %9326 = vrot.lane.b32.xlu0 %v9319, 127
      %v9327 = vpop.permute.xlu0 %9326
      %9328 = vrot.lane.b32.xlu0 %v9320, 127
      %v9329 = vpop.permute.xlu0 %9328
      %9330 = vrot.lane.b32.xlu0 %v9321, 127
      %v9331 = vpop.permute.xlu0 %9330
      %9332 = vrot.lane.b32.xlu0 %v9322, 127
      %v9333 = vpop.permute.xlu0 %9332
      %9334 = vrot.lane.b32.xlu0 %v9323, 127
      %v9335 = vpop.permute.xlu0 %9334
      %v9336 = vsel %vm1066, %v9325, %v9327
      %v9337 = vsel %vm1066, %v9327, %v9329
      %v9338 = vsel %vm1066, %v9331, %v9333
      %v9339 = vsel %vm1066, %v9333, %v9335
      %v9348 = vunpack.c.l.b16 %v9220
      %v9349 = vunpack.c.h.b16 %v9220
      %v9350 = vunpack.c.l.b16 %v9221
      %v9351 = vunpack.c.l.b16 %v9222
      %v9352 = vunpack.c.h.b16 %v9222
      %v9353 = vunpack.c.l.b16 %v9223
      %v9354 = vunpack.c.l.b16 %v9224
      %v9355 = vunpack.c.h.b16 %v9224
      %v9356 = vunpack.c.l.b16 %v9225
      %v9357 = vunpack.c.l.b16 %v9226
      %v9358 = vunpack.c.h.b16 %v9226
      %v9359 = vunpack.c.l.b16 %v9227
      %v9360 = vpack.c.b16 %v9351, %v9348
      %v9361 = vpack.c.b16 %v9352, %v9349
      %v9362 = vpack.c.b16 %v9353, %v9350
      %v9363 = vpack.c.b16 %v9357, %v9354
      %v9364 = vpack.c.b16 %v9358, %v9355
      %v9365 = vpack.c.b16 %v9359, %v9356
      %9366 = vrot.lane.b32.xlu0 %v9360, 126
      %v9367 = vpop.permute.xlu0 %9366
      %9368 = vrot.lane.b32.xlu0 %v9361, 126
      %v9369 = vpop.permute.xlu0 %9368
      %9370 = vrot.lane.b32.xlu0 %v9362, 126
      %v9371 = vpop.permute.xlu0 %9370
      %9372 = vrot.lane.b32.xlu0 %v9363, 126
      %v9373 = vpop.permute.xlu0 %9372
      %9374 = vrot.lane.b32.xlu0 %v9364, 126
      %v9375 = vpop.permute.xlu0 %9374
      %9376 = vrot.lane.b32.xlu0 %v9365, 126
      %v9377 = vpop.permute.xlu0 %9376
      %v9378 = vsel %vm1235, %v9367, %v9369
      %v9379 = vsel %vm1235, %v9369, %v9371
      %v9380 = vsel %vm1235, %v9373, %v9375
      %v9381 = vsel %vm1235, %v9375, %v9377
      %v9390 = vunpack.c.l.b16 %v9228
      %v9391 = vunpack.c.h.b16 %v9228
      %v9392 = vunpack.c.l.b16 %v9229
      %v9393 = vunpack.c.l.b16 %v9230
      %v9394 = vunpack.c.h.b16 %v9230
      %v9395 = vunpack.c.l.b16 %v9231
      %v9396 = vunpack.c.l.b16 %v9232
      %v9397 = vunpack.c.h.b16 %v9232
      %v9398 = vunpack.c.l.b16 %v9233
      %v9399 = vunpack.c.l.b16 %v9234
      %v9400 = vunpack.c.h.b16 %v9234
      %v9401 = vunpack.c.l.b16 %v9235
      %v9402 = vpack.c.b16 %v9393, %v9390
      %v9403 = vpack.c.b16 %v9394, %v9391
      %v9404 = vpack.c.b16 %v9395, %v9392
      %v9405 = vpack.c.b16 %v9399, %v9396
      %v9406 = vpack.c.b16 %v9400, %v9397
      %v9407 = vpack.c.b16 %v9401, %v9398
      %9408 = vrot.lane.b32.xlu0 %v9402, 112
      %v9409 = vpop.permute.xlu0 %9408
      %9410 = vrot.lane.b32.xlu0 %v9403, 112
      %v9411 = vpop.permute.xlu0 %9410
      %9412 = vrot.lane.b32.xlu0 %v9404, 112
      %v9413 = vpop.permute.xlu0 %9412
      %9414 = vrot.lane.b32.xlu0 %v9405, 112
      %v9415 = vpop.permute.xlu0 %9414
      %9416 = vrot.lane.b32.xlu0 %v9406, 112
      %v9417 = vpop.permute.xlu0 %9416
      %9418 = vrot.lane.b32.xlu0 %v9407, 112
      %v9419 = vpop.permute.xlu0 %9418
      %v9420 = vsel %vm1404, %v9409, %v9411
      %v9421 = vsel %vm1404, %v9411, %v9413
      %v9422 = vsel %vm1404, %v9415, %v9417
      %v9423 = vsel %vm1404, %v9417, %v9419
      %v9428 = vunpack.c.l.b16 %v9236
      %v9429 = vunpack.c.h.b16 %v9236
      %v9430 = vunpack.c.l.b16 %v9237
      %v9431 = vunpack.c.h.b16 %v9237
      %v9432 = vunpack.c.l.b16 %v9238
      %v9433 = vunpack.c.h.b16 %v9238
      %v9434 = vunpack.c.l.b16 %v9239
      %v9435 = vunpack.c.h.b16 %v9239
      %v9436 = vpack.c.b16 %v9430, %v9428
      %v9437 = vpack.c.b16 %v9431, %v9429
      %v9438 = vpack.c.b16 %v9434, %v9432
      %v9439 = vpack.c.b16 %v9435, %v9433
      %9440 = vrot.lane.b32.xlu0 %v9436, 111
      %v9441 = vpop.permute.xlu0 %9440
      %9442 = vrot.lane.b32.xlu0 %v9437, 111
      %v9443 = vpop.permute.xlu0 %9442
      %9444 = vrot.lane.b32.xlu0 %v9438, 111
      %v9445 = vpop.permute.xlu0 %9444
      %9446 = vrot.lane.b32.xlu0 %v9439, 111
      %v9447 = vpop.permute.xlu0 %9446
      %v9448 = vsel %vm1469, %v9441, %v9443
      %v9449 = vsel %vm1469, %v9445, %v9447
      %v9458 = vunpack.c.l.b16 %v9248
      %v9459 = vunpack.c.h.b16 %v9248
      %v9460 = vunpack.c.l.b16 %v9249
      %v9461 = vunpack.c.l.b16 %v9250
      %v9462 = vunpack.c.h.b16 %v9250
      %v9463 = vunpack.c.l.b16 %v9251
      %v9464 = vunpack.c.l.b16 %v9252
      %v9465 = vunpack.c.h.b16 %v9252
      %v9466 = vunpack.c.l.b16 %v9253
      %v9467 = vunpack.c.l.b16 %v9254
      %v9468 = vunpack.c.h.b16 %v9254
      %v9469 = vunpack.c.l.b16 %v9255
      %v9470 = vpack.c.b16 %v9461, %v9458
      %v9471 = vpack.c.b16 %v9462, %v9459
      %v9472 = vpack.c.b16 %v9463, %v9460
      %v9473 = vpack.c.b16 %v9467, %v9464
      %v9474 = vpack.c.b16 %v9468, %v9465
      %v9475 = vpack.c.b16 %v9469, %v9466
      %9476 = vrot.lane.b32.xlu0 %v9470, 110
      %v9477 = vpop.permute.xlu0 %9476
      %9478 = vrot.lane.b32.xlu0 %v9471, 110
      %v9479 = vpop.permute.xlu0 %9478
      %9480 = vrot.lane.b32.xlu0 %v9472, 110
      %v9481 = vpop.permute.xlu0 %9480
      %9482 = vrot.lane.b32.xlu0 %v9473, 110
      %v9483 = vpop.permute.xlu0 %9482
      %9484 = vrot.lane.b32.xlu0 %v9474, 110
      %v9485 = vpop.permute.xlu0 %9484
      %9486 = vrot.lane.b32.xlu0 %v9475, 110
      %v9487 = vpop.permute.xlu0 %9486
      %v9488 = vsel %vm1638, %v9477, %v9479
      %v9489 = vsel %vm1638, %v9479, %v9481
      %v9490 = vsel %vm1638, %v9483, %v9485
      %v9491 = vsel %vm1638, %v9485, %v9487
      %v9500 = vunpack.c.l.b16 %v9256
      %v9501 = vunpack.c.h.b16 %v9256
      %v9502 = vunpack.c.l.b16 %v9257
      %v9503 = vunpack.c.l.b16 %v9258
      %v9504 = vunpack.c.h.b16 %v9258
      %v9505 = vunpack.c.l.b16 %v9259
      %v9506 = vunpack.c.l.b16 %v9260
      %v9507 = vunpack.c.h.b16 %v9260
      %v9508 = vunpack.c.l.b16 %v9261
      %v9509 = vunpack.c.l.b16 %v9262
      %v9510 = vunpack.c.h.b16 %v9262
      %v9511 = vunpack.c.l.b16 %v9263
      %v9512 = vpack.c.b16 %v9503, %v9500
      %v9513 = vpack.c.b16 %v9504, %v9501
      %v9514 = vpack.c.b16 %v9505, %v9502
      %v9515 = vpack.c.b16 %v9509, %v9506
      %v9516 = vpack.c.b16 %v9510, %v9507
      %v9517 = vpack.c.b16 %v9511, %v9508
      %9518 = vrot.lane.b32.xlu0 %v9512, 96
      %v9519 = vpop.permute.xlu0 %9518
      %9520 = vrot.lane.b32.xlu0 %v9513, 96
      %v9521 = vpop.permute.xlu0 %9520
      %9522 = vrot.lane.b32.xlu0 %v9514, 96
      %v9523 = vpop.permute.xlu0 %9522
      %9524 = vrot.lane.b32.xlu0 %v9515, 96
      %v9525 = vpop.permute.xlu0 %9524
      %9526 = vrot.lane.b32.xlu0 %v9516, 96
      %v9527 = vpop.permute.xlu0 %9526
      %9528 = vrot.lane.b32.xlu0 %v9517, 96
      %v9529 = vpop.permute.xlu0 %9528
      %v9530 = vsel %vm1807, %v9519, %v9521
      %v9531 = vsel %vm1807, %v9521, %v9523
      %v9532 = vsel %vm1807, %v9525, %v9527
      %v9533 = vsel %vm1807, %v9527, %v9529
      %v9542 = vunpack.c.l.b16 %v9240
      %v9543 = vunpack.c.h.b16 %v9240
      %v9544 = vunpack.c.l.b16 %v9241
      %v9545 = vunpack.c.l.b16 %v9242
      %v9546 = vunpack.c.h.b16 %v9242
      %v9547 = vunpack.c.l.b16 %v9243
      %v9548 = vunpack.c.l.b16 %v9244
      %v9549 = vunpack.c.h.b16 %v9244
      %v9550 = vunpack.c.l.b16 %v9245
      %v9551 = vunpack.c.l.b16 %v9246
      %v9552 = vunpack.c.h.b16 %v9246
      %v9553 = vunpack.c.l.b16 %v9247
      %v9554 = vpack.c.b16 %v9545, %v9542
      %v9555 = vpack.c.b16 %v9546, %v9543
      %v9556 = vpack.c.b16 %v9547, %v9544
      %v9557 = vpack.c.b16 %v9551, %v9548
      %v9558 = vpack.c.b16 %v9552, %v9549
      %v9559 = vpack.c.b16 %v9553, %v9550
      %9560 = vrot.lane.b32.xlu0 %v9554, 95
      %v9561 = vpop.permute.xlu0 %9560
      %9562 = vrot.lane.b32.xlu0 %v9555, 95
      %v9563 = vpop.permute.xlu0 %9562
      %9564 = vrot.lane.b32.xlu0 %v9556, 95
      %v9565 = vpop.permute.xlu0 %9564
      %9566 = vrot.lane.b32.xlu0 %v9557, 95
      %v9567 = vpop.permute.xlu0 %9566
      %9568 = vrot.lane.b32.xlu0 %v9558, 95
      %v9569 = vpop.permute.xlu0 %9568
      %9570 = vrot.lane.b32.xlu0 %v9559, 95
      %v9571 = vpop.permute.xlu0 %9570
      %v9572 = vsel %vm1872, %v9561, %v9563
      %v9573 = vsel %vm1872, %v9563, %v9565
      %v9574 = vsel %vm1872, %v9567, %v9569
      %v9575 = vsel %vm1872, %v9569, %v9571
      %v9584 = vunpack.c.l.b16 %v9264
      %v9585 = vunpack.c.h.b16 %v9264
      %v9586 = vunpack.c.l.b16 %v9265
      %v9587 = vunpack.c.l.b16 %v9266
      %v9588 = vunpack.c.h.b16 %v9266
      %v9589 = vunpack.c.l.b16 %v9267
      %v9590 = vunpack.c.l.b16 %v9268
      %v9591 = vunpack.c.h.b16 %v9268
      %v9592 = vunpack.c.l.b16 %v9269
      %v9593 = vunpack.c.l.b16 %v9270
      %v9594 = vunpack.c.h.b16 %v9270
      %v9595 = vunpack.c.l.b16 %v9271
      %v9596 = vpack.c.b16 %v9587, %v9584
      %v9597 = vpack.c.b16 %v9588, %v9585
      %v9598 = vpack.c.b16 %v9589, %v9586
      %v9599 = vpack.c.b16 %v9593, %v9590
      %v9600 = vpack.c.b16 %v9594, %v9591
      %v9601 = vpack.c.b16 %v9595, %v9592
      %9602 = vrot.lane.b32.xlu0 %v9596, 94
      %v9603 = vpop.permute.xlu0 %9602
      %9604 = vrot.lane.b32.xlu0 %v9597, 94
      %v9605 = vpop.permute.xlu0 %9604
      %9606 = vrot.lane.b32.xlu0 %v9598, 94
      %v9607 = vpop.permute.xlu0 %9606
      %9608 = vrot.lane.b32.xlu0 %v9599, 94
      %v9609 = vpop.permute.xlu0 %9608
      %9610 = vrot.lane.b32.xlu0 %v9600, 94
      %v9611 = vpop.permute.xlu0 %9610
      %9612 = vrot.lane.b32.xlu0 %v9601, 94
      %v9613 = vpop.permute.xlu0 %9612
      %v9614 = vsel %vm2041, %v9603, %v9605
      %v9615 = vsel %vm2041, %v9605, %v9607
      %v9616 = vsel %vm2041, %v9609, %v9611
      %v9617 = vsel %vm2041, %v9611, %v9613
      %s9618 = scalar_lea.vmem %s4, 336
      %v9619 = vld [vmem:[%s9618] sm:$0xff]
      %v9620 = vld [vmem:[%s9618 + $0x8] sm:$0xf]
      %v9621 = vld [vmem:[%s9618 + $0xc] sm:$0xff]
      %v9622 = vld [vmem:[%s9618 + $0x14] sm:$0xf]
      %v9623 = vld [vmem:[%s9618 + $0x18] sm:$0xff]
      %v9624 = vld [vmem:[%s9618 + $0x20] sm:$0xf]
      %v9625 = vld [vmem:[%s9618 + $0x24] sm:$0xff]
      %v9626 = vld [vmem:[%s9618 + $0x2c] sm:$0xf]
      %s9627 = scalar_lea.vmem %s5, 224
      %v9628 = vld [vmem:[%s9627] sm:$0xff]
      %v9629 = vld [vmem:[%s9627 + $0x8] sm:$0xff]
      %v9630 = vld [vmem:[%s9627 + $0x10] sm:$0xff]
      %v9631 = vld [vmem:[%s9627 + $0x18] sm:$0xff]
      %9633 = vset.pattern.permute.xlu0 0
      %9634 = vperm.xlu0 %9633, %v9628
      %v9635 = vpop.permute.xlu0 %9634
      %9638 = vset.pattern.permute.xlu0 0
      %9639 = vperm.xlu0 %9638, %v9629
      %v9640 = vpop.permute.xlu0 %9639
      %9643 = vset.pattern.permute.xlu0 0
      %9644 = vperm.xlu0 %9643, %v9630
      %v9645 = vpop.permute.xlu0 %9644
      %9648 = vset.pattern.permute.xlu0 0
      %9649 = vperm.xlu0 %9648, %v9631
      %v9650 = vpop.permute.xlu0 %9649
      %v9660 = vunpack.c.l.b16 %v9619
      %v9661 = vunpack.c.h.b16 %v9619
      %v9662 = vunpack.c.l.b16 %v9620
      %v9663 = vunpack.c.l.b16 %v9621
      %v9664 = vunpack.c.h.b16 %v9621
      %v9665 = vunpack.c.l.b16 %v9622
      %v9666 = vunpack.c.l.b16 %v9623
      %v9667 = vunpack.c.h.b16 %v9623
      %v9668 = vunpack.c.l.b16 %v9624
      %v9669 = vunpack.c.l.b16 %v9625
      %v9670 = vunpack.c.h.b16 %v9625
      %v9671 = vunpack.c.l.b16 %v9626
      %v9672 = vpack.c.b16 %v9663, %v9660
      %v9673 = vpack.c.b16 %v9664, %v9661
      %v9674 = vpack.c.b16 %v9665, %v9662
      %v9675 = vpack.c.b16 %v9669, %v9666
      %v9676 = vpack.c.b16 %v9670, %v9667
      %v9677 = vpack.c.b16 %v9671, %v9668
      %9682 = vrot.lane.b32.xlu0 %v9292, 17
      %v9683 = vpop.permute.xlu0 %9682
      %9684 = vrot.lane.b32.xlu0 %v9293, 17
      %v9685 = vpop.permute.xlu0 %9684
      %9686 = vrot.lane.b32.xlu0 %v9294, 17
      %v9687 = vpop.permute.xlu0 %9686
      %9688 = vrot.lane.b32.xlu0 %v9295, 17
      %v9689 = vpop.permute.xlu0 %9688
      %9690 = vrot.lane.b32.xlu0 %v9296, 17
      %v9691 = vpop.permute.xlu0 %9690
      %9692 = vrot.lane.b32.xlu0 %v9297, 17
      %v9693 = vpop.permute.xlu0 %9692
      %9694 = vrot.lane.b32.xlu0 %v9336, 17
      %v9695 = vpop.permute.xlu0 %9694
      %9696 = vrot.lane.b32.xlu0 %v9337, 17
      %v9697 = vpop.permute.xlu0 %9696
      %9698 = vrot.lane.b32.xlu0 %v9329, 17
      %v9699 = vpop.permute.xlu0 %9698
      %9700 = vrot.lane.b32.xlu0 %v9338, 17
      %v9701 = vpop.permute.xlu0 %9700
      %9702 = vrot.lane.b32.xlu0 %v9339, 17
      %v9703 = vpop.permute.xlu0 %9702
      %9704 = vrot.lane.b32.xlu0 %v9335, 17
      %v9705 = vpop.permute.xlu0 %9704
      %9706 = vrot.lane.b32.xlu0 %v9378, 17
      %v9707 = vpop.permute.xlu0 %9706
      %9708 = vrot.lane.b32.xlu0 %v9379, 17
      %v9709 = vpop.permute.xlu0 %9708
      %9710 = vrot.lane.b32.xlu0 %v9371, 17
      %v9711 = vpop.permute.xlu0 %9710
      %9712 = vrot.lane.b32.xlu0 %v9380, 17
      %v9713 = vpop.permute.xlu0 %9712
      %9714 = vrot.lane.b32.xlu0 %v9381, 17
      %v9715 = vpop.permute.xlu0 %9714
      %9716 = vrot.lane.b32.xlu0 %v9377, 17
      %v9717 = vpop.permute.xlu0 %9716
      %9718 = vrot.lane.b32.xlu0 %v9420, 17
      %v9719 = vpop.permute.xlu0 %9718
      %9720 = vrot.lane.b32.xlu0 %v9421, 17
      %v9721 = vpop.permute.xlu0 %9720
      %9722 = vrot.lane.b32.xlu0 %v9413, 17
      %v9723 = vpop.permute.xlu0 %9722
      %9724 = vrot.lane.b32.xlu0 %v9422, 17
      %v9725 = vpop.permute.xlu0 %9724
      %9726 = vrot.lane.b32.xlu0 %v9423, 17
      %v9727 = vpop.permute.xlu0 %9726
      %9728 = vrot.lane.b32.xlu0 %v9419, 17
      %v9729 = vpop.permute.xlu0 %9728
      %9730 = vrot.lane.b32.xlu0 %v9441, 17
      %v9731 = vpop.permute.xlu0 %9730
      %9732 = vrot.lane.b32.xlu0 %v9448, 17
      %v9733 = vpop.permute.xlu0 %9732
      %9734 = vrot.lane.b32.xlu0 %v9443, 17
      %v9735 = vpop.permute.xlu0 %9734
      %9736 = vrot.lane.b32.xlu0 %v9445, 17
      %v9737 = vpop.permute.xlu0 %9736
      %9738 = vrot.lane.b32.xlu0 %v9449, 17
      %v9739 = vpop.permute.xlu0 %9738
      %9740 = vrot.lane.b32.xlu0 %v9447, 17
      %v9741 = vpop.permute.xlu0 %9740
      %9742 = vrot.lane.b32.xlu0 %v9477, 17
      %v9743 = vpop.permute.xlu0 %9742
      %9744 = vrot.lane.b32.xlu0 %v9488, 17
      %v9745 = vpop.permute.xlu0 %9744
      %9746 = vrot.lane.b32.xlu0 %v9489, 17
      %v9747 = vpop.permute.xlu0 %9746
      %9748 = vrot.lane.b32.xlu0 %v9483, 17
      %v9749 = vpop.permute.xlu0 %9748
      %9750 = vrot.lane.b32.xlu0 %v9490, 17
      %v9751 = vpop.permute.xlu0 %9750
      %9752 = vrot.lane.b32.xlu0 %v9491, 17
      %v9753 = vpop.permute.xlu0 %9752
      %9754 = vrot.lane.b32.xlu0 %v9519, 17
      %v9755 = vpop.permute.xlu0 %9754
      %9756 = vrot.lane.b32.xlu0 %v9530, 17
      %v9757 = vpop.permute.xlu0 %9756
      %9758 = vrot.lane.b32.xlu0 %v9531, 17
      %v9759 = vpop.permute.xlu0 %9758
      %9760 = vrot.lane.b32.xlu0 %v9525, 17
      %v9761 = vpop.permute.xlu0 %9760
      %9762 = vrot.lane.b32.xlu0 %v9532, 17
      %v9763 = vpop.permute.xlu0 %9762
      %9764 = vrot.lane.b32.xlu0 %v9533, 17
      %v9765 = vpop.permute.xlu0 %9764
      %9766 = vrot.lane.b32.xlu0 %v9561, 17
      %v9767 = vpop.permute.xlu0 %9766
      %9768 = vrot.lane.b32.xlu0 %v9572, 17
      %v9769 = vpop.permute.xlu0 %9768
      %9770 = vrot.lane.b32.xlu0 %v9573, 17
      %v9771 = vpop.permute.xlu0 %9770
      %9772 = vrot.lane.b32.xlu0 %v9567, 17
      %v9773 = vpop.permute.xlu0 %9772
      %9774 = vrot.lane.b32.xlu0 %v9574, 17
      %v9775 = vpop.permute.xlu0 %9774
      %9776 = vrot.lane.b32.xlu0 %v9575, 17
      %v9777 = vpop.permute.xlu0 %9776
      %9778 = vrot.lane.b32.xlu0 %v9603, 17
      %v9779 = vpop.permute.xlu0 %9778
      %9780 = vrot.lane.b32.xlu0 %v9614, 17
      %v9781 = vpop.permute.xlu0 %9780
      %9782 = vrot.lane.b32.xlu0 %v9615, 17
      %v9783 = vpop.permute.xlu0 %9782
      %9784 = vrot.lane.b32.xlu0 %v9609, 17
      %v9785 = vpop.permute.xlu0 %9784
      %9786 = vrot.lane.b32.xlu0 %v9616, 17
      %v9787 = vpop.permute.xlu0 %9786
      %9788 = vrot.lane.b32.xlu0 %v9617, 17
      %v9789 = vpop.permute.xlu0 %9788
      %v9790 = vsel %vm3691, %v9683, %v9685
      %v9791 = vsel %vm3691, %v9685, %v9687
      %v9792 = vsel %vm3691, %v9689, %v9691
      %v9793 = vsel %vm3691, %v9691, %v9693
      %v9794 = vsel %vm3691, %v9695, %v9697
      %v9795 = vsel %vm3691, %v9697, %v9699
      %v9796 = vsel %vm3691, %v9701, %v9703
      %v9797 = vsel %vm3691, %v9703, %v9705
      %v9798 = vsel %vm3691, %v9707, %v9709
      %v9799 = vsel %vm3691, %v9709, %v9711
      %v9800 = vsel %vm3691, %v9713, %v9715
      %v9801 = vsel %vm3691, %v9715, %v9717
      %v9802 = vsel %vm3691, %v9719, %v9721
      %v9803 = vsel %vm3691, %v9721, %v9723
      %v9804 = vsel %vm3691, %v9725, %v9727
      %v9805 = vsel %vm3691, %v9727, %v9729
      %v9806 = vsel %vm3691, %v9731, %v9733
      %v9807 = vsel %vm3691, %v9733, %v9735
      %v9808 = vsel %vm3691, %v9737, %v9739
      %v9809 = vsel %vm3691, %v9739, %v9741
      %v9810 = vsel %vm3691, %v9743, %v9745
      %v9811 = vsel %vm3691, %v9745, %v9747
      %v9812 = vsel %vm3691, %v9749, %v9751
      %v9813 = vsel %vm3691, %v9751, %v9753
      %v9814 = vsel %vm3691, %v9755, %v9757
      %v9815 = vsel %vm3691, %v9757, %v9759
      %v9816 = vsel %vm3691, %v9761, %v9763
      %v9817 = vsel %vm3691, %v9763, %v9765
      %v9818 = vsel %vm3691, %v9767, %v9769
      %v9819 = vsel %vm3691, %v9769, %v9771
      %v9820 = vsel %vm3691, %v9773, %v9775
      %v9821 = vsel %vm3691, %v9775, %v9777
      %v9822 = vsel %vm3691, %v9779, %v9781
      %v9823 = vsel %vm3691, %v9781, %v9783
      %v9824 = vsel %vm3691, %v9785, %v9787
      %v9825 = vsel %vm3691, %v9787, %v9789
      %v9863 = vsel %vm4303, %v9674, 0
      %v9866 = vsel %vm4303, %v9677, 0
      %9868 = vmatpush.bf16.msra.mxu0 %v9804
      %9869 = vmatpush.bf16.msra.mxu0 %v9802
      %9870 = vmatpush.bf16.msra.mxu0 %v9800
      %9871 = vmatpush.bf16.msra.mxu0 %v9798
      %9872 = vmatpush.bf16.msra.mxu0 %v9796
      %9873 = vmatpush.bf16.msra.mxu0 %v9794
      %9874 = vmatpush.bf16.msra.mxu0 %v9792
      %9875 = vmatpush.bf16.msra.mxu0 %v9790
      %9876 = vmatmul.bf16.gmra.mxu0 %v9672
      %v9877 = vpop.f32.mrf.mxu0
      %v9878 = vadd.f32 %v9635, %v9877
      %v9879 = vpop.f32.mrf.mxu0
      %v9880 = vadd.f32 %v9640, %v9879
      %9881 = vmatmul.bf16.gmra.mxu0 %v9675
      %v9882 = vpop.f32.mrf.mxu0
      %v9883 = vadd.f32 %v9645, %v9882
      %v9884 = vpop.f32.mrf.mxu0
      %v9885 = vadd.f32 %v9650, %v9884
      %9886 = vdwg.mxu0
      %9887 = vmatpush.bf16.msra.mxu0 %v9820
      %9888 = vmatpush.bf16.msra.mxu0 %v9818
      %9889 = vmatpush.bf16.msra.mxu0 %v9816
      %9890 = vmatpush.bf16.msra.mxu0 %v9814
      %9891 = vmatpush.bf16.msra.mxu0 %v9812
      %9892 = vmatpush.bf16.msra.mxu0 %v9810
      %9893 = vmatpush.bf16.msra.mxu0 %v9808
      %9894 = vmatpush.bf16.msra.mxu0 %v9806
      %9895 = vmatmul.bf16.gmra.mxu0 %v9673
      %v9896 = vpop.f32.mrf.mxu0
      %v9897 = vadd.f32 %v9878, %v9896
      %v9898 = vpop.f32.mrf.mxu0
      %v9899 = vadd.f32 %v9880, %v9898
      %9900 = vmatmul.bf16.gmra.mxu0 %v9676
      %v9901 = vpop.f32.mrf.mxu0
      %v9902 = vadd.f32 %v9883, %v9901
      %v9903 = vpop.f32.mrf.mxu0
      %v9904 = vadd.f32 %v9885, %v9903
      %9905 = vdwg.mxu0
      %9906 = vmatpush.bf16.msra.mxu0 0
      %9907 = vmatpush.bf16.msra.mxu0 0
      %9908 = vmatpush.bf16.msra.mxu0 0
      %9909 = vmatpush.bf16.msra.mxu0 0
      %9910 = vmatpush.bf16.msra.mxu0 0
      %9911 = vmatpush.bf16.msra.mxu0 0
      %9912 = vmatpush.bf16.msra.mxu0 %v9824
      %9913 = vmatpush.bf16.msra.mxu0 %v9822
      %9914 = vmatmul.bf16.gmra.mxu0 %v9863
      %v9915 = vpop.f32.mrf.mxu0
      %v9916 = vadd.f32 %v9897, %v9915
      %v9917 = vpop.f32.mrf.mxu0
      %v9918 = vadd.f32 %v9899, %v9917
      %9919 = vmatmul.bf16.gmra.mxu0 %v9866
      %v9920 = vpop.f32.mrf.mxu0
      %v9921 = vadd.f32 %v9902, %v9920
      %v9922 = vpop.f32.mrf.mxu0
      %v9923 = vadd.f32 %v9904, %v9922
      %9924 = vdwg.mxu0
      %9925 = vmatpush.bf16.msra.mxu0 %v9805
      %9926 = vmatpush.bf16.msra.mxu0 %v9803
      %9927 = vmatpush.bf16.msra.mxu0 %v9801
      %9928 = vmatpush.bf16.msra.mxu0 %v9799
      %9929 = vmatpush.bf16.msra.mxu0 %v9797
      %9930 = vmatpush.bf16.msra.mxu0 %v9795
      %9931 = vmatpush.bf16.msra.mxu0 %v9793
      %9932 = vmatpush.bf16.msra.mxu0 %v9791
      %9933 = vmatmul.bf16.gmra.mxu0 %v9672
      %v9934 = vpop.f32.mrf.mxu0
      %v9935 = vadd.f32 %v9635, %v9934
      %v9936 = vpop.f32.mrf.mxu0
      %v9937 = vadd.f32 %v9640, %v9936
      %9938 = vmatmul.bf16.gmra.mxu0 %v9675
      %v9939 = vpop.f32.mrf.mxu0
      %v9940 = vadd.f32 %v9645, %v9939
      %v9941 = vpop.f32.mrf.mxu0
      %v9942 = vadd.f32 %v9650, %v9941
      %9943 = vdwg.mxu0
      %9944 = vmatpush.bf16.msra.mxu0 %v9821
      %9945 = vmatpush.bf16.msra.mxu0 %v9819
      %9946 = vmatpush.bf16.msra.mxu0 %v9817
      %9947 = vmatpush.bf16.msra.mxu0 %v9815
      %9948 = vmatpush.bf16.msra.mxu0 %v9813
      %9949 = vmatpush.bf16.msra.mxu0 %v9811
      %9950 = vmatpush.bf16.msra.mxu0 %v9809
      %9951 = vmatpush.bf16.msra.mxu0 %v9807
      %9952 = vmatmul.bf16.gmra.mxu0 %v9673
      %v9953 = vpop.f32.mrf.mxu0
      %v9954 = vadd.f32 %v9935, %v9953
      %v9955 = vpop.f32.mrf.mxu0
      %v9956 = vadd.f32 %v9937, %v9955
      %9957 = vmatmul.bf16.gmra.mxu0 %v9676
      %v9958 = vpop.f32.mrf.mxu0
      %v9959 = vadd.f32 %v9940, %v9958
      %v9960 = vpop.f32.mrf.mxu0
      %v9961 = vadd.f32 %v9942, %v9960
      %9962 = vdwg.mxu0
      %9963 = vmatpush.bf16.msra.mxu0 0
      %9964 = vmatpush.bf16.msra.mxu0 0
      %9965 = vmatpush.bf16.msra.mxu0 0
      %9966 = vmatpush.bf16.msra.mxu0 0
      %9967 = vmatpush.bf16.msra.mxu0 0
      %9968 = vmatpush.bf16.msra.mxu0 0
      %9969 = vmatpush.bf16.msra.mxu0 %v9825
      %9970 = vmatpush.bf16.msra.mxu0 %v9823
      %9971 = vmatmul.bf16.gmra.mxu0 %v9863
      %v9972 = vpop.f32.mrf.mxu0
      %v9973 = vadd.f32 %v9954, %v9972
      %v9974 = vpop.f32.mrf.mxu0
      %v9975 = vadd.f32 %v9956, %v9974
      %9976 = vmatmul.bf16.gmra.mxu0 %v9866
      %v9977 = vpop.f32.mrf.mxu0
      %v9978 = vadd.f32 %v9959, %v9977
      %v9979 = vpop.f32.mrf.mxu0
      %v9980 = vadd.f32 %v9961, %v9979
      %9981 = vdwg.mxu0
      %v9982 = vadd.f32 %v8394, %v9916
      %v9983 = vadd.f32 %v8395, %v9973
      %v9984 = vadd.f32 %v8396, %v9918
      %v9985 = vadd.f32 %v8397, %v9975
      %v9986 = vadd.f32 %v8398, %v9921
      %v9987 = vadd.f32 %v8399, %v9978
      %v9988 = vadd.f32 %v8400, %v9923
      %v9989 = vadd.f32 %v8401, %v9980
      %v9990 = vpack.c.bf16 %v9983, %v9982
      %v9991 = vpack.c.bf16 %v9985, %v9984
      %v9992 = vpack.c.bf16 %v9987, %v9986
      %v9993 = vpack.c.bf16 %v9989, %v9988
      %9994 = vst [vmem:[#allocation2 + $0x4] sm:$0xff] %v9990
      %9995 = vst [vmem:[#allocation2 + $0x14] sm:$0xff] %v9991
      %9996 = vst [vmem:[#allocation2 + $0x24] sm:$0xff] %v9992
      %9997 = vst [vmem:[#allocation2 + $0x34] sm:$0xff] %v9993
      %v9998 = vld [vmem:[#allocation2] sm:$0xff]
      %v9999 = vld [vmem:[#allocation2 + $0x8] sm:$0xf]
      %v10000 = vld [vmem:[#allocation2 + $0x10] sm:$0xff]
      %v10001 = vld [vmem:[#allocation2 + $0x18] sm:$0xf]
      %v10002 = vld [vmem:[#allocation2 + $0x20] sm:$0xff]
      %v10003 = vld [vmem:[#allocation2 + $0x28] sm:$0xf]
      %v10004 = vld [vmem:[#allocation2 + $0x30] sm:$0xff]
      %v10005 = vld [vmem:[#allocation2 + $0x38] sm:$0xf]
      %v10006 = vsel %vm3553, %v9998, 0
      %v10007 = vsel %vm3560, %v9999, 0
      %v10008 = vsel %vm3553, %v10000, 0
      %v10009 = vsel %vm3560, %v10001, 0
      %v10010 = vsel %vm3553, %v10002, 0
      %v10011 = vsel %vm3560, %v10003, 0
      %v10012 = vsel %vm3553, %v10004, 0
      %v10013 = vsel %vm3560, %v10005, 0
      %v10014 = vsel %vm3580, %v9998, 0
      %v10015 = vsel %vm3587, %v9999, 0
      %v10016 = vsel %vm3580, %v10000, 0
      %v10017 = vsel %vm3587, %v10001, 0
      %v10018 = vsel %vm3580, %v10002, 0
      %v10019 = vsel %vm3587, %v10003, 0
      %v10020 = vsel %vm3580, %v10004, 0
      %v10021 = vsel %vm3587, %v10005, 0
      %v10022 = vsel %vm3606, %v9998, 0
      %v10023 = vsel %vm3613, %v9999, 0
      %v10024 = vsel %vm3606, %v10000, 0
      %v10025 = vsel %vm3613, %v10001, 0
      %v10026 = vsel %vm3606, %v10002, 0
      %v10027 = vsel %vm3613, %v10003, 0
      %v10028 = vsel %vm3606, %v10004, 0
      %v10029 = vsel %vm3613, %v10005, 0
      %v10030 = vld [vmem:[#allocation2 + $0x4] sm:$0xff]
      %v10031 = vld [vmem:[#allocation2 + $0x14] sm:$0xff]
      %v10032 = vld [vmem:[#allocation2 + $0x24] sm:$0xff]
      %v10033 = vld [vmem:[#allocation2 + $0x34] sm:$0xff]
      %v10034 = vld [vmem:[#allocation2 + $0x4] sm:$0xff]
      %v10035 = vld [vmem:[#allocation2 + $0xc] sm:$0xf]
      %v10036 = vld [vmem:[#allocation2 + $0x14] sm:$0xff]
      %v10037 = vld [vmem:[#allocation2 + $0x1c] sm:$0xf]
      %v10038 = vld [vmem:[#allocation2 + $0x24] sm:$0xff]
      %v10039 = vld [vmem:[#allocation2 + $0x2c] sm:$0xf]
      %v10040 = vld [vmem:[#allocation2 + $0x34] sm:$0xff]
      %v10041 = vld [vmem:[#allocation2 + $0x3c] sm:$0xf]
      %v10042 = vsel %vm3645, %v10034, 0
      %v10043 = vsel %vm3652, %v10035, 0
      %v10044 = vsel %vm3645, %v10036, 0
      %v10045 = vsel %vm3652, %v10037, 0
      %v10046 = vsel %vm3645, %v10038, 0
      %v10047 = vsel %vm3652, %v10039, 0
      %v10048 = vsel %vm3645, %v10040, 0
      %v10049 = vsel %vm3652, %v10041, 0
      %v10050 = vsel %vm3672, %v10034, 0
      %v10051 = vsel %vm3679, %v10035, 0
      %v10052 = vsel %vm3672, %v10036, 0
      %v10053 = vsel %vm3679, %v10037, 0
      %v10054 = vsel %vm3672, %v10038, 0
      %v10055 = vsel %vm3679, %v10039, 0
      %v10056 = vsel %vm3672, %v10040, 0
      %v10057 = vsel %vm3679, %v10041, 0
      %v10058 = vsel %vm3699, %v10034, 0
      %v10059 = vsel %vm3706, %v10035, 0
      %v10060 = vsel %vm3699, %v10036, 0
      %v10061 = vsel %vm3706, %v10037, 0
      %v10062 = vsel %vm3699, %v10038, 0
      %v10063 = vsel %vm3706, %v10039, 0
      %v10064 = vsel %vm3699, %v10040, 0
      %v10065 = vsel %vm3706, %v10041, 0
      %v10074 = vunpack.c.l.b16 %v10006
      %v10075 = vunpack.c.h.b16 %v10006
      %v10076 = vunpack.c.l.b16 %v10007
      %v10077 = vunpack.c.l.b16 %v10008
      %v10078 = vunpack.c.h.b16 %v10008
      %v10079 = vunpack.c.l.b16 %v10009
      %v10080 = vunpack.c.l.b16 %v10010
      %v10081 = vunpack.c.h.b16 %v10010
      %v10082 = vunpack.c.l.b16 %v10011
      %v10083 = vunpack.c.l.b16 %v10012
      %v10084 = vunpack.c.h.b16 %v10012
      %v10085 = vunpack.c.l.b16 %v10013
      %v10086 = vpack.c.b16 %v10077, %v10074
      %v10087 = vpack.c.b16 %v10078, %v10075
      %v10088 = vpack.c.b16 %v10079, %v10076
      %v10089 = vpack.c.b16 %v10083, %v10080
      %v10090 = vpack.c.b16 %v10084, %v10081
      %v10091 = vpack.c.b16 %v10085, %v10082
      %v10100 = vunpack.c.l.b16 %v9998
      %v10101 = vunpack.c.h.b16 %v9998
      %v10102 = vunpack.c.l.b16 %v9999
      %v10103 = vunpack.c.l.b16 %v10000
      %v10104 = vunpack.c.h.b16 %v10000
      %v10105 = vunpack.c.l.b16 %v10001
      %v10106 = vunpack.c.l.b16 %v10002
      %v10107 = vunpack.c.h.b16 %v10002
      %v10108 = vunpack.c.l.b16 %v10003
      %v10109 = vunpack.c.l.b16 %v10004
      %v10110 = vunpack.c.h.b16 %v10004
      %v10111 = vunpack.c.l.b16 %v10005
      %v10112 = vpack.c.b16 %v10103, %v10100
      %v10113 = vpack.c.b16 %v10104, %v10101
      %v10114 = vpack.c.b16 %v10105, %v10102
      %v10115 = vpack.c.b16 %v10109, %v10106
      %v10116 = vpack.c.b16 %v10110, %v10107
      %v10117 = vpack.c.b16 %v10111, %v10108
      %10118 = vrot.lane.b32.xlu0 %v10112, 127
      %v10119 = vpop.permute.xlu0 %10118
      %10120 = vrot.lane.b32.xlu0 %v10113, 127
      %v10121 = vpop.permute.xlu0 %10120
      %10122 = vrot.lane.b32.xlu0 %v10114, 127
      %v10123 = vpop.permute.xlu0 %10122
      %10124 = vrot.lane.b32.xlu0 %v10115, 127
      %v10125 = vpop.permute.xlu0 %10124
      %10126 = vrot.lane.b32.xlu0 %v10116, 127
      %v10127 = vpop.permute.xlu0 %10126
      %10128 = vrot.lane.b32.xlu0 %v10117, 127
      %v10129 = vpop.permute.xlu0 %10128
      %v10130 = vsel %vm1066, %v10119, %v10121
      %v10131 = vsel %vm1066, %v10121, %v10123
      %v10132 = vsel %vm1066, %v10125, %v10127
      %v10133 = vsel %vm1066, %v10127, %v10129
      %v10142 = vunpack.c.l.b16 %v10014
      %v10143 = vunpack.c.h.b16 %v10014
      %v10144 = vunpack.c.l.b16 %v10015
      %v10145 = vunpack.c.l.b16 %v10016
      %v10146 = vunpack.c.h.b16 %v10016
      %v10147 = vunpack.c.l.b16 %v10017
      %v10148 = vunpack.c.l.b16 %v10018
      %v10149 = vunpack.c.h.b16 %v10018
      %v10150 = vunpack.c.l.b16 %v10019
      %v10151 = vunpack.c.l.b16 %v10020
      %v10152 = vunpack.c.h.b16 %v10020
      %v10153 = vunpack.c.l.b16 %v10021
      %v10154 = vpack.c.b16 %v10145, %v10142
      %v10155 = vpack.c.b16 %v10146, %v10143
      %v10156 = vpack.c.b16 %v10147, %v10144
      %v10157 = vpack.c.b16 %v10151, %v10148
      %v10158 = vpack.c.b16 %v10152, %v10149
      %v10159 = vpack.c.b16 %v10153, %v10150
      %10160 = vrot.lane.b32.xlu0 %v10154, 126
      %v10161 = vpop.permute.xlu0 %10160
      %10162 = vrot.lane.b32.xlu0 %v10155, 126
      %v10163 = vpop.permute.xlu0 %10162
      %10164 = vrot.lane.b32.xlu0 %v10156, 126
      %v10165 = vpop.permute.xlu0 %10164
      %10166 = vrot.lane.b32.xlu0 %v10157, 126
      %v10167 = vpop.permute.xlu0 %10166
      %10168 = vrot.lane.b32.xlu0 %v10158, 126
      %v10169 = vpop.permute.xlu0 %10168
      %10170 = vrot.lane.b32.xlu0 %v10159, 126
      %v10171 = vpop.permute.xlu0 %10170
      %v10172 = vsel %vm1235, %v10161, %v10163
      %v10173 = vsel %vm1235, %v10163, %v10165
      %v10174 = vsel %vm1235, %v10167, %v10169
      %v10175 = vsel %vm1235, %v10169, %v10171
      %v10184 = vunpack.c.l.b16 %v10022
      %v10185 = vunpack.c.h.b16 %v10022
      %v10186 = vunpack.c.l.b16 %v10023
      %v10187 = vunpack.c.l.b16 %v10024
      %v10188 = vunpack.c.h.b16 %v10024
      %v10189 = vunpack.c.l.b16 %v10025
      %v10190 = vunpack.c.l.b16 %v10026
      %v10191 = vunpack.c.h.b16 %v10026
      %v10192 = vunpack.c.l.b16 %v10027
      %v10193 = vunpack.c.l.b16 %v10028
      %v10194 = vunpack.c.h.b16 %v10028
      %v10195 = vunpack.c.l.b16 %v10029
      %v10196 = vpack.c.b16 %v10187, %v10184
      %v10197 = vpack.c.b16 %v10188, %v10185
      %v10198 = vpack.c.b16 %v10189, %v10186
      %v10199 = vpack.c.b16 %v10193, %v10190
      %v10200 = vpack.c.b16 %v10194, %v10191
      %v10201 = vpack.c.b16 %v10195, %v10192
      %10202 = vrot.lane.b32.xlu0 %v10196, 112
      %v10203 = vpop.permute.xlu0 %10202
      %10204 = vrot.lane.b32.xlu0 %v10197, 112
      %v10205 = vpop.permute.xlu0 %10204
      %10206 = vrot.lane.b32.xlu0 %v10198, 112
      %v10207 = vpop.permute.xlu0 %10206
      %10208 = vrot.lane.b32.xlu0 %v10199, 112
      %v10209 = vpop.permute.xlu0 %10208
      %10210 = vrot.lane.b32.xlu0 %v10200, 112
      %v10211 = vpop.permute.xlu0 %10210
      %10212 = vrot.lane.b32.xlu0 %v10201, 112
      %v10213 = vpop.permute.xlu0 %10212
      %v10214 = vsel %vm1404, %v10203, %v10205
      %v10215 = vsel %vm1404, %v10205, %v10207
      %v10216 = vsel %vm1404, %v10209, %v10211
      %v10217 = vsel %vm1404, %v10211, %v10213
      %v10222 = vunpack.c.l.b16 %v10030
      %v10223 = vunpack.c.h.b16 %v10030
      %v10224 = vunpack.c.l.b16 %v10031
      %v10225 = vunpack.c.h.b16 %v10031
      %v10226 = vunpack.c.l.b16 %v10032
      %v10227 = vunpack.c.h.b16 %v10032
      %v10228 = vunpack.c.l.b16 %v10033
      %v10229 = vunpack.c.h.b16 %v10033
      %v10230 = vpack.c.b16 %v10224, %v10222
      %v10231 = vpack.c.b16 %v10225, %v10223
      %v10232 = vpack.c.b16 %v10228, %v10226
      %v10233 = vpack.c.b16 %v10229, %v10227
      %10234 = vrot.lane.b32.xlu0 %v10230, 111
      %v10235 = vpop.permute.xlu0 %10234
      %10236 = vrot.lane.b32.xlu0 %v10231, 111
      %v10237 = vpop.permute.xlu0 %10236
      %10238 = vrot.lane.b32.xlu0 %v10232, 111
      %v10239 = vpop.permute.xlu0 %10238
      %10240 = vrot.lane.b32.xlu0 %v10233, 111
      %v10241 = vpop.permute.xlu0 %10240
      %v10242 = vsel %vm1469, %v10235, %v10237
      %v10243 = vsel %vm1469, %v10239, %v10241
      %v10252 = vunpack.c.l.b16 %v10042
      %v10253 = vunpack.c.h.b16 %v10042
      %v10254 = vunpack.c.l.b16 %v10043
      %v10255 = vunpack.c.l.b16 %v10044
      %v10256 = vunpack.c.h.b16 %v10044
      %v10257 = vunpack.c.l.b16 %v10045
      %v10258 = vunpack.c.l.b16 %v10046
      %v10259 = vunpack.c.h.b16 %v10046
      %v10260 = vunpack.c.l.b16 %v10047
      %v10261 = vunpack.c.l.b16 %v10048
      %v10262 = vunpack.c.h.b16 %v10048
      %v10263 = vunpack.c.l.b16 %v10049
      %v10264 = vpack.c.b16 %v10255, %v10252
      %v10265 = vpack.c.b16 %v10256, %v10253
      %v10266 = vpack.c.b16 %v10257, %v10254
      %v10267 = vpack.c.b16 %v10261, %v10258
      %v10268 = vpack.c.b16 %v10262, %v10259
      %v10269 = vpack.c.b16 %v10263, %v10260
      %10270 = vrot.lane.b32.xlu0 %v10264, 110
      %v10271 = vpop.permute.xlu0 %10270
      %10272 = vrot.lane.b32.xlu0 %v10265, 110
      %v10273 = vpop.permute.xlu0 %10272
      %10274 = vrot.lane.b32.xlu0 %v10266, 110
      %v10275 = vpop.permute.xlu0 %10274
      %10276 = vrot.lane.b32.xlu0 %v10267, 110
      %v10277 = vpop.permute.xlu0 %10276
      %10278 = vrot.lane.b32.xlu0 %v10268, 110
      %v10279 = vpop.permute.xlu0 %10278
      %10280 = vrot.lane.b32.xlu0 %v10269, 110
      %v10281 = vpop.permute.xlu0 %10280
      %v10282 = vsel %vm1638, %v10271, %v10273
      %v10283 = vsel %vm1638, %v10273, %v10275
      %v10284 = vsel %vm1638, %v10277, %v10279
      %v10285 = vsel %vm1638, %v10279, %v10281
      %v10294 = vunpack.c.l.b16 %v10050
      %v10295 = vunpack.c.h.b16 %v10050
      %v10296 = vunpack.c.l.b16 %v10051
      %v10297 = vunpack.c.l.b16 %v10052
      %v10298 = vunpack.c.h.b16 %v10052
      %v10299 = vunpack.c.l.b16 %v10053
      %v10300 = vunpack.c.l.b16 %v10054
      %v10301 = vunpack.c.h.b16 %v10054
      %v10302 = vunpack.c.l.b16 %v10055
      %v10303 = vunpack.c.l.b16 %v10056
      %v10304 = vunpack.c.h.b16 %v10056
      %v10305 = vunpack.c.l.b16 %v10057
      %v10306 = vpack.c.b16 %v10297, %v10294
      %v10307 = vpack.c.b16 %v10298, %v10295
      %v10308 = vpack.c.b16 %v10299, %v10296
      %v10309 = vpack.c.b16 %v10303, %v10300
      %v10310 = vpack.c.b16 %v10304, %v10301
      %v10311 = vpack.c.b16 %v10305, %v10302
      %10312 = vrot.lane.b32.xlu0 %v10306, 96
      %v10313 = vpop.permute.xlu0 %10312
      %10314 = vrot.lane.b32.xlu0 %v10307, 96
      %v10315 = vpop.permute.xlu0 %10314
      %10316 = vrot.lane.b32.xlu0 %v10308, 96
      %v10317 = vpop.permute.xlu0 %10316
      %10318 = vrot.lane.b32.xlu0 %v10309, 96
      %v10319 = vpop.permute.xlu0 %10318
      %10320 = vrot.lane.b32.xlu0 %v10310, 96
      %v10321 = vpop.permute.xlu0 %10320
      %10322 = vrot.lane.b32.xlu0 %v10311, 96
      %v10323 = vpop.permute.xlu0 %10322
      %v10324 = vsel %vm1807, %v10313, %v10315
      %v10325 = vsel %vm1807, %v10315, %v10317
      %v10326 = vsel %vm1807, %v10319, %v10321
      %v10327 = vsel %vm1807, %v10321, %v10323
      %v10336 = vunpack.c.l.b16 %v10034
      %v10337 = vunpack.c.h.b16 %v10034
      %v10338 = vunpack.c.l.b16 %v10035
      %v10339 = vunpack.c.l.b16 %v10036
      %v10340 = vunpack.c.h.b16 %v10036
      %v10341 = vunpack.c.l.b16 %v10037
      %v10342 = vunpack.c.l.b16 %v10038
      %v10343 = vunpack.c.h.b16 %v10038
      %v10344 = vunpack.c.l.b16 %v10039
      %v10345 = vunpack.c.l.b16 %v10040
      %v10346 = vunpack.c.h.b16 %v10040
      %v10347 = vunpack.c.l.b16 %v10041
      %v10348 = vpack.c.b16 %v10339, %v10336
      %v10349 = vpack.c.b16 %v10340, %v10337
      %v10350 = vpack.c.b16 %v10341, %v10338
      %v10351 = vpack.c.b16 %v10345, %v10342
      %v10352 = vpack.c.b16 %v10346, %v10343
      %v10353 = vpack.c.b16 %v10347, %v10344
      %10354 = vrot.lane.b32.xlu0 %v10348, 95
      %v10355 = vpop.permute.xlu0 %10354
      %10356 = vrot.lane.b32.xlu0 %v10349, 95
      %v10357 = vpop.permute.xlu0 %10356
      %10358 = vrot.lane.b32.xlu0 %v10350, 95
      %v10359 = vpop.permute.xlu0 %10358
      %10360 = vrot.lane.b32.xlu0 %v10351, 95
      %v10361 = vpop.permute.xlu0 %10360
      %10362 = vrot.lane.b32.xlu0 %v10352, 95
      %v10363 = vpop.permute.xlu0 %10362
      %10364 = vrot.lane.b32.xlu0 %v10353, 95
      %v10365 = vpop.permute.xlu0 %10364
      %v10366 = vsel %vm1872, %v10355, %v10357
      %v10367 = vsel %vm1872, %v10357, %v10359
      %v10368 = vsel %vm1872, %v10361, %v10363
      %v10369 = vsel %vm1872, %v10363, %v10365
      %v10378 = vunpack.c.l.b16 %v10058
      %v10379 = vunpack.c.h.b16 %v10058
      %v10380 = vunpack.c.l.b16 %v10059
      %v10381 = vunpack.c.l.b16 %v10060
      %v10382 = vunpack.c.h.b16 %v10060
      %v10383 = vunpack.c.l.b16 %v10061
      %v10384 = vunpack.c.l.b16 %v10062
      %v10385 = vunpack.c.h.b16 %v10062
      %v10386 = vunpack.c.l.b16 %v10063
      %v10387 = vunpack.c.l.b16 %v10064
      %v10388 = vunpack.c.h.b16 %v10064
      %v10389 = vunpack.c.l.b16 %v10065
      %v10390 = vpack.c.b16 %v10381, %v10378
      %v10391 = vpack.c.b16 %v10382, %v10379
      %v10392 = vpack.c.b16 %v10383, %v10380
      %v10393 = vpack.c.b16 %v10387, %v10384
      %v10394 = vpack.c.b16 %v10388, %v10385
      %v10395 = vpack.c.b16 %v10389, %v10386
      %10396 = vrot.lane.b32.xlu0 %v10390, 94
      %v10397 = vpop.permute.xlu0 %10396
      %10398 = vrot.lane.b32.xlu0 %v10391, 94
      %v10399 = vpop.permute.xlu0 %10398
      %10400 = vrot.lane.b32.xlu0 %v10392, 94
      %v10401 = vpop.permute.xlu0 %10400
      %10402 = vrot.lane.b32.xlu0 %v10393, 94
      %v10403 = vpop.permute.xlu0 %10402
      %10404 = vrot.lane.b32.xlu0 %v10394, 94
      %v10405 = vpop.permute.xlu0 %10404
      %10406 = vrot.lane.b32.xlu0 %v10395, 94
      %v10407 = vpop.permute.xlu0 %10406
      %v10408 = vsel %vm2041, %v10397, %v10399
      %v10409 = vsel %vm2041, %v10399, %v10401
      %v10410 = vsel %vm2041, %v10403, %v10405
      %v10411 = vsel %vm2041, %v10405, %v10407
      %v10412 = vld [vmem:[%s6] sm:$0xff]
      %v10413 = vld [vmem:[%s6 + $0x8] sm:$0xf]
      %v10414 = vld [vmem:[%s7] sm:$0xff]
      %10416 = vset.pattern.permute.xlu0 0
      %10417 = vperm.xlu0 %10416, %v10414
      %v10418 = vpop.permute.xlu0 %10417
      %v10422 = vunpack.c.l.b16 %v10412
      %v10423 = vunpack.c.h.b16 %v10412
      %v10424 = vunpack.c.l.b16 %v10413
      %v10425 = vpack.c.b16 %v10422, %v10422
      %v10426 = vpack.c.b16 %v10423, %v10423
      %v10427 = vpack.c.b16 %v10424, %v10424
      %10430 = vrot.lane.b32.xlu0 %v10086, 17
      %v10431 = vpop.permute.xlu0 %10430
      %10432 = vrot.lane.b32.xlu0 %v10087, 17
      %v10433 = vpop.permute.xlu0 %10432
      %10434 = vrot.lane.b32.xlu0 %v10088, 17
      %v10435 = vpop.permute.xlu0 %10434
      %10436 = vrot.lane.b32.xlu0 %v10089, 17
      %v10437 = vpop.permute.xlu0 %10436
      %10438 = vrot.lane.b32.xlu0 %v10090, 17
      %v10439 = vpop.permute.xlu0 %10438
      %10440 = vrot.lane.b32.xlu0 %v10091, 17
      %v10441 = vpop.permute.xlu0 %10440
      %10442 = vrot.lane.b32.xlu0 %v10130, 17
      %v10443 = vpop.permute.xlu0 %10442
      %10444 = vrot.lane.b32.xlu0 %v10131, 17
      %v10445 = vpop.permute.xlu0 %10444
      %10446 = vrot.lane.b32.xlu0 %v10123, 17
      %v10447 = vpop.permute.xlu0 %10446
      %10448 = vrot.lane.b32.xlu0 %v10132, 17
      %v10449 = vpop.permute.xlu0 %10448
      %10450 = vrot.lane.b32.xlu0 %v10133, 17
      %v10451 = vpop.permute.xlu0 %10450
      %10452 = vrot.lane.b32.xlu0 %v10129, 17
      %v10453 = vpop.permute.xlu0 %10452
      %10454 = vrot.lane.b32.xlu0 %v10172, 17
      %v10455 = vpop.permute.xlu0 %10454
      %10456 = vrot.lane.b32.xlu0 %v10173, 17
      %v10457 = vpop.permute.xlu0 %10456
      %10458 = vrot.lane.b32.xlu0 %v10165, 17
      %v10459 = vpop.permute.xlu0 %10458
      %10460 = vrot.lane.b32.xlu0 %v10174, 17
      %v10461 = vpop.permute.xlu0 %10460
      %10462 = vrot.lane.b32.xlu0 %v10175, 17
      %v10463 = vpop.permute.xlu0 %10462
      %10464 = vrot.lane.b32.xlu0 %v10171, 17
      %v10465 = vpop.permute.xlu0 %10464
      %10466 = vrot.lane.b32.xlu0 %v10214, 17
      %v10467 = vpop.permute.xlu0 %10466
      %10468 = vrot.lane.b32.xlu0 %v10215, 17
      %v10469 = vpop.permute.xlu0 %10468
      %10470 = vrot.lane.b32.xlu0 %v10207, 17
      %v10471 = vpop.permute.xlu0 %10470
      %10472 = vrot.lane.b32.xlu0 %v10216, 17
      %v10473 = vpop.permute.xlu0 %10472
      %10474 = vrot.lane.b32.xlu0 %v10217, 17
      %v10475 = vpop.permute.xlu0 %10474
      %10476 = vrot.lane.b32.xlu0 %v10213, 17
      %v10477 = vpop.permute.xlu0 %10476
      %10478 = vrot.lane.b32.xlu0 %v10235, 17
      %v10479 = vpop.permute.xlu0 %10478
      %10480 = vrot.lane.b32.xlu0 %v10242, 17
      %v10481 = vpop.permute.xlu0 %10480
      %10482 = vrot.lane.b32.xlu0 %v10237, 17
      %v10483 = vpop.permute.xlu0 %10482
      %10484 = vrot.lane.b32.xlu0 %v10239, 17
      %v10485 = vpop.permute.xlu0 %10484
      %10486 = vrot.lane.b32.xlu0 %v10243, 17
      %v10487 = vpop.permute.xlu0 %10486
      %10488 = vrot.lane.b32.xlu0 %v10241, 17
      %v10489 = vpop.permute.xlu0 %10488
      %10490 = vrot.lane.b32.xlu0 %v10271, 17
      %v10491 = vpop.permute.xlu0 %10490
      %10492 = vrot.lane.b32.xlu0 %v10282, 17
      %v10493 = vpop.permute.xlu0 %10492
      %10494 = vrot.lane.b32.xlu0 %v10283, 17
      %v10495 = vpop.permute.xlu0 %10494
      %10496 = vrot.lane.b32.xlu0 %v10277, 17
      %v10497 = vpop.permute.xlu0 %10496
      %10498 = vrot.lane.b32.xlu0 %v10284, 17
      %v10499 = vpop.permute.xlu0 %10498
      %10500 = vrot.lane.b32.xlu0 %v10285, 17
      %v10501 = vpop.permute.xlu0 %10500
      %10502 = vrot.lane.b32.xlu0 %v10313, 17
      %v10503 = vpop.permute.xlu0 %10502
      %10504 = vrot.lane.b32.xlu0 %v10324, 17
      %v10505 = vpop.permute.xlu0 %10504
      %10506 = vrot.lane.b32.xlu0 %v10325, 17
      %v10507 = vpop.permute.xlu0 %10506
      %10508 = vrot.lane.b32.xlu0 %v10319, 17
      %v10509 = vpop.permute.xlu0 %10508
      %10510 = vrot.lane.b32.xlu0 %v10326, 17
      %v10511 = vpop.permute.xlu0 %10510
      %10512 = vrot.lane.b32.xlu0 %v10327, 17
      %v10513 = vpop.permute.xlu0 %10512
      %10514 = vrot.lane.b32.xlu0 %v10355, 17
      %v10515 = vpop.permute.xlu0 %10514
      %10516 = vrot.lane.b32.xlu0 %v10366, 17
      %v10517 = vpop.permute.xlu0 %10516
      %10518 = vrot.lane.b32.xlu0 %v10367, 17
      %v10519 = vpop.permute.xlu0 %10518
      %10520 = vrot.lane.b32.xlu0 %v10361, 17
      %v10521 = vpop.permute.xlu0 %10520
      %10522 = vrot.lane.b32.xlu0 %v10368, 17
      %v10523 = vpop.permute.xlu0 %10522
      %10524 = vrot.lane.b32.xlu0 %v10369, 17
      %v10525 = vpop.permute.xlu0 %10524
      %10526 = vrot.lane.b32.xlu0 %v10397, 17
      %v10527 = vpop.permute.xlu0 %10526
      %10528 = vrot.lane.b32.xlu0 %v10408, 17
      %v10529 = vpop.permute.xlu0 %10528
      %10530 = vrot.lane.b32.xlu0 %v10409, 17
      %v10531 = vpop.permute.xlu0 %10530
      %10532 = vrot.lane.b32.xlu0 %v10403, 17
      %v10533 = vpop.permute.xlu0 %10532
      %10534 = vrot.lane.b32.xlu0 %v10410, 17
      %v10535 = vpop.permute.xlu0 %10534
      %10536 = vrot.lane.b32.xlu0 %v10411, 17
      %v10537 = vpop.permute.xlu0 %10536
      %v10538 = vsel %vm3691, %v10431, %v10433
      %v10539 = vsel %vm3691, %v10433, %v10435
      %v10540 = vsel %vm3691, %v10437, %v10439
      %v10541 = vsel %vm3691, %v10439, %v10441
      %v10542 = vsel %vm3691, %v10443, %v10445
      %v10543 = vsel %vm3691, %v10445, %v10447
      %v10544 = vsel %vm3691, %v10449, %v10451
      %v10545 = vsel %vm3691, %v10451, %v10453
      %v10546 = vsel %vm3691, %v10455, %v10457
      %v10547 = vsel %vm3691, %v10457, %v10459
      %v10548 = vsel %vm3691, %v10461, %v10463
      %v10549 = vsel %vm3691, %v10463, %v10465
      %v10550 = vsel %vm3691, %v10467, %v10469
      %v10551 = vsel %vm3691, %v10469, %v10471
      %v10552 = vsel %vm3691, %v10473, %v10475
      %v10553 = vsel %vm3691, %v10475, %v10477
      %v10554 = vsel %vm3691, %v10479, %v10481
      %v10555 = vsel %vm3691, %v10481, %v10483
      %v10556 = vsel %vm3691, %v10485, %v10487
      %v10557 = vsel %vm3691, %v10487, %v10489
      %v10558 = vsel %vm3691, %v10491, %v10493
      %v10559 = vsel %vm3691, %v10493, %v10495
      %v10560 = vsel %vm3691, %v10497, %v10499
      %v10561 = vsel %vm3691, %v10499, %v10501
      %v10562 = vsel %vm3691, %v10503, %v10505
      %v10563 = vsel %vm3691, %v10505, %v10507
      %v10564 = vsel %vm3691, %v10509, %v10511
      %v10565 = vsel %vm3691, %v10511, %v10513
      %v10566 = vsel %vm3691, %v10515, %v10517
      %v10567 = vsel %vm3691, %v10517, %v10519
      %v10568 = vsel %vm3691, %v10521, %v10523
      %v10569 = vsel %vm3691, %v10523, %v10525
      %v10570 = vsel %vm3691, %v10527, %v10529
      %v10571 = vsel %vm3691, %v10529, %v10531
      %v10572 = vsel %vm3691, %v10533, %v10535
      %v10573 = vsel %vm3691, %v10535, %v10537
      %v10611 = vsel %vm4303, %v10427, 0
      %10613 = vmatpush.bf16.msra.mxu0 %v10552
      %10614 = vmatpush.bf16.msra.mxu0 %v10550
      %10615 = vmatpush.bf16.msra.mxu0 %v10548
      %10616 = vmatpush.bf16.msra.mxu0 %v10546
      %10617 = vmatpush.bf16.msra.mxu0 %v10544
      %10618 = vmatpush.bf16.msra.mxu0 %v10542
      %10619 = vmatpush.bf16.msra.mxu0 %v10540
      %10620 = vmatpush.bf16.msra.mxu0 %v10538
      %10621 = vmatmul.bf16.gmra.mxu0 %v10425
      %v10622 = vpop.f32.mrf.mxu0
      %v10623 = vadd.f32 %v10418, %v10622
      %v10624 = vpop.f32.mrf.mxu0
      %10625 = vdwg.mxu0
      %10626 = vmatpush.bf16.msra.mxu0 %v10568
      %10627 = vmatpush.bf16.msra.mxu0 %v10566
      %10628 = vmatpush.bf16.msra.mxu0 %v10564
      %10629 = vmatpush.bf16.msra.mxu0 %v10562
      %10630 = vmatpush.bf16.msra.mxu0 %v10560
      %10631 = vmatpush.bf16.msra.mxu0 %v10558
      %10632 = vmatpush.bf16.msra.mxu0 %v10556
      %10633 = vmatpush.bf16.msra.mxu0 %v10554
      %10634 = vmatmul.bf16.gmra.mxu0 %v10426
      %v10635 = vpop.f32.mrf.mxu0
      %v10636 = vadd.f32 %v10623, %v10635
      %v10637 = vpop.f32.mrf.mxu0
      %10638 = vdwg.mxu0
      %10639 = vmatpush.bf16.msra.mxu0 0
      %10640 = vmatpush.bf16.msra.mxu0 0
      %10641 = vmatpush.bf16.msra.mxu0 0
      %10642 = vmatpush.bf16.msra.mxu0 0
      %10643 = vmatpush.bf16.msra.mxu0 0
      %10644 = vmatpush.bf16.msra.mxu0 0
      %10645 = vmatpush.bf16.msra.mxu0 %v10572
      %10646 = vmatpush.bf16.msra.mxu0 %v10570
      %10647 = vmatmul.bf16.gmra.mxu0 %v10611
      %v10648 = vpop.f32.mrf.mxu0
      %v10649 = vadd.f32 %v10636, %v10648
      %v10650 = vpop.f32.mrf.mxu0
      %10651 = vdwg.mxu0
      %10652 = vmatpush.bf16.msra.mxu0 %v10553
      %10653 = vmatpush.bf16.msra.mxu0 %v10551
      %10654 = vmatpush.bf16.msra.mxu0 %v10549
      %10655 = vmatpush.bf16.msra.mxu0 %v10547
      %10656 = vmatpush.bf16.msra.mxu0 %v10545
      %10657 = vmatpush.bf16.msra.mxu0 %v10543
      %10658 = vmatpush.bf16.msra.mxu0 %v10541
      %10659 = vmatpush.bf16.msra.mxu0 %v10539
      %10660 = vmatmul.bf16.gmra.mxu0 %v10425
      %v10661 = vpop.f32.mrf.mxu0
      %v10662 = vadd.f32 %v10418, %v10661
      %v10663 = vpop.f32.mrf.mxu0
      %10664 = vdwg.mxu0
      %10665 = vmatpush.bf16.msra.mxu0 %v10569
      %10666 = vmatpush.bf16.msra.mxu0 %v10567
      %10667 = vmatpush.bf16.msra.mxu0 %v10565
      %10668 = vmatpush.bf16.msra.mxu0 %v10563
      %10669 = vmatpush.bf16.msra.mxu0 %v10561
      %10670 = vmatpush.bf16.msra.mxu0 %v10559
      %10671 = vmatpush.bf16.msra.mxu0 %v10557
      %10672 = vmatpush.bf16.msra.mxu0 %v10555
      %10673 = vmatmul.bf16.gmra.mxu0 %v10426
      %v10674 = vpop.f32.mrf.mxu0
      %v10675 = vadd.f32 %v10662, %v10674
      %v10676 = vpop.f32.mrf.mxu0
      %10677 = vdwg.mxu0
      %10678 = vmatpush.bf16.msra.mxu0 0
      %10679 = vmatpush.bf16.msra.mxu0 0
      %10680 = vmatpush.bf16.msra.mxu0 0
      %10681 = vmatpush.bf16.msra.mxu0 0
      %10682 = vmatpush.bf16.msra.mxu0 0
      %10683 = vmatpush.bf16.msra.mxu0 0
      %10684 = vmatpush.bf16.msra.mxu0 %v10573
      %10685 = vmatpush.bf16.msra.mxu0 %v10571
      %10686 = vmatmul.bf16.gmra.mxu0 %v10611
      %v10687 = vpop.f32.mrf.mxu0
      %v10688 = vadd.f32 %v10675, %v10687
      %v10689 = vpop.f32.mrf.mxu0
      %10690 = vdwg.mxu0
      %v10691 = vld [vmem:[%s320] sm:$0xff]
      %v10692 = vld [vmem:[%s320 + $0x8] sm:$0xff]
      %v10693 = vld [vmem:[%s320 + $0x10] sm:$0xff]
      %10697 = vrot.lane.b32.xlu0 %v10691, 104
      %v10698 = vpop.permute.xlu0 %10697
      %10699 = vrot.lane.b32.xlu0 %v10692, 104
      %v10700 = vpop.permute.xlu0 %10699
      %10701 = vrot.lane.b32.xlu0 %v10693, 104
      %v10702 = vpop.permute.xlu0 %10701
      %vm10703 = vcmask 850944
      %v10704 = vsel %vm10703, %v10698, %v10700
      %v10705 = vsel %vm10703, %v10700, %v10702
      %v10708 = vadd.f32 %v10649, %v10704
      %v10709 = vadd.f32 %v10688, %v10705
      %v10712 = vrot.slane %v10709, 4
      %v10713 = vsel %vm2132, %v10708, %v10712
      %10715 = vst [vmem:[%s325] sm:$0x77] %v10713
      %p10716 = scmp.lt.s32.totalorder %s19, 1
      %s10717 = scalar_select %p10716, %s19, 1
      %s10718 = smul.addr %s10717, 2
      %s10719 = smul.addr %s10718, 4
      %s10720 = scalar_lea.vmem %s8, %s10719
      // Predicated region
      $region53: #{view_ref_net_pallas.1} parent=51 // pred_check
        %p10721 = pneg %p215
      $region54: #{view_ref_net_pallas.1} parent=51 // pred_check_branch
        %10723 = sbr.rel (%p10721) target = $region56
      $region55: #{view_ref_net_pallas.1} parent=51 // pred_region
        _
      $region56: #{view_ref_net_pallas.1} parent=51 // pred_fallthru
        _
    $region52: #{view_ref_net_pallas.1} parent=5 // pred_fallthru
      _
    %p10724 = scmp.le.s32.totalorder 2, %s14
    // Predicated region
    $region57: #{view_ref_net_pallas.1} parent=5 // pred_check
      %p10725 = pneg %p10724
    $region58: #{view_ref_net_pallas.1} parent=5 // pred_check_branch
      %10727 = sbr.rel (%p10725) target = $region60
    $region59: #{view_ref_net_pallas.1} parent=5 // pred_region
      %s10728 = ssub.s32 %s14, 2
      // Predicated region
      $region61: #{view_ref_net_pallas.1} parent=59 // pred_check
        %p10729 = pneg %p221
      $region62: #{view_ref_net_pallas.1} parent=59 // pred_check_branch
        %10731 = sbr.rel (%p10729) target = $region64
      $region63: #{view_ref_net_pallas.1} parent=59 // pred_region
        %p10732 = scmp.lt.s32.totalorder %s20, 1
        %s10733 = scalar_select %p10732, %s20, 1
        %s10734 = smul.addr %s10733, 2
        %s10735 = smul.addr %s10734, 4
        %s10736 = scalar_lea.vmem %s8, %s10735
      $region64: #{view_ref_net_pallas.1} parent=59 // pred_fallthru
        _
    $region60: #{view_ref_net_pallas.1} parent=5 // pred_fallthru
      _
  $region6: #{view_ref_net_pallas.1} parent=0 // loop_footer
    %s18 = sadd.s32 1, %s14
  $region7: #{view_ref_net_pallas.1} parent=0 // loop_footer_branch
    %13 = sbr.rel target = $region3
  $region8: #{view_ref_net_pallas.1} parent=0 // loop_exit
    _

</llo_original>
